<compile_context>
chip_gen: v7x
topology: tpu7x:2x2x1
jax: 0.10.0
libtpu: 0.0.40
codegen_flags: <defaults>
</compile_context>

<pallas_src>
import math

import jax
import jax.numpy as jnp
from jax import lax
from jax.experimental import pallas as pl
from jax.experimental.pallas import tpu as pltpu

# ----------------------------- configuration -------------------------------
B = 2            # batch
IN_CH = 3        # RGB input
HIN = WIN = 32   # input spatial size
C = 32           # all_channel (256 in the reference)
LC = 32          # low-level feature channels (256 in the reference)
PC = 8           # project() output channels (48 in the reference)
HID = 16         # SE hidden dim (fc1/fc3 out_features)
NUM_CLASSES = 1
T = 0.07
BN_SCALE = 1.0 / math.sqrt(1.0 + 1e-5)   # eval BN with default running stats


def _round_up(x, m):
    return (x + m - 1) // m * m


def _sigmoid(x):
    return 1.0 / (1.0 + jnp.exp(-x))


# ------------------------ fused co-attention kernel -------------------------
# Axis mapping vs torch (exemplar/query spatial-major (D, C) here, E / Q):
#   A[i, j]        = <corr[i], Q[j]>              == bmm(exemplar_corr, query_flat)
#   A1             = softmax(A, dim=1) in torch   == softmax over axis 0 here
#   B              = softmax(A^T, dim=1) in torch == row softmax of A here
#   query_att_sm   = A1^T @ E,   exemplar_att_sm = row_softmax(A) @ Q


def _coattn_kernel(ex_ref, q_ref, we_ref, gw_ref, fc1_ref, fc2_ref,
                   fc3_ref, fc4_ref, cat1_ref, cat2_ref):
    ex = ex_ref[0]                       # (D, C) exemplar, spatial-major, f32
    q = q_ref[0]                         # (D, C) query,    spatial-major, f32
    c = ex.shape[-1]
    exb = ex.astype(jnp.bfloat16)        # bf16 copies feed the MXU
    qb = q.astype(jnp.bfloat16)

    # exemplar_corr = exemplar_t @ W_e^T  (W_e stored pre-transposed as (in, out))
    corr = jnp.dot(exb, we_ref[...], preferred_element_type=jnp.float32)
    a = lax.dot_general(corr.astype(jnp.bfloat16), qb, (((1,), (1,)), ((), ())),
                        preferred_element_type=jnp.float32)          # (D, D)

    # A1 = softmax(A, dim=1)  -> over exemplar positions (axis 0 here)
    a1 = jnp.exp(a - jnp.max(a, axis=0, keepdims=True))
    a1 = a1 * pl.reciprocal(jnp.sum(a1, axis=0, keepdims=True), approx=True)
    # B = softmax(A^T, dim=1) -> row softmax of A
    s = jnp.exp(a - jnp.max(a, axis=1, keepdims=True))
    s = s * pl.reciprocal(jnp.sum(s, axis=1, keepdims=True), approx=True)

    # attention-weighted features (bf16 probabilities x bf16 values, f32 acc)
    ex_att = jnp.dot(s.astype(jnp.bfloat16), qb,
                     preferred_element_type=jnp.float32)              # input1_att
    q_att = lax.dot_general(a1.astype(jnp.bfloat16), exb,
                            (((0,), (0,)), ((), ())),
                            preferred_element_type=jnp.float32)       # input2_att

    # gate1 / gate2 fused into one (2C, 2) matmul; the channel concat of
    # [input1_att, input2_att] is expressed as a split matmul.
    gates = _sigmoid(
        jnp.dot(ex_att, gw_ref[0:c, :], preferred_element_type=jnp.float32)
        + jnp.dot(q_att, gw_ref[c:2 * c, :], preferred_element_type=jnp.float32))
    mask1 = gates[:, 0:1]                # (D, 1)
    mask2 = gates[:, 1:2]

    # SE branch: global average pool of the channel concat + fc1..fc4 + sigmoid
    p_e = jnp.mean(ex_att, axis=0, keepdims=True)   # (1, C)
    p_q = jnp.mean(q_att, axis=0, keepdims=True)    # (1, C)
    h1 = jnp.maximum(
        jnp.dot(p_e, fc1_ref[0:c, :], preferred_element_type=jnp.float32)
        + jnp.dot(p_q, fc1_ref[c:2 * c, :], preferred_element_type=jnp.float32),
        0.0)
    se_e = _sigmoid(jnp.dot(h1, fc2_ref[...], preferred_element_type=jnp.float32))
    h3 = jnp.maximum(
        jnp.dot(p_e, fc3_ref[0:c, :], preferred_element_type=jnp.float32)
        + jnp.dot(p_q, fc3_ref[c:2 * c, :], preferred_element_type=jnp.float32),
        0.0)
    se_q = _sigmoid(jnp.dot(h3, fc4_ref[...], preferred_element_type=jnp.float32))

    in1 = ex_att * mask1 * se_q          # out_q * (input1_att * input1_mask)
    in2 = q_att * mask2 * se_e           # out_e * (input2_att * input2_mask)

    # torch cat([gated_att, raw_feature], channel): build the concat in
    # registers and do ONE lane-dense full-tile store per output (bf16 — the
    # consumer conv casts to bf16 anyway, so numerics are unchanged).
    cat1_ref[0] = jnp.concatenate([in1, ex], axis=-1).astype(cat1_ref.dtype)
    cat2_ref[0] = jnp.concatenate([in2, q], axis=-1).astype(cat2_ref.dtype)


def coattn_call(ex_f, q_f, params):
    # ex_f, q_f: (B, D, C) spatial-major flattened high-level features.
    # NOTE: at reference scale (D = 26*26 or larger) the (D, D) attention matrix
    # should be tiled along D with an online softmax to fit v7x's 64 MiB VMEM;
    # at this toy scale the whole problem is a few KB so one block per batch.
    b, d, c = ex_f.shape

    def wspec(shape):
        return pl.BlockSpec(shape, lambda i: (0,) * len(shape))

    return pl.pallas_call(
        _coattn_kernel,
        out_shape=(jax.ShapeDtypeStruct((b, d, 2 * c), jnp.bfloat16),
                   jax.ShapeDtypeStruct((b, d, 2 * c), jnp.bfloat16)),
        grid=(b,),
        in_specs=[pl.BlockSpec((1, d, c), lambda i: (i, 0, 0)),
                  pl.BlockSpec((1, d, c), lambda i: (i, 0, 0)),
                  wspec((c, c)),
                  wspec((2 * c, 2)),
                  wspec((2 * c, HID)), wspec((HID, c)),
                  wspec((2 * c, HID)), wspec((HID, c))],
        out_specs=(pl.BlockSpec((1, d, 2 * c), lambda i: (i, 0, 0)),
                   pl.BlockSpec((1, d, 2 * c), lambda i: (i, 0, 0))),
        compiler_params=pltpu.CompilerParams(
            dimension_semantics=("parallel",)),
    )(ex_f, q_f, params["linear_e_w"], params["gate_w"],
      params["fc1_w"], params["fc2_w"], params["fc3_w"], params["fc4_w"])


# ------------------------------ plain matmul --------------------------------


def _make_matmul_kernel(relu, cast_dtype):
    def kernel(x_ref, w_ref, o_ref):
        y = jnp.dot(x_ref[...].astype(cast_dtype), w_ref[...],
                    preferred_element_type=jnp.float32)
        if relu:
            y = jnp.maximum(y, 0.0)
        o_ref[...] = y
    return kernel


def matmul2d(x, w, relu=False):
    """(M, K) x (K, N) matmul (+ optional ReLU).

    Batch / stream dims must be pre-folded into M (keeps the MXU M dimension
    large and gives a parallel grid axis for v7x's two TensorCores).
    """
    m, k = x.shape
    n = w.shape[-1]
    tm = 128 if m % 128 == 0 else m
    return pl.pallas_call(
        _make_matmul_kernel(relu, w.dtype),
        out_shape=jax.ShapeDtypeStruct((m, n), jnp.float32),
        grid=(m // tm,),
        in_specs=[pl.BlockSpec((tm, k), lambda i: (i, 0)),
                  pl.BlockSpec((k, n), lambda i: (0, 0))],
        out_specs=pl.BlockSpec((tm, n), lambda i: (i, 0)),
        compiler_params=pltpu.CompilerParams(
            dimension_semantics=("parallel",)),
    )(x, w)


# ------------------- 3x3 conv (+BN+ReLU [+fused 1x1]) kernel ----------------


def _make_conv3x3_kernel(wp, r, cast_dtype, fuse_1x1):
    def kernel(x_ref, w_ref, *rest):
        if fuse_1x1:
            w1_ref, o_ref = rest
        else:
            (o_ref,) = rest
        acc = None
        for kh in range(3):
            for kw in range(3):
                off = kh * wp + kw                       # static shift
                lhs = x_ref[0, 0, off:off + r, :].astype(cast_dtype)
                part = jnp.dot(lhs, w_ref[0, kh * 3 + kw],
                               preferred_element_type=jnp.float32)
                acc = part if acc is None else acc + part
        h = jnp.maximum(acc, 0.0)                        # folded BN + ReLU
        if fuse_1x1:
            o_ref[0, 0] = jnp.dot(h, w1_ref[...],
                                  preferred_element_type=jnp.float32)
        else:
            o_ref[0, 0] = h
    return kernel


def conv3x3_bn_relu(x, w, w1=None):
    """3x3 conv (padding=1, stride=1) + folded BN + ReLU, optionally fused
    with a trailing 1x1 conv (the final classifier head).

    x : (G, Bt, H, W, Cin)   G = weight groups, Bt = batch * streams
    w : (G, 9, Cin, Cout)    tap k = kh*3 + kw  (bf16, BN folded)
    w1: optional (Cout, Nout) 1x1 weight fused into the epilogue.

    Each (g, b) grid step reads the zero-padded input once and accumulates 9
    shifted (H*Wp, Cin) x (Cin, Cout) matmuls in registers; the Wp-strided
    garbage columns are dropped by the wrapper slice.
    """
    g, bt, h, wdt, cin = x.shape
    cout = w.shape[-1]
    nout = cout if w1 is None else w1.shape[-1]
    hp, wp = h + 2, wdt + 2
    r = h * wp                                   # rows of padded-layout output
    nf = _round_up(hp * wp + 2, 8)               # flat rows incl. tap slack

    xp = jnp.pad(x, ((0, 0), (0, 0), (1, 1), (1, 1), (0, 0)))
    xf = xp.reshape(g, bt, hp * wp, cin)
    xf = jnp.pad(xf, ((0, 0), (0, 0), (0, nf - hp * wp), (0, 0)))

    in_specs = [pl.BlockSpec((1, 1, nf, cin), lambda gi, bi: (gi, bi, 0, 0)),
                pl.BlockSpec((1, 9, cin, cout), lambda gi, bi: (gi, 0, 0, 0))]
    args = [xf, w]
    if w1 is not None:
        in_specs.append(pl.BlockSpec((cout, nout), lambda gi, bi: (0, 0)))
        args.append(w1)

    out = pl.pallas_call(
        _make_conv3x3_kernel(wp, r, w.dtype, w1 is not None),
        out_shape=jax.ShapeDtypeStruct((g, bt, r, nout), jnp.float32),
        grid=(g, bt),
        in_specs=in_specs,
        out_specs=pl.BlockSpec((1, 1, r, nout), lambda gi, bi: (gi, bi, 0, 0)),
        compiler_params=pltpu.CompilerParams(
            dimension_semantics=("parallel", "parallel")),
    )(*args)
    return out.reshape(g, bt, h, wp, nout)[:, :, :, :wdt, :]


# ----------------- fused global pools + contrastive logits ------------------


def _logits_kernel(h_ref, o_ref):
    def pooled_unit(x):                              # x: (D, C)
        v = jnp.mean(x, axis=0, keepdims=True)       # adaptive_avg_pool2d
        n = jnp.sqrt(jnp.sum(v * v, axis=1, keepdims=True))
        return v / jnp.maximum(n, 1e-12)             # F.normalize semantics
    v1 = pooled_unit(h_ref[0, 0])
    v2 = pooled_unit(h_ref[1, 0])
    v3 = pooled_unit(h_ref[2, 0])
    inv_t = 1.0 / T
    o_ref[0, :, 0:1] = jnp.sum(v1 * v2, axis=1, keepdims=True) * inv_t
    o_ref[0, :, 1:2] = jnp.sum(v1 * v3, axis=1, keepdims=True) * inv_t


def contrastive_logits(high):
    # high: (3, B, D, C) stacked (exemplar, query, other) high-level features.
    _, b, d, c = high.shape
    out = pl.pallas_call(
        _logits_kernel,
        out_shape=jax.ShapeDtypeStruct((b, 1, 2), jnp.float32),
        grid=(b,),
        in_specs=[pl.BlockSpec((3, 1, d, c), lambda i: (0, i, 0, 0))],
        out_specs=pl.BlockSpec((1, 1, 2), lambda i: (i, 0, 0)),
        compiler_params=pltpu.CompilerParams(
            dimension_semantics=("parallel",)),
    )(high)
    return out[:, 0, :]


# ----------------------------- model pieces --------------------------------


def encoder(params, x):
    # TODO(synk): the DeepLabV3 backbone definition is not provided; this is a
    # deterministic stand-in (avg-pool downsample + 1x1 conv + ReLU) matching
    # the channel / stride contract (low-level @ stride 4, high-level @ stride 8).
    bt, h, w, cin = x.shape
    hl, wl = h // 4, w // 4
    low_in = x.reshape(bt, hl, 4, wl, 4, cin).mean(axis=(2, 4))
    low = matmul2d(low_in.reshape(bt * hl * wl, cin), params["enc_low_w"],
                   relu=True).reshape(bt, hl, wl, LC)
    hh, wh = hl // 2, wl // 2
    hi_in = low.reshape(bt, hh, 2, wh, 2, LC).mean(axis=(2, 4))
    high = matmul2d(hi_in.reshape(bt * hh * wh, LC), params["enc_high_w"],
                    relu=True).reshape(bt, hh, wh, C)
    return low, high


def tvsd_forward(params, input1, input2, input3):
    b, hin, win, _ = input1.shape

    # one encoder pass over the stacked (exemplar, query, other) streams
    x_all = jnp.concatenate([input1, input2, input3], axis=0)      # (3B, H, W, 3)
    low, high = encoder(params, x_all)       # (3B, HL, WL, LC), (3B, HH, WH, C)
    hl, wl = low.shape[1], low.shape[2]
    hh, wh = high.shape[1], high.shape[2]
    d = hh * wh

    exm = high[:b].reshape(b, d, C)
    qry = high[b:2 * b].reshape(b, d, C)

    # fused co-attention (linear_e .. gating .. channel concat) per batch item
    cat1, cat2 = coattn_call(exm, qry, params)               # (B, D, 2C) bf16

    # conv1 + conv2 (+BN+ReLU) as one weight-stacked call
    cats = jnp.stack([cat1.reshape(b, hh, wh, 2 * C),
                      cat2.reshape(b, hh, wh, 2 * C)], axis=0)     # (2, B, HH, WH, 2C)
    x12 = conv3x3_bn_relu(cats, params["conv12_w"])                # (2, B, HH, WH, C)

    # upsample x1, x2 and the raw "other" high-level feature to low-level size
    ups_in = jnp.concatenate([x12[0], x12[1], high[2 * b:]], axis=0)
    ups = jax.image.resize(ups_in, (3 * b, hl, wl, C), method="bilinear")

    # project(low) as one stacked (3B*HL*WL, LC) matmul
    proj = matmul2d(low.reshape(3 * b * hl * wl, LC), params["project_w"],
                    relu=True).reshape(3 * b, hl, wl, PC)

    fuse = jnp.concatenate([ups, proj], axis=-1)                   # (3B, HL, WL, C+PC)

    # final_pre: 3x3 conv + BN + ReLU fused with the 1x1 classifier epilogue
    pre = conv3x3_bn_relu(fuse[None], params["final_conv3_w"],
                          w1=params["final_conv1_w"])[0]           # (3B, HL, WL, 1)

    pre = jax.image.resize(pre, (3 * b, hin, win, NUM_CLASSES), method="bilinear")
    pre_e, pre_q, pre_o = pre[:b], pre[b:2 * b], pre[2 * b:]

    # fused global-average-pool + L2-normalize + contrastive logits
    logits = contrastive_logits(high.reshape(3, b, d, C))
    return pre_e, pre_q, pre_o, logits


# ----------------------------- parameter init ------------------------------


def _kaiming(key, shape, fan_in, scale=1.0, dtype=jnp.float32):
    w = jax.random.normal(key, shape, jnp.float32) * math.sqrt(2.0 / fan_in)
    return (w * scale).astype(dtype)


def init_params(key):
    ks = jax.random.split(key, 16)
    bf16 = jnp.bfloat16
    return {
        # stand-in encoder
        "enc_low_w": _kaiming(ks[0], (IN_CH, LC), IN_CH, dtype=bf16),
        "enc_high_w": _kaiming(ks[1], (LC, C), LC, dtype=bf16),
        # CoattentionModel (all biases are zeroed by initialize_weights)
        "linear_e_w": _kaiming(ks[2], (C, C), C, dtype=bf16),  # stored (in, out)
        "gate_w": jnp.concatenate(                            # gate1 | gate2
            [_kaiming(ks[3], (2 * C, 1), 2 * C),
             _kaiming(ks[4], (2 * C, 1), 2 * C)], axis=1),
        "conv12_w": jnp.stack(                                # conv1 | conv2, BN folded
            [_kaiming(ks[5], (9, 2 * C, C), 2 * C * 9, BN_SCALE, bf16),
             _kaiming(ks[6], (9, 2 * C, C), 2 * C * 9, BN_SCALE, bf16)], axis=0),
        "fc1_w": _kaiming(ks[7], (2 * C, HID), 2 * C),
        "fc2_w": _kaiming(ks[8], (HID, C), HID),
        "fc3_w": _kaiming(ks[9], (2 * C, HID), 2 * C),
        "fc4_w": _kaiming(ks[10], (HID, C), HID),
        # project / final_pre (BN folded into the conv weights at init)
        "project_w": _kaiming(ks[11], (LC, PC), LC, BN_SCALE, bf16),
        "final_conv3_w": _kaiming(ks[12], (1, 9, C + PC, C), (C + PC) * 9,
                                  BN_SCALE, bf16),
        "final_conv1_w": _kaiming(ks[13], (C, NUM_CLASSES), C),
    }


# --------------------------------- main -------------------------------------

if __name__ == "__main__":
    key = jax.random.PRNGKey(0)
    kp, k1, k2, k3 = jax.random.split(key, 4)
    params = init_params(kp)
    input1 = jax.random.normal(k1, (B, HIN, WIN, IN_CH), jnp.float32)
    input2 = jax.random.normal(k2, (B, HIN, WIN, IN_CH), jnp.float32)
    input3 = jax.random.normal(k3, (B, HIN, WIN, IN_CH), jnp.float32)

    fwd = jax.jit(tvsd_forward)
    outs = fwd(params, input1, input2, input3)
    jax.block_until_ready(outs)

    pre_e, pre_q, pre_o, logits = outs
    assert pre_e.shape == (B, HIN, WIN, NUM_CLASSES)
    assert pre_q.shape == (B, HIN, WIN, NUM_CLASSES)
    assert pre_o.shape == (B, HIN, WIN, NUM_CLASSES)
    assert logits.shape == (B, 2)
    assert bool(jnp.all(jnp.isfinite(pre_e)))
    assert bool(jnp.all(jnp.isfinite(pre_q)))
    assert bool(jnp.all(jnp.isfinite(pre_o)))
    assert bool(jnp.all(jnp.isfinite(logits)))
    print("KERNEL_OK")
</pallas_src>

<mosaic_0001>
module attributes {stable_mosaic.version = 11 : i64} {
  func.func @kernel(%arg0: i32, %arg1: memref<128x3xf32, #tpu.memory_space<vmem>>, %arg2: memref<3x32xbf16, #tpu.memory_space<vmem>>, %arg3: memref<128x32xf32, #tpu.memory_space<vmem>>) attributes {dimension_semantics = [#tpu.dimension_semantics<parallel>], iteration_bounds = array<i64: 3>, scalar_prefetch = 0 : i64, scratch_operands = 0 : i64, tpu.core_type = #tpu.core_type<tc>, window_params = [{transform_indices = @transform_0, window_bounds = array<i64: 128, 3>}, {pipeline_mode = #tpu.pipeline_mode<synchronous>, transform_indices = @transform_1, window_bounds = array<i64: 3, 32>}, {transform_indices = @transform_2, window_bounds = array<i64: 128, 32>}]} {
    %c0 = arith.constant 0 : index
    %c0_0 = arith.constant 0 : index
    %0 = vector.load %arg1[%c0, %c0_0] : memref<128x3xf32, #tpu.memory_space<vmem>>, vector<128x3xf32>
    %1 = arith.truncf %0 : vector<128x3xf32> to vector<128x3xbf16>
    %c0_1 = arith.constant 0 : index
    %c0_2 = arith.constant 0 : index
    %2 = vector.load %arg2[%c0_1, %c0_2] : memref<3x32xbf16, #tpu.memory_space<vmem>>, vector<3x32xbf16>
    %cst = arith.constant dense<0.000000e+00> : vector<128x32xf32>
    %3 = tpu.matmul %1, %2, %cst {dimension_numbers = #tpu.dot_dimension_numbers<[1], [0], [0], [1], [0, 0, 1, 1], [], []>} : vector<128x3xbf16>, vector<3x32xbf16>, vector<128x32xf32> -> vector<128x32xf32>
    %cst_3 = arith.constant 0.000000e+00 : f32
    %4 = vector.broadcast %cst_3 : f32 to vector<128x32xf32>
    %5 = arith.maximumf %3, %4 : vector<128x32xf32>
    %c0_4 = arith.constant 0 : index
    %c0_5 = arith.constant 0 : index
    %6 = vector.load %arg3[%c0_4, %c0_5] : memref<128x32xf32, #tpu.memory_space<vmem>>, vector<128x32xf32>
    tpu.vector_store %arg3[%c0_4, %c0_5], %5 {strides = array<i32>} : memref<128x32xf32, #tpu.memory_space<vmem>>, vector<128x32xf32>,
    return
  }
  func.func @transform_0(%arg0: i32) -> (i32, i32) {
    %c0_i32 = arith.constant 0 : i32
    %c0_i32_0 = arith.constant 0 : i32
    return %arg0, %c0_i32 : i32, i32
  }
  func.func @transform_1(%arg0: i32) -> (i32, i32) {
    %c0_i32 = arith.constant 0 : i32
    %c0_i32_0 = arith.constant 0 : i32
    %c0_i32_1 = arith.constant 0 : i32
    return %c0_i32, %c0_i32_0 : i32, i32
  }
  func.func @transform_2(%arg0: i32) -> (i32, i32) {
    %c0_i32 = arith.constant 0 : i32
    %c0_i32_0 = arith.constant 0 : i32
    return %arg0, %c0_i32 : i32, i32
  }
}

module attributes {stable_mosaic.version = 11 : i64} {
  func.func @kernel(%arg0: i32, %arg1: memref<96x32xf32, #tpu.memory_space<vmem>>, %arg2: memref<32x32xbf16, #tpu.memory_space<vmem>>, %arg3: memref<96x32xf32, #tpu.memory_space<vmem>>) attributes {dimension_semantics = [#tpu.dimension_semantics<parallel>], iteration_bounds = array<i64: 1>, scalar_prefetch = 0 : i64, scratch_operands = 0 : i64, tpu.core_type = #tpu.core_type<tc>, window_params = [{transform_indices = @transform_0, window_bounds = array<i64: 96, 32>}, {pipeline_mode = #tpu.pipeline_mode<synchronous>, transform_indices = @transform_1, window_bounds = array<i64: 32, 32>}, {transform_indices = @transform_2, window_bounds = array<i64: 96, 32>}]} {
    %c0 = arith.constant 0 : index
    %c0_0 = arith.constant 0 : index
    %0 = vector.load %arg1[%c0, %c0_0] : memref<96x32xf32, #tpu.memory_space<vmem>>, vector<96x32xf32>
    %1 = arith.truncf %0 : vector<96x32xf32> to vector<96x32xbf16>
    %c0_1 = arith.constant 0 : index
    %c0_2 = arith.constant 0 : index
    %2 = vector.load %arg2[%c0_1, %c0_2] : memref<32x32xbf16, #tpu.memory_space<vmem>>, vector<32x32xbf16>
    %cst = arith.constant dense<0.000000e+00> : vector<96x32xf32>
    %3 = tpu.matmul %1, %2, %cst {dimension_numbers = #tpu.dot_dimension_numbers<[1], [0], [0], [1], [0, 0, 1, 1], [], []>} : vector<96x32xbf16>, vector<32x32xbf16>, vector<96x32xf32> -> vector<96x32xf32>
    %cst_3 = arith.constant 0.000000e+00 : f32
    %4 = vector.broadcast %cst_3 : f32 to vector<96x32xf32>
    %5 = arith.maximumf %3, %4 : vector<96x32xf32>
    %c0_4 = arith.constant 0 : index
    %c0_5 = arith.constant 0 : index
    %6 = vector.load %arg3[%c0_4, %c0_5] : memref<96x32xf32, #tpu.memory_space<vmem>>, vector<96x32xf32>
    tpu.vector_store %arg3[%c0_4, %c0_5], %5 {strides = array<i32>} : memref<96x32xf32, #tpu.memory_space<vmem>>, vector<96x32xf32>,
    return
  }
  func.func @transform_0(%arg0: i32) -> (i32, i32) {
    %c0_i32 = arith.constant 0 : i32
    %c0_i32_0 = arith.constant 0 : i32
    return %arg0, %c0_i32 : i32, i32
  }
  func.func @transform_1(%arg0: i32) -> (i32, i32) {
    %c0_i32 = arith.constant 0 : i32
    %c0_i32_0 = arith.constant 0 : i32
    %c0_i32_1 = arith.constant 0 : i32
    return %c0_i32, %c0_i32_0 : i32, i32
  }
  func.func @transform_2(%arg0: i32) -> (i32, i32) {
    %c0_i32 = arith.constant 0 : i32
    %c0_i32_0 = arith.constant 0 : i32
    return %arg0, %c0_i32 : i32, i32
  }
}

module attributes {stable_mosaic.version = 11 : i64} {
  func.func @_coattn_kernel(%arg0: i32, %arg1: memref<1x16x32xf32, #tpu.memory_space<vmem>>, %arg2: memref<1x16x32xf32, #tpu.memory_space<vmem>>, %arg3: memref<32x32xbf16, #tpu.memory_space<vmem>>, %arg4: memref<64x2xf32, #tpu.memory_space<vmem>>, %arg5: memref<64x16xf32, #tpu.memory_space<vmem>>, %arg6: memref<16x32xf32, #tpu.memory_space<vmem>>, %arg7: memref<64x16xf32, #tpu.memory_space<vmem>>, %arg8: memref<16x32xf32, #tpu.memory_space<vmem>>, %arg9: memref<1x16x64xbf16, #tpu.memory_space<vmem>>, %arg10: memref<1x16x64xbf16, #tpu.memory_space<vmem>>) attributes {dimension_semantics = [#tpu.dimension_semantics<parallel>], iteration_bounds = array<i64: 2>, scalar_prefetch = 0 : i64, scratch_operands = 0 : i64, tpu.core_type = #tpu.core_type<tc>, window_params = [{transform_indices = @transform_0, window_bounds = array<i64: 1, 16, 32>}, {transform_indices = @transform_1, window_bounds = array<i64: 1, 16, 32>}, {pipeline_mode = #tpu.pipeline_mode<synchronous>, transform_indices = @transform_2, window_bounds = array<i64: 32, 32>}, {pipeline_mode = #tpu.pipeline_mode<synchronous>, transform_indices = @transform_3, window_bounds = array<i64: 64, 2>}, {pipeline_mode = #tpu.pipeline_mode<synchronous>, transform_indices = @transform_4, window_bounds = array<i64: 64, 16>}, {pipeline_mode = #tpu.pipeline_mode<synchronous>, transform_indices = @transform_5, window_bounds = array<i64: 16, 32>}, {pipeline_mode = #tpu.pipeline_mode<synchronous>, transform_indices = @transform_6, window_bounds = array<i64: 64, 16>}, {pipeline_mode = #tpu.pipeline_mode<synchronous>, transform_indices = @transform_7, window_bounds = array<i64: 16, 32>}, {transform_indices = @transform_8, window_bounds = array<i64: 1, 16, 64>}, {transform_indices = @transform_9, window_bounds = array<i64: 1, 16, 64>}]} {
    %c0 = arith.constant 0 : index
    %c0_0 = arith.constant 0 : index
    %c0_1 = arith.constant 0 : index
    %0 = vector.load %arg1[%c0, %c0_0, %c0_1] : memref<1x16x32xf32, #tpu.memory_space<vmem>>, vector<1x16x32xf32>
    %1 = vector.shape_cast %0 : vector<1x16x32xf32> to vector<16x32xf32>
    %c0_2 = arith.constant 0 : index
    %c0_3 = arith.constant 0 : index
    %c0_4 = arith.constant 0 : index
    %2 = vector.load %arg2[%c0_2, %c0_3, %c0_4] : memref<1x16x32xf32, #tpu.memory_space<vmem>>, vector<1x16x32xf32>
    %3 = vector.shape_cast %2 : vector<1x16x32xf32> to vector<16x32xf32>
    %4 = arith.truncf %1 : vector<16x32xf32> to vector<16x32xbf16>
    %5 = arith.truncf %3 : vector<16x32xf32> to vector<16x32xbf16>
    %c0_5 = arith.constant 0 : index
    %c0_6 = arith.constant 0 : index
    %6 = vector.load %arg3[%c0_5, %c0_6] : memref<32x32xbf16, #tpu.memory_space<vmem>>, vector<32x32xbf16>
    %cst = arith.constant dense<0.000000e+00> : vector<16x32xf32>
    %7 = tpu.matmul %4, %6, %cst {dimension_numbers = #tpu.dot_dimension_numbers<[1], [0], [0], [1], [0, 0, 1, 1], [], []>} : vector<16x32xbf16>, vector<32x32xbf16>, vector<16x32xf32> -> vector<16x32xf32>
    %8 = arith.truncf %7 : vector<16x32xf32> to vector<16x32xbf16>
    %cst_7 = arith.constant dense<0.000000e+00> : vector<16x16xf32>
    %9 = tpu.matmul %8, %5, %cst_7 {dimension_numbers = #tpu.dot_dimension_numbers<[1], [1], [0], [0], [0, 0, 1, 0], [], []>} : vector<16x32xbf16>, vector<16x32xbf16>, vector<16x16xf32> -> vector<16x16xf32>
    %cst_8 = arith.constant dense<0xFF800000> : vector<16xf32>
    %10 = vector.multi_reduction <maximumf>, %9, %cst_8 [0] : vector<16x16xf32> to vector<16xf32>
    %11 = vector.shape_cast %10 : vector<16xf32> to vector<1x16xf32>
    %12 = vector.broadcast %11 : vector<1x16xf32> to vector<16x16xf32>
    %13 = arith.subf %9, %12 : vector<16x16xf32>
    %14 = math.exp %13 : vector<16x16xf32>
    %cst_9 = arith.constant dense<0.000000e+00> : vector<16xf32>
    %15 = vector.multi_reduction <add>, %14, %cst_9 [0] : vector<16x16xf32> to vector<16xf32>
    %16 = vector.shape_cast %15 : vector<16xf32> to vector<1x16xf32>
    %17 = tpu.reciprocal %16 {approx = true} : vector<1x16xf32> -> vector<1x16xf32>
    %18 = vector.broadcast %17 : vector<1x16xf32> to vector<16x16xf32>
    %19 = arith.mulf %14, %18 : vector<16x16xf32>
    %cst_10 = arith.constant dense<0xFF800000> : vector<16xf32>
    %20 = vector.multi_reduction <maximumf>, %9, %cst_10 [1] : vector<16x16xf32> to vector<16xf32>
    %21 = vector.shape_cast %20 : vector<16xf32> to vector<16x1xf32>
    %22 = vector.broadcast %21 : vector<16x1xf32> to vector<16x16xf32>
    %23 = arith.subf %9, %22 : vector<16x16xf32>
    %24 = math.exp %23 : vector<16x16xf32>
    %cst_11 = arith.constant dense<0.000000e+00> : vector<16xf32>
    %25 = vector.multi_reduction <add>, %24, %cst_11 [1] : vector<16x16xf32> to vector<16xf32>
    %26 = vector.shape_cast %25 : vector<16xf32> to vector<16x1xf32>
    %27 = tpu.reciprocal %26 {approx = true} : vector<16x1xf32> -> vector<16x1xf32>
    %28 = vector.broadcast %27 : vector<16x1xf32> to vector<16x16xf32>
    %29 = arith.mulf %24, %28 : vector<16x16xf32>
    %30 = arith.truncf %29 : vector<16x16xf32> to vector<16x16xbf16>
    %cst_12 = arith.constant dense<0.000000e+00> : vector<16x32xf32>
    %31 = tpu.matmul %30, %5, %cst_12 {dimension_numbers = #tpu.dot_dimension_numbers<[1], [0], [0], [1], [0, 0, 1, 1], [], []>} : vector<16x16xbf16>, vector<16x32xbf16>, vector<16x32xf32> -> vector<16x32xf32>
    %32 = arith.truncf %19 : vector<16x16xf32> to vector<16x16xbf16>
    %cst_13 = arith.constant dense<0.000000e+00> : vector<16x32xf32>
    %33 = tpu.matmul %32, %4, %cst_13 {dimension_numbers = #tpu.dot_dimension_numbers<[0], [0], [1], [1], [0, 1, 1, 1], [], []>} : vector<16x16xbf16>, vector<16x32xbf16>, vector<16x32xf32> -> vector<16x32xf32>
    %c0_14 = arith.constant 0 : index
    %c0_15 = arith.constant 0 : index
    %34 = vector.load %arg4[%c0_14, %c0_15] : memref<64x2xf32, #tpu.memory_space<vmem>>, vector<32x2xf32>
    %cst_16 = arith.constant dense<0.000000e+00> : vector<16x2xf32>
    %35 = tpu.matmul %31, %34, %cst_16 {dimension_numbers = #tpu.dot_dimension_numbers<[1], [0], [0], [1], [0, 0, 1, 1], [], []>} : vector<16x32xf32>, vector<32x2xf32>, vector<16x2xf32> -> vector<16x2xf32>
    %c32 = arith.constant 32 : index
    %c0_17 = arith.constant 0 : index
    %36 = vector.load %arg4[%c32, %c0_17] : memref<64x2xf32, #tpu.memory_space<vmem>>, vector<32x2xf32>
    %cst_18 = arith.constant dense<0.000000e+00> : vector<16x2xf32>
    %37 = tpu.matmul %33, %36, %cst_18 {dimension_numbers = #tpu.dot_dimension_numbers<[1], [0], [0], [1], [0, 0, 1, 1], [], []>} : vector<16x32xf32>, vector<32x2xf32>, vector<16x2xf32> -> vector<16x2xf32>
    %38 = arith.addf %35, %37 : vector<16x2xf32>
    %cst_19 = arith.constant 0.000000e+00 : f32
    %39 = vector.broadcast %cst_19 : f32 to vector<16x2xf32>
    %40 = arith.subf %39, %38 : vector<16x2xf32>
    %41 = math.exp %40 : vector<16x2xf32>
    %cst_20 = arith.constant 1.000000e+00 : f32
    %42 = vector.broadcast %cst_20 : f32 to vector<16x2xf32>
    %43 = arith.addf %42, %41 : vector<16x2xf32>
    %cst_21 = arith.constant 1.000000e+00 : f32
    %44 = vector.broadcast %cst_21 : f32 to vector<16x2xf32>
    %45 = arith.divf %44, %43 : vector<16x2xf32>
    %46 = vector.extract_strided_slice %45 {offsets = [0, 0], sizes = [16, 1], strides = [1, 1]} : vector<16x2xf32> to vector<16x1xf32>
    %47 = vector.extract_strided_slice %45 {offsets = [0, 1], sizes = [16, 1], strides = [1, 1]} : vector<16x2xf32> to vector<16x1xf32>
    %cst_22 = arith.constant dense<0.000000e+00> : vector<32xf32>
    %48 = vector.multi_reduction <add>, %31, %cst_22 [0] : vector<16x32xf32> to vector<32xf32>
    %49 = vector.shape_cast %48 : vector<32xf32> to vector<1x32xf32>
    %cst_23 = arith.constant 1.600000e+01 : f32
    %50 = vector.broadcast %cst_23 : f32 to vector<1x32xf32>
    %51 = arith.divf %49, %50 : vector<1x32xf32>
    %cst_24 = arith.constant dense<0.000000e+00> : vector<32xf32>
    %52 = vector.multi_reduction <add>, %33, %cst_24 [0] : vector<16x32xf32> to vector<32xf32>
    %53 = vector.shape_cast %52 : vector<32xf32> to vector<1x32xf32>
    %cst_25 = arith.constant 1.600000e+01 : f32
    %54 = vector.broadcast %cst_25 : f32 to vector<1x32xf32>
    %55 = arith.divf %53, %54 : vector<1x32xf32>
    %c0_26 = arith.constant 0 : index
    %c0_27 = arith.constant 0 : index
    %56 = vector.load %arg5[%c0_26, %c0_27] : memref<64x16xf32, #tpu.memory_space<vmem>>, vector<32x16xf32>
    %cst_28 = arith.constant dense<0.000000e+00> : vector<1x16xf32>
    %57 = tpu.matmul %51, %56, %cst_28 {dimension_numbers = #tpu.dot_dimension_numbers<[1], [0], [0], [1], [0, 0, 1, 1], [], []>} : vector<1x32xf32>, vector<32x16xf32>, vector<1x16xf32> -> vector<1x16xf32>
    %c32_29 = arith.constant 32 : index
    %c0_30 = arith.constant 0 : index
    %58 = vector.load %arg5[%c32_29, %c0_30] : memref<64x16xf32, #tpu.memory_space<vmem>>, vector<32x16xf32>
    %cst_31 = arith.constant dense<0.000000e+00> : vector<1x16xf32>
    %59 = tpu.matmul %55, %58, %cst_31 {dimension_numbers = #tpu.dot_dimension_numbers<[1], [0], [0], [1], [0, 0, 1, 1], [], []>} : vector<1x32xf32>, vector<32x16xf32>, vector<1x16xf32> -> vector<1x16xf32>
    %60 = arith.addf %57, %59 : vector<1x16xf32>
    %cst_32 = arith.constant 0.000000e+00 : f32
    %61 = vector.broadcast %cst_32 : f32 to vector<1x16xf32>
    %62 = arith.maximumf %60, %61 : vector<1x16xf32>
    %c0_33 = arith.constant 0 : index
    %c0_34 = arith.constant 0 : index
    %63 = vector.load %arg6[%c0_33, %c0_34] : memref<16x32xf32, #tpu.memory_space<vmem>>, vector<16x32xf32>
    %cst_35 = arith.constant dense<0.000000e+00> : vector<1x32xf32>
    %64 = tpu.matmul %62, %63, %cst_35 {dimension_numbers = #tpu.dot_dimension_numbers<[1], [0], [0], [1], [0, 0, 1, 1], [], []>} : vector<1x16xf32>, vector<16x32xf32>, vector<1x32xf32> -> vector<1x32xf32>
    %cst_36 = arith.constant 0.000000e+00 : f32
    %65 = vector.broadcast %cst_36 : f32 to vector<1x32xf32>
    %66 = arith.subf %65, %64 : vector<1x32xf32>
    %67 = math.exp %66 : vector<1x32xf32>
    %cst_37 = arith.constant 1.000000e+00 : f32
    %68 = vector.broadcast %cst_37 : f32 to vector<1x32xf32>
    %69 = arith.addf %68, %67 : vector<1x32xf32>
    %cst_38 = arith.constant 1.000000e+00 : f32
    %70 = vector.broadcast %cst_38 : f32 to vector<1x32xf32>
    %71 = arith.divf %70, %69 : vector<1x32xf32>
    %c0_39 = arith.constant 0 : index
    %c0_40 = arith.constant 0 : index
    %72 = vector.load %arg7[%c0_39, %c0_40] : memref<64x16xf32, #tpu.memory_space<vmem>>, vector<32x16xf32>
    %cst_41 = arith.constant dense<0.000000e+00> : vector<1x16xf32>
    %73 = tpu.matmul %51, %72, %cst_41 {dimension_numbers = #tpu.dot_dimension_numbers<[1], [0], [0], [1], [0, 0, 1, 1], [], []>} : vector<1x32xf32>, vector<32x16xf32>, vector<1x16xf32> -> vector<1x16xf32>
    %c32_42 = arith.constant 32 : index
    %c0_43 = arith.constant 0 : index
    %74 = vector.load %arg7[%c32_42, %c0_43] : memref<64x16xf32, #tpu.memory_space<vmem>>, vector<32x16xf32>
    %cst_44 = arith.constant dense<0.000000e+00> : vector<1x16xf32>
    %75 = tpu.matmul %55, %74, %cst_44 {dimension_numbers = #tpu.dot_dimension_numbers<[1], [0], [0], [1], [0, 0, 1, 1], [], []>} : vector<1x32xf32>, vector<32x16xf32>, vector<1x16xf32> -> vector<1x16xf32>
    %76 = arith.addf %73, %75 : vector<1x16xf32>
    %cst_45 = arith.constant 0.000000e+00 : f32
    %77 = vector.broadcast %cst_45 : f32 to vector<1x16xf32>
    %78 = arith.maximumf %76, %77 : vector<1x16xf32>
    %c0_46 = arith.constant 0 : index
    %c0_47 = arith.constant 0 : index
    %79 = vector.load %arg8[%c0_46, %c0_47] : memref<16x32xf32, #tpu.memory_space<vmem>>, vector<16x32xf32>
    %cst_48 = arith.constant dense<0.000000e+00> : vector<1x32xf32>
    %80 = tpu.matmul %78, %79, %cst_48 {dimension_numbers = #tpu.dot_dimension_numbers<[1], [0], [0], [1], [0, 0, 1, 1], [], []>} : vector<1x16xf32>, vector<16x32xf32>, vector<1x32xf32> -> vector<1x32xf32>
    %cst_49 = arith.constant 0.000000e+00 : f32
    %81 = vector.broadcast %cst_49 : f32 to vector<1x32xf32>
    %82 = arith.subf %81, %80 : vector<1x32xf32>
    %83 = math.exp %82 : vector<1x32xf32>
    %cst_50 = arith.constant 1.000000e+00 : f32
    %84 = vector.broadcast %cst_50 : f32 to vector<1x32xf32>
    %85 = arith.addf %84, %83 : vector<1x32xf32>
    %cst_51 = arith.constant 1.000000e+00 : f32
    %86 = vector.broadcast %cst_51 : f32 to vector<1x32xf32>
    %87 = arith.divf %86, %85 : vector<1x32xf32>
    %88 = vector.broadcast %46 : vector<16x1xf32> to vector<16x32xf32>
    %89 = arith.mulf %31, %88 : vector<16x32xf32>
    %90 = vector.broadcast %87 : vector<1x32xf32> to vector<16x32xf32>
    %91 = arith.mulf %89, %90 : vector<16x32xf32>
    %92 = vector.broadcast %47 : vector<16x1xf32> to vector<16x32xf32>
    %93 = arith.mulf %33, %92 : vector<16x32xf32>
    %94 = vector.broadcast %71 : vector<1x32xf32> to vector<16x32xf32>
    %95 = arith.mulf %93, %94 : vector<16x32xf32>
    %96 = tpu.concatenate %91, %1 in 1 : vector<16x32xf32>, vector<16x32xf32> -> vector<16x64xf32>
    %97 = arith.truncf %96 : vector<16x64xf32> to vector<16x64xbf16>
    %c0_52 = arith.constant 0 : index
    %c0_53 = arith.constant 0 : index
    %c0_54 = arith.constant 0 : index
    %98 = vector.load %arg9[%c0_52, %c0_53, %c0_54] : memref<1x16x64xbf16, #tpu.memory_space<vmem>>, vector<1x16x64xbf16>
    %99 = vector.shape_cast %98 : vector<1x16x64xbf16> to vector<16x64xbf16>
    %100 = vector.shape_cast %97 : vector<16x64xbf16> to vector<1x16x64xbf16>
    tpu.vector_store %arg9[%c0_52, %c0_53, %c0_54], %100 {strides = array<i32>} : memref<1x16x64xbf16, #tpu.memory_space<vmem>>, vector<1x16x64xbf16>,
    %101 = tpu.concatenate %95, %3 in 1 : vector<16x32xf32>, vector<16x32xf32> -> vector<16x64xf32>
    %102 = arith.truncf %101 : vector<16x64xf32> to vector<16x64xbf16>
    %c0_55 = arith.constant 0 : index
    %c0_56 = arith.constant 0 : index
    %c0_57 = arith.constant 0 : index
    %103 = vector.load %arg10[%c0_55, %c0_56, %c0_57] : memref<1x16x64xbf16, #tpu.memory_space<vmem>>, vector<1x16x64xbf16>
    %104 = vector.shape_cast %103 : vector<1x16x64xbf16> to vector<16x64xbf16>
    %105 = vector.shape_cast %102 : vector<16x64xbf16> to vector<1x16x64xbf16>
    tpu.vector_store %arg10[%c0_55, %c0_56, %c0_57], %105 {strides = array<i32>} : memref<1x16x64xbf16, #tpu.memory_space<vmem>>, vector<1x16x64xbf16>,
    return
  }
  func.func @transform_0(%arg0: i32) -> (i32, i32, i32) {
    %c0_i32 = arith.constant 0 : i32
    %c0_i32_0 = arith.constant 0 : i32
    %c0_i32_1 = arith.constant 0 : i32
    return %arg0, %c0_i32, %c0_i32_0 : i32, i32, i32
  }
  func.func @transform_1(%arg0: i32) -> (i32, i32, i32) {
    %c0_i32 = arith.constant 0 : i32
    %c0_i32_0 = arith.constant 0 : i32
    %c0_i32_1 = arith.constant 0 : i32
    return %arg0, %c0_i32, %c0_i32_0 : i32, i32, i32
  }
  func.func @transform_2(%arg0: i32) -> (i32, i32) {
    %c0_i32 = arith.constant 0 : i32
    %c0_i32_0 = arith.constant 0 : i32
    %c0_i32_1 = arith.constant 0 : i32
    return %c0_i32, %c0_i32_0 : i32, i32
  }
  func.func @transform_3(%arg0: i32) -> (i32, i32) {
    %c0_i32 = arith.constant 0 : i32
    %c0_i32_0 = arith.constant 0 : i32
    %c0_i32_1 = arith.constant 0 : i32
    return %c0_i32, %c0_i32_0 : i32, i32
  }
  func.func @transform_4(%arg0: i32) -> (i32, i32) {
    %c0_i32 = arith.constant 0 : i32
    %c0_i32_0 = arith.constant 0 : i32
    %c0_i32_1 = arith.constant 0 : i32
    return %c0_i32, %c0_i32_0 : i32, i32
  }
  func.func @transform_5(%arg0: i32) -> (i32, i32) {
    %c0_i32 = arith.constant 0 : i32
    %c0_i32_0 = arith.constant 0 : i32
    %c0_i32_1 = arith.constant 0 : i32
    return %c0_i32, %c0_i32_0 : i32, i32
  }
  func.func @transform_6(%arg0: i32) -> (i32, i32) {
    %c0_i32 = arith.constant 0 : i32
    %c0_i32_0 = arith.constant 0 : i32
    %c0_i32_1 = arith.constant 0 : i32
    return %c0_i32, %c0_i32_0 : i32, i32
  }
  func.func @transform_7(%arg0: i32) -> (i32, i32) {
    %c0_i32 = arith.constant 0 : i32
    %c0_i32_0 = arith.constant 0 : i32
    %c0_i32_1 = arith.constant 0 : i32
    return %c0_i32, %c0_i32_0 : i32, i32
  }
  func.func @transform_8(%arg0: i32) -> (i32, i32, i32) {
    %c0_i32 = arith.constant 0 : i32
    %c0_i32_0 = arith.constant 0 : i32
    %c0_i32_1 = arith.constant 0 : i32
    return %arg0, %c0_i32, %c0_i32_0 : i32, i32, i32
  }
  func.func @transform_9(%arg0: i32) -> (i32, i32, i32) {
    %c0_i32 = arith.constant 0 : i32
    %c0_i32_0 = arith.constant 0 : i32
    %c0_i32_1 = arith.constant 0 : i32
    return %arg0, %c0_i32, %c0_i32_0 : i32, i32, i32
  }
}

module attributes {stable_mosaic.version = 11 : i64} {
  func.func @kernel(%arg0: i32, %arg1: i32, %arg2: memref<1x1x40x64xbf16, #tpu.memory_space<vmem>>, %arg3: memref<1x9x64x32xbf16, #tpu.memory_space<vmem>>, %arg4: memref<1x1x24x32xf32, #tpu.memory_space<vmem>>) attributes {dimension_semantics = [#tpu.dimension_semantics<parallel>, #tpu.dimension_semantics<parallel>], iteration_bounds = array<i64: 2, 2>, scalar_prefetch = 0 : i64, scratch_operands = 0 : i64, tpu.core_type = #tpu.core_type<tc>, window_params = [{transform_indices = @transform_0, window_bounds = array<i64: 1, 1, 40, 64>}, {transform_indices = @transform_1, window_bounds = array<i64: 1, 9, 64, 32>}, {transform_indices = @transform_2, window_bounds = array<i64: 1, 1, 24, 32>}]} {
    %c0 = arith.constant 0 : index
    %c0_0 = arith.constant 0 : index
    %c0_1 = arith.constant 0 : index
    %c0_2 = arith.constant 0 : index
    %0 = vector.load %arg2[%c0, %c0_0, %c0_1, %c0_2] : memref<1x1x40x64xbf16, #tpu.memory_space<vmem>>, vector<1x1x24x64xbf16>
    %1 = vector.shape_cast %0 : vector<1x1x24x64xbf16> to vector<24x64xbf16>
    %c0_3 = arith.constant 0 : index
    %c0_4 = arith.constant 0 : index
    %c0_5 = arith.constant 0 : index
    %c0_6 = arith.constant 0 : index
    %2 = vector.load %arg3[%c0_3, %c0_4, %c0_5, %c0_6] : memref<1x9x64x32xbf16, #tpu.memory_space<vmem>>, vector<1x1x64x32xbf16>
    %3 = vector.shape_cast %2 : vector<1x1x64x32xbf16> to vector<64x32xbf16>
    %cst = arith.constant dense<0.000000e+00> : vector<24x32xf32>
    %4 = tpu.matmul %1, %3, %cst {dimension_numbers = #tpu.dot_dimension_numbers<[1], [0], [0], [1], [0, 0, 1, 1], [], []>} : vector<24x64xbf16>, vector<64x32xbf16>, vector<24x32xf32> -> vector<24x32xf32>
    %c0_7 = arith.constant 0 : index
    %c0_8 = arith.constant 0 : index
    %c1 = arith.constant 1 : index
    %c0_9 = arith.constant 0 : index
    %5 = vector.load %arg2[%c0_7, %c0_8, %c1, %c0_9] : memref<1x1x40x64xbf16, #tpu.memory_space<vmem>>, vector<1x1x24x64xbf16>
    %6 = vector.shape_cast %5 : vector<1x1x24x64xbf16> to vector<24x64xbf16>
    %c0_10 = arith.constant 0 : index
    %c1_11 = arith.constant 1 : index
    %c0_12 = arith.constant 0 : index
    %c0_13 = arith.constant 0 : index
    %7 = vector.load %arg3[%c0_10, %c1_11, %c0_12, %c0_13] : memref<1x9x64x32xbf16, #tpu.memory_space<vmem>>, vector<1x1x64x32xbf16>
    %8 = vector.shape_cast %7 : vector<1x1x64x32xbf16> to vector<64x32xbf16>
    %cst_14 = arith.constant dense<0.000000e+00> : vector<24x32xf32>
    %9 = tpu.matmul %6, %8, %cst_14 {dimension_numbers = #tpu.dot_dimension_numbers<[1], [0], [0], [1], [0, 0, 1, 1], [], []>} : vector<24x64xbf16>, vector<64x32xbf16>, vector<24x32xf32> -> vector<24x32xf32>
    %10 = arith.addf %4, %9 : vector<24x32xf32>
    %c0_15 = arith.constant 0 : index
    %c0_16 = arith.constant 0 : index
    %c2 = arith.constant 2 : index
    %c0_17 = arith.constant 0 : index
    %11 = vector.load %arg2[%c0_15, %c0_16, %c2, %c0_17] : memref<1x1x40x64xbf16, #tpu.memory_space<vmem>>, vector<1x1x24x64xbf16>
    %12 = vector.shape_cast %11 : vector<1x1x24x64xbf16> to vector<24x64xbf16>
    %c0_18 = arith.constant 0 : index
    %c2_19 = arith.constant 2 : index
    %c0_20 = arith.constant 0 : index
    %c0_21 = arith.constant 0 : index
    %13 = vector.load %arg3[%c0_18, %c2_19, %c0_20, %c0_21] : memref<1x9x64x32xbf16, #tpu.memory_space<vmem>>, vector<1x1x64x32xbf16>
    %14 = vector.shape_cast %13 : vector<1x1x64x32xbf16> to vector<64x32xbf16>
    %cst_22 = arith.constant dense<0.000000e+00> : vector<24x32xf32>
    %15 = tpu.matmul %12, %14, %cst_22 {dimension_numbers = #tpu.dot_dimension_numbers<[1], [0], [0], [1], [0, 0, 1, 1], [], []>} : vector<24x64xbf16>, vector<64x32xbf16>, vector<24x32xf32> -> vector<24x32xf32>
    %16 = arith.addf %10, %15 : vector<24x32xf32>
    %c0_23 = arith.constant 0 : index
    %c0_24 = arith.constant 0 : index
    %c6 = arith.constant 6 : index
    %c0_25 = arith.constant 0 : index
    %17 = vector.load %arg2[%c0_23, %c0_24, %c6, %c0_25] : memref<1x1x40x64xbf16, #tpu.memory_space<vmem>>, vector<1x1x24x64xbf16>
    %18 = vector.shape_cast %17 : vector<1x1x24x64xbf16> to vector<24x64xbf16>
    %c0_26 = arith.constant 0 : index
    %c3 = arith.constant 3 : index
    %c0_27 = arith.constant 0 : index
    %c0_28 = arith.constant 0 : index
    %19 = vector.load %arg3[%c0_26, %c3, %c0_27, %c0_28] : memref<1x9x64x32xbf16, #tpu.memory_space<vmem>>, vector<1x1x64x32xbf16>
    %20 = vector.shape_cast %19 : vector<1x1x64x32xbf16> to vector<64x32xbf16>
    %cst_29 = arith.constant dense<0.000000e+00> : vector<24x32xf32>
    %21 = tpu.matmul %18, %20, %cst_29 {dimension_numbers = #tpu.dot_dimension_numbers<[1], [0], [0], [1], [0, 0, 1, 1], [], []>} : vector<24x64xbf16>, vector<64x32xbf16>, vector<24x32xf32> -> vector<24x32xf32>
    %22 = arith.addf %16, %21 : vector<24x32xf32>
    %c0_30 = arith.constant 0 : index
    %c0_31 = arith.constant 0 : index
    %c7 = arith.constant 7 : index
    %c0_32 = arith.constant 0 : index
    %23 = vector.load %arg2[%c0_30, %c0_31, %c7, %c0_32] : memref<1x1x40x64xbf16, #tpu.memory_space<vmem>>, vector<1x1x24x64xbf16>
    %24 = vector.shape_cast %23 : vector<1x1x24x64xbf16> to vector<24x64xbf16>
    %c0_33 = arith.constant 0 : index
    %c4 = arith.constant 4 : index
    %c0_34 = arith.constant 0 : index
    %c0_35 = arith.constant 0 : index
    %25 = vector.load %arg3[%c0_33, %c4, %c0_34, %c0_35] : memref<1x9x64x32xbf16, #tpu.memory_space<vmem>>, vector<1x1x64x32xbf16>
    %26 = vector.shape_cast %25 : vector<1x1x64x32xbf16> to vector<64x32xbf16>
    %cst_36 = arith.constant dense<0.000000e+00> : vector<24x32xf32>
    %27 = tpu.matmul %24, %26, %cst_36 {dimension_numbers = #tpu.dot_dimension_numbers<[1], [0], [0], [1], [0, 0, 1, 1], [], []>} : vector<24x64xbf16>, vector<64x32xbf16>, vector<24x32xf32> -> vector<24x32xf32>
    %28 = arith.addf %22, %27 : vector<24x32xf32>
    %c0_37 = arith.constant 0 : index
    %c0_38 = arith.constant 0 : index
    %c8 = arith.constant 8 : index
    %c0_39 = arith.constant 0 : index
    %29 = vector.load %arg2[%c0_37, %c0_38, %c8, %c0_39] : memref<1x1x40x64xbf16, #tpu.memory_space<vmem>>, vector<1x1x24x64xbf16>
    %30 = vector.shape_cast %29 : vector<1x1x24x64xbf16> to vector<24x64xbf16>
    %c0_40 = arith.constant 0 : index
    %c5 = arith.constant 5 : index
    %c0_41 = arith.constant 0 : index
    %c0_42 = arith.constant 0 : index
    %31 = vector.load %arg3[%c0_40, %c5, %c0_41, %c0_42] : memref<1x9x64x32xbf16, #tpu.memory_space<vmem>>, vector<1x1x64x32xbf16>
    %32 = vector.shape_cast %31 : vector<1x1x64x32xbf16> to vector<64x32xbf16>
    %cst_43 = arith.constant dense<0.000000e+00> : vector<24x32xf32>
    %33 = tpu.matmul %30, %32, %cst_43 {dimension_numbers = #tpu.dot_dimension_numbers<[1], [0], [0], [1], [0, 0, 1, 1], [], []>} : vector<24x64xbf16>, vector<64x32xbf16>, vector<24x32xf32> -> vector<24x32xf32>
    %34 = arith.addf %28, %33 : vector<24x32xf32>
    %c0_44 = arith.constant 0 : index
    %c0_45 = arith.constant 0 : index
    %c12 = arith.constant 12 : index
    %c0_46 = arith.constant 0 : index
    %35 = vector.load %arg2[%c0_44, %c0_45, %c12, %c0_46] : memref<1x1x40x64xbf16, #tpu.memory_space<vmem>>, vector<1x1x24x64xbf16>
    %36 = vector.shape_cast %35 : vector<1x1x24x64xbf16> to vector<24x64xbf16>
    %c0_47 = arith.constant 0 : index
    %c6_48 = arith.constant 6 : index
    %c0_49 = arith.constant 0 : index
    %c0_50 = arith.constant 0 : index
    %37 = vector.load %arg3[%c0_47, %c6_48, %c0_49, %c0_50] : memref<1x9x64x32xbf16, #tpu.memory_space<vmem>>, vector<1x1x64x32xbf16>
    %38 = vector.shape_cast %37 : vector<1x1x64x32xbf16> to vector<64x32xbf16>
    %cst_51 = arith.constant dense<0.000000e+00> : vector<24x32xf32>
    %39 = tpu.matmul %36, %38, %cst_51 {dimension_numbers = #tpu.dot_dimension_numbers<[1], [0], [0], [1], [0, 0, 1, 1], [], []>} : vector<24x64xbf16>, vector<64x32xbf16>, vector<24x32xf32> -> vector<24x32xf32>
    %40 = arith.addf %34, %39 : vector<24x32xf32>
    %c0_52 = arith.constant 0 : index
    %c0_53 = arith.constant 0 : index
    %c13 = arith.constant 13 : index
    %c0_54 = arith.constant 0 : index
    %41 = vector.load %arg2[%c0_52, %c0_53, %c13, %c0_54] : memref<1x1x40x64xbf16, #tpu.memory_space<vmem>>, vector<1x1x24x64xbf16>
    %42 = vector.shape_cast %41 : vector<1x1x24x64xbf16> to vector<24x64xbf16>
    %c0_55 = arith.constant 0 : index
    %c7_56 = arith.constant 7 : index
    %c0_57 = arith.constant 0 : index
    %c0_58 = arith.constant 0 : index
    %43 = vector.load %arg3[%c0_55, %c7_56, %c0_57, %c0_58] : memref<1x9x64x32xbf16, #tpu.memory_space<vmem>>, vector<1x1x64x32xbf16>
    %44 = vector.shape_cast %43 : vector<1x1x64x32xbf16> to vector<64x32xbf16>
    %cst_59 = arith.constant dense<0.000000e+00> : vector<24x32xf32>
    %45 = tpu.matmul %42, %44, %cst_59 {dimension_numbers = #tpu.dot_dimension_numbers<[1], [0], [0], [1], [0, 0, 1, 1], [], []>} : vector<24x64xbf16>, vector<64x32xbf16>, vector<24x32xf32> -> vector<24x32xf32>
    %46 = arith.addf %40, %45 : vector<24x32xf32>
    %c0_60 = arith.constant 0 : index
    %c0_61 = arith.constant 0 : index
    %c14 = arith.constant 14 : index
    %c0_62 = arith.constant 0 : index
    %47 = vector.load %arg2[%c0_60, %c0_61, %c14, %c0_62] : memref<1x1x40x64xbf16, #tpu.memory_space<vmem>>, vector<1x1x24x64xbf16>
    %48 = vector.shape_cast %47 : vector<1x1x24x64xbf16> to vector<24x64xbf16>
    %c0_63 = arith.constant 0 : index
    %c8_64 = arith.constant 8 : index
    %c0_65 = arith.constant 0 : index
    %c0_66 = arith.constant 0 : index
    %49 = vector.load %arg3[%c0_63, %c8_64, %c0_65, %c0_66] : memref<1x9x64x32xbf16, #tpu.memory_space<vmem>>, vector<1x1x64x32xbf16>
    %50 = vector.shape_cast %49 : vector<1x1x64x32xbf16> to vector<64x32xbf16>
    %cst_67 = arith.constant dense<0.000000e+00> : vector<24x32xf32>
    %51 = tpu.matmul %48, %50, %cst_67 {dimension_numbers = #tpu.dot_dimension_numbers<[1], [0], [0], [1], [0, 0, 1, 1], [], []>} : vector<24x64xbf16>, vector<64x32xbf16>, vector<24x32xf32> -> vector<24x32xf32>
    %52 = arith.addf %46, %51 : vector<24x32xf32>
    %cst_68 = arith.constant 0.000000e+00 : f32
    %53 = vector.broadcast %cst_68 : f32 to vector<24x32xf32>
    %54 = arith.maximumf %52, %53 : vector<24x32xf32>
    %c0_69 = arith.constant 0 : index
    %c0_70 = arith.constant 0 : index
    %c0_71 = arith.constant 0 : index
    %c0_72 = arith.constant 0 : index
    %55 = vector.load %arg4[%c0_69, %c0_70, %c0_71, %c0_72] : memref<1x1x24x32xf32, #tpu.memory_space<vmem>>, vector<1x1x24x32xf32>
    %56 = vector.shape_cast %55 : vector<1x1x24x32xf32> to vector<24x32xf32>
    %57 = vector.shape_cast %54 : vector<24x32xf32> to vector<1x1x24x32xf32>
    tpu.vector_store %arg4[%c0_69, %c0_70, %c0_71, %c0_72], %57 {strides = array<i32>} : memref<1x1x24x32xf32, #tpu.memory_space<vmem>>, vector<1x1x24x32xf32>,
    return
  }
  func.func @transform_0(%arg0: i32, %arg1: i32) -> (i32, i32, i32, i32) {
    %c0_i32 = arith.constant 0 : i32
    %c0_i32_0 = arith.constant 0 : i32
    %c0_i32_1 = arith.constant 0 : i32
    return %arg0, %arg1, %c0_i32, %c0_i32_0 : i32, i32, i32, i32
  }
  func.func @transform_1(%arg0: i32, %arg1: i32) -> (i32, i32, i32, i32) {
    %c0_i32 = arith.constant 0 : i32
    %c0_i32_0 = arith.constant 0 : i32
    %c0_i32_1 = arith.constant 0 : i32
    %c0_i32_2 = arith.constant 0 : i32
    return %arg0, %c0_i32, %c0_i32_0, %c0_i32_1 : i32, i32, i32, i32
  }
  func.func @transform_2(%arg0: i32, %arg1: i32) -> (i32, i32, i32, i32) {
    %c0_i32 = arith.constant 0 : i32
    %c0_i32_0 = arith.constant 0 : i32
    %c0_i32_1 = arith.constant 0 : i32
    return %arg0, %arg1, %c0_i32, %c0_i32_0 : i32, i32, i32, i32
  }
}

module attributes {stable_mosaic.version = 11 : i64} {
  func.func @kernel(%arg0: i32, %arg1: memref<128x32xf32, #tpu.memory_space<vmem>>, %arg2: memref<32x8xbf16, #tpu.memory_space<vmem>>, %arg3: memref<128x8xf32, #tpu.memory_space<vmem>>) attributes {dimension_semantics = [#tpu.dimension_semantics<parallel>], iteration_bounds = array<i64: 3>, scalar_prefetch = 0 : i64, scratch_operands = 0 : i64, tpu.core_type = #tpu.core_type<tc>, window_params = [{transform_indices = @transform_0, window_bounds = array<i64: 128, 32>}, {pipeline_mode = #tpu.pipeline_mode<synchronous>, transform_indices = @transform_1, window_bounds = array<i64: 32, 8>}, {transform_indices = @transform_2, window_bounds = array<i64: 128, 8>}]} {
    %c0 = arith.constant 0 : index
    %c0_0 = arith.constant 0 : index
    %0 = vector.load %arg1[%c0, %c0_0] : memref<128x32xf32, #tpu.memory_space<vmem>>, vector<128x32xf32>
    %1 = arith.truncf %0 : vector<128x32xf32> to vector<128x32xbf16>
    %c0_1 = arith.constant 0 : index
    %c0_2 = arith.constant 0 : index
    %2 = vector.load %arg2[%c0_1, %c0_2] : memref<32x8xbf16, #tpu.memory_space<vmem>>, vector<32x8xbf16>
    %cst = arith.constant dense<0.000000e+00> : vector<128x8xf32>
    %3 = tpu.matmul %1, %2, %cst {dimension_numbers = #tpu.dot_dimension_numbers<[1], [0], [0], [1], [0, 0, 1, 1], [], []>} : vector<128x32xbf16>, vector<32x8xbf16>, vector<128x8xf32> -> vector<128x8xf32>
    %cst_3 = arith.constant 0.000000e+00 : f32
    %4 = vector.broadcast %cst_3 : f32 to vector<128x8xf32>
    %5 = arith.maximumf %3, %4 : vector<128x8xf32>
    %c0_4 = arith.constant 0 : index
    %c0_5 = arith.constant 0 : index
    %6 = vector.load %arg3[%c0_4, %c0_5] : memref<128x8xf32, #tpu.memory_space<vmem>>, vector<128x8xf32>
    tpu.vector_store %arg3[%c0_4, %c0_5], %5 {strides = array<i32>} : memref<128x8xf32, #tpu.memory_space<vmem>>, vector<128x8xf32>,
    return
  }
  func.func @transform_0(%arg0: i32) -> (i32, i32) {
    %c0_i32 = arith.constant 0 : i32
    %c0_i32_0 = arith.constant 0 : i32
    return %arg0, %c0_i32 : i32, i32
  }
  func.func @transform_1(%arg0: i32) -> (i32, i32) {
    %c0_i32 = arith.constant 0 : i32
    %c0_i32_0 = arith.constant 0 : i32
    %c0_i32_1 = arith.constant 0 : i32
    return %c0_i32, %c0_i32_0 : i32, i32
  }
  func.func @transform_2(%arg0: i32) -> (i32, i32) {
    %c0_i32 = arith.constant 0 : i32
    %c0_i32_0 = arith.constant 0 : i32
    return %arg0, %c0_i32 : i32, i32
  }
}

module attributes {stable_mosaic.version = 11 : i64} {
  func.func @kernel(%arg0: i32, %arg1: i32, %arg2: memref<1x1x104x40xf32, #tpu.memory_space<vmem>>, %arg3: memref<1x9x40x32xbf16, #tpu.memory_space<vmem>>, %arg4: memref<32x1xf32, #tpu.memory_space<vmem>>, %arg5: memref<1x1x80x1xf32, #tpu.memory_space<vmem>>) attributes {dimension_semantics = [#tpu.dimension_semantics<parallel>, #tpu.dimension_semantics<parallel>], iteration_bounds = array<i64: 1, 6>, scalar_prefetch = 0 : i64, scratch_operands = 0 : i64, tpu.core_type = #tpu.core_type<tc>, window_params = [{transform_indices = @transform_0, window_bounds = array<i64: 1, 1, 104, 40>}, {transform_indices = @transform_1, window_bounds = array<i64: 1, 9, 40, 32>}, {pipeline_mode = #tpu.pipeline_mode<synchronous>, transform_indices = @transform_2, window_bounds = array<i64: 32, 1>}, {transform_indices = @transform_3, window_bounds = array<i64: 1, 1, 80, 1>}]} {
    %c0 = arith.constant 0 : index
    %c0_0 = arith.constant 0 : index
    %c0_1 = arith.constant 0 : index
    %c0_2 = arith.constant 0 : index
    %0 = vector.load %arg2[%c0, %c0_0, %c0_1, %c0_2] : memref<1x1x104x40xf32, #tpu.memory_space<vmem>>, vector<1x1x80x40xf32>
    %1 = vector.shape_cast %0 : vector<1x1x80x40xf32> to vector<80x40xf32>
    %2 = arith.truncf %1 : vector<80x40xf32> to vector<80x40xbf16>
    %c0_3 = arith.constant 0 : index
    %c0_4 = arith.constant 0 : index
    %c0_5 = arith.constant 0 : index
    %c0_6 = arith.constant 0 : index
    %3 = vector.load %arg3[%c0_3, %c0_4, %c0_5, %c0_6] : memref<1x9x40x32xbf16, #tpu.memory_space<vmem>>, vector<1x1x40x32xbf16>
    %4 = vector.shape_cast %3 : vector<1x1x40x32xbf16> to vector<40x32xbf16>
    %cst = arith.constant dense<0.000000e+00> : vector<80x32xf32>
    %5 = tpu.matmul %2, %4, %cst {dimension_numbers = #tpu.dot_dimension_numbers<[1], [0], [0], [1], [0, 0, 1, 1], [], []>} : vector<80x40xbf16>, vector<40x32xbf16>, vector<80x32xf32> -> vector<80x32xf32>
    %c0_7 = arith.constant 0 : index
    %c0_8 = arith.constant 0 : index
    %c1 = arith.constant 1 : index
    %c0_9 = arith.constant 0 : index
    %6 = vector.load %arg2[%c0_7, %c0_8, %c1, %c0_9] : memref<1x1x104x40xf32, #tpu.memory_space<vmem>>, vector<1x1x80x40xf32>
    %7 = vector.shape_cast %6 : vector<1x1x80x40xf32> to vector<80x40xf32>
    %8 = arith.truncf %7 : vector<80x40xf32> to vector<80x40xbf16>
    %c0_10 = arith.constant 0 : index
    %c1_11 = arith.constant 1 : index
    %c0_12 = arith.constant 0 : index
    %c0_13 = arith.constant 0 : index
    %9 = vector.load %arg3[%c0_10, %c1_11, %c0_12, %c0_13] : memref<1x9x40x32xbf16, #tpu.memory_space<vmem>>, vector<1x1x40x32xbf16>
    %10 = vector.shape_cast %9 : vector<1x1x40x32xbf16> to vector<40x32xbf16>
    %cst_14 = arith.constant dense<0.000000e+00> : vector<80x32xf32>
    %11 = tpu.matmul %8, %10, %cst_14 {dimension_numbers = #tpu.dot_dimension_numbers<[1], [0], [0], [1], [0, 0, 1, 1], [], []>} : vector<80x40xbf16>, vector<40x32xbf16>, vector<80x32xf32> -> vector<80x32xf32>
    %12 = arith.addf %5, %11 : vector<80x32xf32>
    %c0_15 = arith.constant 0 : index
    %c0_16 = arith.constant 0 : index
    %c2 = arith.constant 2 : index
    %c0_17 = arith.constant 0 : index
    %13 = vector.load %arg2[%c0_15, %c0_16, %c2, %c0_17] : memref<1x1x104x40xf32, #tpu.memory_space<vmem>>, vector<1x1x80x40xf32>
    %14 = vector.shape_cast %13 : vector<1x1x80x40xf32> to vector<80x40xf32>
    %15 = arith.truncf %14 : vector<80x40xf32> to vector<80x40xbf16>
    %c0_18 = arith.constant 0 : index
    %c2_19 = arith.constant 2 : index
    %c0_20 = arith.constant 0 : index
    %c0_21 = arith.constant 0 : index
    %16 = vector.load %arg3[%c0_18, %c2_19, %c0_20, %c0_21] : memref<1x9x40x32xbf16, #tpu.memory_space<vmem>>, vector<1x1x40x32xbf16>
    %17 = vector.shape_cast %16 : vector<1x1x40x32xbf16> to vector<40x32xbf16>
    %cst_22 = arith.constant dense<0.000000e+00> : vector<80x32xf32>
    %18 = tpu.matmul %15, %17, %cst_22 {dimension_numbers = #tpu.dot_dimension_numbers<[1], [0], [0], [1], [0, 0, 1, 1], [], []>} : vector<80x40xbf16>, vector<40x32xbf16>, vector<80x32xf32> -> vector<80x32xf32>
    %19 = arith.addf %12, %18 : vector<80x32xf32>
    %c0_23 = arith.constant 0 : index
    %c0_24 = arith.constant 0 : index
    %c10 = arith.constant 10 : index
    %c0_25 = arith.constant 0 : index
    %20 = vector.load %arg2[%c0_23, %c0_24, %c10, %c0_25] : memref<1x1x104x40xf32, #tpu.memory_space<vmem>>, vector<1x1x80x40xf32>
    %21 = vector.shape_cast %20 : vector<1x1x80x40xf32> to vector<80x40xf32>
    %22 = arith.truncf %21 : vector<80x40xf32> to vector<80x40xbf16>
    %c0_26 = arith.constant 0 : index
    %c3 = arith.constant 3 : index
    %c0_27 = arith.constant 0 : index
    %c0_28 = arith.constant 0 : index
    %23 = vector.load %arg3[%c0_26, %c3, %c0_27, %c0_28] : memref<1x9x40x32xbf16, #tpu.memory_space<vmem>>, vector<1x1x40x32xbf16>
    %24 = vector.shape_cast %23 : vector<1x1x40x32xbf16> to vector<40x32xbf16>
    %cst_29 = arith.constant dense<0.000000e+00> : vector<80x32xf32>
    %25 = tpu.matmul %22, %24, %cst_29 {dimension_numbers = #tpu.dot_dimension_numbers<[1], [0], [0], [1], [0, 0, 1, 1], [], []>} : vector<80x40xbf16>, vector<40x32xbf16>, vector<80x32xf32> -> vector<80x32xf32>
    %26 = arith.addf %19, %25 : vector<80x32xf32>
    %c0_30 = arith.constant 0 : index
    %c0_31 = arith.constant 0 : index
    %c11 = arith.constant 11 : index
    %c0_32 = arith.constant 0 : index
    %27 = vector.load %arg2[%c0_30, %c0_31, %c11, %c0_32] : memref<1x1x104x40xf32, #tpu.memory_space<vmem>>, vector<1x1x80x40xf32>
    %28 = vector.shape_cast %27 : vector<1x1x80x40xf32> to vector<80x40xf32>
    %29 = arith.truncf %28 : vector<80x40xf32> to vector<80x40xbf16>
    %c0_33 = arith.constant 0 : index
    %c4 = arith.constant 4 : index
    %c0_34 = arith.constant 0 : index
    %c0_35 = arith.constant 0 : index
    %30 = vector.load %arg3[%c0_33, %c4, %c0_34, %c0_35] : memref<1x9x40x32xbf16, #tpu.memory_space<vmem>>, vector<1x1x40x32xbf16>
    %31 = vector.shape_cast %30 : vector<1x1x40x32xbf16> to vector<40x32xbf16>
    %cst_36 = arith.constant dense<0.000000e+00> : vector<80x32xf32>
    %32 = tpu.matmul %29, %31, %cst_36 {dimension_numbers = #tpu.dot_dimension_numbers<[1], [0], [0], [1], [0, 0, 1, 1], [], []>} : vector<80x40xbf16>, vector<40x32xbf16>, vector<80x32xf32> -> vector<80x32xf32>
    %33 = arith.addf %26, %32 : vector<80x32xf32>
    %c0_37 = arith.constant 0 : index
    %c0_38 = arith.constant 0 : index
    %c12 = arith.constant 12 : index
    %c0_39 = arith.constant 0 : index
    %34 = vector.load %arg2[%c0_37, %c0_38, %c12, %c0_39] : memref<1x1x104x40xf32, #tpu.memory_space<vmem>>, vector<1x1x80x40xf32>
    %35 = vector.shape_cast %34 : vector<1x1x80x40xf32> to vector<80x40xf32>
    %36 = arith.truncf %35 : vector<80x40xf32> to vector<80x40xbf16>
    %c0_40 = arith.constant 0 : index
    %c5 = arith.constant 5 : index
    %c0_41 = arith.constant 0 : index
    %c0_42 = arith.constant 0 : index
    %37 = vector.load %arg3[%c0_40, %c5, %c0_41, %c0_42] : memref<1x9x40x32xbf16, #tpu.memory_space<vmem>>, vector<1x1x40x32xbf16>
    %38 = vector.shape_cast %37 : vector<1x1x40x32xbf16> to vector<40x32xbf16>
    %cst_43 = arith.constant dense<0.000000e+00> : vector<80x32xf32>
    %39 = tpu.matmul %36, %38, %cst_43 {dimension_numbers = #tpu.dot_dimension_numbers<[1], [0], [0], [1], [0, 0, 1, 1], [], []>} : vector<80x40xbf16>, vector<40x32xbf16>, vector<80x32xf32> -> vector<80x32xf32>
    %40 = arith.addf %33, %39 : vector<80x32xf32>
    %c0_44 = arith.constant 0 : index
    %c0_45 = arith.constant 0 : index
    %c20 = arith.constant 20 : index
    %c0_46 = arith.constant 0 : index
    %41 = vector.load %arg2[%c0_44, %c0_45, %c20, %c0_46] : memref<1x1x104x40xf32, #tpu.memory_space<vmem>>, vector<1x1x80x40xf32>
    %42 = vector.shape_cast %41 : vector<1x1x80x40xf32> to vector<80x40xf32>
    %43 = arith.truncf %42 : vector<80x40xf32> to vector<80x40xbf16>
    %c0_47 = arith.constant 0 : index
    %c6 = arith.constant 6 : index
    %c0_48 = arith.constant 0 : index
    %c0_49 = arith.constant 0 : index
    %44 = vector.load %arg3[%c0_47, %c6, %c0_48, %c0_49] : memref<1x9x40x32xbf16, #tpu.memory_space<vmem>>, vector<1x1x40x32xbf16>
    %45 = vector.shape_cast %44 : vector<1x1x40x32xbf16> to vector<40x32xbf16>
    %cst_50 = arith.constant dense<0.000000e+00> : vector<80x32xf32>
    %46 = tpu.matmul %43, %45, %cst_50 {dimension_numbers = #tpu.dot_dimension_numbers<[1], [0], [0], [1], [0, 0, 1, 1], [], []>} : vector<80x40xbf16>, vector<40x32xbf16>, vector<80x32xf32> -> vector<80x32xf32>
    %47 = arith.addf %40, %46 : vector<80x32xf32>
    %c0_51 = arith.constant 0 : index
    %c0_52 = arith.constant 0 : index
    %c21 = arith.constant 21 : index
    %c0_53 = arith.constant 0 : index
    %48 = vector.load %arg2[%c0_51, %c0_52, %c21, %c0_53] : memref<1x1x104x40xf32, #tpu.memory_space<vmem>>, vector<1x1x80x40xf32>
    %49 = vector.shape_cast %48 : vector<1x1x80x40xf32> to vector<80x40xf32>
    %50 = arith.truncf %49 : vector<80x40xf32> to vector<80x40xbf16>
    %c0_54 = arith.constant 0 : index
    %c7 = arith.constant 7 : index
    %c0_55 = arith.constant 0 : index
    %c0_56 = arith.constant 0 : index
    %51 = vector.load %arg3[%c0_54, %c7, %c0_55, %c0_56] : memref<1x9x40x32xbf16, #tpu.memory_space<vmem>>, vector<1x1x40x32xbf16>
    %52 = vector.shape_cast %51 : vector<1x1x40x32xbf16> to vector<40x32xbf16>
    %cst_57 = arith.constant dense<0.000000e+00> : vector<80x32xf32>
    %53 = tpu.matmul %50, %52, %cst_57 {dimension_numbers = #tpu.dot_dimension_numbers<[1], [0], [0], [1], [0, 0, 1, 1], [], []>} : vector<80x40xbf16>, vector<40x32xbf16>, vector<80x32xf32> -> vector<80x32xf32>
    %54 = arith.addf %47, %53 : vector<80x32xf32>
    %c0_58 = arith.constant 0 : index
    %c0_59 = arith.constant 0 : index
    %c22 = arith.constant 22 : index
    %c0_60 = arith.constant 0 : index
    %55 = vector.load %arg2[%c0_58, %c0_59, %c22, %c0_60] : memref<1x1x104x40xf32, #tpu.memory_space<vmem>>, vector<1x1x80x40xf32>
    %56 = vector.shape_cast %55 : vector<1x1x80x40xf32> to vector<80x40xf32>
    %57 = arith.truncf %56 : vector<80x40xf32> to vector<80x40xbf16>
    %c0_61 = arith.constant 0 : index
    %c8 = arith.constant 8 : index
    %c0_62 = arith.constant 0 : index
    %c0_63 = arith.constant 0 : index
    %58 = vector.load %arg3[%c0_61, %c8, %c0_62, %c0_63] : memref<1x9x40x32xbf16, #tpu.memory_space<vmem>>, vector<1x1x40x32xbf16>
    %59 = vector.shape_cast %58 : vector<1x1x40x32xbf16> to vector<40x32xbf16>
    %cst_64 = arith.constant dense<0.000000e+00> : vector<80x32xf32>
    %60 = tpu.matmul %57, %59, %cst_64 {dimension_numbers = #tpu.dot_dimension_numbers<[1], [0], [0], [1], [0, 0, 1, 1], [], []>} : vector<80x40xbf16>, vector<40x32xbf16>, vector<80x32xf32> -> vector<80x32xf32>
    %61 = arith.addf %54, %60 : vector<80x32xf32>
    %cst_65 = arith.constant 0.000000e+00 : f32
    %62 = vector.broadcast %cst_65 : f32 to vector<80x32xf32>
    %63 = arith.maximumf %61, %62 : vector<80x32xf32>
    %c0_66 = arith.constant 0 : index
    %c0_67 = arith.constant 0 : index
    %64 = vector.load %arg4[%c0_66, %c0_67] : memref<32x1xf32, #tpu.memory_space<vmem>>, vector<32x1xf32>
    %cst_68 = arith.constant dense<0.000000e+00> : vector<80x1xf32>
    %65 = tpu.matmul %63, %64, %cst_68 {dimension_numbers = #tpu.dot_dimension_numbers<[1], [0], [0], [1], [0, 0, 1, 1], [], []>} : vector<80x32xf32>, vector<32x1xf32>, vector<80x1xf32> -> vector<80x1xf32>
    %c0_69 = arith.constant 0 : index
    %c0_70 = arith.constant 0 : index
    %c0_71 = arith.constant 0 : index
    %c0_72 = arith.constant 0 : index
    %66 = vector.load %arg5[%c0_69, %c0_70, %c0_71, %c0_72] : memref<1x1x80x1xf32, #tpu.memory_space<vmem>>, vector<1x1x80x1xf32>
    %67 = vector.shape_cast %66 : vector<1x1x80x1xf32> to vector<80x1xf32>
    %68 = vector.shape_cast %65 : vector<80x1xf32> to vector<1x1x80x1xf32>
    tpu.vector_store %arg5[%c0_69, %c0_70, %c0_71, %c0_72], %68 {strides = array<i32>} : memref<1x1x80x1xf32, #tpu.memory_space<vmem>>, vector<1x1x80x1xf32>,
    return
  }
  func.func @transform_0(%arg0: i32, %arg1: i32) -> (i32, i32, i32, i32) {
    %c0_i32 = arith.constant 0 : i32
    %c0_i32_0 = arith.constant 0 : i32
    %c0_i32_1 = arith.constant 0 : i32
    return %arg0, %arg1, %c0_i32, %c0_i32_0 : i32, i32, i32, i32
  }
  func.func @transform_1(%arg0: i32, %arg1: i32) -> (i32, i32, i32, i32) {
    %c0_i32 = arith.constant 0 : i32
    %c0_i32_0 = arith.constant 0 : i32
    %c0_i32_1 = arith.constant 0 : i32
    %c0_i32_2 = arith.constant 0 : i32
    return %arg0, %c0_i32, %c0_i32_0, %c0_i32_1 : i32, i32, i32, i32
  }
  func.func @transform_2(%arg0: i32, %arg1: i32) -> (i32, i32) {
    %c0_i32 = arith.constant 0 : i32
    %c0_i32_0 = arith.constant 0 : i32
    %c0_i32_1 = arith.constant 0 : i32
    return %c0_i32, %c0_i32_0 : i32, i32
  }
  func.func @transform_3(%arg0: i32, %arg1: i32) -> (i32, i32, i32, i32) {
    %c0_i32 = arith.constant 0 : i32
    %c0_i32_0 = arith.constant 0 : i32
    %c0_i32_1 = arith.constant 0 : i32
    return %arg0, %arg1, %c0_i32, %c0_i32_0 : i32, i32, i32, i32
  }
}

module attributes {stable_mosaic.version = 11 : i64} {
  func.func @_logits_kernel(%arg0: i32, %arg1: memref<3x1x16x32xf32, #tpu.memory_space<vmem>>, %arg2: memref<1x1x2xf32, #tpu.memory_space<vmem>>) attributes {dimension_semantics = [#tpu.dimension_semantics<parallel>], iteration_bounds = array<i64: 2>, scalar_prefetch = 0 : i64, scratch_operands = 0 : i64, tpu.core_type = #tpu.core_type<tc>, window_params = [{transform_indices = @transform_0, window_bounds = array<i64: 3, 1, 16, 32>}, {transform_indices = @transform_1, window_bounds = array<i64: 1, 1, 2>}]} {
    %c0 = arith.constant 0 : index
    %c0_0 = arith.constant 0 : index
    %c0_1 = arith.constant 0 : index
    %c0_2 = arith.constant 0 : index
    %0 = vector.load %arg1[%c0, %c0_0, %c0_1, %c0_2] : memref<3x1x16x32xf32, #tpu.memory_space<vmem>>, vector<1x1x16x32xf32>
    %1 = vector.shape_cast %0 : vector<1x1x16x32xf32> to vector<16x32xf32>
    %cst = arith.constant dense<0.000000e+00> : vector<32xf32>
    %2 = vector.multi_reduction <add>, %1, %cst [0] : vector<16x32xf32> to vector<32xf32>
    %3 = vector.shape_cast %2 : vector<32xf32> to vector<1x32xf32>
    %cst_3 = arith.constant 1.600000e+01 : f32
    %4 = vector.broadcast %cst_3 : f32 to vector<1x32xf32>
    %5 = arith.divf %3, %4 : vector<1x32xf32>
    %6 = arith.mulf %5, %5 : vector<1x32xf32>
    %cst_4 = arith.constant dense<0.000000e+00> : vector<1xf32>
    %7 = vector.multi_reduction <add>, %6, %cst_4 [1] : vector<1x32xf32> to vector<1xf32>
    %8 = vector.shape_cast %7 : vector<1xf32> to vector<1x1xf32>
    %9 = math.sqrt %8 : vector<1x1xf32>
    %cst_5 = arith.constant 9.99999996E-13 : f32
    %10 = vector.broadcast %cst_5 : f32 to vector<1x1xf32>
    %11 = arith.maximumf %9, %10 : vector<1x1xf32>
    %12 = vector.broadcast %11 : vector<1x1xf32> to vector<1x32xf32>
    %13 = arith.divf %5, %12 : vector<1x32xf32>
    %c1 = arith.constant 1 : index
    %c0_6 = arith.constant 0 : index
    %c0_7 = arith.constant 0 : index
    %c0_8 = arith.constant 0 : index
    %14 = vector.load %arg1[%c1, %c0_6, %c0_7, %c0_8] : memref<3x1x16x32xf32, #tpu.memory_space<vmem>>, vector<1x1x16x32xf32>
    %15 = vector.shape_cast %14 : vector<1x1x16x32xf32> to vector<16x32xf32>
    %cst_9 = arith.constant dense<0.000000e+00> : vector<32xf32>
    %16 = vector.multi_reduction <add>, %15, %cst_9 [0] : vector<16x32xf32> to vector<32xf32>
    %17 = vector.shape_cast %16 : vector<32xf32> to vector<1x32xf32>
    %cst_10 = arith.constant 1.600000e+01 : f32
    %18 = vector.broadcast %cst_10 : f32 to vector<1x32xf32>
    %19 = arith.divf %17, %18 : vector<1x32xf32>
    %20 = arith.mulf %19, %19 : vector<1x32xf32>
    %cst_11 = arith.constant dense<0.000000e+00> : vector<1xf32>
    %21 = vector.multi_reduction <add>, %20, %cst_11 [1] : vector<1x32xf32> to vector<1xf32>
    %22 = vector.shape_cast %21 : vector<1xf32> to vector<1x1xf32>
    %23 = math.sqrt %22 : vector<1x1xf32>
    %cst_12 = arith.constant 9.99999996E-13 : f32
    %24 = vector.broadcast %cst_12 : f32 to vector<1x1xf32>
    %25 = arith.maximumf %23, %24 : vector<1x1xf32>
    %26 = vector.broadcast %25 : vector<1x1xf32> to vector<1x32xf32>
    %27 = arith.divf %19, %26 : vector<1x32xf32>
    %c2 = arith.constant 2 : index
    %c0_13 = arith.constant 0 : index
    %c0_14 = arith.constant 0 : index
    %c0_15 = arith.constant 0 : index
    %28 = vector.load %arg1[%c2, %c0_13, %c0_14, %c0_15] : memref<3x1x16x32xf32, #tpu.memory_space<vmem>>, vector<1x1x16x32xf32>
    %29 = vector.shape_cast %28 : vector<1x1x16x32xf32> to vector<16x32xf32>
    %cst_16 = arith.constant dense<0.000000e+00> : vector<32xf32>
    %30 = vector.multi_reduction <add>, %29, %cst_16 [0] : vector<16x32xf32> to vector<32xf32>
    %31 = vector.shape_cast %30 : vector<32xf32> to vector<1x32xf32>
    %cst_17 = arith.constant 1.600000e+01 : f32
    %32 = vector.broadcast %cst_17 : f32 to vector<1x32xf32>
    %33 = arith.divf %31, %32 : vector<1x32xf32>
    %34 = arith.mulf %33, %33 : vector<1x32xf32>
    %cst_18 = arith.constant dense<0.000000e+00> : vector<1xf32>
    %35 = vector.multi_reduction <add>, %34, %cst_18 [1] : vector<1x32xf32> to vector<1xf32>
    %36 = vector.shape_cast %35 : vector<1xf32> to vector<1x1xf32>
    %37 = math.sqrt %36 : vector<1x1xf32>
    %cst_19 = arith.constant 9.99999996E-13 : f32
    %38 = vector.broadcast %cst_19 : f32 to vector<1x1xf32>
    %39 = arith.maximumf %37, %38 : vector<1x1xf32>
    %40 = vector.broadcast %39 : vector<1x1xf32> to vector<1x32xf32>
    %41 = arith.divf %33, %40 : vector<1x32xf32>
    %42 = arith.mulf %13, %27 : vector<1x32xf32>
    %cst_20 = arith.constant dense<0.000000e+00> : vector<1xf32>
    %43 = vector.multi_reduction <add>, %42, %cst_20 [1] : vector<1x32xf32> to vector<1xf32>
    %44 = vector.shape_cast %43 : vector<1xf32> to vector<1x1xf32>
    %cst_21 = arith.constant 14.2857141 : f32
    %45 = vector.broadcast %cst_21 : f32 to vector<1x1xf32>
    %46 = arith.mulf %44, %45 : vector<1x1xf32>
    %c0_22 = arith.constant 0 : index
    %c0_23 = arith.constant 0 : index
    %c0_24 = arith.constant 0 : index
    %47 = vector.load %arg2[%c0_22, %c0_23, %c0_24] : memref<1x1x2xf32, #tpu.memory_space<vmem>>, vector<1x1x1xf32>
    %48 = vector.shape_cast %47 : vector<1x1x1xf32> to vector<1x1xf32>
    %49 = vector.shape_cast %46 : vector<1x1xf32> to vector<1x1x1xf32>
    tpu.vector_store %arg2[%c0_22, %c0_23, %c0_24], %49 {strides = array<i32>} : memref<1x1x2xf32, #tpu.memory_space<vmem>>, vector<1x1x1xf32>,
    %50 = arith.mulf %13, %41 : vector<1x32xf32>
    %cst_25 = arith.constant dense<0.000000e+00> : vector<1xf32>
    %51 = vector.multi_reduction <add>, %50, %cst_25 [1] : vector<1x32xf32> to vector<1xf32>
    %52 = vector.shape_cast %51 : vector<1xf32> to vector<1x1xf32>
    %cst_26 = arith.constant 14.2857141 : f32
    %53 = vector.broadcast %cst_26 : f32 to vector<1x1xf32>
    %54 = arith.mulf %52, %53 : vector<1x1xf32>
    %c0_27 = arith.constant 0 : index
    %c0_28 = arith.constant 0 : index
    %c1_29 = arith.constant 1 : index
    %55 = vector.load %arg2[%c0_27, %c0_28, %c1_29] : memref<1x1x2xf32, #tpu.memory_space<vmem>>, vector<1x1x1xf32>
    %56 = vector.shape_cast %55 : vector<1x1x1xf32> to vector<1x1xf32>
    %57 = vector.shape_cast %54 : vector<1x1xf32> to vector<1x1x1xf32>
    tpu.vector_store %arg2[%c0_27, %c0_28, %c1_29], %57 {strides = array<i32>} : memref<1x1x2xf32, #tpu.memory_space<vmem>>, vector<1x1x1xf32>,
    return
  }
  func.func @transform_0(%arg0: i32) -> (i32, i32, i32, i32) {
    %c0_i32 = arith.constant 0 : i32
    %c0_i32_0 = arith.constant 0 : i32
    %c0_i32_1 = arith.constant 0 : i32
    %c0_i32_2 = arith.constant 0 : i32
    return %c0_i32, %arg0, %c0_i32_0, %c0_i32_1 : i32, i32, i32, i32
  }
  func.func @transform_1(%arg0: i32) -> (i32, i32, i32) {
    %c0_i32 = arith.constant 0 : i32
    %c0_i32_0 = arith.constant 0 : i32
    %c0_i32_1 = arith.constant 0 : i32
    return %arg0, %c0_i32, %c0_i32_0 : i32, i32, i32
  }
}

</mosaic_0001>

<llo_original>
// kernel: tvsd_forward.7
$region0: #{tvsd_forward.7}
  #allocation0 [shape = 'u32[]', space=smem, size = 0x4, offset = 0x4, fixed_abs, tag = 'smem constant byte address 0x4 - core index']
  #allocation1 [shape = 'u32[144,128]{1,0:T(1,128)}', space=vmem, size = 0x12000, scoped, tag = 'internal scratch']
  %s0 = inlined_call_operand.vmem [shape: f32[384,3], index: 0, kind: input, shape index: {}]
  %s1 = inlined_call_operand.vmem [shape: bf16[3,32], index: 1, kind: input, shape index: {}]
  %s2 = inlined_call_operand.vmem [shape: f32[384,32], index: 2, kind: output, shape index: {}]
  %s3 = sld [smem:[#allocation0]]
  $region41: #{tvsd_forward.7} parent=0
    _
  %s5 = ssub.s32 1, %s3
  %s6 = scalar_select 0, %s5, %s3
  loop: start=0, step=1, limit=5
  $region2: #{tvsd_forward.7} parent=0 // loop_pre_header
    _
  $region3: #{tvsd_forward.7} parent=0 // loop_header
    %s8 = sphi 0, %s12
    %p9 = scmp.ge.s32.totalorder %s8, 5
    %s18 = sphi 0, %s20
    %s21 = sphi 0, %s18
    %s22 = sphi 0, %s21
    %s38 = sphi 0, %s22
    %s42 = sphi 0, %s42
    %s44 = sphi 0, %s42
    %s45 = sphi 0, %s44
    %s59 = sphi 0, %s45
    %s65 = sphi 0, %s67
    %s68 = sphi 0, %s65
    %s69 = sphi 0, %s68
    %s85 = sphi 0, %s69
  $region4: #{tvsd_forward.7} parent=0 // loop_header_branch
    %11 = sbr.rel (%p9) target = $region8
  $region5: #{tvsd_forward.7} parent=0 // loop_body
    %s13 = ssub.s32 %s8, 1
    %s14 = ssub.s32 %s8, 2
    %s15 = sadd.s32 %s8, 1
    %s16 = ssub.s32 %s8, %s15
    %p17 = scmp.eq.s32.totalorder %s16, 0
    %s19 = sadd.s32 %s18, 1
    %s20 = scalar_select %p17, %s18, %s19
    %p23 = pneg %p17
    %p24 = scmp.eq.s32.totalorder %s8, 2
    %p25 = por %p23, %p24
    %p26 = scmp.ne.s32.totalorder %s18, %s21
    %p27 = scmp.eq.s32.totalorder %s8, 0
    %p28 = por %p26, %p27
    %p29 = scmp.ne.s32.totalorder %s18, %s21
    %p30 = scmp.eq.s32.totalorder %s13, 2
    %p31 = por %p29, %p30
    %p32 = scmp.ne.s32.totalorder %s21, %s22
    %p33 = scmp.eq.s32.totalorder %s13, 0
    %p34 = por %p32, %p33
    %p35 = scmp.ne.s32.totalorder %s21, %s22
    %p36 = scmp.eq.s32.totalorder %s14, 2
    %p37 = por %p35, %p36
    %p39 = scmp.ne.s32.totalorder %s22, %s38
    %p40 = scmp.eq.s32.totalorder %s14, 0
    %p41 = por %p39, %p40
    %s43 = sadd.s32 %s42, 1
    %p46 = scmp.eq.s32.totalorder %s8, 2
    %p47 = scmp.ne.s32.totalorder %s42, %s44
    %p48 = scmp.eq.s32.totalorder %s8, 0
    %p49 = por %p47, %p48
    %p50 = scmp.ne.s32.totalorder %s42, %s44
    %p51 = scmp.eq.s32.totalorder %s13, 2
    %p52 = por %p50, %p51
    %p53 = scmp.ne.s32.totalorder %s44, %s45
    %p54 = scmp.eq.s32.totalorder %s13, 0
    %p55 = por %p53, %p54
    %p56 = scmp.ne.s32.totalorder %s44, %s45
    %p57 = scmp.eq.s32.totalorder %s14, 2
    %p58 = por %p56, %p57
    %p60 = scmp.ne.s32.totalorder %s45, %s59
    %p61 = scmp.eq.s32.totalorder %s14, 0
    %p62 = por %p60, %p61
    %s63 = ssub.s32 %s8, %s15
    %p64 = scmp.eq.s32.totalorder %s63, 0
    %s66 = sadd.s32 %s65, 1
    %s67 = scalar_select %p64, %s65, %s66
    %p70 = pneg %p64
    %p71 = scmp.eq.s32.totalorder %s8, 2
    %p72 = por %p70, %p71
    %p73 = scmp.ne.s32.totalorder %s65, %s68
    %p74 = scmp.eq.s32.totalorder %s8, 0
    %p75 = por %p73, %p74
    %p76 = scmp.ne.s32.totalorder %s65, %s68
    %p77 = scmp.eq.s32.totalorder %s13, 2
    %p78 = por %p76, %p77
    %p79 = scmp.ne.s32.totalorder %s68, %s69
    %p80 = scmp.eq.s32.totalorder %s13, 0
    %p81 = por %p79, %p80
    %p82 = scmp.ne.s32.totalorder %s68, %s69
    %p83 = scmp.eq.s32.totalorder %s14, 2
    %p84 = por %p82, %p83
    %p86 = scmp.ne.s32.totalorder %s69, %s85
    %p87 = scmp.eq.s32.totalorder %s14, 0
    %p88 = por %p86, %p87
    %p89 = scmp.le.s32.totalorder 1, %s8
    %p90 = scmp.lt.s32.totalorder %s8, 4
    %p91 = pnand %p89, %p90
    %p92 = pneg %p91
    // Predicated region
    $region9: #{tvsd_forward.7} parent=5 // pred_check
      _
    $region10: #{tvsd_forward.7} parent=5 // pred_check_branch
      %94 = sbr.rel (%p91) target = $region12
    $region11: #{tvsd_forward.7} parent=5 // pred_region
      %s95 = ssub.s32 %s8, 1
      // Predicated region
      $region13: #{tvsd_forward.7} parent=11 // pred_check
        %p96 = pneg %p55
      $region14: #{tvsd_forward.7} parent=11 // pred_check_branch
        %98 = sbr.rel (%p96) target = $region16
      $region15: #{tvsd_forward.7} parent=11 // pred_region
        _
      $region16: #{tvsd_forward.7} parent=11 // pred_fallthru
        _
    $region12: #{tvsd_forward.7} parent=5 // pred_fallthru
      _
    %p99 = scmp.lt.s32.totalorder %s8, 3
    // Predicated region
    $region17: #{tvsd_forward.7} parent=5 // pred_check
      %p100 = pneg %p99
    $region18: #{tvsd_forward.7} parent=5 // pred_check_branch
      %102 = sbr.rel (%p100) target = $region20
    $region19: #{tvsd_forward.7} parent=5 // pred_region
      // Predicated region
      $region21: #{tvsd_forward.7} parent=19 // pred_check
        %p103 = pneg %p28
      $region22: #{tvsd_forward.7} parent=19 // pred_check_branch
        %105 = sbr.rel (%p103) target = $region24
      $region23: #{tvsd_forward.7} parent=19 // pred_region
        %s106 = smul.u32 16, %s8
        %p107 = scmp.lt.s32.totalorder %s106, 47
        %s108 = scalar_select %p107, %s106, 47
        %s109 = smul.addr %s108, 8
        %s110 = scalar_lea.vmem %s0, %s109
        %s111 = smul.u32 16, %s8
      $region24: #{tvsd_forward.7} parent=19 // pred_fallthru
        _
    $region20: #{tvsd_forward.7} parent=5 // pred_fallthru
      _
    %p112 = scmp.le.s32.totalorder 1, %s8
    %p113 = scmp.lt.s32.totalorder %s8, 4
    %p114 = pnand %p112, %p113
    %p115 = pneg %p114
    // Predicated region
    $region25: #{tvsd_forward.7} parent=5 // pred_check
      _
    $region26: #{tvsd_forward.7} parent=5 // pred_check_branch
      %117 = sbr.rel (%p114) target = $region28
    $region27: #{tvsd_forward.7} parent=5 // pred_region
      %s118 = ssub.s32 %s8, 1
      %s119 = smul.u32 16, %s13
      %p120 = scmp.lt.s32.totalorder %s119, 47
      %s121 = scalar_select %p120, %s119, 47
      %s122 = smul.addr %s121, 8
      %s123 = scalar_lea.vmem %s0, %s122
      %p124 = pneg %p34
      %p125 = pneg %p31
      %p126 = pneg %p55
      %p127 = pneg %p52
      %p128 = pneg %p81
      %p129 = pneg %p78
      %s130 = smul.u32 16, %s13
      %p131 = scmp.lt.s32.totalorder %s130, 47
      %s132 = scalar_select %p131, %s130, 47
      %s133 = smul.addr %s132, 8
      %s134 = scalar_lea.vmem %s2, %s133
      %s135 = smul.u32 16, %s13
      %p136 = scmp.lt.s32.totalorder %s135, 47
      %s137 = scalar_select %p136, %s135, 47
      %s138 = smul.addr %s137, 8
      %s139 = scalar_lea.vmem %s0, %s138
      %s140 = smul.u32 16, %s13
      %s141 = smul.u32 16, %s13
      %p142 = scmp.lt.s32.totalorder %s141, 47
      %s143 = scalar_select %p142, %s141, 47
      %s144 = smul.addr %s143, 8
      %s145 = scalar_lea.vmem %s2, %s144
      %s146 = smul.u32 16, %s13
      %v148 = vld [vmem:[%s139] sm:$0xff]
      %v149 = vld [vmem:[%s139 + $0x8] sm:$0xff]
      %v150 = vld [vmem:[%s139 + $0x10] sm:$0xff]
      %v151 = vld [vmem:[%s139 + $0x18] sm:$0xff]
      %v152 = vld [vmem:[%s139 + $0x20] sm:$0xff]
      %v153 = vld [vmem:[%s139 + $0x28] sm:$0xff]
      %v154 = vld [vmem:[%s139 + $0x30] sm:$0xff]
      %v155 = vld [vmem:[%s139 + $0x38] sm:$0xff]
      %v156 = vld [vmem:[%s139 + $0x40] sm:$0xff]
      %v157 = vld [vmem:[%s139 + $0x48] sm:$0xff]
      %v158 = vld [vmem:[%s139 + $0x50] sm:$0xff]
      %v159 = vld [vmem:[%s139 + $0x58] sm:$0xff]
      %v160 = vld [vmem:[%s139 + $0x60] sm:$0xff]
      %v161 = vld [vmem:[%s139 + $0x68] sm:$0xff]
      %v162 = vld [vmem:[%s139 + $0x70] sm:$0xff]
      %v163 = vld [vmem:[%s139 + $0x78] sm:$0xff]
      %v164 = vpack.c.bf16 %v149, %v148
      %v165 = vpack.c.bf16 %v151, %v150
      %v166 = vpack.c.bf16 %v153, %v152
      %v167 = vpack.c.bf16 %v155, %v154
      %v168 = vpack.c.bf16 %v157, %v156
      %v169 = vpack.c.bf16 %v159, %v158
      %v170 = vpack.c.bf16 %v161, %v160
      %v171 = vpack.c.bf16 %v163, %v162
      %v172 = vld [vmem:[%s1] sm:$0x3]
      %vm173 = vcmask 23552
      %v175 = vsel %vm173, %v164, 0
      %v178 = vsel %vm173, %v165, 0
      %v181 = vsel %vm173, %v166, 0
      %v184 = vsel %vm173, %v167, 0
      %v187 = vsel %vm173, %v168, 0
      %v190 = vsel %vm173, %v169, 0
      %v193 = vsel %vm173, %v170, 0
      %v196 = vsel %vm173, %v171, 0
      %vm198 = vcmask 1040384
      %vm199 = vcmask 1041408
      %v200 = vsel %vm198, 4294967295, 65535
      %v201 = vsel %vm199, %v200, 0
      %v203 = vand.u32 %v172, %v201
      %205 = vmatprep.subr.bf16.mxu0 0
      %206 = vmatpush1.bf16.msra.mxu0 %v203
      %207 = vmatprep.subr.bf16.mxu0 0
      %208 = vmatpush1.bf16.msra.mxu0 0
      %209 = vmatprep.subr.bf16.mxu0 0
      %210 = vmatpush1.bf16.msra.mxu0 0
      %211 = vmatprep.subr.bf16.mxu0 0
      %212 = vmatpush1.bf16.msra.mxu0 0
      %213 = vmatprep.subr.bf16.mxu0 0
      %214 = vmatpush1.bf16.msra.mxu0 0
      %215 = vmatprep.subr.bf16.mxu0 0
      %216 = vmatpush1.bf16.msra.mxu0 0
      %217 = vmatprep.subr.bf16.mxu0 0
      %218 = vmatpush1.bf16.msra.mxu0 0
      %219 = vmatprep.subr.bf16.mxu0 0
      %220 = vmatpush1.bf16.msra.mxu0 0
      %221 = vmatprep.subr.bf16.mxu0 0
      %222 = vmatpush1.bf16.msra.mxu0 0
      %223 = vmatprep.subr.bf16.mxu0 0
      %224 = vmatpush1.bf16.msra.mxu0 0
      %225 = vmatprep.subr.bf16.mxu0 0
      %226 = vmatpush1.bf16.msra.mxu0 0
      %227 = vmatprep.subr.bf16.mxu0 0
      %228 = vmatpush1.bf16.msra.mxu0 0
      %229 = vmatprep.subr.bf16.mxu0 0
      %230 = vmatpush1.bf16.msra.mxu0 0
      %231 = vmatprep.subr.bf16.mxu0 0
      %232 = vmatpush1.bf16.msra.mxu0 0
      %233 = vmatprep.subr.bf16.mxu0 0
      %234 = vmatpush1.bf16.msra.mxu0 0
      %235 = vmatprep.subr.bf16.mxu0 0
      %236 = vmatpush1.bf16.msra.mxu0 0
      %237 = vmatprep.mubr.bf16.mxu0 0
      %238 = vmatmul.mubr.bf16.gmra.mrb[0].mxu0 %v175
      %v239 = vpop.f32.mrb[0].mxu0
      %v240 = vadd.f32 0.0, %v239
      %v241 = vpop.f32.mrb[0].mxu0
      %v242 = vpop.f32.mrb[0].mxu0
      %v243 = vadd.f32 0.0, %v242
      %v244 = vpop.f32.mrb[0].mxu0
      %245 = vmatprep.mubr.bf16.mxu0 0
      %246 = vmatmul.mubr.bf16.gmra.mrb[0].mxu0 %v178
      %v247 = vpop.f32.mrb[0].mxu0
      %v248 = vadd.f32 0.0, %v247
      %v249 = vpop.f32.mrb[0].mxu0
      %v250 = vpop.f32.mrb[0].mxu0
      %v251 = vadd.f32 0.0, %v250
      %v252 = vpop.f32.mrb[0].mxu0
      %253 = vmatprep.mubr.bf16.mxu0 0
      %254 = vmatmul.mubr.bf16.gmra.mrb[0].mxu0 %v181
      %v255 = vpop.f32.mrb[0].mxu0
      %v256 = vadd.f32 0.0, %v255
      %v257 = vpop.f32.mrb[0].mxu0
      %v258 = vpop.f32.mrb[0].mxu0
      %v259 = vadd.f32 0.0, %v258
      %v260 = vpop.f32.mrb[0].mxu0
      %261 = vmatprep.mubr.bf16.mxu0 0
      %262 = vmatmul.mubr.bf16.gmra.mrb[0].mxu0 %v184
      %v263 = vpop.f32.mrb[0].mxu0
      %v264 = vadd.f32 0.0, %v263
      %v265 = vpop.f32.mrb[0].mxu0
      %v266 = vpop.f32.mrb[0].mxu0
      %v267 = vadd.f32 0.0, %v266
      %v268 = vpop.f32.mrb[0].mxu0
      %269 = vmatprep.mubr.bf16.mxu0 0
      %270 = vmatmul.mubr.bf16.gmra.mrb[0].mxu0 %v187
      %v271 = vpop.f32.mrb[0].mxu0
      %v272 = vadd.f32 0.0, %v271
      %v273 = vpop.f32.mrb[0].mxu0
      %v274 = vpop.f32.mrb[0].mxu0
      %v275 = vadd.f32 0.0, %v274
      %v276 = vpop.f32.mrb[0].mxu0
      %277 = vmatprep.mubr.bf16.mxu0 0
      %278 = vmatmul.mubr.bf16.gmra.mrb[0].mxu0 %v190
      %v279 = vpop.f32.mrb[0].mxu0
      %v280 = vadd.f32 0.0, %v279
      %v281 = vpop.f32.mrb[0].mxu0
      %v282 = vpop.f32.mrb[0].mxu0
      %v283 = vadd.f32 0.0, %v282
      %v284 = vpop.f32.mrb[0].mxu0
      %285 = vmatprep.mubr.bf16.mxu0 0
      %286 = vmatmul.mubr.bf16.gmra.mrb[0].mxu0 %v193
      %v287 = vpop.f32.mrb[0].mxu0
      %v288 = vadd.f32 0.0, %v287
      %v289 = vpop.f32.mrb[0].mxu0
      %v290 = vpop.f32.mrb[0].mxu0
      %v291 = vadd.f32 0.0, %v290
      %v292 = vpop.f32.mrb[0].mxu0
      %293 = vmatprep.mubr.bf16.mxu0 0
      %294 = vmatmul.mubr.bf16.gmra.mrb[0].mxu0 %v196
      %v295 = vpop.f32.mrb[0].mxu0
      %v296 = vadd.f32 0.0, %v295
      %v297 = vpop.f32.mrb[0].mxu0
      %v298 = vpop.f32.mrb[0].mxu0
      %v299 = vadd.f32 0.0, %v298
      %v300 = vpop.f32.mrb[0].mxu0
      %301 = vdwg.mxu0
      %v302 = vmax.f32 %v240, 0.0
      %v303 = vmax.f32 %v243, 0.0
      %v304 = vmax.f32 %v248, 0.0
      %v305 = vmax.f32 %v251, 0.0
      %v306 = vmax.f32 %v256, 0.0
      %v307 = vmax.f32 %v259, 0.0
      %v308 = vmax.f32 %v264, 0.0
      %v309 = vmax.f32 %v267, 0.0
      %v310 = vmax.f32 %v272, 0.0
      %v311 = vmax.f32 %v275, 0.0
      %v312 = vmax.f32 %v280, 0.0
      %v313 = vmax.f32 %v283, 0.0
      %v314 = vmax.f32 %v288, 0.0
      %v315 = vmax.f32 %v291, 0.0
      %v316 = vmax.f32 %v296, 0.0
      %v317 = vmax.f32 %v299, 0.0
      %vm318 = vcmask 261120
      %319 = vst.msk [vmem:[%s145] sm:$0xff] %vm318, %v302
      %320 = vst.msk [vmem:[%s145 + $0x8] sm:$0xff] %vm318, %v303
      %321 = vst.msk [vmem:[%s145 + $0x10] sm:$0xff] %vm318, %v304
      %322 = vst.msk [vmem:[%s145 + $0x18] sm:$0xff] %vm318, %v305
      %323 = vst.msk [vmem:[%s145 + $0x20] sm:$0xff] %vm318, %v306
      %324 = vst.msk [vmem:[%s145 + $0x28] sm:$0xff] %vm318, %v307
      %325 = vst.msk [vmem:[%s145 + $0x30] sm:$0xff] %vm318, %v308
      %326 = vst.msk [vmem:[%s145 + $0x38] sm:$0xff] %vm318, %v309
      %327 = vst.msk [vmem:[%s145 + $0x40] sm:$0xff] %vm318, %v310
      %328 = vst.msk [vmem:[%s145 + $0x48] sm:$0xff] %vm318, %v311
      %329 = vst.msk [vmem:[%s145 + $0x50] sm:$0xff] %vm318, %v312
      %330 = vst.msk [vmem:[%s145 + $0x58] sm:$0xff] %vm318, %v313
      %331 = vst.msk [vmem:[%s145 + $0x60] sm:$0xff] %vm318, %v314
      %332 = vst.msk [vmem:[%s145 + $0x68] sm:$0xff] %vm318, %v315
      %333 = vst.msk [vmem:[%s145 + $0x70] sm:$0xff] %vm318, %v316
      %334 = vst.msk [vmem:[%s145 + $0x78] sm:$0xff] %vm318, %v317
      %s335 = smul.u32 16, %s13
      %p336 = scmp.lt.s32.totalorder %s335, 47
      %s337 = scalar_select %p336, %s335, 47
      %s338 = smul.addr %s337, 8
      %s339 = scalar_lea.vmem %s2, %s338
      // Predicated region
      $region29: #{tvsd_forward.7} parent=27 // pred_check
        %p340 = pneg %p78
      $region30: #{tvsd_forward.7} parent=27 // pred_check_branch
        %342 = sbr.rel (%p340) target = $region32
      $region31: #{tvsd_forward.7} parent=27 // pred_region
        %s343 = smul.u32 16, %s13
      $region32: #{tvsd_forward.7} parent=27 // pred_fallthru
        _
    $region28: #{tvsd_forward.7} parent=5 // pred_fallthru
      _
    %p344 = scmp.le.s32.totalorder 2, %s8
    // Predicated region
    $region33: #{tvsd_forward.7} parent=5 // pred_check
      %p345 = pneg %p344
    $region34: #{tvsd_forward.7} parent=5 // pred_check_branch
      %347 = sbr.rel (%p345) target = $region36
    $region35: #{tvsd_forward.7} parent=5 // pred_region
      %s348 = ssub.s32 %s8, 2
      // Predicated region
      $region37: #{tvsd_forward.7} parent=35 // pred_check
        %p349 = pneg %p84
      $region38: #{tvsd_forward.7} parent=35 // pred_check_branch
        %351 = sbr.rel (%p349) target = $region40
      $region39: #{tvsd_forward.7} parent=35 // pred_region
        %s352 = smul.u32 16, %s14
        %p353 = scmp.lt.s32.totalorder %s352, 47
        %s354 = scalar_select %p353, %s352, 47
        %s355 = smul.addr %s354, 8
        %s356 = scalar_lea.vmem %s2, %s355
      $region40: #{tvsd_forward.7} parent=35 // pred_fallthru
        _
    $region36: #{tvsd_forward.7} parent=5 // pred_fallthru
      _
  $region6: #{tvsd_forward.7} parent=0 // loop_footer
    %s12 = sadd.s32 1, %s8
  $region7: #{tvsd_forward.7} parent=0 // loop_footer_branch
    %7 = sbr.rel target = $region3
  $region8: #{tvsd_forward.7} parent=0 // loop_exit
    _

// kernel: tvsd_forward.8
$region0: #{tvsd_forward.8}
  #allocation0 [shape = 'u32[]', space=smem, size = 0x4, offset = 0x4, fixed_abs, tag = 'smem constant byte address 0x4 - core index']
  #allocation1 [shape = 'u32[144,128]{1,0:T(1,128)}', space=vmem, size = 0x12000, scoped, tag = 'internal scratch']
  %s0 = inlined_call_operand.vmem [shape: f32[96,32], index: 0, kind: input, shape index: {}]
  %s1 = inlined_call_operand.vmem [shape: bf16[32,32], index: 1, kind: input, shape index: {}]
  %s2 = inlined_call_operand.vmem [shape: f32[96,32], index: 2, kind: output, shape index: {}]
  %s3 = sld [smem:[#allocation0]]
  $region18: #{tvsd_forward.8} parent=0
    _
  %s5 = ssub.s32 1, %s3
  %s6 = scalar_select 0, %s5, %s3
  // Predicated region
  $region2: #{tvsd_forward.8} parent=0 // pred_check
    _
  $region3: #{tvsd_forward.8} parent=0 // pred_check_branch
    %8 = sbr.rel (0) target = $region5
  $region4: #{tvsd_forward.8} parent=0 // pred_region
    _
  $region5: #{tvsd_forward.8} parent=0 // pred_fallthru
    _
  // Predicated region
  $region6: #{tvsd_forward.8} parent=0 // pred_check
    _
  $region7: #{tvsd_forward.8} parent=0 // pred_check_branch
    %10 = sbr.rel (0) target = $region9
  $region8: #{tvsd_forward.8} parent=0 // pred_region
    _
  $region9: #{tvsd_forward.8} parent=0 // pred_fallthru
    _
  %v12 = vld [vmem:[%s0] sm:$0xff]
  %v13 = vld [vmem:[%s0 + $0x8] sm:$0xff]
  %v14 = vld [vmem:[%s0 + $0x10] sm:$0xff]
  %v15 = vld [vmem:[%s0 + $0x18] sm:$0xff]
  %v16 = vld [vmem:[%s0 + $0x20] sm:$0xff]
  %v17 = vld [vmem:[%s0 + $0x28] sm:$0xff]
  %v18 = vld [vmem:[%s0 + $0x30] sm:$0xff]
  %v19 = vld [vmem:[%s0 + $0x38] sm:$0xff]
  %v20 = vld [vmem:[%s0 + $0x40] sm:$0xff]
  %v21 = vld [vmem:[%s0 + $0x48] sm:$0xff]
  %v22 = vld [vmem:[%s0 + $0x50] sm:$0xff]
  %v23 = vld [vmem:[%s0 + $0x58] sm:$0xff]
  %v24 = vpack.c.bf16 %v13, %v12
  %v25 = vpack.c.bf16 %v15, %v14
  %v26 = vpack.c.bf16 %v17, %v16
  %v27 = vpack.c.bf16 %v19, %v18
  %v28 = vpack.c.bf16 %v21, %v20
  %v29 = vpack.c.bf16 %v23, %v22
  %v30 = vld [vmem:[%s1] sm:$0xf]
  %v31 = vld [vmem:[%s1 + $0x4] sm:$0xf]
  %v32 = vld [vmem:[%s1 + $0x8] sm:$0xf]
  %v33 = vld [vmem:[%s1 + $0xc] sm:$0xf]
  %v38 = vunpack.c.l.b16 %v30
  %v39 = vunpack.c.l.b16 %v31
  %v40 = vunpack.c.l.b16 %v32
  %v41 = vunpack.c.l.b16 %v33
  %v42 = vpack.c.b16 %v39, %v38
  %v43 = vpack.c.b16 %v41, %v40
  %vm46 = vcmask 261120
  %v48 = vsel %vm46, %v24, 0
  %v51 = vsel %vm46, %v25, 0
  %v54 = vsel %vm46, %v26, 0
  %v57 = vsel %vm46, %v27, 0
  %v60 = vsel %vm46, %v28, 0
  %v63 = vsel %vm46, %v29, 0
  %65 = vmatprep.subr.bf16.mxu0 0
  %66 = vmatpush1.bf16.msra.mxu0 %v42
  %67 = vmatprep.subr.bf16.mxu0 0
  %68 = vmatpush1.bf16.msra.mxu0 %v43
  %69 = vmatprep.subr.bf16.mxu0 0
  %70 = vmatpush1.bf16.msra.mxu0 0
  %71 = vmatprep.subr.bf16.mxu0 0
  %72 = vmatpush1.bf16.msra.mxu0 0
  %73 = vmatprep.subr.bf16.mxu0 0
  %74 = vmatpush1.bf16.msra.mxu0 0
  %75 = vmatprep.subr.bf16.mxu0 0
  %76 = vmatpush1.bf16.msra.mxu0 0
  %77 = vmatprep.subr.bf16.mxu0 0
  %78 = vmatpush1.bf16.msra.mxu0 0
  %79 = vmatprep.subr.bf16.mxu0 0
  %80 = vmatpush1.bf16.msra.mxu0 0
  %81 = vmatprep.subr.bf16.mxu0 0
  %82 = vmatpush1.bf16.msra.mxu0 0
  %83 = vmatprep.subr.bf16.mxu0 0
  %84 = vmatpush1.bf16.msra.mxu0 0
  %85 = vmatprep.subr.bf16.mxu0 0
  %86 = vmatpush1.bf16.msra.mxu0 0
  %87 = vmatprep.subr.bf16.mxu0 0
  %88 = vmatpush1.bf16.msra.mxu0 0
  %89 = vmatprep.subr.bf16.mxu0 0
  %90 = vmatpush1.bf16.msra.mxu0 0
  %91 = vmatprep.subr.bf16.mxu0 0
  %92 = vmatpush1.bf16.msra.mxu0 0
  %93 = vmatprep.subr.bf16.mxu0 0
  %94 = vmatpush1.bf16.msra.mxu0 0
  %95 = vmatprep.subr.bf16.mxu0 0
  %96 = vmatpush1.bf16.msra.mxu0 0
  %97 = vmatprep.mubr.bf16.mxu0 0
  %98 = vmatmul.mubr.bf16.gmra.mrb[0].mxu0 %v48
  %v99 = vpop.f32.mrb[0].mxu0
  %v100 = vadd.f32 0.0, %v99
  %v101 = vpop.f32.mrb[0].mxu0
  %v102 = vpop.f32.mrb[0].mxu0
  %v103 = vadd.f32 0.0, %v102
  %v104 = vpop.f32.mrb[0].mxu0
  %105 = vmatprep.mubr.bf16.mxu0 0
  %106 = vmatmul.mubr.bf16.gmra.mrb[0].mxu0 %v51
  %v107 = vpop.f32.mrb[0].mxu0
  %v108 = vadd.f32 0.0, %v107
  %v109 = vpop.f32.mrb[0].mxu0
  %v110 = vpop.f32.mrb[0].mxu0
  %v111 = vadd.f32 0.0, %v110
  %v112 = vpop.f32.mrb[0].mxu0
  %113 = vmatprep.mubr.bf16.mxu0 0
  %114 = vmatmul.mubr.bf16.gmra.mrb[0].mxu0 %v54
  %v115 = vpop.f32.mrb[0].mxu0
  %v116 = vadd.f32 0.0, %v115
  %v117 = vpop.f32.mrb[0].mxu0
  %v118 = vpop.f32.mrb[0].mxu0
  %v119 = vadd.f32 0.0, %v118
  %v120 = vpop.f32.mrb[0].mxu0
  %121 = vmatprep.mubr.bf16.mxu0 0
  %122 = vmatmul.mubr.bf16.gmra.mrb[0].mxu0 %v57
  %v123 = vpop.f32.mrb[0].mxu0
  %v124 = vadd.f32 0.0, %v123
  %v125 = vpop.f32.mrb[0].mxu0
  %v126 = vpop.f32.mrb[0].mxu0
  %v127 = vadd.f32 0.0, %v126
  %v128 = vpop.f32.mrb[0].mxu0
  %129 = vmatprep.mubr.bf16.mxu0 0
  %130 = vmatmul.mubr.bf16.gmra.mrb[0].mxu0 %v60
  %v131 = vpop.f32.mrb[0].mxu0
  %v132 = vadd.f32 0.0, %v131
  %v133 = vpop.f32.mrb[0].mxu0
  %v134 = vpop.f32.mrb[0].mxu0
  %v135 = vadd.f32 0.0, %v134
  %v136 = vpop.f32.mrb[0].mxu0
  %137 = vmatprep.mubr.bf16.mxu0 0
  %138 = vmatmul.mubr.bf16.gmra.mrb[0].mxu0 %v63
  %v139 = vpop.f32.mrb[0].mxu0
  %v140 = vadd.f32 0.0, %v139
  %v141 = vpop.f32.mrb[0].mxu0
  %v142 = vpop.f32.mrb[0].mxu0
  %v143 = vadd.f32 0.0, %v142
  %v144 = vpop.f32.mrb[0].mxu0
  %145 = vdwg.mxu0
  %v146 = vmax.f32 %v100, 0.0
  %v147 = vmax.f32 %v103, 0.0
  %v148 = vmax.f32 %v108, 0.0
  %v149 = vmax.f32 %v111, 0.0
  %v150 = vmax.f32 %v116, 0.0
  %v151 = vmax.f32 %v119, 0.0
  %v152 = vmax.f32 %v124, 0.0
  %v153 = vmax.f32 %v127, 0.0
  %v154 = vmax.f32 %v132, 0.0
  %v155 = vmax.f32 %v135, 0.0
  %v156 = vmax.f32 %v140, 0.0
  %v157 = vmax.f32 %v143, 0.0
  %158 = vst.msk [vmem:[%s2] sm:$0xff] %vm46, %v146
  %159 = vst.msk [vmem:[%s2 + $0x8] sm:$0xff] %vm46, %v147
  %160 = vst.msk [vmem:[%s2 + $0x10] sm:$0xff] %vm46, %v148
  %161 = vst.msk [vmem:[%s2 + $0x18] sm:$0xff] %vm46, %v149
  %162 = vst.msk [vmem:[%s2 + $0x20] sm:$0xff] %vm46, %v150
  %163 = vst.msk [vmem:[%s2 + $0x28] sm:$0xff] %vm46, %v151
  %164 = vst.msk [vmem:[%s2 + $0x30] sm:$0xff] %vm46, %v152
  %165 = vst.msk [vmem:[%s2 + $0x38] sm:$0xff] %vm46, %v153
  %166 = vst.msk [vmem:[%s2 + $0x40] sm:$0xff] %vm46, %v154
  %167 = vst.msk [vmem:[%s2 + $0x48] sm:$0xff] %vm46, %v155
  %168 = vst.msk [vmem:[%s2 + $0x50] sm:$0xff] %vm46, %v156
  %169 = vst.msk [vmem:[%s2 + $0x58] sm:$0xff] %vm46, %v157
  // Predicated region
  $region10: #{tvsd_forward.8} parent=0 // pred_check
    _
  $region11: #{tvsd_forward.8} parent=0 // pred_check_branch
    %171 = sbr.rel (0) target = $region13
  $region12: #{tvsd_forward.8} parent=0 // pred_region
    _
  $region13: #{tvsd_forward.8} parent=0 // pred_fallthru
    _
  // Predicated region
  $region14: #{tvsd_forward.8} parent=0 // pred_check
    _
  $region15: #{tvsd_forward.8} parent=0 // pred_check_branch
    %173 = sbr.rel (0) target = $region17
  $region16: #{tvsd_forward.8} parent=0 // pred_region
    _
  $region17: #{tvsd_forward.8} parent=0 // pred_fallthru
    _

// kernel: tvsd_forward.9
$region0: #{tvsd_forward.9}
  #allocation0 [shape = 'u32[]', space=smem, size = 0x4, offset = 0x4, fixed_abs, tag = 'smem constant byte address 0x4 - core index']
  #allocation1 [shape = 'u32[144,128]{1,0:T(1,128)}', space=vmem, size = 0x12000, scoped, tag = 'internal scratch']
  %s0 = inlined_call_operand.vmem [shape: f32[2,16,32], index: 0, kind: input, shape index: {}]
  %s1 = inlined_call_operand.vmem [shape: f32[2,16,32], index: 1, kind: input, shape index: {}]
  %s2 = inlined_call_operand.vmem [shape: bf16[32,32], index: 2, kind: input, shape index: {}]
  %s3 = inlined_call_operand.vmem [shape: f32[64,2], index: 3, kind: input, shape index: {}]
  %s4 = inlined_call_operand.vmem [shape: f32[64,16], index: 4, kind: input, shape index: {}]
  %s5 = inlined_call_operand.vmem [shape: f32[16,32], index: 5, kind: input, shape index: {}]
  %s6 = inlined_call_operand.vmem [shape: f32[64,16], index: 6, kind: input, shape index: {}]
  %s7 = inlined_call_operand.vmem [shape: f32[16,32], index: 7, kind: input, shape index: {}]
  %s8 = inlined_call_operand.vmem [shape: bf16[2,16,64], index: 8, kind: output, shape index: {0}]
  %s9 = inlined_call_operand.vmem [shape: bf16[2,16,64], index: 9, kind: output, shape index: {1}]
  %10 = xla_tuple %s8, %s9
  %s11 = sld [smem:[#allocation0]]
  $region73: #{tvsd_forward.9} parent=0
    _
  %s13 = ssub.s32 1, %s11
  %s14 = scalar_select 0, %s13, %s11
  loop: start=0, step=1, limit=4
  $region2: #{tvsd_forward.9} parent=0 // loop_pre_header
    _
  $region3: #{tvsd_forward.9} parent=0 // loop_header
    %s16 = sphi 0, %s20
    %p17 = scmp.ge.s32.totalorder %s16, 4
    %s26 = sphi 0, %s28
    %s29 = sphi 0, %s26
    %s30 = sphi 0, %s29
    %s46 = sphi 0, %s30
    %s52 = sphi 0, %s54
    %s55 = sphi 0, %s52
    %s56 = sphi 0, %s55
    %s72 = sphi 0, %s56
    %s76 = sphi 0, %s76
    %s78 = sphi 0, %s76
    %s79 = sphi 0, %s78
    %s93 = sphi 0, %s79
    %s97 = sphi 0, %s97
    %s99 = sphi 0, %s97
    %s100 = sphi 0, %s99
    %s114 = sphi 0, %s100
    %s118 = sphi 0, %s118
    %s120 = sphi 0, %s118
    %s121 = sphi 0, %s120
    %s135 = sphi 0, %s121
    %s139 = sphi 0, %s139
    %s141 = sphi 0, %s139
    %s142 = sphi 0, %s141
    %s156 = sphi 0, %s142
    %s160 = sphi 0, %s160
    %s162 = sphi 0, %s160
    %s163 = sphi 0, %s162
    %s177 = sphi 0, %s163
    %s181 = sphi 0, %s181
    %s183 = sphi 0, %s181
    %s184 = sphi 0, %s183
    %s198 = sphi 0, %s184
    %s204 = sphi 0, %s206
    %s207 = sphi 0, %s204
    %s208 = sphi 0, %s207
    %s224 = sphi 0, %s208
    %s230 = sphi 0, %s232
    %s233 = sphi 0, %s230
    %s234 = sphi 0, %s233
    %s250 = sphi 0, %s234
  $region4: #{tvsd_forward.9} parent=0 // loop_header_branch
    %19 = sbr.rel (%p17) target = $region8
  $region5: #{tvsd_forward.9} parent=0 // loop_body
    %s21 = ssub.s32 %s16, 1
    %s22 = ssub.s32 %s16, 2
    %s23 = sadd.s32 %s16, 1
    %s24 = ssub.s32 %s16, %s23
    %p25 = scmp.eq.s32.totalorder %s24, 0
    %s27 = sadd.s32 %s26, 1
    %s28 = scalar_select %p25, %s26, %s27
    %p31 = pneg %p25
    %p32 = scmp.eq.s32.totalorder %s16, 1
    %p33 = por %p31, %p32
    %p34 = scmp.ne.s32.totalorder %s26, %s29
    %p35 = scmp.eq.s32.totalorder %s16, 0
    %p36 = por %p34, %p35
    %p37 = scmp.ne.s32.totalorder %s26, %s29
    %p38 = scmp.eq.s32.totalorder %s21, 1
    %p39 = por %p37, %p38
    %p40 = scmp.ne.s32.totalorder %s29, %s30
    %p41 = scmp.eq.s32.totalorder %s21, 0
    %p42 = por %p40, %p41
    %p43 = scmp.ne.s32.totalorder %s29, %s30
    %p44 = scmp.eq.s32.totalorder %s22, 1
    %p45 = por %p43, %p44
    %p47 = scmp.ne.s32.totalorder %s30, %s46
    %p48 = scmp.eq.s32.totalorder %s22, 0
    %p49 = por %p47, %p48
    %s50 = ssub.s32 %s16, %s23
    %p51 = scmp.eq.s32.totalorder %s50, 0
    %s53 = sadd.s32 %s52, 1
    %s54 = scalar_select %p51, %s52, %s53
    %p57 = pneg %p51
    %p58 = scmp.eq.s32.totalorder %s16, 1
    %p59 = por %p57, %p58
    %p60 = scmp.ne.s32.totalorder %s52, %s55
    %p61 = scmp.eq.s32.totalorder %s16, 0
    %p62 = por %p60, %p61
    %p63 = scmp.ne.s32.totalorder %s52, %s55
    %p64 = scmp.eq.s32.totalorder %s21, 1
    %p65 = por %p63, %p64
    %p66 = scmp.ne.s32.totalorder %s55, %s56
    %p67 = scmp.eq.s32.totalorder %s21, 0
    %p68 = por %p66, %p67
    %p69 = scmp.ne.s32.totalorder %s55, %s56
    %p70 = scmp.eq.s32.totalorder %s22, 1
    %p71 = por %p69, %p70
    %p73 = scmp.ne.s32.totalorder %s56, %s72
    %p74 = scmp.eq.s32.totalorder %s22, 0
    %p75 = por %p73, %p74
    %s77 = sadd.s32 %s76, 1
    %p80 = scmp.eq.s32.totalorder %s16, 1
    %p81 = scmp.ne.s32.totalorder %s76, %s78
    %p82 = scmp.eq.s32.totalorder %s16, 0
    %p83 = por %p81, %p82
    %p84 = scmp.ne.s32.totalorder %s76, %s78
    %p85 = scmp.eq.s32.totalorder %s21, 1
    %p86 = por %p84, %p85
    %p87 = scmp.ne.s32.totalorder %s78, %s79
    %p88 = scmp.eq.s32.totalorder %s21, 0
    %p89 = por %p87, %p88
    %p90 = scmp.ne.s32.totalorder %s78, %s79
    %p91 = scmp.eq.s32.totalorder %s22, 1
    %p92 = por %p90, %p91
    %p94 = scmp.ne.s32.totalorder %s79, %s93
    %p95 = scmp.eq.s32.totalorder %s22, 0
    %p96 = por %p94, %p95
    %s98 = sadd.s32 %s97, 1
    %p101 = scmp.eq.s32.totalorder %s16, 1
    %p102 = scmp.ne.s32.totalorder %s97, %s99
    %p103 = scmp.eq.s32.totalorder %s16, 0
    %p104 = por %p102, %p103
    %p105 = scmp.ne.s32.totalorder %s97, %s99
    %p106 = scmp.eq.s32.totalorder %s21, 1
    %p107 = por %p105, %p106
    %p108 = scmp.ne.s32.totalorder %s99, %s100
    %p109 = scmp.eq.s32.totalorder %s21, 0
    %p110 = por %p108, %p109
    %p111 = scmp.ne.s32.totalorder %s99, %s100
    %p112 = scmp.eq.s32.totalorder %s22, 1
    %p113 = por %p111, %p112
    %p115 = scmp.ne.s32.totalorder %s100, %s114
    %p116 = scmp.eq.s32.totalorder %s22, 0
    %p117 = por %p115, %p116
    %s119 = sadd.s32 %s118, 1
    %p122 = scmp.eq.s32.totalorder %s16, 1
    %p123 = scmp.ne.s32.totalorder %s118, %s120
    %p124 = scmp.eq.s32.totalorder %s16, 0
    %p125 = por %p123, %p124
    %p126 = scmp.ne.s32.totalorder %s118, %s120
    %p127 = scmp.eq.s32.totalorder %s21, 1
    %p128 = por %p126, %p127
    %p129 = scmp.ne.s32.totalorder %s120, %s121
    %p130 = scmp.eq.s32.totalorder %s21, 0
    %p131 = por %p129, %p130
    %p132 = scmp.ne.s32.totalorder %s120, %s121
    %p133 = scmp.eq.s32.totalorder %s22, 1
    %p134 = por %p132, %p133
    %p136 = scmp.ne.s32.totalorder %s121, %s135
    %p137 = scmp.eq.s32.totalorder %s22, 0
    %p138 = por %p136, %p137
    %s140 = sadd.s32 %s139, 1
    %p143 = scmp.eq.s32.totalorder %s16, 1
    %p144 = scmp.ne.s32.totalorder %s139, %s141
    %p145 = scmp.eq.s32.totalorder %s16, 0
    %p146 = por %p144, %p145
    %p147 = scmp.ne.s32.totalorder %s139, %s141
    %p148 = scmp.eq.s32.totalorder %s21, 1
    %p149 = por %p147, %p148
    %p150 = scmp.ne.s32.totalorder %s141, %s142
    %p151 = scmp.eq.s32.totalorder %s21, 0
    %p152 = por %p150, %p151
    %p153 = scmp.ne.s32.totalorder %s141, %s142
    %p154 = scmp.eq.s32.totalorder %s22, 1
    %p155 = por %p153, %p154
    %p157 = scmp.ne.s32.totalorder %s142, %s156
    %p158 = scmp.eq.s32.totalorder %s22, 0
    %p159 = por %p157, %p158
    %s161 = sadd.s32 %s160, 1
    %p164 = scmp.eq.s32.totalorder %s16, 1
    %p165 = scmp.ne.s32.totalorder %s160, %s162
    %p166 = scmp.eq.s32.totalorder %s16, 0
    %p167 = por %p165, %p166
    %p168 = scmp.ne.s32.totalorder %s160, %s162
    %p169 = scmp.eq.s32.totalorder %s21, 1
    %p170 = por %p168, %p169
    %p171 = scmp.ne.s32.totalorder %s162, %s163
    %p172 = scmp.eq.s32.totalorder %s21, 0
    %p173 = por %p171, %p172
    %p174 = scmp.ne.s32.totalorder %s162, %s163
    %p175 = scmp.eq.s32.totalorder %s22, 1
    %p176 = por %p174, %p175
    %p178 = scmp.ne.s32.totalorder %s163, %s177
    %p179 = scmp.eq.s32.totalorder %s22, 0
    %p180 = por %p178, %p179
    %s182 = sadd.s32 %s181, 1
    %p185 = scmp.eq.s32.totalorder %s16, 1
    %p186 = scmp.ne.s32.totalorder %s181, %s183
    %p187 = scmp.eq.s32.totalorder %s16, 0
    %p188 = por %p186, %p187
    %p189 = scmp.ne.s32.totalorder %s181, %s183
    %p190 = scmp.eq.s32.totalorder %s21, 1
    %p191 = por %p189, %p190
    %p192 = scmp.ne.s32.totalorder %s183, %s184
    %p193 = scmp.eq.s32.totalorder %s21, 0
    %p194 = por %p192, %p193
    %p195 = scmp.ne.s32.totalorder %s183, %s184
    %p196 = scmp.eq.s32.totalorder %s22, 1
    %p197 = por %p195, %p196
    %p199 = scmp.ne.s32.totalorder %s184, %s198
    %p200 = scmp.eq.s32.totalorder %s22, 0
    %p201 = por %p199, %p200
    %s202 = ssub.s32 %s16, %s23
    %p203 = scmp.eq.s32.totalorder %s202, 0
    %s205 = sadd.s32 %s204, 1
    %s206 = scalar_select %p203, %s204, %s205
    %p209 = pneg %p203
    %p210 = scmp.eq.s32.totalorder %s16, 1
    %p211 = por %p209, %p210
    %p212 = scmp.ne.s32.totalorder %s204, %s207
    %p213 = scmp.eq.s32.totalorder %s16, 0
    %p214 = por %p212, %p213
    %p215 = scmp.ne.s32.totalorder %s204, %s207
    %p216 = scmp.eq.s32.totalorder %s21, 1
    %p217 = por %p215, %p216
    %p218 = scmp.ne.s32.totalorder %s207, %s208
    %p219 = scmp.eq.s32.totalorder %s21, 0
    %p220 = por %p218, %p219
    %p221 = scmp.ne.s32.totalorder %s207, %s208
    %p222 = scmp.eq.s32.totalorder %s22, 1
    %p223 = por %p221, %p222
    %p225 = scmp.ne.s32.totalorder %s208, %s224
    %p226 = scmp.eq.s32.totalorder %s22, 0
    %p227 = por %p225, %p226
    %s228 = ssub.s32 %s16, %s23
    %p229 = scmp.eq.s32.totalorder %s228, 0
    %s231 = sadd.s32 %s230, 1
    %s232 = scalar_select %p229, %s230, %s231
    %p235 = pneg %p229
    %p236 = scmp.eq.s32.totalorder %s16, 1
    %p237 = por %p235, %p236
    %p238 = scmp.ne.s32.totalorder %s230, %s233
    %p239 = scmp.eq.s32.totalorder %s16, 0
    %p240 = por %p238, %p239
    %p241 = scmp.ne.s32.totalorder %s230, %s233
    %p242 = scmp.eq.s32.totalorder %s21, 1
    %p243 = por %p241, %p242
    %p244 = scmp.ne.s32.totalorder %s233, %s234
    %p245 = scmp.eq.s32.totalorder %s21, 0
    %p246 = por %p244, %p245
    %p247 = scmp.ne.s32.totalorder %s233, %s234
    %p248 = scmp.eq.s32.totalorder %s22, 1
    %p249 = por %p247, %p248
    %p251 = scmp.ne.s32.totalorder %s234, %s250
    %p252 = scmp.eq.s32.totalorder %s22, 0
    %p253 = por %p251, %p252
    %p254 = scmp.le.s32.totalorder 1, %s16
    %p255 = scmp.lt.s32.totalorder %s16, 3
    %p256 = pnand %p254, %p255
    %p257 = pneg %p256
    // Predicated region
    $region9: #{tvsd_forward.9} parent=5 // pred_check
      _
    $region10: #{tvsd_forward.9} parent=5 // pred_check_branch
      %259 = sbr.rel (%p256) target = $region12
    $region11: #{tvsd_forward.9} parent=5 // pred_region
      %s260 = ssub.s32 %s16, 1
      // Predicated region
      $region13: #{tvsd_forward.9} parent=11 // pred_check
        %p261 = pneg %p89
      $region14: #{tvsd_forward.9} parent=11 // pred_check_branch
        %263 = sbr.rel (%p261) target = $region16
      $region15: #{tvsd_forward.9} parent=11 // pred_region
        _
      $region16: #{tvsd_forward.9} parent=11 // pred_fallthru
        _
      // Predicated region
      $region17: #{tvsd_forward.9} parent=11 // pred_check
        %p264 = pneg %p110
      $region18: #{tvsd_forward.9} parent=11 // pred_check_branch
        %266 = sbr.rel (%p264) target = $region20
      $region19: #{tvsd_forward.9} parent=11 // pred_region
        _
      $region20: #{tvsd_forward.9} parent=11 // pred_fallthru
        _
      // Predicated region
      $region21: #{tvsd_forward.9} parent=11 // pred_check
        %p267 = pneg %p131
      $region22: #{tvsd_forward.9} parent=11 // pred_check_branch
        %269 = sbr.rel (%p267) target = $region24
      $region23: #{tvsd_forward.9} parent=11 // pred_region
        _
      $region24: #{tvsd_forward.9} parent=11 // pred_fallthru
        _
      // Predicated region
      $region25: #{tvsd_forward.9} parent=11 // pred_check
        %p270 = pneg %p152
      $region26: #{tvsd_forward.9} parent=11 // pred_check_branch
        %272 = sbr.rel (%p270) target = $region28
      $region27: #{tvsd_forward.9} parent=11 // pred_region
        _
      $region28: #{tvsd_forward.9} parent=11 // pred_fallthru
        _
      // Predicated region
      $region29: #{tvsd_forward.9} parent=11 // pred_check
        %p273 = pneg %p173
      $region30: #{tvsd_forward.9} parent=11 // pred_check_branch
        %275 = sbr.rel (%p273) target = $region32
      $region31: #{tvsd_forward.9} parent=11 // pred_region
        _
      $region32: #{tvsd_forward.9} parent=11 // pred_fallthru
        _
      // Predicated region
      $region33: #{tvsd_forward.9} parent=11 // pred_check
        %p276 = pneg %p194
      $region34: #{tvsd_forward.9} parent=11 // pred_check_branch
        %278 = sbr.rel (%p276) target = $region36
      $region35: #{tvsd_forward.9} parent=11 // pred_region
        _
      $region36: #{tvsd_forward.9} parent=11 // pred_fallthru
        _
    $region12: #{tvsd_forward.9} parent=5 // pred_fallthru
      _
    %p279 = scmp.lt.s32.totalorder %s16, 2
    // Predicated region
    $region37: #{tvsd_forward.9} parent=5 // pred_check
      %p280 = pneg %p279
    $region38: #{tvsd_forward.9} parent=5 // pred_check_branch
      %282 = sbr.rel (%p280) target = $region40
    $region39: #{tvsd_forward.9} parent=5 // pred_region
      // Predicated region
      $region41: #{tvsd_forward.9} parent=39 // pred_check
        %p283 = pneg %p36
      $region42: #{tvsd_forward.9} parent=39 // pred_check_branch
        %285 = sbr.rel (%p283) target = $region44
      $region43: #{tvsd_forward.9} parent=39 // pred_region
        %p286 = scmp.lt.s32.totalorder %s16, 1
        %s287 = scalar_select %p286, %s16, 1
        %s288 = smul.addr %s287, 2
        %s289 = smul.addr %s288, 8
        %s290 = scalar_lea.vmem %s0, %s289
      $region44: #{tvsd_forward.9} parent=39 // pred_fallthru
        _
      // Predicated region
      $region45: #{tvsd_forward.9} parent=39 // pred_check
        %p291 = pneg %p62
      $region46: #{tvsd_forward.9} parent=39 // pred_check_branch
        %293 = sbr.rel (%p291) target = $region48
      $region47: #{tvsd_forward.9} parent=39 // pred_region
        %p294 = scmp.lt.s32.totalorder %s16, 1
        %s295 = scalar_select %p294, %s16, 1
        %s296 = smul.addr %s295, 2
        %s297 = smul.addr %s296, 8
        %s298 = scalar_lea.vmem %s1, %s297
      $region48: #{tvsd_forward.9} parent=39 // pred_fallthru
        _
    $region40: #{tvsd_forward.9} parent=5 // pred_fallthru
      _
    %p299 = scmp.le.s32.totalorder 1, %s16
    %p300 = scmp.lt.s32.totalorder %s16, 3
    %p301 = pnand %p299, %p300
    %p302 = pneg %p301
    // Predicated region
    $region49: #{tvsd_forward.9} parent=5 // pred_check
      _
    $region50: #{tvsd_forward.9} parent=5 // pred_check_branch
      %304 = sbr.rel (%p301) target = $region52
    $region51: #{tvsd_forward.9} parent=5 // pred_region
      %s305 = ssub.s32 %s16, 1
      %p306 = scmp.lt.s32.totalorder %s21, 1
      %s307 = scalar_select %p306, %s21, 1
      %s308 = smul.addr %s307, 2
      %s309 = smul.addr %s308, 8
      %s310 = scalar_lea.vmem %s0, %s309
      %p311 = pneg %p42
      %p312 = pneg %p39
      %p313 = scmp.lt.s32.totalorder %s21, 1
      %s314 = scalar_select %p313, %s21, 1
      %s315 = smul.addr %s314, 2
      %s316 = smul.addr %s315, 8
      %s317 = scalar_lea.vmem %s1, %s316
      %p318 = pneg %p68
      %p319 = pneg %p65
      %p320 = pneg %p89
      %p321 = pneg %p86
      %p322 = pneg %p110
      %p323 = pneg %p107
      %p324 = pneg %p131
      %p325 = pneg %p128
      %p326 = pneg %p152
      %p327 = pneg %p149
      %p328 = pneg %p173
      %p329 = pneg %p170
      %p330 = pneg %p194
      %p331 = pneg %p191
      %p332 = pneg %p220
      %p333 = pneg %p217
      %p334 = scmp.lt.s32.totalorder %s21, 1
      %s335 = scalar_select %p334, %s21, 1
      %s336 = smul.addr %s335, 2
      %s337 = smul.addr %s336, 4
      %s338 = scalar_lea.vmem %s8, %s337
      %p339 = pneg %p246
      %p340 = pneg %p243
      %p341 = scmp.lt.s32.totalorder %s21, 1
      %s342 = scalar_select %p341, %s21, 1
      %s343 = smul.addr %s342, 2
      %s344 = smul.addr %s343, 4
      %s345 = scalar_lea.vmem %s9, %s344
      %p346 = scmp.lt.s32.totalorder %s21, 1
      %s347 = scalar_select %p346, %s21, 1
      %s348 = smul.addr %s347, 2
      %s349 = smul.addr %s348, 8
      %s350 = scalar_lea.vmem %s0, %s349
      %p351 = scmp.lt.s32.totalorder %s21, 1
      %s352 = scalar_select %p351, %s21, 1
      %s353 = smul.addr %s352, 2
      %s354 = smul.addr %s353, 8
      %s355 = scalar_lea.vmem %s1, %s354
      %p356 = scmp.lt.s32.totalorder %s21, 1
      %s357 = scalar_select %p356, %s21, 1
      %s358 = smul.addr %s357, 2
      %s359 = smul.addr %s358, 4
      %s360 = scalar_lea.vmem %s8, %s359
      %p361 = scmp.lt.s32.totalorder %s21, 1
      %s362 = scalar_select %p361, %s21, 1
      %s363 = smul.addr %s362, 2
      %s364 = smul.addr %s363, 4
      %s365 = scalar_lea.vmem %s9, %s364
      %v367 = vld [vmem:[%s350] sm:$0xff]
      %v368 = vld [vmem:[%s350 + $0x8] sm:$0xff]
      %v369 = vld [vmem:[%s355] sm:$0xff]
      %v370 = vld [vmem:[%s355 + $0x8] sm:$0xff]
      %v371 = vpack.c.bf16 %v368, %v367
      %v372 = vpack.c.bf16 %v370, %v369
      %v373 = vld [vmem:[%s2] sm:$0xf]
      %v374 = vld [vmem:[%s2 + $0x4] sm:$0xf]
      %v375 = vld [vmem:[%s2 + $0x8] sm:$0xf]
      %v376 = vld [vmem:[%s2 + $0xc] sm:$0xf]
      %v381 = vunpack.c.l.b16 %v373
      %v382 = vunpack.c.l.b16 %v374
      %v383 = vunpack.c.l.b16 %v375
      %v384 = vunpack.c.l.b16 %v376
      %v385 = vpack.c.b16 %v382, %v381
      %v386 = vpack.c.b16 %v384, %v383
      %vm389 = vcmask 261120
      %v391 = vsel %vm389, %v371, 0
      %393 = vmatprep.subr.bf16.mxu0 0
      %394 = vmatpush1.bf16.msra.mxu0 %v385
      %395 = vmatprep.subr.bf16.mxu0 0
      %396 = vmatpush1.bf16.msra.mxu0 %v386
      %397 = vmatprep.subr.bf16.mxu0 0
      %398 = vmatpush1.bf16.msra.mxu0 0
      %399 = vmatprep.subr.bf16.mxu0 0
      %400 = vmatpush1.bf16.msra.mxu0 0
      %401 = vmatprep.subr.bf16.mxu0 0
      %402 = vmatpush1.bf16.msra.mxu0 0
      %403 = vmatprep.subr.bf16.mxu0 0
      %404 = vmatpush1.bf16.msra.mxu0 0
      %405 = vmatprep.subr.bf16.mxu0 0
      %406 = vmatpush1.bf16.msra.mxu0 0
      %407 = vmatprep.subr.bf16.mxu0 0
      %408 = vmatpush1.bf16.msra.mxu0 0
      %409 = vmatprep.subr.bf16.mxu0 0
      %410 = vmatpush1.bf16.msra.mxu0 0
      %411 = vmatprep.subr.bf16.mxu0 0
      %412 = vmatpush1.bf16.msra.mxu0 0
      %413 = vmatprep.subr.bf16.mxu0 0
      %414 = vmatpush1.bf16.msra.mxu0 0
      %415 = vmatprep.subr.bf16.mxu0 0
      %416 = vmatpush1.bf16.msra.mxu0 0
      %417 = vmatprep.subr.bf16.mxu0 0
      %418 = vmatpush1.bf16.msra.mxu0 0
      %419 = vmatprep.subr.bf16.mxu0 0
      %420 = vmatpush1.bf16.msra.mxu0 0
      %421 = vmatprep.subr.bf16.mxu0 0
      %422 = vmatpush1.bf16.msra.mxu0 0
      %423 = vmatprep.subr.bf16.mxu0 0
      %424 = vmatpush1.bf16.msra.mxu0 0
      %425 = vmatprep.mubr.bf16.mxu0 0
      %426 = vmatmul.mubr.bf16.gmra.mrb[0].mxu0 %v391
      %v427 = vpop.f32.mrb[0].mxu0
      %v428 = vadd.f32 0.0, %v427
      %v429 = vpop.f32.mrb[0].mxu0
      %v430 = vpop.f32.mrb[0].mxu0
      %v431 = vadd.f32 0.0, %v430
      %v432 = vpop.f32.mrb[0].mxu0
      %433 = vdwg.mxu0
      %v434 = vpack.c.bf16 %v431, %v428
      %v436 = vsel %vm389, %v434, 0
      %v439 = vsel %vm389, %v372, 0
      %441 = vmatprep.subr.bf16.mxu0 0
      %442 = vmatpush1.bf16.xpose.msra.mxu0 %v439
      %443 = vmatprep.subr.bf16.mxu0 0
      %444 = vmatpush1.bf16.xpose.msra.mxu0 0
      %445 = vmatprep.subr.bf16.mxu0 0
      %446 = vmatpush1.bf16.xpose.msra.mxu0 0
      %447 = vmatprep.subr.bf16.mxu0 0
      %448 = vmatpush1.bf16.xpose.msra.mxu0 0
      %449 = vmatprep.subr.bf16.mxu0 0
      %450 = vmatpush1.bf16.xpose.msra.mxu0 0
      %451 = vmatprep.subr.bf16.mxu0 0
      %452 = vmatpush1.bf16.xpose.msra.mxu0 0
      %453 = vmatprep.subr.bf16.mxu0 0
      %454 = vmatpush1.bf16.xpose.msra.mxu0 0
      %455 = vmatprep.subr.bf16.mxu0 0
      %456 = vmatpush1.bf16.xpose.msra.mxu0 0
      %457 = vmatprep.subr.bf16.mxu0 0
      %458 = vmatpush1.bf16.xpose.msra.mxu0 0
      %459 = vmatprep.subr.bf16.mxu0 0
      %460 = vmatpush1.bf16.xpose.msra.mxu0 0
      %461 = vmatprep.subr.bf16.mxu0 0
      %462 = vmatpush1.bf16.xpose.msra.mxu0 0
      %463 = vmatprep.subr.bf16.mxu0 0
      %464 = vmatpush1.bf16.xpose.msra.mxu0 0
      %465 = vmatprep.subr.bf16.mxu0 0
      %466 = vmatpush1.bf16.xpose.msra.mxu0 0
      %467 = vmatprep.subr.bf16.mxu0 0
      %468 = vmatpush1.bf16.xpose.msra.mxu0 0
      %469 = vmatprep.subr.bf16.mxu0 0
      %470 = vmatpush1.bf16.xpose.msra.mxu0 0
      %471 = vmatprep.subr.bf16.mxu0 0
      %472 = vmatpush1.bf16.xpose.msra.mxu0 0
      %473 = vmatprep.mubr.bf16.mxu0 0
      %474 = vmatmul.mubr.bf16.gmra.mrb[0].mxu0 %v436
      %v475 = vpop.f32.mrb[0].mxu0
      %v476 = vadd.f32 0.0, %v475
      %v477 = vpop.f32.mrb[0].mxu0
      %v478 = vpop.f32.mrb[0].mxu0
      %v479 = vadd.f32 0.0, %v478
      %v480 = vpop.f32.mrb[0].mxu0
      %481 = vdwg.mxu0
      %vm482 = vcmask 130048
      %v483 = vsel %vm482, %v476, -inf
      %v484 = vsel %vm482, %v479, -inf
      %v485 = vmax.f32 %v483, %v484
      %v486 = vrot.slane %v485, 4
      %v487 = vmax.f32 %v485, %v486
      %v488 = vrot.slane %v487, 2
      %v489 = vmax.f32 %v487, %v488
      %v490 = vrot.slane %v489, 1
      %v491 = vmax.f32 %v489, %v490
      %v492 = vsub.f32 %v476, %v491
      %v493 = vsub.f32 %v479, %v491
      %v494 = vmul.f32 %v492, 1.442695
      %v495 = vpow.pop %v494
      %v496 = vmul.f32 %v493, 1.442695
      %v497 = vpow.pop %v496
      %v498 = vsel %vm482, %v495, 0.0
      %v499 = vsel %vm482, %v497, 0.0
      %v500 = vadd.f32 %v498, %v499
      %v501 = vrot.slane %v500, 4
      %v502 = vadd.f32 %v500, %v501
      %v503 = vrot.slane %v502, 2
      %v504 = vadd.f32 %v502, %v503
      %v505 = vrot.slane %v504, 1
      %v506 = vadd.f32 %v504, %v505
      %v507 = vrcp.pop %v506
      %v508 = vmul.f32 %v495, %v507
      %v509 = vmul.f32 %v497, %v507
      %510 = vmax.xlane.f32.xlu0 %v483
      %v511 = vpop.xlane.xlu0 %510
      %512 = vmax.xlane.f32.xlu0 %v484
      %v513 = vpop.xlane.xlu0 %512
      %v514 = vsub.f32 %v476, %v511
      %v515 = vsub.f32 %v479, %v513
      %v516 = vmul.f32 %v514, 1.442695
      %v517 = vpow.pop %v516
      %v518 = vmul.f32 %v515, 1.442695
      %v519 = vpow.pop %v518
      %v520 = vsel %vm482, %v517, 0.0
      %521 = vadd.xlane.f32.xlu0 %v520
      %v522 = vpop.xlane.xlu0 %521
      %v523 = vsel %vm482, %v519, 0.0
      %524 = vadd.xlane.f32.xlu0 %v523
      %v525 = vpop.xlane.xlu0 %524
      %v526 = vrcp.pop %v522
      %v527 = vrcp.pop %v525
      %v528 = vmul.f32 %v517, %v526
      %v529 = vmul.f32 %v519, %v527
      %v530 = vpack.c.bf16 %v529, %v528
      %v532 = vsel %vm482, %v530, 0
      %534 = vmatprep.subr.bf16.mxu0 0
      %535 = vmatpush1.bf16.msra.mxu0 %v372
      %536 = vmatprep.subr.bf16.mxu0 0
      %537 = vmatpush1.bf16.msra.mxu0 0
      %538 = vmatprep.subr.bf16.mxu0 0
      %539 = vmatpush1.bf16.msra.mxu0 0
      %540 = vmatprep.subr.bf16.mxu0 0
      %541 = vmatpush1.bf16.msra.mxu0 0
      %542 = vmatprep.subr.bf16.mxu0 0
      %543 = vmatpush1.bf16.msra.mxu0 0
      %544 = vmatprep.subr.bf16.mxu0 0
      %545 = vmatpush1.bf16.msra.mxu0 0
      %546 = vmatprep.subr.bf16.mxu0 0
      %547 = vmatpush1.bf16.msra.mxu0 0
      %548 = vmatprep.subr.bf16.mxu0 0
      %549 = vmatpush1.bf16.msra.mxu0 0
      %550 = vmatprep.subr.bf16.mxu0 0
      %551 = vmatpush1.bf16.msra.mxu0 0
      %552 = vmatprep.subr.bf16.mxu0 0
      %553 = vmatpush1.bf16.msra.mxu0 0
      %554 = vmatprep.subr.bf16.mxu0 0
      %555 = vmatpush1.bf16.msra.mxu0 0
      %556 = vmatprep.subr.bf16.mxu0 0
      %557 = vmatpush1.bf16.msra.mxu0 0
      %558 = vmatprep.subr.bf16.mxu0 0
      %559 = vmatpush1.bf16.msra.mxu0 0
      %560 = vmatprep.subr.bf16.mxu0 0
      %561 = vmatpush1.bf16.msra.mxu0 0
      %562 = vmatprep.subr.bf16.mxu0 0
      %563 = vmatpush1.bf16.msra.mxu0 0
      %564 = vmatprep.subr.bf16.mxu0 0
      %565 = vmatpush1.bf16.msra.mxu0 0
      %566 = vmatprep.mubr.bf16.mxu0 0
      %567 = vmatmul.mubr.bf16.gmra.mrb[0].mxu0 %v532
      %v568 = vpop.f32.mrb[0].mxu0
      %v569 = vadd.f32 0.0, %v568
      %v570 = vpop.f32.mrb[0].mxu0
      %v571 = vpop.f32.mrb[0].mxu0
      %v572 = vadd.f32 0.0, %v571
      %v573 = vpop.f32.mrb[0].mxu0
      %574 = vdwg.mxu0
      %v575 = vpack.c.bf16 %v509, %v508
      %576 = vxpose.xlu0.c.b16.start [1/8] %v575, 128
      %577 = vxpose.xlu0.c.b16.cont [2/8] 0, 128
      %578 = vxpose.xlu0.c.b16.cont [3/8] 0, 128
      %579 = vxpose.xlu0.c.b16.cont [4/8] 0, 128
      %580 = vxpose.xlu0.c.b16.cont [5/8] 0, 128
      %581 = vxpose.xlu0.c.b16.cont [6/8] 0, 128
      %582 = vxpose.xlu0.c.b16.cont [7/8] 0, 128
      %583 = vxpose.xlu0.c.b16.end [8/8] 0, 128
      %v584 = vpop.trf.xlu0
      %v585 = vpop.trf.xlu0
      %v586 = vpop.trf.xlu0
      %v587 = vpop.trf.xlu0
      %v588 = vpop.trf.xlu0
      %v589 = vpop.trf.xlu0
      %v590 = vpop.trf.xlu0
      %v591 = vpop.trf.xlu0
      %v593 = vsel %vm482, %v584, 0
      %595 = vmatprep.subr.bf16.mxu0 0
      %596 = vmatpush1.bf16.msra.mxu0 %v371
      %597 = vmatprep.subr.bf16.mxu0 0
      %598 = vmatpush1.bf16.msra.mxu0 0
      %599 = vmatprep.subr.bf16.mxu0 0
      %600 = vmatpush1.bf16.msra.mxu0 0
      %601 = vmatprep.subr.bf16.mxu0 0
      %602 = vmatpush1.bf16.msra.mxu0 0
      %603 = vmatprep.subr.bf16.mxu0 0
      %604 = vmatpush1.bf16.msra.mxu0 0
      %605 = vmatprep.subr.bf16.mxu0 0
      %606 = vmatpush1.bf16.msra.mxu0 0
      %607 = vmatprep.subr.bf16.mxu0 0
      %608 = vmatpush1.bf16.msra.mxu0 0
      %609 = vmatprep.subr.bf16.mxu0 0
      %610 = vmatpush1.bf16.msra.mxu0 0
      %611 = vmatprep.subr.bf16.mxu0 0
      %612 = vmatpush1.bf16.msra.mxu0 0
      %613 = vmatprep.subr.bf16.mxu0 0
      %614 = vmatpush1.bf16.msra.mxu0 0
      %615 = vmatprep.subr.bf16.mxu0 0
      %616 = vmatpush1.bf16.msra.mxu0 0
      %617 = vmatprep.subr.bf16.mxu0 0
      %618 = vmatpush1.bf16.msra.mxu0 0
      %619 = vmatprep.subr.bf16.mxu0 0
      %620 = vmatpush1.bf16.msra.mxu0 0
      %621 = vmatprep.subr.bf16.mxu0 0
      %622 = vmatpush1.bf16.msra.mxu0 0
      %623 = vmatprep.subr.bf16.mxu0 0
      %624 = vmatpush1.bf16.msra.mxu0 0
      %625 = vmatprep.subr.bf16.mxu0 0
      %626 = vmatpush1.bf16.msra.mxu0 0
      %627 = vmatprep.mubr.bf16.mxu0 0
      %628 = vmatmul.mubr.bf16.gmra.mrb[0].mxu0 %v593
      %v629 = vpop.f32.mrb[0].mxu0
      %v630 = vadd.f32 0.0, %v629
      %v631 = vpop.f32.mrb[0].mxu0
      %v632 = vpop.f32.mrb[0].mxu0
      %v633 = vadd.f32 0.0, %v632
      %v634 = vpop.f32.mrb[0].mxu0
      %635 = vdwg.mxu0
      %v636 = vld [vmem:[%s3] sm:$0xff]
      %v637 = vld [vmem:[%s3 + $0x8] sm:$0xff]
      %v638 = vld [vmem:[%s3 + $0x10] sm:$0xff]
      %v639 = vld [vmem:[%s3 + $0x18] sm:$0xff]
      %v640 = vld [vmem:[%s3 + $0x20] sm:$0xff]
      %v641 = vld [vmem:[%s3 + $0x28] sm:$0xff]
      %v642 = vld [vmem:[%s3 + $0x30] sm:$0xff]
      %v643 = vld [vmem:[%s3 + $0x38] sm:$0xff]
      %v645 = vsel %vm389, %v630, 0
      %v648 = vsel %vm389, %v633, 0
      %650 = vmatprep.subr.mxu0 0.0
      %651 = vmatpush1.msra.mxu0 %v640
      %652 = vmatprep.subr.mxu0 0.0
      %653 = vmatpush1.msra.mxu0 %v641
      %654 = vmatprep.subr.mxu0 0.0
      %655 = vmatpush1.msra.mxu0 %v642
      %656 = vmatprep.subr.mxu0 0.0
      %657 = vmatpush1.msra.mxu0 %v643
      %658 = vmatprep.subr.mxu0 0.0
      %659 = vmatpush1.msra.mxu0 0.0
      %660 = vmatprep.subr.mxu0 0.0
      %661 = vmatpush1.msra.mxu0 0.0
      %662 = vmatprep.subr.mxu0 0.0
      %663 = vmatpush1.msra.mxu0 0.0
      %664 = vmatprep.subr.mxu0 0.0
      %665 = vmatpush1.msra.mxu0 0.0
      %666 = vmatprep.subr.mxu0 0.0
      %667 = vmatpush1.msra.mxu0 0.0
      %668 = vmatprep.subr.mxu0 0.0
      %669 = vmatpush1.msra.mxu0 0.0
      %670 = vmatprep.subr.mxu0 0.0
      %671 = vmatpush1.msra.mxu0 0.0
      %672 = vmatprep.subr.mxu0 0.0
      %673 = vmatpush1.msra.mxu0 0.0
      %674 = vmatprep.subr.mxu0 0.0
      %675 = vmatpush1.msra.mxu0 0.0
      %676 = vmatprep.subr.mxu0 0.0
      %677 = vmatpush1.msra.mxu0 0.0
      %678 = vmatprep.subr.mxu0 0.0
      %679 = vmatpush1.msra.mxu0 0.0
      %680 = vmatprep.subr.mxu0 0.0
      %681 = vmatpush1.msra.mxu0 0.0
      %682 = vmatprep.subr.mxu0 0.0
      %683 = vmatpush1.msra.mxu0 0.0
      %684 = vmatprep.subr.mxu0 0.0
      %685 = vmatpush1.msra.mxu0 0.0
      %686 = vmatprep.subr.mxu0 0.0
      %687 = vmatpush1.msra.mxu0 0.0
      %688 = vmatprep.subr.mxu0 0.0
      %689 = vmatpush1.msra.mxu0 0.0
      %690 = vmatprep.subr.mxu0 0.0
      %691 = vmatpush1.msra.mxu0 0.0
      %692 = vmatprep.subr.mxu0 0.0
      %693 = vmatpush1.msra.mxu0 0.0
      %694 = vmatprep.subr.mxu0 0.0
      %695 = vmatpush1.msra.mxu0 0.0
      %696 = vmatprep.subr.mxu0 0.0
      %697 = vmatpush1.msra.mxu0 0.0
      %698 = vmatprep.subr.mxu0 0.0
      %699 = vmatpush1.msra.mxu0 0.0
      %700 = vmatprep.subr.mxu0 0.0
      %701 = vmatpush1.msra.mxu0 0.0
      %702 = vmatprep.subr.mxu0 0.0
      %703 = vmatpush1.msra.mxu0 0.0
      %704 = vmatprep.subr.mxu0 0.0
      %705 = vmatpush1.msra.mxu0 0.0
      %706 = vmatprep.subr.mxu0 0.0
      %707 = vmatpush1.msra.mxu0 0.0
      %708 = vmatprep.subr.mxu0 0.0
      %709 = vmatpush1.msra.mxu0 0.0
      %710 = vmatprep.subr.mxu0 0.0
      %711 = vmatpush1.msra.mxu0 0.0
      %712 = vmatprep.subr.mxu0 0.0
      %713 = vmatpush1.msra.mxu0 0.0
      %714 = vmatprep.mubr.f32.mxu0 0.0
      %715 = vmatmul.mubr.f32.gmra.mrb[0].mxu0 %v645
      %v716 = vpop.f32.mrb[0].mxu0
      %v717 = vadd.f32 0.0, %v716
      %v718 = vpop.f32.mrb[0].mxu0
      %719 = vmatprep.mubr.f32.mxu0 0.0
      %720 = vmatmul.mubr.f32.gmra.mrb[0].mxu0 %v648
      %v721 = vpop.f32.mrb[0].mxu0
      %v722 = vadd.f32 0.0, %v721
      %v723 = vpop.f32.mrb[0].mxu0
      %724 = vdwg.mxu0
      %v726 = vsel %vm389, %v569, 0
      %v729 = vsel %vm389, %v572, 0
      %731 = vmatprep.subr.mxu0 0.0
      %732 = vmatpush1.msra.mxu0 %v636
      %733 = vmatprep.subr.mxu0 0.0
      %734 = vmatpush1.msra.mxu0 %v637
      %735 = vmatprep.subr.mxu0 0.0
      %736 = vmatpush1.msra.mxu0 %v638
      %737 = vmatprep.subr.mxu0 0.0
      %738 = vmatpush1.msra.mxu0 %v639
      %739 = vmatprep.subr.mxu0 0.0
      %740 = vmatpush1.msra.mxu0 0.0
      %741 = vmatprep.subr.mxu0 0.0
      %742 = vmatpush1.msra.mxu0 0.0
      %743 = vmatprep.subr.mxu0 0.0
      %744 = vmatpush1.msra.mxu0 0.0
      %745 = vmatprep.subr.mxu0 0.0
      %746 = vmatpush1.msra.mxu0 0.0
      %747 = vmatprep.subr.mxu0 0.0
      %748 = vmatpush1.msra.mxu0 0.0
      %749 = vmatprep.subr.mxu0 0.0
      %750 = vmatpush1.msra.mxu0 0.0
      %751 = vmatprep.subr.mxu0 0.0
      %752 = vmatpush1.msra.mxu0 0.0
      %753 = vmatprep.subr.mxu0 0.0
      %754 = vmatpush1.msra.mxu0 0.0
      %755 = vmatprep.subr.mxu0 0.0
      %756 = vmatpush1.msra.mxu0 0.0
      %757 = vmatprep.subr.mxu0 0.0
      %758 = vmatpush1.msra.mxu0 0.0
      %759 = vmatprep.subr.mxu0 0.0
      %760 = vmatpush1.msra.mxu0 0.0
      %761 = vmatprep.subr.mxu0 0.0
      %762 = vmatpush1.msra.mxu0 0.0
      %763 = vmatprep.subr.mxu0 0.0
      %764 = vmatpush1.msra.mxu0 0.0
      %765 = vmatprep.subr.mxu0 0.0
      %766 = vmatpush1.msra.mxu0 0.0
      %767 = vmatprep.subr.mxu0 0.0
      %768 = vmatpush1.msra.mxu0 0.0
      %769 = vmatprep.subr.mxu0 0.0
      %770 = vmatpush1.msra.mxu0 0.0
      %771 = vmatprep.subr.mxu0 0.0
      %772 = vmatpush1.msra.mxu0 0.0
      %773 = vmatprep.subr.mxu0 0.0
      %774 = vmatpush1.msra.mxu0 0.0
      %775 = vmatprep.subr.mxu0 0.0
      %776 = vmatpush1.msra.mxu0 0.0
      %777 = vmatprep.subr.mxu0 0.0
      %778 = vmatpush1.msra.mxu0 0.0
      %779 = vmatprep.subr.mxu0 0.0
      %780 = vmatpush1.msra.mxu0 0.0
      %781 = vmatprep.subr.mxu0 0.0
      %782 = vmatpush1.msra.mxu0 0.0
      %783 = vmatprep.subr.mxu0 0.0
      %784 = vmatpush1.msra.mxu0 0.0
      %785 = vmatprep.subr.mxu0 0.0
      %786 = vmatpush1.msra.mxu0 0.0
      %787 = vmatprep.subr.mxu0 0.0
      %788 = vmatpush1.msra.mxu0 0.0
      %789 = vmatprep.subr.mxu0 0.0
      %790 = vmatpush1.msra.mxu0 0.0
      %791 = vmatprep.subr.mxu0 0.0
      %792 = vmatpush1.msra.mxu0 0.0
      %793 = vmatprep.subr.mxu0 0.0
      %794 = vmatpush1.msra.mxu0 0.0
      %795 = vmatprep.mubr.f32.mxu0 0.0
      %796 = vmatmul.mubr.f32.gmra.mrb[0].mxu0 %v726
      %v797 = vpop.f32.mrb[0].mxu0
      %v798 = vadd.f32 %v717, %v797
      %v799 = vpop.f32.mrb[0].mxu0
      %800 = vmatprep.mubr.f32.mxu0 0.0
      %801 = vmatmul.mubr.f32.gmra.mrb[0].mxu0 %v729
      %v802 = vpop.f32.mrb[0].mxu0
      %v803 = vadd.f32 %v722, %v802
      %v804 = vpop.f32.mrb[0].mxu0
      %805 = vdwg.mxu0
      %v806 = vsub.f32 0.0, %v798
      %v807 = vsub.f32 0.0, %v803
      %v808 = vmul.f32 %v806, 1.442695
      %v809 = vpow.pop %v808
      %v810 = vmul.f32 %v807, 1.442695
      %v811 = vpow.pop %v810
      %v812 = vadd.f32 %v809, 1.0
      %v813 = vadd.f32 %v811, 1.0
      %v814 = vrcp.pop %v812
      %v815 = vmul.f32 1.0, %v814
      %v816 = vrcp.pop %v813
      %v817 = vmul.f32 1.0, %v816
      %v818 = vsel %vm389, %v569, 0.0
      %v819 = vsel %vm389, %v572, 0.0
      %v820 = vadd.f32 %v818, %v819
      %v821 = vrot.slane %v820, 4
      %v822 = vadd.f32 %v820, %v821
      %v823 = vrot.slane %v822, 2
      %v824 = vadd.f32 %v822, %v823
      %v825 = vrot.slane %v824, 1
      %v826 = vadd.f32 %v824, %v825
      %v827 = vrcp.pop 16.0
      %v828 = vmul.f32 %v826, %v827
      %v829 = vsel %vm389, %v630, 0.0
      %v830 = vsel %vm389, %v633, 0.0
      %v831 = vadd.f32 %v829, %v830
      %v832 = vrot.slane %v831, 4
      %v833 = vadd.f32 %v831, %v832
      %v834 = vrot.slane %v833, 2
      %v835 = vadd.f32 %v833, %v834
      %v836 = vrot.slane %v835, 1
      %v837 = vadd.f32 %v835, %v836
      %v838 = vmul.f32 %v837, %v827
      %v839 = vld [vmem:[%s4] sm:$0xff]
      %v840 = vld [vmem:[%s4 + $0x8] sm:$0xff]
      %v841 = vld [vmem:[%s4 + $0x10] sm:$0xff]
      %v842 = vld [vmem:[%s4 + $0x18] sm:$0xff]
      %v843 = vld [vmem:[%s4 + $0x20] sm:$0xff]
      %v844 = vld [vmem:[%s4 + $0x28] sm:$0xff]
      %v845 = vld [vmem:[%s4 + $0x30] sm:$0xff]
      %v846 = vld [vmem:[%s4 + $0x38] sm:$0xff]
      %v848 = vsel %vm389, %v838, 0
      %850 = vmatprep.subr.mxu0 0.0
      %851 = vmatpush1.msra.mxu0 %v843
      %852 = vmatprep.subr.mxu0 0.0
      %853 = vmatpush1.msra.mxu0 %v844
      %854 = vmatprep.subr.mxu0 0.0
      %855 = vmatpush1.msra.mxu0 %v845
      %856 = vmatprep.subr.mxu0 0.0
      %857 = vmatpush1.msra.mxu0 %v846
      %858 = vmatprep.subr.mxu0 0.0
      %859 = vmatpush1.msra.mxu0 0.0
      %860 = vmatprep.subr.mxu0 0.0
      %861 = vmatpush1.msra.mxu0 0.0
      %862 = vmatprep.subr.mxu0 0.0
      %863 = vmatpush1.msra.mxu0 0.0
      %864 = vmatprep.subr.mxu0 0.0
      %865 = vmatpush1.msra.mxu0 0.0
      %866 = vmatprep.subr.mxu0 0.0
      %867 = vmatpush1.msra.mxu0 0.0
      %868 = vmatprep.subr.mxu0 0.0
      %869 = vmatpush1.msra.mxu0 0.0
      %870 = vmatprep.subr.mxu0 0.0
      %871 = vmatpush1.msra.mxu0 0.0
      %872 = vmatprep.subr.mxu0 0.0
      %873 = vmatpush1.msra.mxu0 0.0
      %874 = vmatprep.subr.mxu0 0.0
      %875 = vmatpush1.msra.mxu0 0.0
      %876 = vmatprep.subr.mxu0 0.0
      %877 = vmatpush1.msra.mxu0 0.0
      %878 = vmatprep.subr.mxu0 0.0
      %879 = vmatpush1.msra.mxu0 0.0
      %880 = vmatprep.subr.mxu0 0.0
      %881 = vmatpush1.msra.mxu0 0.0
      %882 = vmatprep.subr.mxu0 0.0
      %883 = vmatpush1.msra.mxu0 0.0
      %884 = vmatprep.subr.mxu0 0.0
      %885 = vmatpush1.msra.mxu0 0.0
      %886 = vmatprep.subr.mxu0 0.0
      %887 = vmatpush1.msra.mxu0 0.0
      %888 = vmatprep.subr.mxu0 0.0
      %889 = vmatpush1.msra.mxu0 0.0
      %890 = vmatprep.subr.mxu0 0.0
      %891 = vmatpush1.msra.mxu0 0.0
      %892 = vmatprep.subr.mxu0 0.0
      %893 = vmatpush1.msra.mxu0 0.0
      %894 = vmatprep.subr.mxu0 0.0
      %895 = vmatpush1.msra.mxu0 0.0
      %896 = vmatprep.subr.mxu0 0.0
      %897 = vmatpush1.msra.mxu0 0.0
      %898 = vmatprep.subr.mxu0 0.0
      %899 = vmatpush1.msra.mxu0 0.0
      %900 = vmatprep.subr.mxu0 0.0
      %901 = vmatpush1.msra.mxu0 0.0
      %902 = vmatprep.subr.mxu0 0.0
      %903 = vmatpush1.msra.mxu0 0.0
      %904 = vmatprep.subr.mxu0 0.0
      %905 = vmatpush1.msra.mxu0 0.0
      %906 = vmatprep.subr.mxu0 0.0
      %907 = vmatpush1.msra.mxu0 0.0
      %908 = vmatprep.subr.mxu0 0.0
      %909 = vmatpush1.msra.mxu0 0.0
      %910 = vmatprep.subr.mxu0 0.0
      %911 = vmatpush1.msra.mxu0 0.0
      %912 = vmatprep.subr.mxu0 0.0
      %913 = vmatpush1.msra.mxu0 0.0
      %914 = vmatprep.mubr.f32.mxu0 0.0
      %915 = vmatmul.mubr.f32.gmra.mrb[0].mxu0 %v848
      %v916 = vpop.f32.mrb[0].mxu0
      %v917 = vadd.f32 0.0, %v916
      %v918 = vpop.f32.mrb[0].mxu0
      %919 = vdwg.mxu0
      %v921 = vsel %vm389, %v828, 0
      %923 = vmatprep.subr.mxu0 0.0
      %924 = vmatpush1.msra.mxu0 %v839
      %925 = vmatprep.subr.mxu0 0.0
      %926 = vmatpush1.msra.mxu0 %v840
      %927 = vmatprep.subr.mxu0 0.0
      %928 = vmatpush1.msra.mxu0 %v841
      %929 = vmatprep.subr.mxu0 0.0
      %930 = vmatpush1.msra.mxu0 %v842
      %931 = vmatprep.subr.mxu0 0.0
      %932 = vmatpush1.msra.mxu0 0.0
      %933 = vmatprep.subr.mxu0 0.0
      %934 = vmatpush1.msra.mxu0 0.0
      %935 = vmatprep.subr.mxu0 0.0
      %936 = vmatpush1.msra.mxu0 0.0
      %937 = vmatprep.subr.mxu0 0.0
      %938 = vmatpush1.msra.mxu0 0.0
      %939 = vmatprep.subr.mxu0 0.0
      %940 = vmatpush1.msra.mxu0 0.0
      %941 = vmatprep.subr.mxu0 0.0
      %942 = vmatpush1.msra.mxu0 0.0
      %943 = vmatprep.subr.mxu0 0.0
      %944 = vmatpush1.msra.mxu0 0.0
      %945 = vmatprep.subr.mxu0 0.0
      %946 = vmatpush1.msra.mxu0 0.0
      %947 = vmatprep.subr.mxu0 0.0
      %948 = vmatpush1.msra.mxu0 0.0
      %949 = vmatprep.subr.mxu0 0.0
      %950 = vmatpush1.msra.mxu0 0.0
      %951 = vmatprep.subr.mxu0 0.0
      %952 = vmatpush1.msra.mxu0 0.0
      %953 = vmatprep.subr.mxu0 0.0
      %954 = vmatpush1.msra.mxu0 0.0
      %955 = vmatprep.subr.mxu0 0.0
      %956 = vmatpush1.msra.mxu0 0.0
      %957 = vmatprep.subr.mxu0 0.0
      %958 = vmatpush1.msra.mxu0 0.0
      %959 = vmatprep.subr.mxu0 0.0
      %960 = vmatpush1.msra.mxu0 0.0
      %961 = vmatprep.subr.mxu0 0.0
      %962 = vmatpush1.msra.mxu0 0.0
      %963 = vmatprep.subr.mxu0 0.0
      %964 = vmatpush1.msra.mxu0 0.0
      %965 = vmatprep.subr.mxu0 0.0
      %966 = vmatpush1.msra.mxu0 0.0
      %967 = vmatprep.subr.mxu0 0.0
      %968 = vmatpush1.msra.mxu0 0.0
      %969 = vmatprep.subr.mxu0 0.0
      %970 = vmatpush1.msra.mxu0 0.0
      %971 = vmatprep.subr.mxu0 0.0
      %972 = vmatpush1.msra.mxu0 0.0
      %973 = vmatprep.subr.mxu0 0.0
      %974 = vmatpush1.msra.mxu0 0.0
      %975 = vmatprep.subr.mxu0 0.0
      %976 = vmatpush1.msra.mxu0 0.0
      %977 = vmatprep.subr.mxu0 0.0
      %978 = vmatpush1.msra.mxu0 0.0
      %979 = vmatprep.subr.mxu0 0.0
      %980 = vmatpush1.msra.mxu0 0.0
      %981 = vmatprep.subr.mxu0 0.0
      %982 = vmatpush1.msra.mxu0 0.0
      %983 = vmatprep.subr.mxu0 0.0
      %984 = vmatpush1.msra.mxu0 0.0
      %985 = vmatprep.subr.mxu0 0.0
      %986 = vmatpush1.msra.mxu0 0.0
      %987 = vmatprep.mubr.f32.mxu0 0.0
      %988 = vmatmul.mubr.f32.gmra.mrb[0].mxu0 %v921
      %v989 = vpop.f32.mrb[0].mxu0
      %v990 = vadd.f32 %v917, %v989
      %v991 = vpop.f32.mrb[0].mxu0
      %992 = vdwg.mxu0
      %v993 = vmax.f32 %v990, 0.0
      %v994 = vld [vmem:[%s5] sm:$0xff]
      %v995 = vld [vmem:[%s5 + $0x8] sm:$0xff]
      %v997 = vsel %vm482, %v993, 0
      %999 = vmatprep.subr.mxu0 0.0
      %1000 = vmatpush1.msra.mxu0 %v994
      %1001 = vmatprep.subr.mxu0 0.0
      %1002 = vmatpush1.msra.mxu0 %v995
      %1003 = vmatprep.subr.mxu0 0.0
      %1004 = vmatpush1.msra.mxu0 0.0
      %1005 = vmatprep.subr.mxu0 0.0
      %1006 = vmatpush1.msra.mxu0 0.0
      %1007 = vmatprep.subr.mxu0 0.0
      %1008 = vmatpush1.msra.mxu0 0.0
      %1009 = vmatprep.subr.mxu0 0.0
      %1010 = vmatpush1.msra.mxu0 0.0
      %1011 = vmatprep.subr.mxu0 0.0
      %1012 = vmatpush1.msra.mxu0 0.0
      %1013 = vmatprep.subr.mxu0 0.0
      %1014 = vmatpush1.msra.mxu0 0.0
      %1015 = vmatprep.subr.mxu0 0.0
      %1016 = vmatpush1.msra.mxu0 0.0
      %1017 = vmatprep.subr.mxu0 0.0
      %1018 = vmatpush1.msra.mxu0 0.0
      %1019 = vmatprep.subr.mxu0 0.0
      %1020 = vmatpush1.msra.mxu0 0.0
      %1021 = vmatprep.subr.mxu0 0.0
      %1022 = vmatpush1.msra.mxu0 0.0
      %1023 = vmatprep.subr.mxu0 0.0
      %1024 = vmatpush1.msra.mxu0 0.0
      %1025 = vmatprep.subr.mxu0 0.0
      %1026 = vmatpush1.msra.mxu0 0.0
      %1027 = vmatprep.subr.mxu0 0.0
      %1028 = vmatpush1.msra.mxu0 0.0
      %1029 = vmatprep.subr.mxu0 0.0
      %1030 = vmatpush1.msra.mxu0 0.0
      %1031 = vmatprep.subr.mxu0 0.0
      %1032 = vmatpush1.msra.mxu0 0.0
      %1033 = vmatprep.subr.mxu0 0.0
      %1034 = vmatpush1.msra.mxu0 0.0
      %1035 = vmatprep.subr.mxu0 0.0
      %1036 = vmatpush1.msra.mxu0 0.0
      %1037 = vmatprep.subr.mxu0 0.0
      %1038 = vmatpush1.msra.mxu0 0.0
      %1039 = vmatprep.subr.mxu0 0.0
      %1040 = vmatpush1.msra.mxu0 0.0
      %1041 = vmatprep.subr.mxu0 0.0
      %1042 = vmatpush1.msra.mxu0 0.0
      %1043 = vmatprep.subr.mxu0 0.0
      %1044 = vmatpush1.msra.mxu0 0.0
      %1045 = vmatprep.subr.mxu0 0.0
      %1046 = vmatpush1.msra.mxu0 0.0
      %1047 = vmatprep.subr.mxu0 0.0
      %1048 = vmatpush1.msra.mxu0 0.0
      %1049 = vmatprep.subr.mxu0 0.0
      %1050 = vmatpush1.msra.mxu0 0.0
      %1051 = vmatprep.subr.mxu0 0.0
      %1052 = vmatpush1.msra.mxu0 0.0
      %1053 = vmatprep.subr.mxu0 0.0
      %1054 = vmatpush1.msra.mxu0 0.0
      %1055 = vmatprep.subr.mxu0 0.0
      %1056 = vmatpush1.msra.mxu0 0.0
      %1057 = vmatprep.subr.mxu0 0.0
      %1058 = vmatpush1.msra.mxu0 0.0
      %1059 = vmatprep.subr.mxu0 0.0
      %1060 = vmatpush1.msra.mxu0 0.0
      %1061 = vmatprep.subr.mxu0 0.0
      %1062 = vmatpush1.msra.mxu0 0.0
      %1063 = vmatprep.mubr.f32.mxu0 0.0
      %1064 = vmatmul.mubr.f32.gmra.mrb[0].mxu0 %v997
      %v1065 = vpop.f32.mrb[0].mxu0
      %v1066 = vadd.f32 0.0, %v1065
      %v1067 = vpop.f32.mrb[0].mxu0
      %1068 = vdwg.mxu0
      %v1069 = vsub.f32 0.0, %v1066
      %v1070 = vmul.f32 %v1069, 1.442695
      %v1071 = vpow.pop %v1070
      %v1072 = vadd.f32 %v1071, 1.0
      %v1073 = vrcp.pop %v1072
      %v1074 = vmul.f32 1.0, %v1073
      %v1075 = vld [vmem:[%s6] sm:$0xff]
      %v1076 = vld [vmem:[%s6 + $0x8] sm:$0xff]
      %v1077 = vld [vmem:[%s6 + $0x10] sm:$0xff]
      %v1078 = vld [vmem:[%s6 + $0x18] sm:$0xff]
      %v1079 = vld [vmem:[%s6 + $0x20] sm:$0xff]
      %v1080 = vld [vmem:[%s6 + $0x28] sm:$0xff]
      %v1081 = vld [vmem:[%s6 + $0x30] sm:$0xff]
      %v1082 = vld [vmem:[%s6 + $0x38] sm:$0xff]
      %1083 = vmatprep.subr.mxu0 0.0
      %1084 = vmatpush1.msra.mxu0 %v1079
      %1085 = vmatprep.subr.mxu0 0.0
      %1086 = vmatpush1.msra.mxu0 %v1080
      %1087 = vmatprep.subr.mxu0 0.0
      %1088 = vmatpush1.msra.mxu0 %v1081
      %1089 = vmatprep.subr.mxu0 0.0
      %1090 = vmatpush1.msra.mxu0 %v1082
      %1091 = vmatprep.subr.mxu0 0.0
      %1092 = vmatpush1.msra.mxu0 0.0
      %1093 = vmatprep.subr.mxu0 0.0
      %1094 = vmatpush1.msra.mxu0 0.0
      %1095 = vmatprep.subr.mxu0 0.0
      %1096 = vmatpush1.msra.mxu0 0.0
      %1097 = vmatprep.subr.mxu0 0.0
      %1098 = vmatpush1.msra.mxu0 0.0
      %1099 = vmatprep.subr.mxu0 0.0
      %1100 = vmatpush1.msra.mxu0 0.0
      %1101 = vmatprep.subr.mxu0 0.0
      %1102 = vmatpush1.msra.mxu0 0.0
      %1103 = vmatprep.subr.mxu0 0.0
      %1104 = vmatpush1.msra.mxu0 0.0
      %1105 = vmatprep.subr.mxu0 0.0
      %1106 = vmatpush1.msra.mxu0 0.0
      %1107 = vmatprep.subr.mxu0 0.0
      %1108 = vmatpush1.msra.mxu0 0.0
      %1109 = vmatprep.subr.mxu0 0.0
      %1110 = vmatpush1.msra.mxu0 0.0
      %1111 = vmatprep.subr.mxu0 0.0
      %1112 = vmatpush1.msra.mxu0 0.0
      %1113 = vmatprep.subr.mxu0 0.0
      %1114 = vmatpush1.msra.mxu0 0.0
      %1115 = vmatprep.subr.mxu0 0.0
      %1116 = vmatpush1.msra.mxu0 0.0
      %1117 = vmatprep.subr.mxu0 0.0
      %1118 = vmatpush1.msra.mxu0 0.0
      %1119 = vmatprep.subr.mxu0 0.0
      %1120 = vmatpush1.msra.mxu0 0.0
      %1121 = vmatprep.subr.mxu0 0.0
      %1122 = vmatpush1.msra.mxu0 0.0
      %1123 = vmatprep.subr.mxu0 0.0
      %1124 = vmatpush1.msra.mxu0 0.0
      %1125 = vmatprep.subr.mxu0 0.0
      %1126 = vmatpush1.msra.mxu0 0.0
      %1127 = vmatprep.subr.mxu0 0.0
      %1128 = vmatpush1.msra.mxu0 0.0
      %1129 = vmatprep.subr.mxu0 0.0
      %1130 = vmatpush1.msra.mxu0 0.0
      %1131 = vmatprep.subr.mxu0 0.0
      %1132 = vmatpush1.msra.mxu0 0.0
      %1133 = vmatprep.subr.mxu0 0.0
      %1134 = vmatpush1.msra.mxu0 0.0
      %1135 = vmatprep.subr.mxu0 0.0
      %1136 = vmatpush1.msra.mxu0 0.0
      %1137 = vmatprep.subr.mxu0 0.0
      %1138 = vmatpush1.msra.mxu0 0.0
      %1139 = vmatprep.subr.mxu0 0.0
      %1140 = vmatpush1.msra.mxu0 0.0
      %1141 = vmatprep.subr.mxu0 0.0
      %1142 = vmatpush1.msra.mxu0 0.0
      %1143 = vmatprep.subr.mxu0 0.0
      %1144 = vmatpush1.msra.mxu0 0.0
      %1145 = vmatprep.subr.mxu0 0.0
      %1146 = vmatpush1.msra.mxu0 0.0
      %1147 = vmatprep.mubr.f32.mxu0 0.0
      %1148 = vmatmul.mubr.f32.gmra.mrb[0].mxu0 %v848
      %v1149 = vpop.f32.mrb[0].mxu0
      %v1150 = vadd.f32 0.0, %v1149
      %v1151 = vpop.f32.mrb[0].mxu0
      %1152 = vdwg.mxu0
      %1153 = vmatprep.subr.mxu0 0.0
      %1154 = vmatpush1.msra.mxu0 %v1075
      %1155 = vmatprep.subr.mxu0 0.0
      %1156 = vmatpush1.msra.mxu0 %v1076
      %1157 = vmatprep.subr.mxu0 0.0
      %1158 = vmatpush1.msra.mxu0 %v1077
      %1159 = vmatprep.subr.mxu0 0.0
      %1160 = vmatpush1.msra.mxu0 %v1078
      %1161 = vmatprep.subr.mxu0 0.0
      %1162 = vmatpush1.msra.mxu0 0.0
      %1163 = vmatprep.subr.mxu0 0.0
      %1164 = vmatpush1.msra.mxu0 0.0
      %1165 = vmatprep.subr.mxu0 0.0
      %1166 = vmatpush1.msra.mxu0 0.0
      %1167 = vmatprep.subr.mxu0 0.0
      %1168 = vmatpush1.msra.mxu0 0.0
      %1169 = vmatprep.subr.mxu0 0.0
      %1170 = vmatpush1.msra.mxu0 0.0
      %1171 = vmatprep.subr.mxu0 0.0
      %1172 = vmatpush1.msra.mxu0 0.0
      %1173 = vmatprep.subr.mxu0 0.0
      %1174 = vmatpush1.msra.mxu0 0.0
      %1175 = vmatprep.subr.mxu0 0.0
      %1176 = vmatpush1.msra.mxu0 0.0
      %1177 = vmatprep.subr.mxu0 0.0
      %1178 = vmatpush1.msra.mxu0 0.0
      %1179 = vmatprep.subr.mxu0 0.0
      %1180 = vmatpush1.msra.mxu0 0.0
      %1181 = vmatprep.subr.mxu0 0.0
      %1182 = vmatpush1.msra.mxu0 0.0
      %1183 = vmatprep.subr.mxu0 0.0
      %1184 = vmatpush1.msra.mxu0 0.0
      %1185 = vmatprep.subr.mxu0 0.0
      %1186 = vmatpush1.msra.mxu0 0.0
      %1187 = vmatprep.subr.mxu0 0.0
      %1188 = vmatpush1.msra.mxu0 0.0
      %1189 = vmatprep.subr.mxu0 0.0
      %1190 = vmatpush1.msra.mxu0 0.0
      %1191 = vmatprep.subr.mxu0 0.0
      %1192 = vmatpush1.msra.mxu0 0.0
      %1193 = vmatprep.subr.mxu0 0.0
      %1194 = vmatpush1.msra.mxu0 0.0
      %1195 = vmatprep.subr.mxu0 0.0
      %1196 = vmatpush1.msra.mxu0 0.0
      %1197 = vmatprep.subr.mxu0 0.0
      %1198 = vmatpush1.msra.mxu0 0.0
      %1199 = vmatprep.subr.mxu0 0.0
      %1200 = vmatpush1.msra.mxu0 0.0
      %1201 = vmatprep.subr.mxu0 0.0
      %1202 = vmatpush1.msra.mxu0 0.0
      %1203 = vmatprep.subr.mxu0 0.0
      %1204 = vmatpush1.msra.mxu0 0.0
      %1205 = vmatprep.subr.mxu0 0.0
      %1206 = vmatpush1.msra.mxu0 0.0
      %1207 = vmatprep.subr.mxu0 0.0
      %1208 = vmatpush1.msra.mxu0 0.0
      %1209 = vmatprep.subr.mxu0 0.0
      %1210 = vmatpush1.msra.mxu0 0.0
      %1211 = vmatprep.subr.mxu0 0.0
      %1212 = vmatpush1.msra.mxu0 0.0
      %1213 = vmatprep.subr.mxu0 0.0
      %1214 = vmatpush1.msra.mxu0 0.0
      %1215 = vmatprep.subr.mxu0 0.0
      %1216 = vmatpush1.msra.mxu0 0.0
      %1217 = vmatprep.mubr.f32.mxu0 0.0
      %1218 = vmatmul.mubr.f32.gmra.mrb[0].mxu0 %v921
      %v1219 = vpop.f32.mrb[0].mxu0
      %v1220 = vadd.f32 %v1150, %v1219
      %v1221 = vpop.f32.mrb[0].mxu0
      %1222 = vdwg.mxu0
      %v1223 = vmax.f32 %v1220, 0.0
      %v1224 = vld [vmem:[%s7] sm:$0xff]
      %v1225 = vld [vmem:[%s7 + $0x8] sm:$0xff]
      %v1227 = vsel %vm482, %v1223, 0
      %1229 = vmatprep.subr.mxu0 0.0
      %1230 = vmatpush1.msra.mxu0 %v1224
      %1231 = vmatprep.subr.mxu0 0.0
      %1232 = vmatpush1.msra.mxu0 %v1225
      %1233 = vmatprep.subr.mxu0 0.0
      %1234 = vmatpush1.msra.mxu0 0.0
      %1235 = vmatprep.subr.mxu0 0.0
      %1236 = vmatpush1.msra.mxu0 0.0
      %1237 = vmatprep.subr.mxu0 0.0
      %1238 = vmatpush1.msra.mxu0 0.0
      %1239 = vmatprep.subr.mxu0 0.0
      %1240 = vmatpush1.msra.mxu0 0.0
      %1241 = vmatprep.subr.mxu0 0.0
      %1242 = vmatpush1.msra.mxu0 0.0
      %1243 = vmatprep.subr.mxu0 0.0
      %1244 = vmatpush1.msra.mxu0 0.0
      %1245 = vmatprep.subr.mxu0 0.0
      %1246 = vmatpush1.msra.mxu0 0.0
      %1247 = vmatprep.subr.mxu0 0.0
      %1248 = vmatpush1.msra.mxu0 0.0
      %1249 = vmatprep.subr.mxu0 0.0
      %1250 = vmatpush1.msra.mxu0 0.0
      %1251 = vmatprep.subr.mxu0 0.0
      %1252 = vmatpush1.msra.mxu0 0.0
      %1253 = vmatprep.subr.mxu0 0.0
      %1254 = vmatpush1.msra.mxu0 0.0
      %1255 = vmatprep.subr.mxu0 0.0
      %1256 = vmatpush1.msra.mxu0 0.0
      %1257 = vmatprep.subr.mxu0 0.0
      %1258 = vmatpush1.msra.mxu0 0.0
      %1259 = vmatprep.subr.mxu0 0.0
      %1260 = vmatpush1.msra.mxu0 0.0
      %1261 = vmatprep.subr.mxu0 0.0
      %1262 = vmatpush1.msra.mxu0 0.0
      %1263 = vmatprep.subr.mxu0 0.0
      %1264 = vmatpush1.msra.mxu0 0.0
      %1265 = vmatprep.subr.mxu0 0.0
      %1266 = vmatpush1.msra.mxu0 0.0
      %1267 = vmatprep.subr.mxu0 0.0
      %1268 = vmatpush1.msra.mxu0 0.0
      %1269 = vmatprep.subr.mxu0 0.0
      %1270 = vmatpush1.msra.mxu0 0.0
      %1271 = vmatprep.subr.mxu0 0.0
      %1272 = vmatpush1.msra.mxu0 0.0
      %1273 = vmatprep.subr.mxu0 0.0
      %1274 = vmatpush1.msra.mxu0 0.0
      %1275 = vmatprep.subr.mxu0 0.0
      %1276 = vmatpush1.msra.mxu0 0.0
      %1277 = vmatprep.subr.mxu0 0.0
      %1278 = vmatpush1.msra.mxu0 0.0
      %1279 = vmatprep.subr.mxu0 0.0
      %1280 = vmatpush1.msra.mxu0 0.0
      %1281 = vmatprep.subr.mxu0 0.0
      %1282 = vmatpush1.msra.mxu0 0.0
      %1283 = vmatprep.subr.mxu0 0.0
      %1284 = vmatpush1.msra.mxu0 0.0
      %1285 = vmatprep.subr.mxu0 0.0
      %1286 = vmatpush1.msra.mxu0 0.0
      %1287 = vmatprep.subr.mxu0 0.0
      %1288 = vmatpush1.msra.mxu0 0.0
      %1289 = vmatprep.subr.mxu0 0.0
      %1290 = vmatpush1.msra.mxu0 0.0
      %1291 = vmatprep.subr.mxu0 0.0
      %1292 = vmatpush1.msra.mxu0 0.0
      %1293 = vmatprep.mubr.f32.mxu0 0.0
      %1294 = vmatmul.mubr.f32.gmra.mrb[0].mxu0 %v1227
      %v1295 = vpop.f32.mrb[0].mxu0
      %v1296 = vadd.f32 0.0, %v1295
      %v1297 = vpop.f32.mrb[0].mxu0
      %1298 = vdwg.mxu0
      %v1299 = vsub.f32 0.0, %v1296
      %v1300 = vmul.f32 %v1299, 1.442695
      %v1301 = vpow.pop %v1300
      %v1302 = vadd.f32 %v1301, 1.0
      %v1303 = vrcp.pop %v1302
      %v1304 = vmul.f32 1.0, %v1303
      %1306 = vset.pattern.permute.xlu0 0
      %1307 = vperm.xlu0 %1306, %v815
      %v1308 = vpop.permute.xlu0 %1307
      %1311 = vset.pattern.permute.xlu0 0
      %1312 = vperm.xlu0 %1311, %v817
      %v1313 = vpop.permute.xlu0 %1312
      %v1315 = vmul.f32 %v569, %v1308
      %v1316 = vmul.f32 %v572, %v1313
      %v1317 = vlaneseq
      %v1318 = vshrl.u32 %v1317, 7
      %v1319 = vsub.s32 0, %v1318
      %v1320 = vrot.slane %v1304, %v1319
      %v1321 = vmul.f32 %v1315, %v1320
      %v1322 = vmul.f32 %v1316, %v1320
      %1323 = vset.pattern.permute.xlu0 1
      %1324 = vperm.xlu0 %1323, %v815
      %v1325 = vpop.permute.xlu0 %1324
      %1327 = vset.pattern.permute.xlu0 1
      %1328 = vperm.xlu0 %1327, %v817
      %v1329 = vpop.permute.xlu0 %1328
      %v1331 = vmul.f32 %v630, %v1325
      %v1332 = vmul.f32 %v633, %v1329
      %v1333 = vlaneseq
      %v1334 = vshrl.u32 %v1333, 7
      %v1335 = vsub.s32 0, %v1334
      %v1336 = vrot.slane %v1074, %v1335
      %v1337 = vmul.f32 %v1331, %v1336
      %v1338 = vmul.f32 %v1332, %v1336
      %1341 = vrot.lane.b32.xlu0 %v367, 32
      %v1342 = vpop.permute.xlu0 %1341
      %1343 = vrot.lane.b32.xlu0 %v368, 32
      %v1344 = vpop.permute.xlu0 %1343
      %v1347 = vsel %vm389, %v1321, %v1342
      %v1348 = vsel %vm389, %v1322, %v1344
      %v1349 = vpack.c.bf16 %v1348, %v1347
      %v1351 = vunpack.c.l.b16 %v1349
      %v1352 = vunpack.c.h.b16 %v1349
      %v1353 = vpack.c.b16 %v1351, %v1351
      %v1354 = vpack.c.b16 %v1352, %v1352
      %vm1357 = vcmask 519168
      %1358 = vst.msk [vmem:[%s360] sm:$0xf] %vm1357, %v1353
      %1359 = vst.msk [vmem:[%s360 + $0x4] sm:$0xf] %vm1357, %v1354
      %1362 = vrot.lane.b32.xlu0 %v369, 32
      %v1363 = vpop.permute.xlu0 %1362
      %1364 = vrot.lane.b32.xlu0 %v370, 32
      %v1365 = vpop.permute.xlu0 %1364
      %v1368 = vsel %vm389, %v1337, %v1363
      %v1369 = vsel %vm389, %v1338, %v1365
      %v1370 = vpack.c.bf16 %v1369, %v1368
      %v1372 = vunpack.c.l.b16 %v1370
      %v1373 = vunpack.c.h.b16 %v1370
      %v1374 = vpack.c.b16 %v1372, %v1372
      %v1375 = vpack.c.b16 %v1373, %v1373
      %1378 = vst.msk [vmem:[%s365] sm:$0xf] %vm1357, %v1374
      %1379 = vst.msk [vmem:[%s365 + $0x4] sm:$0xf] %vm1357, %v1375
      %p1380 = scmp.lt.s32.totalorder %s21, 1
      %s1381 = scalar_select %p1380, %s21, 1
      %s1382 = smul.addr %s1381, 2
      %s1383 = smul.addr %s1382, 4
      %s1384 = scalar_lea.vmem %s8, %s1383
      %p1385 = scmp.lt.s32.totalorder %s21, 1
      %s1386 = scalar_select %p1385, %s21, 1
      %s1387 = smul.addr %s1386, 2
      %s1388 = smul.addr %s1387, 4
      %s1389 = scalar_lea.vmem %s9, %s1388
      // Predicated region
      $region53: #{tvsd_forward.9} parent=51 // pred_check
        %p1390 = pneg %p217
      $region54: #{tvsd_forward.9} parent=51 // pred_check_branch
        %1392 = sbr.rel (%p1390) target = $region56
      $region55: #{tvsd_forward.9} parent=51 // pred_region
        _
      $region56: #{tvsd_forward.9} parent=51 // pred_fallthru
        _
      // Predicated region
      $region57: #{tvsd_forward.9} parent=51 // pred_check
        %p1393 = pneg %p243
      $region58: #{tvsd_forward.9} parent=51 // pred_check_branch
        %1395 = sbr.rel (%p1393) target = $region60
      $region59: #{tvsd_forward.9} parent=51 // pred_region
        _
      $region60: #{tvsd_forward.9} parent=51 // pred_fallthru
        _
    $region52: #{tvsd_forward.9} parent=5 // pred_fallthru
      _
    %p1396 = scmp.le.s32.totalorder 2, %s16
    // Predicated region
    $region61: #{tvsd_forward.9} parent=5 // pred_check
      %p1397 = pneg %p1396
    $region62: #{tvsd_forward.9} parent=5 // pred_check_branch
      %1399 = sbr.rel (%p1397) target = $region64
    $region63: #{tvsd_forward.9} parent=5 // pred_region
      %s1400 = ssub.s32 %s16, 2
      // Predicated region
      $region65: #{tvsd_forward.9} parent=63 // pred_check
        %p1401 = pneg %p223
      $region66: #{tvsd_forward.9} parent=63 // pred_check_branch
        %1403 = sbr.rel (%p1401) target = $region68
      $region67: #{tvsd_forward.9} parent=63 // pred_region
        %p1404 = scmp.lt.s32.totalorder %s22, 1
        %s1405 = scalar_select %p1404, %s22, 1
        %s1406 = smul.addr %s1405, 2
        %s1407 = smul.addr %s1406, 4
        %s1408 = scalar_lea.vmem %s8, %s1407
      $region68: #{tvsd_forward.9} parent=63 // pred_fallthru
        _
      // Predicated region
      $region69: #{tvsd_forward.9} parent=63 // pred_check
        %p1409 = pneg %p249
      $region70: #{tvsd_forward.9} parent=63 // pred_check_branch
        %1411 = sbr.rel (%p1409) target = $region72
      $region71: #{tvsd_forward.9} parent=63 // pred_region
        %p1412 = scmp.lt.s32.totalorder %s22, 1
        %s1413 = scalar_select %p1412, %s22, 1
        %s1414 = smul.addr %s1413, 2
        %s1415 = smul.addr %s1414, 4
        %s1416 = scalar_lea.vmem %s9, %s1415
      $region72: #{tvsd_forward.9} parent=63 // pred_fallthru
        _
    $region64: #{tvsd_forward.9} parent=5 // pred_fallthru
      _
  $region6: #{tvsd_forward.9} parent=0 // loop_footer
    %s20 = sadd.s32 1, %s16
  $region7: #{tvsd_forward.9} parent=0 // loop_footer_branch
    %15 = sbr.rel target = $region3
  $region8: #{tvsd_forward.9} parent=0 // loop_exit
    _

// kernel: tvsd_forward.10
$region0: #{tvsd_forward.10}
  #allocation0 [shape = 'u32[]', space=smem, size = 0x4, offset = 0x4, fixed_abs, tag = 'smem constant byte address 0x4 - core index']
  #allocation1 [shape = 'u32[144,128]{1,0:T(1,128)}', space=vmem, size = 0x12000, scoped, tag = 'internal scratch']
  %s0 = inlined_call_operand.vmem [shape: bf16[2,2,40,64], index: 0, kind: input, shape index: {}]
  %s1 = inlined_call_operand.vmem [shape: bf16[2,9,64,32], index: 1, kind: input, shape index: {}]
  %s2 = inlined_call_operand.vmem [shape: f32[2,2,24,32], index: 2, kind: output, shape index: {}]
  %s3 = sld [smem:[#allocation0]]
  $region41: #{tvsd_forward.10} parent=0
    _
  %s5 = ssub.s32 1, %s3
  %s6 = scalar_select 0, %s5, %s3
  loop: start=0, step=1, limit=6
  $region2: #{tvsd_forward.10} parent=0 // loop_pre_header
    _
  $region3: #{tvsd_forward.10} parent=0 // loop_header
    %s8 = sphi 0, %s12
    %p9 = scmp.ge.s32.totalorder %s8, 6
    %s15 = sphi 0, %s27
    %s16 = sphi 0, %s23
    %s17 = sphi 0, %s15
    %s18 = sphi 0, %s16
    %s19 = sphi 0, %s17
    %s20 = sphi 0, %s18
    %s32 = sphi 0, %s34
    %s35 = sphi 0, %s32
    %s36 = sphi 0, %s35
    %s52 = sphi 0, %s36
    %s58 = sphi 0, %s60
    %s61 = sphi 0, %s58
    %s62 = sphi 0, %s61
    %s78 = sphi 0, %s62
    %s86 = sphi 0, %s88
    %s89 = sphi 0, %s86
    %s90 = sphi 0, %s89
    %s106 = sphi 0, %s90
  $region4: #{tvsd_forward.10} parent=0 // loop_header_branch
    %11 = sbr.rel (%p9) target = $region8
  $region5: #{tvsd_forward.10} parent=0 // loop_body
    %s13 = ssub.s32 %s8, 1
    %s14 = ssub.s32 %s8, 2
    %s21 = sadd.s32 1, %s16
    %p22 = scmp.ge.s32.totalorder %s21, 2
    %s23 = scalar_select %p22, 0, %s21
    %s24 = sadd.s32 1, %s15
    %s25 = scalar_select %p22, %s24, %s15
    %p26 = scmp.ge.s32.totalorder %s25, 2
    %s27 = scalar_select %p26, 0, %s25
    %s28 = ssub.s32 %s15, %s27
    %s29 = ssub.s32 %s16, %s23
    %s30 = sor.u32 %s28, %s29
    %p31 = scmp.eq.s32.totalorder %s30, 0
    %s33 = sadd.s32 %s32, 1
    %s34 = scalar_select %p31, %s32, %s33
    %p37 = pneg %p31
    %p38 = scmp.eq.s32.totalorder %s8, 3
    %p39 = por %p37, %p38
    %p40 = scmp.ne.s32.totalorder %s32, %s35
    %p41 = scmp.eq.s32.totalorder %s8, 0
    %p42 = por %p40, %p41
    %p43 = scmp.ne.s32.totalorder %s32, %s35
    %p44 = scmp.eq.s32.totalorder %s13, 3
    %p45 = por %p43, %p44
    %p46 = scmp.ne.s32.totalorder %s35, %s36
    %p47 = scmp.eq.s32.totalorder %s13, 0
    %p48 = por %p46, %p47
    %p49 = scmp.ne.s32.totalorder %s35, %s36
    %p50 = scmp.eq.s32.totalorder %s14, 3
    %p51 = por %p49, %p50
    %p53 = scmp.ne.s32.totalorder %s36, %s52
    %p54 = scmp.eq.s32.totalorder %s14, 0
    %p55 = por %p53, %p54
    %s56 = ssub.s32 %s15, %s27
    %p57 = scmp.eq.s32.totalorder %s56, 0
    %s59 = sadd.s32 %s58, 1
    %s60 = scalar_select %p57, %s58, %s59
    %p63 = pneg %p57
    %p64 = scmp.eq.s32.totalorder %s8, 3
    %p65 = por %p63, %p64
    %p66 = scmp.ne.s32.totalorder %s58, %s61
    %p67 = scmp.eq.s32.totalorder %s8, 0
    %p68 = por %p66, %p67
    %p69 = scmp.ne.s32.totalorder %s58, %s61
    %p70 = scmp.eq.s32.totalorder %s13, 3
    %p71 = por %p69, %p70
    %p72 = scmp.ne.s32.totalorder %s61, %s62
    %p73 = scmp.eq.s32.totalorder %s13, 0
    %p74 = por %p72, %p73
    %p75 = scmp.ne.s32.totalorder %s61, %s62
    %p76 = scmp.eq.s32.totalorder %s14, 3
    %p77 = por %p75, %p76
    %p79 = scmp.ne.s32.totalorder %s62, %s78
    %p80 = scmp.eq.s32.totalorder %s14, 0
    %p81 = por %p79, %p80
    %s82 = ssub.s32 %s15, %s27
    %s83 = ssub.s32 %s16, %s23
    %s84 = sor.u32 %s82, %s83
    %p85 = scmp.eq.s32.totalorder %s84, 0
    %s87 = sadd.s32 %s86, 1
    %s88 = scalar_select %p85, %s86, %s87
    %p91 = pneg %p85
    %p92 = scmp.eq.s32.totalorder %s8, 3
    %p93 = por %p91, %p92
    %p94 = scmp.ne.s32.totalorder %s86, %s89
    %p95 = scmp.eq.s32.totalorder %s8, 0
    %p96 = por %p94, %p95
    %p97 = scmp.ne.s32.totalorder %s86, %s89
    %p98 = scmp.eq.s32.totalorder %s13, 3
    %p99 = por %p97, %p98
    %p100 = scmp.ne.s32.totalorder %s89, %s90
    %p101 = scmp.eq.s32.totalorder %s13, 0
    %p102 = por %p100, %p101
    %p103 = scmp.ne.s32.totalorder %s89, %s90
    %p104 = scmp.eq.s32.totalorder %s14, 3
    %p105 = por %p103, %p104
    %p107 = scmp.ne.s32.totalorder %s90, %s106
    %p108 = scmp.eq.s32.totalorder %s14, 0
    %p109 = por %p107, %p108
    %p110 = scmp.le.s32.totalorder 1, %s8
    %p111 = scmp.lt.s32.totalorder %s8, 5
    %p112 = pnand %p110, %p111
    %p113 = pneg %p112
    // Predicated region
    $region9: #{tvsd_forward.10} parent=5 // pred_check
      _
    $region10: #{tvsd_forward.10} parent=5 // pred_check_branch
      %115 = sbr.rel (%p112) target = $region12
    $region11: #{tvsd_forward.10} parent=5 // pred_region
      %s116 = ssub.s32 %s8, 1
    $region12: #{tvsd_forward.10} parent=5 // pred_fallthru
      _
    %p117 = scmp.lt.s32.totalorder %s8, 4
    // Predicated region
    $region13: #{tvsd_forward.10} parent=5 // pred_check
      %p118 = pneg %p117
    $region14: #{tvsd_forward.10} parent=5 // pred_check_branch
      %120 = sbr.rel (%p118) target = $region16
    $region15: #{tvsd_forward.10} parent=5 // pred_region
      // Predicated region
      $region17: #{tvsd_forward.10} parent=15 // pred_check
        %p121 = pneg %p42
      $region18: #{tvsd_forward.10} parent=15 // pred_check_branch
        %123 = sbr.rel (%p121) target = $region20
      $region19: #{tvsd_forward.10} parent=15 // pred_region
        %p124 = scmp.lt.s32.totalorder %s15, 1
        %s125 = scalar_select %p124, %s15, 1
        %p126 = scmp.lt.s32.totalorder %s16, 1
        %s127 = scalar_select %p126, %s16, 1
        %s128 = smul.addr %s127, 5
        %s129 = smul.addr %s125, 10
        %s130 = sadd.s32 %s128, %s129
        %s131 = smul.addr %s130, 4
        %s132 = scalar_lea.vmem %s0, %s131
      $region20: #{tvsd_forward.10} parent=15 // pred_fallthru
        _
      // Predicated region
      $region21: #{tvsd_forward.10} parent=15 // pred_check
        %p133 = pneg %p68
      $region22: #{tvsd_forward.10} parent=15 // pred_check_branch
        %135 = sbr.rel (%p133) target = $region24
      $region23: #{tvsd_forward.10} parent=15 // pred_region
        %p136 = scmp.lt.s32.totalorder %s15, 1
        %s137 = scalar_select %p136, %s15, 1
        %s138 = smul.addr %s137, 72
        %s139 = smul.addr %s138, 4
        %s140 = scalar_lea.vmem %s1, %s139
      $region24: #{tvsd_forward.10} parent=15 // pred_fallthru
        _
    $region16: #{tvsd_forward.10} parent=5 // pred_fallthru
      _
    %p141 = scmp.le.s32.totalorder 1, %s8
    %p142 = scmp.lt.s32.totalorder %s8, 5
    %p143 = pnand %p141, %p142
    %p144 = pneg %p143
    // Predicated region
    $region25: #{tvsd_forward.10} parent=5 // pred_check
      _
    $region26: #{tvsd_forward.10} parent=5 // pred_check_branch
      %146 = sbr.rel (%p143) target = $region28
    $region27: #{tvsd_forward.10} parent=5 // pred_region
      %s147 = ssub.s32 %s8, 1
      %p148 = scmp.lt.s32.totalorder %s17, 1
      %s149 = scalar_select %p148, %s17, 1
      %p150 = scmp.lt.s32.totalorder %s18, 1
      %s151 = scalar_select %p150, %s18, 1
      %s152 = smul.addr %s151, 5
      %s153 = smul.addr %s149, 10
      %s154 = sadd.s32 %s152, %s153
      %s155 = smul.addr %s154, 4
      %s156 = scalar_lea.vmem %s0, %s155
      %p157 = pneg %p48
      %p158 = pneg %p45
      %p159 = scmp.lt.s32.totalorder %s17, 1
      %s160 = scalar_select %p159, %s17, 1
      %s161 = smul.addr %s160, 72
      %s162 = smul.addr %s161, 4
      %s163 = scalar_lea.vmem %s1, %s162
      %p164 = pneg %p74
      %p165 = pneg %p71
      %p166 = pneg %p102
      %p167 = pneg %p99
      %p168 = scmp.lt.s32.totalorder %s17, 1
      %s169 = scalar_select %p168, %s17, 1
      %p170 = scmp.lt.s32.totalorder %s18, 1
      %s171 = scalar_select %p170, %s18, 1
      %s172 = smul.addr %s171, 3
      %s173 = smul.addr %s169, 6
      %s174 = sadd.s32 %s172, %s173
      %s175 = smul.addr %s174, 8
      %s176 = scalar_lea.vmem %s2, %s175
      %p177 = scmp.lt.s32.totalorder %s17, 1
      %s178 = scalar_select %p177, %s17, 1
      %p179 = scmp.lt.s32.totalorder %s18, 1
      %s180 = scalar_select %p179, %s18, 1
      %s181 = smul.addr %s180, 5
      %s182 = smul.addr %s178, 10
      %s183 = sadd.s32 %s181, %s182
      %s184 = smul.addr %s183, 4
      %s185 = scalar_lea.vmem %s0, %s184
      %p186 = scmp.lt.s32.totalorder %s17, 1
      %s187 = scalar_select %p186, %s17, 1
      %s188 = smul.addr %s187, 72
      %s189 = smul.addr %s188, 4
      %s190 = scalar_lea.vmem %s1, %s189
      %p191 = scmp.lt.s32.totalorder %s17, 1
      %s192 = scalar_select %p191, %s17, 1
      %p193 = scmp.lt.s32.totalorder %s18, 1
      %s194 = scalar_select %p193, %s18, 1
      %s195 = smul.addr %s194, 3
      %s196 = smul.addr %s192, 6
      %s197 = sadd.s32 %s195, %s196
      %s198 = smul.addr %s197, 8
      %s199 = scalar_lea.vmem %s2, %s198
      %v201 = vld [vmem:[%s185] sm:$0xf]
      %v202 = vld [vmem:[%s185 + $0x4] sm:$0xf]
      %v203 = vld [vmem:[%s185 + $0x8] sm:$0xf]
      %v204 = vld [vmem:[%s190] sm:$0xf]
      %v205 = vld [vmem:[%s190 + $0x4] sm:$0xf]
      %v206 = vld [vmem:[%s190 + $0x8] sm:$0xf]
      %v207 = vld [vmem:[%s190 + $0xc] sm:$0xf]
      %v208 = vld [vmem:[%s190 + $0x10] sm:$0xf]
      %v209 = vld [vmem:[%s190 + $0x14] sm:$0xf]
      %v210 = vld [vmem:[%s190 + $0x18] sm:$0xf]
      %v211 = vld [vmem:[%s190 + $0x1c] sm:$0xf]
      %v212 = vld [vmem:[%s185 + $0xc] sm:$0x1]
      %s213 = scalar_lea.vmem %s190, 32
      %v214 = vld [vmem:[%s213] sm:$0xf]
      %v215 = vld [vmem:[%s213 + $0x4] sm:$0xf]
      %v216 = vld [vmem:[%s213 + $0x8] sm:$0xf]
      %v217 = vld [vmem:[%s213 + $0xc] sm:$0xf]
      %v218 = vld [vmem:[%s213 + $0x10] sm:$0xf]
      %v219 = vld [vmem:[%s213 + $0x14] sm:$0xf]
      %v220 = vld [vmem:[%s213 + $0x18] sm:$0xf]
      %v221 = vld [vmem:[%s213 + $0x1c] sm:$0xf]
      %v226 = vunpack.c.l.b16 %v201
      %v227 = vunpack.c.l.b16 %v202
      %v228 = vunpack.c.l.b16 %v203
      %v229 = vunpack.c.l.b16 %v212
      %v230 = vpack.c.b16 %v227, %v226
      %v231 = vpack.c.b16 %v229, %v228
      %vm232 = vsmask.f32 7424
      %v234 = vshrl.u32 %v230, 16
      %v236 = vshll.u32 %v230, 16
      %v238 = vrot.slane %v236, 1
      %v239 = vor.u32 %v234, %v238
      %v241 = vshll.u32 %v231, 16
      %v243 = vrot.slane %v241, 1
      %v244 = vsel %vm232, %v239, %v243
      %v245 = vshrl.u32 %v231, 16
      %v247 = vor.u32 %v245, %v243
      %v256 = vunpack.c.l.b16 %v214
      %v257 = vunpack.c.l.b16 %v215
      %v258 = vunpack.c.l.b16 %v216
      %v259 = vunpack.c.l.b16 %v217
      %v260 = vunpack.c.l.b16 %v218
      %v261 = vunpack.c.l.b16 %v219
      %v262 = vunpack.c.l.b16 %v220
      %v263 = vunpack.c.l.b16 %v221
      %v264 = vpack.c.b16 %v257, %v256
      %v265 = vpack.c.b16 %v259, %v258
      %v266 = vpack.c.b16 %v261, %v260
      %v267 = vpack.c.b16 %v263, %v262
      %vm272 = vcmask 523264
      %v274 = vsel %vm272, %v244, 0
      %v277 = vsel %vm272, %v247, 0
      %279 = vmatprep.subr.bf16.mxu0 0
      %280 = vmatpush1.bf16.msra.mxu0 %v264
      %281 = vmatprep.subr.bf16.mxu0 0
      %282 = vmatpush1.bf16.msra.mxu0 %v265
      %283 = vmatprep.subr.bf16.mxu0 0
      %284 = vmatpush1.bf16.msra.mxu0 %v266
      %285 = vmatprep.subr.bf16.mxu0 0
      %286 = vmatpush1.bf16.msra.mxu0 %v267
      %287 = vmatprep.subr.bf16.mxu0 0
      %288 = vmatpush1.bf16.msra.mxu0 0
      %289 = vmatprep.subr.bf16.mxu0 0
      %290 = vmatpush1.bf16.msra.mxu0 0
      %291 = vmatprep.subr.bf16.mxu0 0
      %292 = vmatpush1.bf16.msra.mxu0 0
      %293 = vmatprep.subr.bf16.mxu0 0
      %294 = vmatpush1.bf16.msra.mxu0 0
      %295 = vmatprep.subr.bf16.mxu0 0
      %296 = vmatpush1.bf16.msra.mxu0 0
      %297 = vmatprep.subr.bf16.mxu0 0
      %298 = vmatpush1.bf16.msra.mxu0 0
      %299 = vmatprep.subr.bf16.mxu0 0
      %300 = vmatpush1.bf16.msra.mxu0 0
      %301 = vmatprep.subr.bf16.mxu0 0
      %302 = vmatpush1.bf16.msra.mxu0 0
      %303 = vmatprep.subr.bf16.mxu0 0
      %304 = vmatpush1.bf16.msra.mxu0 0
      %305 = vmatprep.subr.bf16.mxu0 0
      %306 = vmatpush1.bf16.msra.mxu0 0
      %307 = vmatprep.subr.bf16.mxu0 0
      %308 = vmatpush1.bf16.msra.mxu0 0
      %309 = vmatprep.subr.bf16.mxu0 0
      %310 = vmatpush1.bf16.msra.mxu0 0
      %311 = vmatprep.mubr.bf16.mxu0 0
      %312 = vmatmul.mubr.bf16.gmra.mrb[0].mxu0 %v274
      %v313 = vpop.f32.mrb[0].mxu0
      %v314 = vadd.f32 0.0, %v313
      %v315 = vpop.f32.mrb[0].mxu0
      %v316 = vpop.f32.mrb[0].mxu0
      %v317 = vadd.f32 0.0, %v316
      %v318 = vpop.f32.mrb[0].mxu0
      %319 = vmatprep.mubr.bf16.mxu0 0
      %320 = vmatmul.mubr.bf16.gmra.mrb[0].mxu0 %v277
      %v321 = vpop.f32.mrb[0].mxu0
      %v322 = vadd.f32 0.0, %v321
      %v323 = vpop.f32.mrb[0].mxu0
      %v324 = vpop.f32.mrb[0].mxu0
      %v325 = vpop.f32.mrb[0].mxu0
      %326 = vdwg.mxu0
      %v327 = vpack.c.b16 %v228, %v228
      %v336 = vunpack.c.l.b16 %v204
      %v337 = vunpack.c.l.b16 %v205
      %v338 = vunpack.c.l.b16 %v206
      %v339 = vunpack.c.l.b16 %v207
      %v340 = vunpack.c.l.b16 %v208
      %v341 = vunpack.c.l.b16 %v209
      %v342 = vunpack.c.l.b16 %v210
      %v343 = vunpack.c.l.b16 %v211
      %v344 = vpack.c.b16 %v337, %v336
      %v345 = vpack.c.b16 %v339, %v338
      %v346 = vpack.c.b16 %v341, %v340
      %v347 = vpack.c.b16 %v343, %v342
      %v352 = vsel %vm272, %v230, 0
      %v355 = vsel %vm272, %v327, 0
      %357 = vmatprep.subr.bf16.mxu0 0
      %358 = vmatpush1.bf16.msra.mxu0 %v344
      %359 = vmatprep.subr.bf16.mxu0 0
      %360 = vmatpush1.bf16.msra.mxu0 %v345
      %361 = vmatprep.subr.bf16.mxu0 0
      %362 = vmatpush1.bf16.msra.mxu0 %v346
      %363 = vmatprep.subr.bf16.mxu0 0
      %364 = vmatpush1.bf16.msra.mxu0 %v347
      %365 = vmatprep.subr.bf16.mxu0 0
      %366 = vmatpush1.bf16.msra.mxu0 0
      %367 = vmatprep.subr.bf16.mxu0 0
      %368 = vmatpush1.bf16.msra.mxu0 0
      %369 = vmatprep.subr.bf16.mxu0 0
      %370 = vmatpush1.bf16.msra.mxu0 0
      %371 = vmatprep.subr.bf16.mxu0 0
      %372 = vmatpush1.bf16.msra.mxu0 0
      %373 = vmatprep.subr.bf16.mxu0 0
      %374 = vmatpush1.bf16.msra.mxu0 0
      %375 = vmatprep.subr.bf16.mxu0 0
      %376 = vmatpush1.bf16.msra.mxu0 0
      %377 = vmatprep.subr.bf16.mxu0 0
      %378 = vmatpush1.bf16.msra.mxu0 0
      %379 = vmatprep.subr.bf16.mxu0 0
      %380 = vmatpush1.bf16.msra.mxu0 0
      %381 = vmatprep.subr.bf16.mxu0 0
      %382 = vmatpush1.bf16.msra.mxu0 0
      %383 = vmatprep.subr.bf16.mxu0 0
      %384 = vmatpush1.bf16.msra.mxu0 0
      %385 = vmatprep.subr.bf16.mxu0 0
      %386 = vmatpush1.bf16.msra.mxu0 0
      %387 = vmatprep.subr.bf16.mxu0 0
      %388 = vmatpush1.bf16.msra.mxu0 0
      %389 = vmatprep.mubr.bf16.mxu0 0
      %390 = vmatmul.mubr.bf16.gmra.mrb[0].mxu0 %v352
      %v391 = vpop.f32.mrb[0].mxu0
      %v392 = vadd.f32 %v314, %v391
      %v393 = vpop.f32.mrb[0].mxu0
      %v394 = vpop.f32.mrb[0].mxu0
      %v395 = vadd.f32 %v317, %v394
      %v396 = vpop.f32.mrb[0].mxu0
      %397 = vmatprep.mubr.bf16.mxu0 0
      %398 = vmatmul.mubr.bf16.gmra.mrb[0].mxu0 %v355
      %v399 = vpop.f32.mrb[0].mxu0
      %v400 = vadd.f32 %v322, %v399
      %v401 = vpop.f32.mrb[0].mxu0
      %v402 = vpop.f32.mrb[0].mxu0
      %v403 = vpop.f32.mrb[0].mxu0
      %404 = vdwg.mxu0
      %v405 = vld [vmem:[%s185] sm:$0xe]
      %s406 = scalar_lea.vmem %s190, 64
      %v407 = vld [vmem:[%s406] sm:$0xf]
      %v408 = vld [vmem:[%s406 + $0x4] sm:$0xf]
      %v409 = vld [vmem:[%s406 + $0x8] sm:$0xf]
      %v410 = vld [vmem:[%s406 + $0xc] sm:$0xf]
      %v411 = vld [vmem:[%s406 + $0x10] sm:$0xf]
      %v412 = vld [vmem:[%s406 + $0x14] sm:$0xf]
      %v413 = vld [vmem:[%s406 + $0x18] sm:$0xf]
      %v414 = vld [vmem:[%s406 + $0x1c] sm:$0xf]
      %v416 = vunpack.c.l.b16 %v405
      %v417 = vpack.c.b16 %v227, %v416
      %vm418 = vcmask 1046528
      %v419 = vrot.slane %v417, 1
      %v420 = vrot.slane %v231, 1
      %v421 = vsel %vm418, %v419, %v420
      %v430 = vunpack.c.l.b16 %v407
      %v431 = vunpack.c.l.b16 %v408
      %v432 = vunpack.c.l.b16 %v409
      %v433 = vunpack.c.l.b16 %v410
      %v434 = vunpack.c.l.b16 %v411
      %v435 = vunpack.c.l.b16 %v412
      %v436 = vunpack.c.l.b16 %v413
      %v437 = vunpack.c.l.b16 %v414
      %v438 = vpack.c.b16 %v431, %v430
      %v439 = vpack.c.b16 %v433, %v432
      %v440 = vpack.c.b16 %v435, %v434
      %v441 = vpack.c.b16 %v437, %v436
      %v447 = vsel %vm272, %v421, 0
      %v450 = vsel %vm272, %v420, 0
      %452 = vmatprep.subr.bf16.mxu0 0
      %453 = vmatpush1.bf16.msra.mxu0 %v438
      %454 = vmatprep.subr.bf16.mxu0 0
      %455 = vmatpush1.bf16.msra.mxu0 %v439
      %456 = vmatprep.subr.bf16.mxu0 0
      %457 = vmatpush1.bf16.msra.mxu0 %v440
      %458 = vmatprep.subr.bf16.mxu0 0
      %459 = vmatpush1.bf16.msra.mxu0 %v441
      %460 = vmatprep.subr.bf16.mxu0 0
      %461 = vmatpush1.bf16.msra.mxu0 0
      %462 = vmatprep.subr.bf16.mxu0 0
      %463 = vmatpush1.bf16.msra.mxu0 0
      %464 = vmatprep.subr.bf16.mxu0 0
      %465 = vmatpush1.bf16.msra.mxu0 0
      %466 = vmatprep.subr.bf16.mxu0 0
      %467 = vmatpush1.bf16.msra.mxu0 0
      %468 = vmatprep.subr.bf16.mxu0 0
      %469 = vmatpush1.bf16.msra.mxu0 0
      %470 = vmatprep.subr.bf16.mxu0 0
      %471 = vmatpush1.bf16.msra.mxu0 0
      %472 = vmatprep.subr.bf16.mxu0 0
      %473 = vmatpush1.bf16.msra.mxu0 0
      %474 = vmatprep.subr.bf16.mxu0 0
      %475 = vmatpush1.bf16.msra.mxu0 0
      %476 = vmatprep.subr.bf16.mxu0 0
      %477 = vmatpush1.bf16.msra.mxu0 0
      %478 = vmatprep.subr.bf16.mxu0 0
      %479 = vmatpush1.bf16.msra.mxu0 0
      %480 = vmatprep.subr.bf16.mxu0 0
      %481 = vmatpush1.bf16.msra.mxu0 0
      %482 = vmatprep.subr.bf16.mxu0 0
      %483 = vmatpush1.bf16.msra.mxu0 0
      %484 = vmatprep.mubr.bf16.mxu0 0
      %485 = vmatmul.mubr.bf16.gmra.mrb[0].mxu0 %v447
      %v486 = vpop.f32.mrb[0].mxu0
      %v487 = vadd.f32 0.0, %v486
      %v488 = vpop.f32.mrb[0].mxu0
      %v489 = vpop.f32.mrb[0].mxu0
      %v490 = vadd.f32 0.0, %v489
      %v491 = vpop.f32.mrb[0].mxu0
      %492 = vmatprep.mubr.bf16.mxu0 0
      %493 = vmatmul.mubr.bf16.gmra.mrb[0].mxu0 %v450
      %v494 = vpop.f32.mrb[0].mxu0
      %v495 = vadd.f32 0.0, %v494
      %v496 = vpop.f32.mrb[0].mxu0
      %v497 = vpop.f32.mrb[0].mxu0
      %v498 = vpop.f32.mrb[0].mxu0
      %499 = vdwg.mxu0
      %v500 = vadd.f32 %v392, %v487
      %v501 = vadd.f32 %v395, %v490
      %v502 = vadd.f32 %v400, %v495
      %v503 = vld [vmem:[%s185] sm:$0x8]
      %v504 = vld [vmem:[%s185 + $0xc] sm:$0x7]
      %s505 = scalar_lea.vmem %s190, 96
      %v506 = vld [vmem:[%s505] sm:$0xf]
      %v507 = vld [vmem:[%s505 + $0x4] sm:$0xf]
      %v508 = vld [vmem:[%s505 + $0x8] sm:$0xf]
      %v509 = vld [vmem:[%s505 + $0xc] sm:$0xf]
      %v510 = vld [vmem:[%s505 + $0x10] sm:$0xf]
      %v511 = vld [vmem:[%s505 + $0x14] sm:$0xf]
      %v512 = vld [vmem:[%s505 + $0x18] sm:$0xf]
      %v513 = vld [vmem:[%s505 + $0x1c] sm:$0xf]
      %v516 = vunpack.c.l.b16 %v503
      %v517 = vunpack.c.l.b16 %v504
      %v518 = vpack.c.b16 %v227, %v516
      %v519 = vpack.c.b16 %v517, %v228
      %vm520 = vcmask 1044480
      %v521 = vrot.slane %v518, 3
      %v522 = vrot.slane %v519, 3
      %v523 = vsel %vm520, %v521, %v522
      %v532 = vunpack.c.l.b16 %v506
      %v533 = vunpack.c.l.b16 %v507
      %v534 = vunpack.c.l.b16 %v508
      %v535 = vunpack.c.l.b16 %v509
      %v536 = vunpack.c.l.b16 %v510
      %v537 = vunpack.c.l.b16 %v511
      %v538 = vunpack.c.l.b16 %v512
      %v539 = vunpack.c.l.b16 %v513
      %v540 = vpack.c.b16 %v533, %v532
      %v541 = vpack.c.b16 %v535, %v534
      %v542 = vpack.c.b16 %v537, %v536
      %v543 = vpack.c.b16 %v539, %v538
      %v549 = vsel %vm272, %v523, 0
      %v552 = vsel %vm272, %v522, 0
      %554 = vmatprep.subr.bf16.mxu0 0
      %555 = vmatpush1.bf16.msra.mxu0 %v540
      %556 = vmatprep.subr.bf16.mxu0 0
      %557 = vmatpush1.bf16.msra.mxu0 %v541
      %558 = vmatprep.subr.bf16.mxu0 0
      %559 = vmatpush1.bf16.msra.mxu0 %v542
      %560 = vmatprep.subr.bf16.mxu0 0
      %561 = vmatpush1.bf16.msra.mxu0 %v543
      %562 = vmatprep.subr.bf16.mxu0 0
      %563 = vmatpush1.bf16.msra.mxu0 0
      %564 = vmatprep.subr.bf16.mxu0 0
      %565 = vmatpush1.bf16.msra.mxu0 0
      %566 = vmatprep.subr.bf16.mxu0 0
      %567 = vmatpush1.bf16.msra.mxu0 0
      %568 = vmatprep.subr.bf16.mxu0 0
      %569 = vmatpush1.bf16.msra.mxu0 0
      %570 = vmatprep.subr.bf16.mxu0 0
      %571 = vmatpush1.bf16.msra.mxu0 0
      %572 = vmatprep.subr.bf16.mxu0 0
      %573 = vmatpush1.bf16.msra.mxu0 0
      %574 = vmatprep.subr.bf16.mxu0 0
      %575 = vmatpush1.bf16.msra.mxu0 0
      %576 = vmatprep.subr.bf16.mxu0 0
      %577 = vmatpush1.bf16.msra.mxu0 0
      %578 = vmatprep.subr.bf16.mxu0 0
      %579 = vmatpush1.bf16.msra.mxu0 0
      %580 = vmatprep.subr.bf16.mxu0 0
      %581 = vmatpush1.bf16.msra.mxu0 0
      %582 = vmatprep.subr.bf16.mxu0 0
      %583 = vmatpush1.bf16.msra.mxu0 0
      %584 = vmatprep.subr.bf16.mxu0 0
      %585 = vmatpush1.bf16.msra.mxu0 0
      %586 = vmatprep.mubr.bf16.mxu0 0
      %587 = vmatmul.mubr.bf16.gmra.mrb[0].mxu0 %v549
      %v588 = vpop.f32.mrb[0].mxu0
      %v589 = vadd.f32 0.0, %v588
      %v590 = vpop.f32.mrb[0].mxu0
      %v591 = vpop.f32.mrb[0].mxu0
      %v592 = vadd.f32 0.0, %v591
      %v593 = vpop.f32.mrb[0].mxu0
      %594 = vmatprep.mubr.bf16.mxu0 0
      %595 = vmatmul.mubr.bf16.gmra.mrb[0].mxu0 %v552
      %v596 = vpop.f32.mrb[0].mxu0
      %v597 = vadd.f32 0.0, %v596
      %v598 = vpop.f32.mrb[0].mxu0
      %v599 = vpop.f32.mrb[0].mxu0
      %v600 = vpop.f32.mrb[0].mxu0
      %601 = vdwg.mxu0
      %v602 = vadd.f32 %v500, %v589
      %v603 = vadd.f32 %v501, %v592
      %v604 = vadd.f32 %v502, %v597
      %v605 = vld [vmem:[%s185 + $0xc] sm:$0xf]
      %s606 = scalar_lea.vmem %s190, 128
      %v607 = vld [vmem:[%s606] sm:$0xf]
      %v608 = vld [vmem:[%s606 + $0x4] sm:$0xf]
      %v609 = vld [vmem:[%s606 + $0x8] sm:$0xf]
      %v610 = vld [vmem:[%s606 + $0xc] sm:$0xf]
      %v611 = vld [vmem:[%s606 + $0x10] sm:$0xf]
      %v612 = vld [vmem:[%s606 + $0x14] sm:$0xf]
      %v613 = vld [vmem:[%s606 + $0x18] sm:$0xf]
      %v614 = vld [vmem:[%s606 + $0x1c] sm:$0xf]
      %v616 = vunpack.c.l.b16 %v605
      %v617 = vpack.c.b16 %v616, %v228
      %vm618 = vsmask.f32 4352
      %v620 = vshrl.u32 %v518, 16
      %v622 = vrot.slane %v620, 3
      %v623 = vshll.u32 %v518, 16
      %v625 = vrot.slane %v623, 4
      %v626 = vor.u32 %v622, %v625
      %v628 = vshrl.u32 %v617, 16
      %v630 = vrot.slane %v628, 3
      %v631 = vshll.u32 %v617, 16
      %v633 = vrot.slane %v631, 4
      %v634 = vor.u32 %v630, %v633
      %v635 = vsel %vm618, %v626, %v634
      %v644 = vunpack.c.l.b16 %v607
      %v645 = vunpack.c.l.b16 %v608
      %v646 = vunpack.c.l.b16 %v609
      %v647 = vunpack.c.l.b16 %v610
      %v648 = vunpack.c.l.b16 %v611
      %v649 = vunpack.c.l.b16 %v612
      %v650 = vunpack.c.l.b16 %v613
      %v651 = vunpack.c.l.b16 %v614
      %v652 = vpack.c.b16 %v645, %v644
      %v653 = vpack.c.b16 %v647, %v646
      %v654 = vpack.c.b16 %v649, %v648
      %v655 = vpack.c.b16 %v651, %v650
      %v661 = vsel %vm272, %v635, 0
      %v664 = vsel %vm272, %v634, 0
      %666 = vmatprep.subr.bf16.mxu0 0
      %667 = vmatpush1.bf16.msra.mxu0 %v652
      %668 = vmatprep.subr.bf16.mxu0 0
      %669 = vmatpush1.bf16.msra.mxu0 %v653
      %670 = vmatprep.subr.bf16.mxu0 0
      %671 = vmatpush1.bf16.msra.mxu0 %v654
      %672 = vmatprep.subr.bf16.mxu0 0
      %673 = vmatpush1.bf16.msra.mxu0 %v655
      %674 = vmatprep.subr.bf16.mxu0 0
      %675 = vmatpush1.bf16.msra.mxu0 0
      %676 = vmatprep.subr.bf16.mxu0 0
      %677 = vmatpush1.bf16.msra.mxu0 0
      %678 = vmatprep.subr.bf16.mxu0 0
      %679 = vmatpush1.bf16.msra.mxu0 0
      %680 = vmatprep.subr.bf16.mxu0 0
      %681 = vmatpush1.bf16.msra.mxu0 0
      %682 = vmatprep.subr.bf16.mxu0 0
      %683 = vmatpush1.bf16.msra.mxu0 0
      %684 = vmatprep.subr.bf16.mxu0 0
      %685 = vmatpush1.bf16.msra.mxu0 0
      %686 = vmatprep.subr.bf16.mxu0 0
      %687 = vmatpush1.bf16.msra.mxu0 0
      %688 = vmatprep.subr.bf16.mxu0 0
      %689 = vmatpush1.bf16.msra.mxu0 0
      %690 = vmatprep.subr.bf16.mxu0 0
      %691 = vmatpush1.bf16.msra.mxu0 0
      %692 = vmatprep.subr.bf16.mxu0 0
      %693 = vmatpush1.bf16.msra.mxu0 0
      %694 = vmatprep.subr.bf16.mxu0 0
      %695 = vmatpush1.bf16.msra.mxu0 0
      %696 = vmatprep.subr.bf16.mxu0 0
      %697 = vmatpush1.bf16.msra.mxu0 0
      %698 = vmatprep.mubr.bf16.mxu0 0
      %699 = vmatmul.mubr.bf16.gmra.mrb[0].mxu0 %v661
      %v700 = vpop.f32.mrb[0].mxu0
      %v701 = vadd.f32 0.0, %v700
      %v702 = vpop.f32.mrb[0].mxu0
      %v703 = vpop.f32.mrb[0].mxu0
      %v704 = vadd.f32 0.0, %v703
      %v705 = vpop.f32.mrb[0].mxu0
      %706 = vmatprep.mubr.bf16.mxu0 0
      %707 = vmatmul.mubr.bf16.gmra.mrb[0].mxu0 %v664
      %v708 = vpop.f32.mrb[0].mxu0
      %v709 = vadd.f32 0.0, %v708
      %v710 = vpop.f32.mrb[0].mxu0
      %v711 = vpop.f32.mrb[0].mxu0
      %v712 = vpop.f32.mrb[0].mxu0
      %713 = vdwg.mxu0
      %v714 = vadd.f32 %v602, %v701
      %v715 = vadd.f32 %v603, %v704
      %v716 = vadd.f32 %v604, %v709
      %s717 = scalar_lea.vmem %s190, 160
      %v718 = vld [vmem:[%s717] sm:$0xf]
      %v719 = vld [vmem:[%s717 + $0x4] sm:$0xf]
      %v720 = vld [vmem:[%s717 + $0x8] sm:$0xf]
      %v721 = vld [vmem:[%s717 + $0xc] sm:$0xf]
      %v722 = vld [vmem:[%s717 + $0x10] sm:$0xf]
      %v723 = vld [vmem:[%s717 + $0x14] sm:$0xf]
      %v724 = vld [vmem:[%s717 + $0x18] sm:$0xf]
      %v725 = vld [vmem:[%s717 + $0x1c] sm:$0xf]
      %v726 = vpack.c.b16 %v228, %v227
      %v727 = vpack.c.b16 %v616, %v616
      %v736 = vunpack.c.l.b16 %v718
      %v737 = vunpack.c.l.b16 %v719
      %v738 = vunpack.c.l.b16 %v720
      %v739 = vunpack.c.l.b16 %v721
      %v740 = vunpack.c.l.b16 %v722
      %v741 = vunpack.c.l.b16 %v723
      %v742 = vunpack.c.l.b16 %v724
      %v743 = vunpack.c.l.b16 %v725
      %v744 = vpack.c.b16 %v737, %v736
      %v745 = vpack.c.b16 %v739, %v738
      %v746 = vpack.c.b16 %v741, %v740
      %v747 = vpack.c.b16 %v743, %v742
      %v753 = vsel %vm272, %v726, 0
      %v756 = vsel %vm272, %v727, 0
      %758 = vmatprep.subr.bf16.mxu0 0
      %759 = vmatpush1.bf16.msra.mxu0 %v744
      %760 = vmatprep.subr.bf16.mxu0 0
      %761 = vmatpush1.bf16.msra.mxu0 %v745
      %762 = vmatprep.subr.bf16.mxu0 0
      %763 = vmatpush1.bf16.msra.mxu0 %v746
      %764 = vmatprep.subr.bf16.mxu0 0
      %765 = vmatpush1.bf16.msra.mxu0 %v747
      %766 = vmatprep.subr.bf16.mxu0 0
      %767 = vmatpush1.bf16.msra.mxu0 0
      %768 = vmatprep.subr.bf16.mxu0 0
      %769 = vmatpush1.bf16.msra.mxu0 0
      %770 = vmatprep.subr.bf16.mxu0 0
      %771 = vmatpush1.bf16.msra.mxu0 0
      %772 = vmatprep.subr.bf16.mxu0 0
      %773 = vmatpush1.bf16.msra.mxu0 0
      %774 = vmatprep.subr.bf16.mxu0 0
      %775 = vmatpush1.bf16.msra.mxu0 0
      %776 = vmatprep.subr.bf16.mxu0 0
      %777 = vmatpush1.bf16.msra.mxu0 0
      %778 = vmatprep.subr.bf16.mxu0 0
      %779 = vmatpush1.bf16.msra.mxu0 0
      %780 = vmatprep.subr.bf16.mxu0 0
      %781 = vmatpush1.bf16.msra.mxu0 0
      %782 = vmatprep.subr.bf16.mxu0 0
      %783 = vmatpush1.bf16.msra.mxu0 0
      %784 = vmatprep.subr.bf16.mxu0 0
      %785 = vmatpush1.bf16.msra.mxu0 0
      %786 = vmatprep.subr.bf16.mxu0 0
      %787 = vmatpush1.bf16.msra.mxu0 0
      %788 = vmatprep.subr.bf16.mxu0 0
      %789 = vmatpush1.bf16.msra.mxu0 0
      %790 = vmatprep.mubr.bf16.mxu0 0
      %791 = vmatmul.mubr.bf16.gmra.mrb[0].mxu0 %v753
      %v792 = vpop.f32.mrb[0].mxu0
      %v793 = vadd.f32 0.0, %v792
      %v794 = vpop.f32.mrb[0].mxu0
      %v795 = vpop.f32.mrb[0].mxu0
      %v796 = vadd.f32 0.0, %v795
      %v797 = vpop.f32.mrb[0].mxu0
      %798 = vmatprep.mubr.bf16.mxu0 0
      %799 = vmatmul.mubr.bf16.gmra.mrb[0].mxu0 %v756
      %v800 = vpop.f32.mrb[0].mxu0
      %v801 = vadd.f32 0.0, %v800
      %v802 = vpop.f32.mrb[0].mxu0
      %v803 = vpop.f32.mrb[0].mxu0
      %v804 = vpop.f32.mrb[0].mxu0
      %805 = vdwg.mxu0
      %v806 = vadd.f32 %v714, %v793
      %v807 = vadd.f32 %v715, %v796
      %v808 = vadd.f32 %v716, %v801
      %v809 = vld [vmem:[%s185 + $0x4] sm:$0xc]
      %v810 = vld [vmem:[%s185 + $0x8] sm:$0xf]
      %v811 = vld [vmem:[%s185 + $0xc] sm:$0xf]
      %v812 = vld [vmem:[%s185 + $0x10] sm:$0x3]
      %s813 = scalar_lea.vmem %s190, 192
      %v814 = vld [vmem:[%s813] sm:$0xf]
      %v815 = vld [vmem:[%s813 + $0x4] sm:$0xf]
      %v816 = vld [vmem:[%s813 + $0x8] sm:$0xf]
      %v817 = vld [vmem:[%s813 + $0xc] sm:$0xf]
      %v818 = vld [vmem:[%s813 + $0x10] sm:$0xf]
      %v819 = vld [vmem:[%s813 + $0x14] sm:$0xf]
      %v820 = vld [vmem:[%s813 + $0x18] sm:$0xf]
      %v821 = vld [vmem:[%s813 + $0x1c] sm:$0xf]
      %v826 = vunpack.c.l.b16 %v809
      %v827 = vunpack.c.l.b16 %v810
      %v828 = vunpack.c.l.b16 %v811
      %v829 = vunpack.c.l.b16 %v812
      %v830 = vpack.c.b16 %v827, %v826
      %v831 = vpack.c.b16 %v829, %v828
      %vm832 = vcmask 1045504
      %v833 = vrot.slane %v830, 2
      %v834 = vrot.slane %v831, 2
      %v835 = vsel %vm832, %v833, %v834
      %v844 = vunpack.c.l.b16 %v814
      %v845 = vunpack.c.l.b16 %v815
      %v846 = vunpack.c.l.b16 %v816
      %v847 = vunpack.c.l.b16 %v817
      %v848 = vunpack.c.l.b16 %v818
      %v849 = vunpack.c.l.b16 %v819
      %v850 = vunpack.c.l.b16 %v820
      %v851 = vunpack.c.l.b16 %v821
      %v852 = vpack.c.b16 %v845, %v844
      %v853 = vpack.c.b16 %v847, %v846
      %v854 = vpack.c.b16 %v849, %v848
      %v855 = vpack.c.b16 %v851, %v850
      %v861 = vsel %vm272, %v835, 0
      %v864 = vsel %vm272, %v834, 0
      %866 = vmatprep.subr.bf16.mxu0 0
      %867 = vmatpush1.bf16.msra.mxu0 %v852
      %868 = vmatprep.subr.bf16.mxu0 0
      %869 = vmatpush1.bf16.msra.mxu0 %v853
      %870 = vmatprep.subr.bf16.mxu0 0
      %871 = vmatpush1.bf16.msra.mxu0 %v854
      %872 = vmatprep.subr.bf16.mxu0 0
      %873 = vmatpush1.bf16.msra.mxu0 %v855
      %874 = vmatprep.subr.bf16.mxu0 0
      %875 = vmatpush1.bf16.msra.mxu0 0
      %876 = vmatprep.subr.bf16.mxu0 0
      %877 = vmatpush1.bf16.msra.mxu0 0
      %878 = vmatprep.subr.bf16.mxu0 0
      %879 = vmatpush1.bf16.msra.mxu0 0
      %880 = vmatprep.subr.bf16.mxu0 0
      %881 = vmatpush1.bf16.msra.mxu0 0
      %882 = vmatprep.subr.bf16.mxu0 0
      %883 = vmatpush1.bf16.msra.mxu0 0
      %884 = vmatprep.subr.bf16.mxu0 0
      %885 = vmatpush1.bf16.msra.mxu0 0
      %886 = vmatprep.subr.bf16.mxu0 0
      %887 = vmatpush1.bf16.msra.mxu0 0
      %888 = vmatprep.subr.bf16.mxu0 0
      %889 = vmatpush1.bf16.msra.mxu0 0
      %890 = vmatprep.subr.bf16.mxu0 0
      %891 = vmatpush1.bf16.msra.mxu0 0
      %892 = vmatprep.subr.bf16.mxu0 0
      %893 = vmatpush1.bf16.msra.mxu0 0
      %894 = vmatprep.subr.bf16.mxu0 0
      %895 = vmatpush1.bf16.msra.mxu0 0
      %896 = vmatprep.subr.bf16.mxu0 0
      %897 = vmatpush1.bf16.msra.mxu0 0
      %898 = vmatprep.mubr.bf16.mxu0 0
      %899 = vmatmul.mubr.bf16.gmra.mrb[0].mxu0 %v861
      %v900 = vpop.f32.mrb[0].mxu0
      %v901 = vadd.f32 0.0, %v900
      %v902 = vpop.f32.mrb[0].mxu0
      %v903 = vpop.f32.mrb[0].mxu0
      %v904 = vadd.f32 0.0, %v903
      %v905 = vpop.f32.mrb[0].mxu0
      %906 = vmatprep.mubr.bf16.mxu0 0
      %907 = vmatmul.mubr.bf16.gmra.mrb[0].mxu0 %v864
      %v908 = vpop.f32.mrb[0].mxu0
      %v909 = vadd.f32 0.0, %v908
      %v910 = vpop.f32.mrb[0].mxu0
      %v911 = vpop.f32.mrb[0].mxu0
      %v912 = vpop.f32.mrb[0].mxu0
      %913 = vdwg.mxu0
      %v914 = vadd.f32 %v806, %v901
      %v915 = vadd.f32 %v807, %v904
      %v916 = vadd.f32 %v808, %v909
      %v917 = vld [vmem:[%s185 + $0x10] sm:$0x7]
      %s918 = scalar_lea.vmem %s190, 224
      %v919 = vld [vmem:[%s918] sm:$0xf]
      %v920 = vld [vmem:[%s918 + $0x4] sm:$0xf]
      %v921 = vld [vmem:[%s918 + $0x8] sm:$0xf]
      %v922 = vld [vmem:[%s918 + $0xc] sm:$0xf]
      %v923 = vld [vmem:[%s918 + $0x10] sm:$0xf]
      %v924 = vld [vmem:[%s918 + $0x14] sm:$0xf]
      %v925 = vld [vmem:[%s918 + $0x18] sm:$0xf]
      %v926 = vld [vmem:[%s918 + $0x1c] sm:$0xf]
      %v928 = vunpack.c.l.b16 %v917
      %v929 = vpack.c.b16 %v928, %v828
      %vm930 = vsmask.f32 5376
      %v932 = vshrl.u32 %v830, 16
      %v934 = vrot.slane %v932, 2
      %v935 = vshll.u32 %v830, 16
      %v937 = vrot.slane %v935, 3
      %v938 = vor.u32 %v934, %v937
      %v940 = vshrl.u32 %v929, 16
      %v942 = vrot.slane %v940, 2
      %v943 = vshll.u32 %v929, 16
      %v945 = vrot.slane %v943, 3
      %v946 = vor.u32 %v942, %v945
      %v947 = vsel %vm930, %v938, %v946
      %v956 = vunpack.c.l.b16 %v919
      %v957 = vunpack.c.l.b16 %v920
      %v958 = vunpack.c.l.b16 %v921
      %v959 = vunpack.c.l.b16 %v922
      %v960 = vunpack.c.l.b16 %v923
      %v961 = vunpack.c.l.b16 %v924
      %v962 = vunpack.c.l.b16 %v925
      %v963 = vunpack.c.l.b16 %v926
      %v964 = vpack.c.b16 %v957, %v956
      %v965 = vpack.c.b16 %v959, %v958
      %v966 = vpack.c.b16 %v961, %v960
      %v967 = vpack.c.b16 %v963, %v962
      %v973 = vsel %vm272, %v947, 0
      %v976 = vsel %vm272, %v946, 0
      %978 = vmatprep.subr.bf16.mxu0 0
      %979 = vmatpush1.bf16.msra.mxu0 %v964
      %980 = vmatprep.subr.bf16.mxu0 0
      %981 = vmatpush1.bf16.msra.mxu0 %v965
      %982 = vmatprep.subr.bf16.mxu0 0
      %983 = vmatpush1.bf16.msra.mxu0 %v966
      %984 = vmatprep.subr.bf16.mxu0 0
      %985 = vmatpush1.bf16.msra.mxu0 %v967
      %986 = vmatprep.subr.bf16.mxu0 0
      %987 = vmatpush1.bf16.msra.mxu0 0
      %988 = vmatprep.subr.bf16.mxu0 0
      %989 = vmatpush1.bf16.msra.mxu0 0
      %990 = vmatprep.subr.bf16.mxu0 0
      %991 = vmatpush1.bf16.msra.mxu0 0
      %992 = vmatprep.subr.bf16.mxu0 0
      %993 = vmatpush1.bf16.msra.mxu0 0
      %994 = vmatprep.subr.bf16.mxu0 0
      %995 = vmatpush1.bf16.msra.mxu0 0
      %996 = vmatprep.subr.bf16.mxu0 0
      %997 = vmatpush1.bf16.msra.mxu0 0
      %998 = vmatprep.subr.bf16.mxu0 0
      %999 = vmatpush1.bf16.msra.mxu0 0
      %1000 = vmatprep.subr.bf16.mxu0 0
      %1001 = vmatpush1.bf16.msra.mxu0 0
      %1002 = vmatprep.subr.bf16.mxu0 0
      %1003 = vmatpush1.bf16.msra.mxu0 0
      %1004 = vmatprep.subr.bf16.mxu0 0
      %1005 = vmatpush1.bf16.msra.mxu0 0
      %1006 = vmatprep.subr.bf16.mxu0 0
      %1007 = vmatpush1.bf16.msra.mxu0 0
      %1008 = vmatprep.subr.bf16.mxu0 0
      %1009 = vmatpush1.bf16.msra.mxu0 0
      %1010 = vmatprep.mubr.bf16.mxu0 0
      %1011 = vmatmul.mubr.bf16.gmra.mrb[0].mxu0 %v973
      %v1012 = vpop.f32.mrb[0].mxu0
      %v1013 = vadd.f32 0.0, %v1012
      %v1014 = vpop.f32.mrb[0].mxu0
      %v1015 = vpop.f32.mrb[0].mxu0
      %v1016 = vadd.f32 0.0, %v1015
      %v1017 = vpop.f32.mrb[0].mxu0
      %1018 = vmatprep.mubr.bf16.mxu0 0
      %1019 = vmatmul.mubr.bf16.gmra.mrb[0].mxu0 %v976
      %v1020 = vpop.f32.mrb[0].mxu0
      %v1021 = vadd.f32 0.0, %v1020
      %v1022 = vpop.f32.mrb[0].mxu0
      %v1023 = vpop.f32.mrb[0].mxu0
      %v1024 = vpop.f32.mrb[0].mxu0
      %1025 = vdwg.mxu0
      %v1026 = vadd.f32 %v914, %v1013
      %v1027 = vadd.f32 %v915, %v1016
      %v1028 = vadd.f32 %v916, %v1021
      %v1029 = vld [vmem:[%s185 + $0x4] sm:$0x8]
      %s1030 = scalar_lea.vmem %s190, 256
      %v1031 = vld [vmem:[%s1030] sm:$0xf]
      %v1032 = vld [vmem:[%s1030 + $0x4] sm:$0xf]
      %v1033 = vld [vmem:[%s1030 + $0x8] sm:$0xf]
      %v1034 = vld [vmem:[%s1030 + $0xc] sm:$0xf]
      %v1035 = vld [vmem:[%s1030 + $0x10] sm:$0xf]
      %v1036 = vld [vmem:[%s1030 + $0x14] sm:$0xf]
      %v1037 = vld [vmem:[%s1030 + $0x18] sm:$0xf]
      %v1038 = vld [vmem:[%s1030 + $0x1c] sm:$0xf]
      %v1040 = vunpack.c.l.b16 %v1029
      %v1041 = vpack.c.b16 %v827, %v1040
      %v1042 = vrot.slane %v1041, 3
      %v1043 = vrot.slane %v929, 3
      %v1044 = vsel %vm520, %v1042, %v1043
      %v1053 = vunpack.c.l.b16 %v1031
      %v1054 = vunpack.c.l.b16 %v1032
      %v1055 = vunpack.c.l.b16 %v1033
      %v1056 = vunpack.c.l.b16 %v1034
      %v1057 = vunpack.c.l.b16 %v1035
      %v1058 = vunpack.c.l.b16 %v1036
      %v1059 = vunpack.c.l.b16 %v1037
      %v1060 = vunpack.c.l.b16 %v1038
      %v1061 = vpack.c.b16 %v1054, %v1053
      %v1062 = vpack.c.b16 %v1056, %v1055
      %v1063 = vpack.c.b16 %v1058, %v1057
      %v1064 = vpack.c.b16 %v1060, %v1059
      %v1070 = vsel %vm272, %v1044, 0
      %v1073 = vsel %vm272, %v1043, 0
      %1075 = vmatprep.subr.bf16.mxu0 0
      %1076 = vmatpush1.bf16.msra.mxu0 %v1061
      %1077 = vmatprep.subr.bf16.mxu0 0
      %1078 = vmatpush1.bf16.msra.mxu0 %v1062
      %1079 = vmatprep.subr.bf16.mxu0 0
      %1080 = vmatpush1.bf16.msra.mxu0 %v1063
      %1081 = vmatprep.subr.bf16.mxu0 0
      %1082 = vmatpush1.bf16.msra.mxu0 %v1064
      %1083 = vmatprep.subr.bf16.mxu0 0
      %1084 = vmatpush1.bf16.msra.mxu0 0
      %1085 = vmatprep.subr.bf16.mxu0 0
      %1086 = vmatpush1.bf16.msra.mxu0 0
      %1087 = vmatprep.subr.bf16.mxu0 0
      %1088 = vmatpush1.bf16.msra.mxu0 0
      %1089 = vmatprep.subr.bf16.mxu0 0
      %1090 = vmatpush1.bf16.msra.mxu0 0
      %1091 = vmatprep.subr.bf16.mxu0 0
      %1092 = vmatpush1.bf16.msra.mxu0 0
      %1093 = vmatprep.subr.bf16.mxu0 0
      %1094 = vmatpush1.bf16.msra.mxu0 0
      %1095 = vmatprep.subr.bf16.mxu0 0
      %1096 = vmatpush1.bf16.msra.mxu0 0
      %1097 = vmatprep.subr.bf16.mxu0 0
      %1098 = vmatpush1.bf16.msra.mxu0 0
      %1099 = vmatprep.subr.bf16.mxu0 0
      %1100 = vmatpush1.bf16.msra.mxu0 0
      %1101 = vmatprep.subr.bf16.mxu0 0
      %1102 = vmatpush1.bf16.msra.mxu0 0
      %1103 = vmatprep.subr.bf16.mxu0 0
      %1104 = vmatpush1.bf16.msra.mxu0 0
      %1105 = vmatprep.subr.bf16.mxu0 0
      %1106 = vmatpush1.bf16.msra.mxu0 0
      %1107 = vmatprep.mubr.bf16.mxu0 0
      %1108 = vmatmul.mubr.bf16.gmra.mrb[0].mxu0 %v1070
      %v1109 = vpop.f32.mrb[0].mxu0
      %v1110 = vadd.f32 0.0, %v1109
      %v1111 = vpop.f32.mrb[0].mxu0
      %v1112 = vpop.f32.mrb[0].mxu0
      %v1113 = vadd.f32 0.0, %v1112
      %v1114 = vpop.f32.mrb[0].mxu0
      %1115 = vmatprep.mubr.bf16.mxu0 0
      %1116 = vmatmul.mubr.bf16.gmra.mrb[0].mxu0 %v1073
      %v1117 = vpop.f32.mrb[0].mxu0
      %v1118 = vadd.f32 0.0, %v1117
      %v1119 = vpop.f32.mrb[0].mxu0
      %v1120 = vpop.f32.mrb[0].mxu0
      %v1121 = vpop.f32.mrb[0].mxu0
      %1122 = vdwg.mxu0
      %v1123 = vadd.f32 %v1026, %v1110
      %v1124 = vadd.f32 %v1027, %v1113
      %v1125 = vadd.f32 %v1028, %v1118
      %v1126 = vmax.f32 %v1123, 0.0
      %v1127 = vmax.f32 %v1124, 0.0
      %v1128 = vmax.f32 %v1125, 0.0
      %vm1129 = vcmask 261120
      %1130 = vst.msk [vmem:[%s199] sm:$0xff] %vm1129, %v1126
      %1131 = vst.msk [vmem:[%s199 + $0x8] sm:$0xff] %vm1129, %v1127
      %1132 = vst.msk [vmem:[%s199 + $0x10] sm:$0xff] %vm1129, %v1128
      %p1133 = scmp.lt.s32.totalorder %s17, 1
      %s1134 = scalar_select %p1133, %s17, 1
      %p1135 = scmp.lt.s32.totalorder %s18, 1
      %s1136 = scalar_select %p1135, %s18, 1
      %s1137 = smul.addr %s1136, 3
      %s1138 = smul.addr %s1134, 6
      %s1139 = sadd.s32 %s1137, %s1138
      %s1140 = smul.addr %s1139, 8
      %s1141 = scalar_lea.vmem %s2, %s1140
      // Predicated region
      $region29: #{tvsd_forward.10} parent=27 // pred_check
        %p1142 = pneg %p99
      $region30: #{tvsd_forward.10} parent=27 // pred_check_branch
        %1144 = sbr.rel (%p1142) target = $region32
      $region31: #{tvsd_forward.10} parent=27 // pred_region
        _
      $region32: #{tvsd_forward.10} parent=27 // pred_fallthru
        _
    $region28: #{tvsd_forward.10} parent=5 // pred_fallthru
      _
    %p1145 = scmp.le.s32.totalorder 2, %s8
    // Predicated region
    $region33: #{tvsd_forward.10} parent=5 // pred_check
      %p1146 = pneg %p1145
    $region34: #{tvsd_forward.10} parent=5 // pred_check_branch
      %1148 = sbr.rel (%p1146) target = $region36
    $region35: #{tvsd_forward.10} parent=5 // pred_region
      %s1149 = ssub.s32 %s8, 2
      // Predicated region
      $region37: #{tvsd_forward.10} parent=35 // pred_check
        %p1150 = pneg %p105
      $region38: #{tvsd_forward.10} parent=35 // pred_check_branch
        %1152 = sbr.rel (%p1150) target = $region40
      $region39: #{tvsd_forward.10} parent=35 // pred_region
        %p1153 = scmp.lt.s32.totalorder %s19, 1
        %s1154 = scalar_select %p1153, %s19, 1
        %p1155 = scmp.lt.s32.totalorder %s20, 1
        %s1156 = scalar_select %p1155, %s20, 1
        %s1157 = smul.addr %s1156, 3
        %s1158 = smul.addr %s1154, 6
        %s1159 = sadd.s32 %s1157, %s1158
        %s1160 = smul.addr %s1159, 8
        %s1161 = scalar_lea.vmem %s2, %s1160
      $region40: #{tvsd_forward.10} parent=35 // pred_fallthru
        _
    $region36: #{tvsd_forward.10} parent=5 // pred_fallthru
      _
  $region6: #{tvsd_forward.10} parent=0 // loop_footer
    %s12 = sadd.s32 1, %s8
  $region7: #{tvsd_forward.10} parent=0 // loop_footer_branch
    %7 = sbr.rel target = $region3
  $region8: #{tvsd_forward.10} parent=0 // loop_exit
    _

// kernel: tvsd_forward.11
$region0: #{tvsd_forward.11}
  #allocation0 [shape = 'u32[]', space=smem, size = 0x4, offset = 0x4, fixed_abs, tag = 'smem constant byte address 0x4 - core index']
  #allocation1 [shape = 'u32[144,128]{1,0:T(1,128)}', space=vmem, size = 0x12000, scoped, tag = 'internal scratch']
  %s0 = inlined_call_operand.vmem [shape: f32[384,32], index: 0, kind: input, shape index: {}]
  %s1 = inlined_call_operand.vmem [shape: bf16[32,8], index: 1, kind: input, shape index: {}]
  %s2 = inlined_call_operand.vmem [shape: f32[384,8], index: 2, kind: output, shape index: {}]
  %s3 = sld [smem:[#allocation0]]
  $region41: #{tvsd_forward.11} parent=0
    _
  %s5 = ssub.s32 1, %s3
  %s6 = scalar_select 0, %s5, %s3
  loop: start=0, step=1, limit=5
  $region2: #{tvsd_forward.11} parent=0 // loop_pre_header
    _
  $region3: #{tvsd_forward.11} parent=0 // loop_header
    %s8 = sphi 0, %s12
    %p9 = scmp.ge.s32.totalorder %s8, 5
    %s18 = sphi 0, %s20
    %s21 = sphi 0, %s18
    %s22 = sphi 0, %s21
    %s38 = sphi 0, %s22
    %s42 = sphi 0, %s42
    %s44 = sphi 0, %s42
    %s45 = sphi 0, %s44
    %s59 = sphi 0, %s45
    %s65 = sphi 0, %s67
    %s68 = sphi 0, %s65
    %s69 = sphi 0, %s68
    %s85 = sphi 0, %s69
  $region4: #{tvsd_forward.11} parent=0 // loop_header_branch
    %11 = sbr.rel (%p9) target = $region8
  $region5: #{tvsd_forward.11} parent=0 // loop_body
    %s13 = ssub.s32 %s8, 1
    %s14 = ssub.s32 %s8, 2
    %s15 = sadd.s32 %s8, 1
    %s16 = ssub.s32 %s8, %s15
    %p17 = scmp.eq.s32.totalorder %s16, 0
    %s19 = sadd.s32 %s18, 1
    %s20 = scalar_select %p17, %s18, %s19
    %p23 = pneg %p17
    %p24 = scmp.eq.s32.totalorder %s8, 2
    %p25 = por %p23, %p24
    %p26 = scmp.ne.s32.totalorder %s18, %s21
    %p27 = scmp.eq.s32.totalorder %s8, 0
    %p28 = por %p26, %p27
    %p29 = scmp.ne.s32.totalorder %s18, %s21
    %p30 = scmp.eq.s32.totalorder %s13, 2
    %p31 = por %p29, %p30
    %p32 = scmp.ne.s32.totalorder %s21, %s22
    %p33 = scmp.eq.s32.totalorder %s13, 0
    %p34 = por %p32, %p33
    %p35 = scmp.ne.s32.totalorder %s21, %s22
    %p36 = scmp.eq.s32.totalorder %s14, 2
    %p37 = por %p35, %p36
    %p39 = scmp.ne.s32.totalorder %s22, %s38
    %p40 = scmp.eq.s32.totalorder %s14, 0
    %p41 = por %p39, %p40
    %s43 = sadd.s32 %s42, 1
    %p46 = scmp.eq.s32.totalorder %s8, 2
    %p47 = scmp.ne.s32.totalorder %s42, %s44
    %p48 = scmp.eq.s32.totalorder %s8, 0
    %p49 = por %p47, %p48
    %p50 = scmp.ne.s32.totalorder %s42, %s44
    %p51 = scmp.eq.s32.totalorder %s13, 2
    %p52 = por %p50, %p51
    %p53 = scmp.ne.s32.totalorder %s44, %s45
    %p54 = scmp.eq.s32.totalorder %s13, 0
    %p55 = por %p53, %p54
    %p56 = scmp.ne.s32.totalorder %s44, %s45
    %p57 = scmp.eq.s32.totalorder %s14, 2
    %p58 = por %p56, %p57
    %p60 = scmp.ne.s32.totalorder %s45, %s59
    %p61 = scmp.eq.s32.totalorder %s14, 0
    %p62 = por %p60, %p61
    %s63 = ssub.s32 %s8, %s15
    %p64 = scmp.eq.s32.totalorder %s63, 0
    %s66 = sadd.s32 %s65, 1
    %s67 = scalar_select %p64, %s65, %s66
    %p70 = pneg %p64
    %p71 = scmp.eq.s32.totalorder %s8, 2
    %p72 = por %p70, %p71
    %p73 = scmp.ne.s32.totalorder %s65, %s68
    %p74 = scmp.eq.s32.totalorder %s8, 0
    %p75 = por %p73, %p74
    %p76 = scmp.ne.s32.totalorder %s65, %s68
    %p77 = scmp.eq.s32.totalorder %s13, 2
    %p78 = por %p76, %p77
    %p79 = scmp.ne.s32.totalorder %s68, %s69
    %p80 = scmp.eq.s32.totalorder %s13, 0
    %p81 = por %p79, %p80
    %p82 = scmp.ne.s32.totalorder %s68, %s69
    %p83 = scmp.eq.s32.totalorder %s14, 2
    %p84 = por %p82, %p83
    %p86 = scmp.ne.s32.totalorder %s69, %s85
    %p87 = scmp.eq.s32.totalorder %s14, 0
    %p88 = por %p86, %p87
    %p89 = scmp.le.s32.totalorder 1, %s8
    %p90 = scmp.lt.s32.totalorder %s8, 4
    %p91 = pnand %p89, %p90
    %p92 = pneg %p91
    // Predicated region
    $region9: #{tvsd_forward.11} parent=5 // pred_check
      _
    $region10: #{tvsd_forward.11} parent=5 // pred_check_branch
      %94 = sbr.rel (%p91) target = $region12
    $region11: #{tvsd_forward.11} parent=5 // pred_region
      %s95 = ssub.s32 %s8, 1
      // Predicated region
      $region13: #{tvsd_forward.11} parent=11 // pred_check
        %p96 = pneg %p55
      $region14: #{tvsd_forward.11} parent=11 // pred_check_branch
        %98 = sbr.rel (%p96) target = $region16
      $region15: #{tvsd_forward.11} parent=11 // pred_region
        _
      $region16: #{tvsd_forward.11} parent=11 // pred_fallthru
        _
    $region12: #{tvsd_forward.11} parent=5 // pred_fallthru
      _
    %p99 = scmp.lt.s32.totalorder %s8, 3
    // Predicated region
    $region17: #{tvsd_forward.11} parent=5 // pred_check
      %p100 = pneg %p99
    $region18: #{tvsd_forward.11} parent=5 // pred_check_branch
      %102 = sbr.rel (%p100) target = $region20
    $region19: #{tvsd_forward.11} parent=5 // pred_region
      // Predicated region
      $region21: #{tvsd_forward.11} parent=19 // pred_check
        %p103 = pneg %p28
      $region22: #{tvsd_forward.11} parent=19 // pred_check_branch
        %105 = sbr.rel (%p103) target = $region24
      $region23: #{tvsd_forward.11} parent=19 // pred_region
        %s106 = smul.u32 16, %s8
        %p107 = scmp.lt.s32.totalorder %s106, 47
        %s108 = scalar_select %p107, %s106, 47
        %s109 = smul.addr %s108, 8
        %s110 = scalar_lea.vmem %s0, %s109
        %s111 = smul.u32 16, %s8
      $region24: #{tvsd_forward.11} parent=19 // pred_fallthru
        _
    $region20: #{tvsd_forward.11} parent=5 // pred_fallthru
      _
    %p112 = scmp.le.s32.totalorder 1, %s8
    %p113 = scmp.lt.s32.totalorder %s8, 4
    %p114 = pnand %p112, %p113
    %p115 = pneg %p114
    // Predicated region
    $region25: #{tvsd_forward.11} parent=5 // pred_check
      _
    $region26: #{tvsd_forward.11} parent=5 // pred_check_branch
      %117 = sbr.rel (%p114) target = $region28
    $region27: #{tvsd_forward.11} parent=5 // pred_region
      %s118 = ssub.s32 %s8, 1
      %s119 = smul.u32 16, %s13
      %p120 = scmp.lt.s32.totalorder %s119, 47
      %s121 = scalar_select %p120, %s119, 47
      %s122 = smul.addr %s121, 8
      %s123 = scalar_lea.vmem %s0, %s122
      %p124 = pneg %p34
      %p125 = pneg %p31
      %p126 = pneg %p55
      %p127 = pneg %p52
      %p128 = pneg %p81
      %p129 = pneg %p78
      %s130 = smul.u32 16, %s13
      %p131 = scmp.lt.s32.totalorder %s130, 47
      %s132 = scalar_select %p131, %s130, 47
      %s133 = smul.addr %s132, 8
      %s134 = scalar_lea.vmem %s2, %s133
      %s135 = smul.u32 16, %s13
      %p136 = scmp.lt.s32.totalorder %s135, 47
      %s137 = scalar_select %p136, %s135, 47
      %s138 = smul.addr %s137, 8
      %s139 = scalar_lea.vmem %s0, %s138
      %s140 = smul.u32 16, %s13
      %s141 = smul.u32 16, %s13
      %p142 = scmp.lt.s32.totalorder %s141, 47
      %s143 = scalar_select %p142, %s141, 47
      %s144 = smul.addr %s143, 8
      %s145 = scalar_lea.vmem %s2, %s144
      %s146 = smul.u32 16, %s13
      %v148 = vld [vmem:[%s139] sm:$0xff]
      %v149 = vld [vmem:[%s139 + $0x8] sm:$0xff]
      %v150 = vld [vmem:[%s139 + $0x10] sm:$0xff]
      %v151 = vld [vmem:[%s139 + $0x18] sm:$0xff]
      %v152 = vld [vmem:[%s139 + $0x20] sm:$0xff]
      %v153 = vld [vmem:[%s139 + $0x28] sm:$0xff]
      %v154 = vld [vmem:[%s139 + $0x30] sm:$0xff]
      %v155 = vld [vmem:[%s139 + $0x38] sm:$0xff]
      %v156 = vld [vmem:[%s139 + $0x40] sm:$0xff]
      %v157 = vld [vmem:[%s139 + $0x48] sm:$0xff]
      %v158 = vld [vmem:[%s139 + $0x50] sm:$0xff]
      %v159 = vld [vmem:[%s139 + $0x58] sm:$0xff]
      %v160 = vld [vmem:[%s139 + $0x60] sm:$0xff]
      %v161 = vld [vmem:[%s139 + $0x68] sm:$0xff]
      %v162 = vld [vmem:[%s139 + $0x70] sm:$0xff]
      %v163 = vld [vmem:[%s139 + $0x78] sm:$0xff]
      %v164 = vpack.c.bf16 %v149, %v148
      %v165 = vpack.c.bf16 %v151, %v150
      %v166 = vpack.c.bf16 %v153, %v152
      %v167 = vpack.c.bf16 %v155, %v154
      %v168 = vpack.c.bf16 %v157, %v156
      %v169 = vpack.c.bf16 %v159, %v158
      %v170 = vpack.c.bf16 %v161, %v160
      %v171 = vpack.c.bf16 %v163, %v162
      %v172 = vld [vmem:[%s1] sm:$0xf]
      %v173 = vld [vmem:[%s1 + $0x4] sm:$0xf]
      %v174 = vld [vmem:[%s1 + $0x8] sm:$0xf]
      %v175 = vld [vmem:[%s1 + $0xc] sm:$0xf]
      %v180 = vunpack.c.l.b16 %v172
      %v181 = vunpack.c.l.b16 %v173
      %v182 = vunpack.c.l.b16 %v174
      %v183 = vunpack.c.l.b16 %v175
      %v184 = vpack.c.b16 %v181, %v180
      %v185 = vpack.c.b16 %v183, %v182
      %vm188 = vcmask 261120
      %v190 = vsel %vm188, %v164, 0
      %v193 = vsel %vm188, %v165, 0
      %v196 = vsel %vm188, %v166, 0
      %v199 = vsel %vm188, %v167, 0
      %v202 = vsel %vm188, %v168, 0
      %v205 = vsel %vm188, %v169, 0
      %v208 = vsel %vm188, %v170, 0
      %v211 = vsel %vm188, %v171, 0
      %213 = vmatprep.subr.bf16.mxu0 0
      %214 = vmatpush1.bf16.msra.mxu0 %v184
      %215 = vmatprep.subr.bf16.mxu0 0
      %216 = vmatpush1.bf16.msra.mxu0 %v185
      %217 = vmatprep.subr.bf16.mxu0 0
      %218 = vmatpush1.bf16.msra.mxu0 0
      %219 = vmatprep.subr.bf16.mxu0 0
      %220 = vmatpush1.bf16.msra.mxu0 0
      %221 = vmatprep.subr.bf16.mxu0 0
      %222 = vmatpush1.bf16.msra.mxu0 0
      %223 = vmatprep.subr.bf16.mxu0 0
      %224 = vmatpush1.bf16.msra.mxu0 0
      %225 = vmatprep.subr.bf16.mxu0 0
      %226 = vmatpush1.bf16.msra.mxu0 0
      %227 = vmatprep.subr.bf16.mxu0 0
      %228 = vmatpush1.bf16.msra.mxu0 0
      %229 = vmatprep.subr.bf16.mxu0 0
      %230 = vmatpush1.bf16.msra.mxu0 0
      %231 = vmatprep.subr.bf16.mxu0 0
      %232 = vmatpush1.bf16.msra.mxu0 0
      %233 = vmatprep.subr.bf16.mxu0 0
      %234 = vmatpush1.bf16.msra.mxu0 0
      %235 = vmatprep.subr.bf16.mxu0 0
      %236 = vmatpush1.bf16.msra.mxu0 0
      %237 = vmatprep.subr.bf16.mxu0 0
      %238 = vmatpush1.bf16.msra.mxu0 0
      %239 = vmatprep.subr.bf16.mxu0 0
      %240 = vmatpush1.bf16.msra.mxu0 0
      %241 = vmatprep.subr.bf16.mxu0 0
      %242 = vmatpush1.bf16.msra.mxu0 0
      %243 = vmatprep.subr.bf16.mxu0 0
      %244 = vmatpush1.bf16.msra.mxu0 0
      %245 = vmatprep.mubr.bf16.mxu0 0
      %246 = vmatmul.mubr.bf16.gmra.mrb[0].mxu0 %v190
      %v247 = vpop.f32.mrb[0].mxu0
      %v248 = vadd.f32 0.0, %v247
      %v249 = vpop.f32.mrb[0].mxu0
      %v250 = vpop.f32.mrb[0].mxu0
      %v251 = vadd.f32 0.0, %v250
      %v252 = vpop.f32.mrb[0].mxu0
      %253 = vmatprep.mubr.bf16.mxu0 0
      %254 = vmatmul.mubr.bf16.gmra.mrb[0].mxu0 %v193
      %v255 = vpop.f32.mrb[0].mxu0
      %v256 = vadd.f32 0.0, %v255
      %v257 = vpop.f32.mrb[0].mxu0
      %v258 = vpop.f32.mrb[0].mxu0
      %v259 = vadd.f32 0.0, %v258
      %v260 = vpop.f32.mrb[0].mxu0
      %261 = vmatprep.mubr.bf16.mxu0 0
      %262 = vmatmul.mubr.bf16.gmra.mrb[0].mxu0 %v196
      %v263 = vpop.f32.mrb[0].mxu0
      %v264 = vadd.f32 0.0, %v263
      %v265 = vpop.f32.mrb[0].mxu0
      %v266 = vpop.f32.mrb[0].mxu0
      %v267 = vadd.f32 0.0, %v266
      %v268 = vpop.f32.mrb[0].mxu0
      %269 = vmatprep.mubr.bf16.mxu0 0
      %270 = vmatmul.mubr.bf16.gmra.mrb[0].mxu0 %v199
      %v271 = vpop.f32.mrb[0].mxu0
      %v272 = vadd.f32 0.0, %v271
      %v273 = vpop.f32.mrb[0].mxu0
      %v274 = vpop.f32.mrb[0].mxu0
      %v275 = vadd.f32 0.0, %v274
      %v276 = vpop.f32.mrb[0].mxu0
      %277 = vmatprep.mubr.bf16.mxu0 0
      %278 = vmatmul.mubr.bf16.gmra.mrb[0].mxu0 %v202
      %v279 = vpop.f32.mrb[0].mxu0
      %v280 = vadd.f32 0.0, %v279
      %v281 = vpop.f32.mrb[0].mxu0
      %v282 = vpop.f32.mrb[0].mxu0
      %v283 = vadd.f32 0.0, %v282
      %v284 = vpop.f32.mrb[0].mxu0
      %285 = vmatprep.mubr.bf16.mxu0 0
      %286 = vmatmul.mubr.bf16.gmra.mrb[0].mxu0 %v205
      %v287 = vpop.f32.mrb[0].mxu0
      %v288 = vadd.f32 0.0, %v287
      %v289 = vpop.f32.mrb[0].mxu0
      %v290 = vpop.f32.mrb[0].mxu0
      %v291 = vadd.f32 0.0, %v290
      %v292 = vpop.f32.mrb[0].mxu0
      %293 = vmatprep.mubr.bf16.mxu0 0
      %294 = vmatmul.mubr.bf16.gmra.mrb[0].mxu0 %v208
      %v295 = vpop.f32.mrb[0].mxu0
      %v296 = vadd.f32 0.0, %v295
      %v297 = vpop.f32.mrb[0].mxu0
      %v298 = vpop.f32.mrb[0].mxu0
      %v299 = vadd.f32 0.0, %v298
      %v300 = vpop.f32.mrb[0].mxu0
      %301 = vmatprep.mubr.bf16.mxu0 0
      %302 = vmatmul.mubr.bf16.gmra.mrb[0].mxu0 %v211
      %v303 = vpop.f32.mrb[0].mxu0
      %v304 = vadd.f32 0.0, %v303
      %v305 = vpop.f32.mrb[0].mxu0
      %v306 = vpop.f32.mrb[0].mxu0
      %v307 = vadd.f32 0.0, %v306
      %v308 = vpop.f32.mrb[0].mxu0
      %309 = vdwg.mxu0
      %v310 = vmax.f32 %v248, 0.0
      %v311 = vmax.f32 %v251, 0.0
      %v312 = vmax.f32 %v256, 0.0
      %v313 = vmax.f32 %v259, 0.0
      %v314 = vmax.f32 %v264, 0.0
      %v315 = vmax.f32 %v267, 0.0
      %v316 = vmax.f32 %v272, 0.0
      %v317 = vmax.f32 %v275, 0.0
      %v318 = vmax.f32 %v280, 0.0
      %v319 = vmax.f32 %v283, 0.0
      %v320 = vmax.f32 %v288, 0.0
      %v321 = vmax.f32 %v291, 0.0
      %v322 = vmax.f32 %v296, 0.0
      %v323 = vmax.f32 %v299, 0.0
      %v324 = vmax.f32 %v304, 0.0
      %v325 = vmax.f32 %v307, 0.0
      %vm326 = vcmask 64512
      %327 = vst.msk [vmem:[%s145] sm:$0xff] %vm326, %v310
      %328 = vst.msk [vmem:[%s145 + $0x8] sm:$0xff] %vm326, %v311
      %329 = vst.msk [vmem:[%s145 + $0x10] sm:$0xff] %vm326, %v312
      %330 = vst.msk [vmem:[%s145 + $0x18] sm:$0xff] %vm326, %v313
      %331 = vst.msk [vmem:[%s145 + $0x20] sm:$0xff] %vm326, %v314
      %332 = vst.msk [vmem:[%s145 + $0x28] sm:$0xff] %vm326, %v315
      %333 = vst.msk [vmem:[%s145 + $0x30] sm:$0xff] %vm326, %v316
      %334 = vst.msk [vmem:[%s145 + $0x38] sm:$0xff] %vm326, %v317
      %335 = vst.msk [vmem:[%s145 + $0x40] sm:$0xff] %vm326, %v318
      %336 = vst.msk [vmem:[%s145 + $0x48] sm:$0xff] %vm326, %v319
      %337 = vst.msk [vmem:[%s145 + $0x50] sm:$0xff] %vm326, %v320
      %338 = vst.msk [vmem:[%s145 + $0x58] sm:$0xff] %vm326, %v321
      %339 = vst.msk [vmem:[%s145 + $0x60] sm:$0xff] %vm326, %v322
      %340 = vst.msk [vmem:[%s145 + $0x68] sm:$0xff] %vm326, %v323
      %341 = vst.msk [vmem:[%s145 + $0x70] sm:$0xff] %vm326, %v324
      %342 = vst.msk [vmem:[%s145 + $0x78] sm:$0xff] %vm326, %v325
      %s343 = smul.u32 16, %s13
      %p344 = scmp.lt.s32.totalorder %s343, 47
      %s345 = scalar_select %p344, %s343, 47
      %s346 = smul.addr %s345, 8
      %s347 = scalar_lea.vmem %s2, %s346
      // Predicated region
      $region29: #{tvsd_forward.11} parent=27 // pred_check
        %p348 = pneg %p78
      $region30: #{tvsd_forward.11} parent=27 // pred_check_branch
        %350 = sbr.rel (%p348) target = $region32
      $region31: #{tvsd_forward.11} parent=27 // pred_region
        %s351 = smul.u32 16, %s13
      $region32: #{tvsd_forward.11} parent=27 // pred_fallthru
        _
    $region28: #{tvsd_forward.11} parent=5 // pred_fallthru
      _
    %p352 = scmp.le.s32.totalorder 2, %s8
    // Predicated region
    $region33: #{tvsd_forward.11} parent=5 // pred_check
      %p353 = pneg %p352
    $region34: #{tvsd_forward.11} parent=5 // pred_check_branch
      %355 = sbr.rel (%p353) target = $region36
    $region35: #{tvsd_forward.11} parent=5 // pred_region
      %s356 = ssub.s32 %s8, 2
      // Predicated region
      $region37: #{tvsd_forward.11} parent=35 // pred_check
        %p357 = pneg %p84
      $region38: #{tvsd_forward.11} parent=35 // pred_check_branch
        %359 = sbr.rel (%p357) target = $region40
      $region39: #{tvsd_forward.11} parent=35 // pred_region
        %s360 = smul.u32 16, %s14
        %p361 = scmp.lt.s32.totalorder %s360, 47
        %s362 = scalar_select %p361, %s360, 47
        %s363 = smul.addr %s362, 8
        %s364 = scalar_lea.vmem %s2, %s363
      $region40: #{tvsd_forward.11} parent=35 // pred_fallthru
        _
    $region36: #{tvsd_forward.11} parent=5 // pred_fallthru
      _
  $region6: #{tvsd_forward.11} parent=0 // loop_footer
    %s12 = sadd.s32 1, %s8
  $region7: #{tvsd_forward.11} parent=0 // loop_footer_branch
    %7 = sbr.rel target = $region3
  $region8: #{tvsd_forward.11} parent=0 // loop_exit
    _

// kernel: tvsd_forward.12
$region0: #{tvsd_forward.12}
  #allocation0 [shape = 'u32[]', space=smem, size = 0x4, offset = 0x4, fixed_abs, tag = 'smem constant byte address 0x4 - core index']
  #allocation1 [shape = 'u32[144,128]{1,0:T(1,128)}', space=vmem, size = 0x12000, scoped, tag = 'internal scratch']
  %s0 = inlined_call_operand.vmem [shape: f32[1,6,104,40], index: 0, kind: input, shape index: {}]
  %s1 = inlined_call_operand.vmem [shape: bf16[1,9,40,32], index: 1, kind: input, shape index: {}]
  %s2 = inlined_call_operand.vmem [shape: f32[32,1], index: 2, kind: input, shape index: {}]
  %s3 = inlined_call_operand.vmem [shape: f32[1,6,80,1], index: 3, kind: output, shape index: {}]
  %s4 = sld [smem:[#allocation0]]
  $region45: #{tvsd_forward.12} parent=0
    _
  %s6 = ssub.s32 1, %s4
  %s7 = scalar_select 0, %s6, %s4
  loop: start=0, step=1, limit=8
  $region2: #{tvsd_forward.12} parent=0 // loop_pre_header
    _
  $region3: #{tvsd_forward.12} parent=0 // loop_header
    %s9 = sphi 0, %s13
    %p10 = scmp.ge.s32.totalorder %s9, 8
    %s16 = sphi 0, %s28
    %s17 = sphi 0, %s24
    %s18 = sphi 0, %s16
    %s19 = sphi 0, %s17
    %s20 = sphi 0, %s18
    %s21 = sphi 0, %s19
    %s33 = sphi 0, %s35
    %s36 = sphi 0, %s33
    %s37 = sphi 0, %s36
    %s53 = sphi 0, %s37
    %s59 = sphi 0, %s61
    %s62 = sphi 0, %s59
    %s63 = sphi 0, %s62
    %s79 = sphi 0, %s63
    %s83 = sphi 0, %s83
    %s85 = sphi 0, %s83
    %s86 = sphi 0, %s85
    %s100 = sphi 0, %s86
    %s108 = sphi 0, %s110
    %s111 = sphi 0, %s108
    %s112 = sphi 0, %s111
    %s128 = sphi 0, %s112
  $region4: #{tvsd_forward.12} parent=0 // loop_header_branch
    %12 = sbr.rel (%p10) target = $region8
  $region5: #{tvsd_forward.12} parent=0 // loop_body
    %s14 = ssub.s32 %s9, 1
    %s15 = ssub.s32 %s9, 2
    %s22 = sadd.s32 1, %s17
    %p23 = scmp.ge.s32.totalorder %s22, 6
    %s24 = scalar_select %p23, 0, %s22
    %s25 = sadd.s32 1, %s16
    %s26 = scalar_select %p23, %s25, %s16
    %p27 = scmp.ge.s32.totalorder %s26, 1
    %s28 = scalar_select %p27, 0, %s26
    %s29 = ssub.s32 %s16, %s28
    %s30 = ssub.s32 %s17, %s24
    %s31 = sor.u32 %s29, %s30
    %p32 = scmp.eq.s32.totalorder %s31, 0
    %s34 = sadd.s32 %s33, 1
    %s35 = scalar_select %p32, %s33, %s34
    %p38 = pneg %p32
    %p39 = scmp.eq.s32.totalorder %s9, 5
    %p40 = por %p38, %p39
    %p41 = scmp.ne.s32.totalorder %s33, %s36
    %p42 = scmp.eq.s32.totalorder %s9, 0
    %p43 = por %p41, %p42
    %p44 = scmp.ne.s32.totalorder %s33, %s36
    %p45 = scmp.eq.s32.totalorder %s14, 5
    %p46 = por %p44, %p45
    %p47 = scmp.ne.s32.totalorder %s36, %s37
    %p48 = scmp.eq.s32.totalorder %s14, 0
    %p49 = por %p47, %p48
    %p50 = scmp.ne.s32.totalorder %s36, %s37
    %p51 = scmp.eq.s32.totalorder %s15, 5
    %p52 = por %p50, %p51
    %p54 = scmp.ne.s32.totalorder %s37, %s53
    %p55 = scmp.eq.s32.totalorder %s15, 0
    %p56 = por %p54, %p55
    %s57 = ssub.s32 %s16, %s28
    %p58 = scmp.eq.s32.totalorder %s57, 0
    %s60 = sadd.s32 %s59, 1
    %s61 = scalar_select %p58, %s59, %s60
    %p64 = pneg %p58
    %p65 = scmp.eq.s32.totalorder %s9, 5
    %p66 = por %p64, %p65
    %p67 = scmp.ne.s32.totalorder %s59, %s62
    %p68 = scmp.eq.s32.totalorder %s9, 0
    %p69 = por %p67, %p68
    %p70 = scmp.ne.s32.totalorder %s59, %s62
    %p71 = scmp.eq.s32.totalorder %s14, 5
    %p72 = por %p70, %p71
    %p73 = scmp.ne.s32.totalorder %s62, %s63
    %p74 = scmp.eq.s32.totalorder %s14, 0
    %p75 = por %p73, %p74
    %p76 = scmp.ne.s32.totalorder %s62, %s63
    %p77 = scmp.eq.s32.totalorder %s15, 5
    %p78 = por %p76, %p77
    %p80 = scmp.ne.s32.totalorder %s63, %s79
    %p81 = scmp.eq.s32.totalorder %s15, 0
    %p82 = por %p80, %p81
    %s84 = sadd.s32 %s83, 1
    %p87 = scmp.eq.s32.totalorder %s9, 5
    %p88 = scmp.ne.s32.totalorder %s83, %s85
    %p89 = scmp.eq.s32.totalorder %s9, 0
    %p90 = por %p88, %p89
    %p91 = scmp.ne.s32.totalorder %s83, %s85
    %p92 = scmp.eq.s32.totalorder %s14, 5
    %p93 = por %p91, %p92
    %p94 = scmp.ne.s32.totalorder %s85, %s86
    %p95 = scmp.eq.s32.totalorder %s14, 0
    %p96 = por %p94, %p95
    %p97 = scmp.ne.s32.totalorder %s85, %s86
    %p98 = scmp.eq.s32.totalorder %s15, 5
    %p99 = por %p97, %p98
    %p101 = scmp.ne.s32.totalorder %s86, %s100
    %p102 = scmp.eq.s32.totalorder %s15, 0
    %p103 = por %p101, %p102
    %s104 = ssub.s32 %s16, %s28
    %s105 = ssub.s32 %s17, %s24
    %s106 = sor.u32 %s104, %s105
    %p107 = scmp.eq.s32.totalorder %s106, 0
    %s109 = sadd.s32 %s108, 1
    %s110 = scalar_select %p107, %s108, %s109
    %p113 = pneg %p107
    %p114 = scmp.eq.s32.totalorder %s9, 5
    %p115 = por %p113, %p114
    %p116 = scmp.ne.s32.totalorder %s108, %s111
    %p117 = scmp.eq.s32.totalorder %s9, 0
    %p118 = por %p116, %p117
    %p119 = scmp.ne.s32.totalorder %s108, %s111
    %p120 = scmp.eq.s32.totalorder %s14, 5
    %p121 = por %p119, %p120
    %p122 = scmp.ne.s32.totalorder %s111, %s112
    %p123 = scmp.eq.s32.totalorder %s14, 0
    %p124 = por %p122, %p123
    %p125 = scmp.ne.s32.totalorder %s111, %s112
    %p126 = scmp.eq.s32.totalorder %s15, 5
    %p127 = por %p125, %p126
    %p129 = scmp.ne.s32.totalorder %s112, %s128
    %p130 = scmp.eq.s32.totalorder %s15, 0
    %p131 = por %p129, %p130
    %p132 = scmp.le.s32.totalorder 1, %s9
    %p133 = scmp.lt.s32.totalorder %s9, 7
    %p134 = pnand %p132, %p133
    %p135 = pneg %p134
    // Predicated region
    $region9: #{tvsd_forward.12} parent=5 // pred_check
      _
    $region10: #{tvsd_forward.12} parent=5 // pred_check_branch
      %137 = sbr.rel (%p134) target = $region12
    $region11: #{tvsd_forward.12} parent=5 // pred_region
      %s138 = ssub.s32 %s9, 1
      // Predicated region
      $region13: #{tvsd_forward.12} parent=11 // pred_check
        %p139 = pneg %p75
      $region14: #{tvsd_forward.12} parent=11 // pred_check_branch
        %141 = sbr.rel (%p139) target = $region16
      $region15: #{tvsd_forward.12} parent=11 // pred_region
        %p142 = scmp.lt.s32.totalorder %s18, 0
        %s143 = scalar_select %p142, %s18, 0
        %s144 = smul.addr %s143, 45
        %s145 = smul.addr %s144, 4
        %s146 = scalar_lea.vmem %s1, %s145
      $region16: #{tvsd_forward.12} parent=11 // pred_fallthru
        _
      // Predicated region
      $region17: #{tvsd_forward.12} parent=11 // pred_check
        %p147 = pneg %p96
      $region18: #{tvsd_forward.12} parent=11 // pred_check_branch
        %149 = sbr.rel (%p147) target = $region20
      $region19: #{tvsd_forward.12} parent=11 // pred_region
        _
      $region20: #{tvsd_forward.12} parent=11 // pred_fallthru
        _
    $region12: #{tvsd_forward.12} parent=5 // pred_fallthru
      _
    %p150 = scmp.lt.s32.totalorder %s9, 6
    // Predicated region
    $region21: #{tvsd_forward.12} parent=5 // pred_check
      %p151 = pneg %p150
    $region22: #{tvsd_forward.12} parent=5 // pred_check_branch
      %153 = sbr.rel (%p151) target = $region24
    $region23: #{tvsd_forward.12} parent=5 // pred_region
      // Predicated region
      $region25: #{tvsd_forward.12} parent=23 // pred_check
        %p154 = pneg %p43
      $region26: #{tvsd_forward.12} parent=23 // pred_check_branch
        %156 = sbr.rel (%p154) target = $region28
      $region27: #{tvsd_forward.12} parent=23 // pred_region
        %p157 = scmp.lt.s32.totalorder %s16, 0
        %s158 = scalar_select %p157, %s16, 0
        %p159 = scmp.lt.s32.totalorder %s17, 5
        %s160 = scalar_select %p159, %s17, 5
        %s161 = smul.addr %s160, 13
        %s162 = smul.addr %s158, 78
        %s163 = sadd.s32 %s161, %s162
        %s164 = smul.addr %s163, 8
        %s165 = scalar_lea.vmem %s0, %s164
      $region28: #{tvsd_forward.12} parent=23 // pred_fallthru
        _
    $region24: #{tvsd_forward.12} parent=5 // pred_fallthru
      _
    %p166 = scmp.le.s32.totalorder 1, %s9
    %p167 = scmp.lt.s32.totalorder %s9, 7
    %p168 = pnand %p166, %p167
    %p169 = pneg %p168
    // Predicated region
    $region29: #{tvsd_forward.12} parent=5 // pred_check
      _
    $region30: #{tvsd_forward.12} parent=5 // pred_check_branch
      %171 = sbr.rel (%p168) target = $region32
    $region31: #{tvsd_forward.12} parent=5 // pred_region
      %s172 = ssub.s32 %s9, 1
      %p173 = scmp.lt.s32.totalorder %s18, 0
      %s174 = scalar_select %p173, %s18, 0
      %p175 = scmp.lt.s32.totalorder %s19, 5
      %s176 = scalar_select %p175, %s19, 5
      %s177 = smul.addr %s176, 13
      %s178 = smul.addr %s174, 78
      %s179 = sadd.s32 %s177, %s178
      %s180 = smul.addr %s179, 8
      %s181 = scalar_lea.vmem %s0, %s180
      %p182 = pneg %p49
      %p183 = pneg %p46
      %p184 = scmp.lt.s32.totalorder %s18, 0
      %s185 = scalar_select %p184, %s18, 0
      %s186 = smul.addr %s185, 45
      %s187 = smul.addr %s186, 4
      %s188 = scalar_lea.vmem %s1, %s187
      %p189 = pneg %p75
      %p190 = pneg %p72
      %p191 = pneg %p96
      %p192 = pneg %p93
      %p193 = pneg %p124
      %p194 = pneg %p121
      %p195 = scmp.lt.s32.totalorder %s18, 0
      %s196 = scalar_select %p195, %s18, 0
      %p197 = scmp.lt.s32.totalorder %s19, 5
      %s198 = scalar_select %p197, %s19, 5
      %s199 = smul.addr %s198, 10
      %s200 = smul.addr %s196, 60
      %s201 = sadd.s32 %s199, %s200
      %s202 = smul.addr %s201, 8
      %s203 = scalar_lea.vmem %s3, %s202
      %p204 = scmp.lt.s32.totalorder %s18, 0
      %s205 = scalar_select %p204, %s18, 0
      %p206 = scmp.lt.s32.totalorder %s19, 5
      %s207 = scalar_select %p206, %s19, 5
      %s208 = smul.addr %s207, 13
      %s209 = smul.addr %s205, 78
      %s210 = sadd.s32 %s208, %s209
      %s211 = smul.addr %s210, 8
      %s212 = scalar_lea.vmem %s0, %s211
      %p213 = scmp.lt.s32.totalorder %s18, 0
      %s214 = scalar_select %p213, %s18, 0
      %s215 = smul.addr %s214, 45
      %s216 = smul.addr %s215, 4
      %s217 = scalar_lea.vmem %s1, %s216
      %p218 = scmp.lt.s32.totalorder %s18, 0
      %s219 = scalar_select %p218, %s18, 0
      %p220 = scmp.lt.s32.totalorder %s19, 5
      %s221 = scalar_select %p220, %s19, 5
      %s222 = smul.addr %s221, 10
      %s223 = smul.addr %s219, 60
      %s224 = sadd.s32 %s222, %s223
      %s225 = smul.addr %s224, 8
      %s226 = scalar_lea.vmem %s3, %s225
      %v228 = vld [vmem:[%s212] sm:$0xff]
      %v229 = vld [vmem:[%s212 + $0x8] sm:$0xff]
      %v230 = vld [vmem:[%s212 + $0x10] sm:$0xff]
      %v231 = vld [vmem:[%s212 + $0x18] sm:$0xff]
      %v232 = vld [vmem:[%s212 + $0x20] sm:$0xff]
      %v233 = vld [vmem:[%s212 + $0x28] sm:$0xff]
      %v234 = vld [vmem:[%s212 + $0x30] sm:$0xff]
      %v235 = vld [vmem:[%s212 + $0x38] sm:$0xff]
      %v236 = vld [vmem:[%s212 + $0x40] sm:$0xff]
      %v237 = vld [vmem:[%s212 + $0x48] sm:$0xff]
      %v238 = vpack.c.bf16 %v229, %v228
      %v239 = vpack.c.bf16 %v231, %v230
      %v240 = vpack.c.bf16 %v233, %v232
      %v241 = vpack.c.bf16 %v235, %v234
      %v242 = vpack.c.bf16 %v237, %v236
      %v243 = vld [vmem:[%s217] sm:$0xf]
      %v244 = vld [vmem:[%s217 + $0x4] sm:$0xf]
      %v245 = vld [vmem:[%s217 + $0x8] sm:$0xf]
      %v246 = vld [vmem:[%s217 + $0xc] sm:$0xf]
      %v247 = vld [vmem:[%s217 + $0x10] sm:$0xf]
      %v248 = vld [vmem:[%s212 + $0x1] sm:$0xff]
      %v249 = vld [vmem:[%s212 + $0x9] sm:$0xff]
      %v250 = vld [vmem:[%s212 + $0x11] sm:$0xff]
      %v251 = vld [vmem:[%s212 + $0x19] sm:$0xff]
      %v252 = vld [vmem:[%s212 + $0x21] sm:$0xff]
      %v253 = vld [vmem:[%s212 + $0x29] sm:$0xff]
      %v254 = vld [vmem:[%s212 + $0x31] sm:$0xff]
      %v255 = vld [vmem:[%s212 + $0x39] sm:$0xff]
      %v256 = vld [vmem:[%s212 + $0x41] sm:$0xff]
      %v257 = vld [vmem:[%s212 + $0x49] sm:$0xff]
      %v258 = vpack.c.bf16 %v249, %v248
      %v259 = vpack.c.bf16 %v251, %v250
      %v260 = vpack.c.bf16 %v253, %v252
      %v261 = vpack.c.bf16 %v255, %v254
      %v262 = vpack.c.bf16 %v257, %v256
      %s263 = scalar_lea.vmem %s217, 20
      %v264 = vld [vmem:[%s263] sm:$0xf]
      %v265 = vld [vmem:[%s263 + $0x4] sm:$0xf]
      %v266 = vld [vmem:[%s263 + $0x8] sm:$0xf]
      %v267 = vld [vmem:[%s263 + $0xc] sm:$0xf]
      %v268 = vld [vmem:[%s263 + $0x10] sm:$0xf]
      %v274 = vunpack.c.l.b16 %v264
      %v275 = vunpack.c.l.b16 %v265
      %v276 = vunpack.c.l.b16 %v266
      %v277 = vunpack.c.l.b16 %v267
      %v278 = vunpack.c.l.b16 %v268
      %v279 = vpack.c.b16 %v275, %v274
      %v280 = vpack.c.b16 %v277, %v276
      %v281 = vpack.c.b16 %v278, %v278
      %vm284 = vcmask 326656
      %v286 = vsel %vm284, %v258, 0
      %v289 = vsel %vm284, %v259, 0
      %v292 = vsel %vm284, %v260, 0
      %v295 = vsel %vm284, %v261, 0
      %v298 = vsel %vm284, %v262, 0
      %vm300 = vcmask 1043456
      %v302 = vsel %vm300, %v281, 0
      %304 = vmatprep.subr.bf16.mxu0 0
      %305 = vmatpush1.bf16.msra.mxu0 %v279
      %306 = vmatprep.subr.bf16.mxu0 0
      %307 = vmatpush1.bf16.msra.mxu0 %v280
      %308 = vmatprep.subr.bf16.mxu0 0
      %309 = vmatpush1.bf16.msra.mxu0 %v302
      %310 = vmatprep.subr.bf16.mxu0 0
      %311 = vmatpush1.bf16.msra.mxu0 0
      %312 = vmatprep.subr.bf16.mxu0 0
      %313 = vmatpush1.bf16.msra.mxu0 0
      %314 = vmatprep.subr.bf16.mxu0 0
      %315 = vmatpush1.bf16.msra.mxu0 0
      %316 = vmatprep.subr.bf16.mxu0 0
      %317 = vmatpush1.bf16.msra.mxu0 0
      %318 = vmatprep.subr.bf16.mxu0 0
      %319 = vmatpush1.bf16.msra.mxu0 0
      %320 = vmatprep.subr.bf16.mxu0 0
      %321 = vmatpush1.bf16.msra.mxu0 0
      %322 = vmatprep.subr.bf16.mxu0 0
      %323 = vmatpush1.bf16.msra.mxu0 0
      %324 = vmatprep.subr.bf16.mxu0 0
      %325 = vmatpush1.bf16.msra.mxu0 0
      %326 = vmatprep.subr.bf16.mxu0 0
      %327 = vmatpush1.bf16.msra.mxu0 0
      %328 = vmatprep.subr.bf16.mxu0 0
      %329 = vmatpush1.bf16.msra.mxu0 0
      %330 = vmatprep.subr.bf16.mxu0 0
      %331 = vmatpush1.bf16.msra.mxu0 0
      %332 = vmatprep.subr.bf16.mxu0 0
      %333 = vmatpush1.bf16.msra.mxu0 0
      %334 = vmatprep.subr.bf16.mxu0 0
      %335 = vmatpush1.bf16.msra.mxu0 0
      %336 = vmatprep.mubr.bf16.mxu0 0
      %337 = vmatmul.mubr.bf16.gmra.mrb[0].mxu0 %v286
      %v338 = vpop.f32.mrb[0].mxu0
      %v339 = vadd.f32 0.0, %v338
      %v340 = vpop.f32.mrb[0].mxu0
      %v341 = vpop.f32.mrb[0].mxu0
      %v342 = vadd.f32 0.0, %v341
      %v343 = vpop.f32.mrb[0].mxu0
      %344 = vmatprep.mubr.bf16.mxu0 0
      %345 = vmatmul.mubr.bf16.gmra.mrb[0].mxu0 %v289
      %v346 = vpop.f32.mrb[0].mxu0
      %v347 = vadd.f32 0.0, %v346
      %v348 = vpop.f32.mrb[0].mxu0
      %v349 = vpop.f32.mrb[0].mxu0
      %v350 = vadd.f32 0.0, %v349
      %v351 = vpop.f32.mrb[0].mxu0
      %352 = vmatprep.mubr.bf16.mxu0 0
      %353 = vmatmul.mubr.bf16.gmra.mrb[0].mxu0 %v292
      %v354 = vpop.f32.mrb[0].mxu0
      %v355 = vadd.f32 0.0, %v354
      %v356 = vpop.f32.mrb[0].mxu0
      %v357 = vpop.f32.mrb[0].mxu0
      %v358 = vadd.f32 0.0, %v357
      %v359 = vpop.f32.mrb[0].mxu0
      %360 = vmatprep.mubr.bf16.mxu0 0
      %361 = vmatmul.mubr.bf16.gmra.mrb[0].mxu0 %v295
      %v362 = vpop.f32.mrb[0].mxu0
      %v363 = vadd.f32 0.0, %v362
      %v364 = vpop.f32.mrb[0].mxu0
      %v365 = vpop.f32.mrb[0].mxu0
      %v366 = vadd.f32 0.0, %v365
      %v367 = vpop.f32.mrb[0].mxu0
      %368 = vmatprep.mubr.bf16.mxu0 0
      %369 = vmatmul.mubr.bf16.gmra.mrb[0].mxu0 %v298
      %v370 = vpop.f32.mrb[0].mxu0
      %v371 = vadd.f32 0.0, %v370
      %v372 = vpop.f32.mrb[0].mxu0
      %v373 = vpop.f32.mrb[0].mxu0
      %v374 = vadd.f32 0.0, %v373
      %v375 = vpop.f32.mrb[0].mxu0
      %376 = vdwg.mxu0
      %v382 = vunpack.c.l.b16 %v243
      %v383 = vunpack.c.l.b16 %v244
      %v384 = vunpack.c.l.b16 %v245
      %v385 = vunpack.c.l.b16 %v246
      %v386 = vunpack.c.l.b16 %v247
      %v387 = vpack.c.b16 %v383, %v382
      %v388 = vpack.c.b16 %v385, %v384
      %v389 = vpack.c.b16 %v386, %v386
      %v393 = vsel %vm284, %v238, 0
      %v396 = vsel %vm284, %v239, 0
      %v399 = vsel %vm284, %v240, 0
      %v402 = vsel %vm284, %v241, 0
      %v405 = vsel %vm284, %v242, 0
      %v408 = vsel %vm300, %v389, 0
      %410 = vmatprep.subr.bf16.mxu0 0
      %411 = vmatpush1.bf16.msra.mxu0 %v387
      %412 = vmatprep.subr.bf16.mxu0 0
      %413 = vmatpush1.bf16.msra.mxu0 %v388
      %414 = vmatprep.subr.bf16.mxu0 0
      %415 = vmatpush1.bf16.msra.mxu0 %v408
      %416 = vmatprep.subr.bf16.mxu0 0
      %417 = vmatpush1.bf16.msra.mxu0 0
      %418 = vmatprep.subr.bf16.mxu0 0
      %419 = vmatpush1.bf16.msra.mxu0 0
      %420 = vmatprep.subr.bf16.mxu0 0
      %421 = vmatpush1.bf16.msra.mxu0 0
      %422 = vmatprep.subr.bf16.mxu0 0
      %423 = vmatpush1.bf16.msra.mxu0 0
      %424 = vmatprep.subr.bf16.mxu0 0
      %425 = vmatpush1.bf16.msra.mxu0 0
      %426 = vmatprep.subr.bf16.mxu0 0
      %427 = vmatpush1.bf16.msra.mxu0 0
      %428 = vmatprep.subr.bf16.mxu0 0
      %429 = vmatpush1.bf16.msra.mxu0 0
      %430 = vmatprep.subr.bf16.mxu0 0
      %431 = vmatpush1.bf16.msra.mxu0 0
      %432 = vmatprep.subr.bf16.mxu0 0
      %433 = vmatpush1.bf16.msra.mxu0 0
      %434 = vmatprep.subr.bf16.mxu0 0
      %435 = vmatpush1.bf16.msra.mxu0 0
      %436 = vmatprep.subr.bf16.mxu0 0
      %437 = vmatpush1.bf16.msra.mxu0 0
      %438 = vmatprep.subr.bf16.mxu0 0
      %439 = vmatpush1.bf16.msra.mxu0 0
      %440 = vmatprep.subr.bf16.mxu0 0
      %441 = vmatpush1.bf16.msra.mxu0 0
      %442 = vmatprep.mubr.bf16.mxu0 0
      %443 = vmatmul.mubr.bf16.gmra.mrb[0].mxu0 %v393
      %v444 = vpop.f32.mrb[0].mxu0
      %v445 = vadd.f32 %v339, %v444
      %v446 = vpop.f32.mrb[0].mxu0
      %v447 = vpop.f32.mrb[0].mxu0
      %v448 = vadd.f32 %v342, %v447
      %v449 = vpop.f32.mrb[0].mxu0
      %450 = vmatprep.mubr.bf16.mxu0 0
      %451 = vmatmul.mubr.bf16.gmra.mrb[0].mxu0 %v396
      %v452 = vpop.f32.mrb[0].mxu0
      %v453 = vadd.f32 %v347, %v452
      %v454 = vpop.f32.mrb[0].mxu0
      %v455 = vpop.f32.mrb[0].mxu0
      %v456 = vadd.f32 %v350, %v455
      %v457 = vpop.f32.mrb[0].mxu0
      %458 = vmatprep.mubr.bf16.mxu0 0
      %459 = vmatmul.mubr.bf16.gmra.mrb[0].mxu0 %v399
      %v460 = vpop.f32.mrb[0].mxu0
      %v461 = vadd.f32 %v355, %v460
      %v462 = vpop.f32.mrb[0].mxu0
      %v463 = vpop.f32.mrb[0].mxu0
      %v464 = vadd.f32 %v358, %v463
      %v465 = vpop.f32.mrb[0].mxu0
      %466 = vmatprep.mubr.bf16.mxu0 0
      %467 = vmatmul.mubr.bf16.gmra.mrb[0].mxu0 %v402
      %v468 = vpop.f32.mrb[0].mxu0
      %v469 = vadd.f32 %v363, %v468
      %v470 = vpop.f32.mrb[0].mxu0
      %v471 = vpop.f32.mrb[0].mxu0
      %v472 = vadd.f32 %v366, %v471
      %v473 = vpop.f32.mrb[0].mxu0
      %474 = vmatprep.mubr.bf16.mxu0 0
      %475 = vmatmul.mubr.bf16.gmra.mrb[0].mxu0 %v405
      %v476 = vpop.f32.mrb[0].mxu0
      %v477 = vadd.f32 %v371, %v476
      %v478 = vpop.f32.mrb[0].mxu0
      %v479 = vpop.f32.mrb[0].mxu0
      %v480 = vadd.f32 %v374, %v479
      %v481 = vpop.f32.mrb[0].mxu0
      %482 = vdwg.mxu0
      %v483 = vld [vmem:[%s212 + $0x2] sm:$0xff]
      %v484 = vld [vmem:[%s212 + $0xa] sm:$0xff]
      %v485 = vld [vmem:[%s212 + $0x12] sm:$0xff]
      %v486 = vld [vmem:[%s212 + $0x1a] sm:$0xff]
      %v487 = vld [vmem:[%s212 + $0x22] sm:$0xff]
      %v488 = vld [vmem:[%s212 + $0x2a] sm:$0xff]
      %v489 = vld [vmem:[%s212 + $0x32] sm:$0xff]
      %v490 = vld [vmem:[%s212 + $0x3a] sm:$0xff]
      %v491 = vld [vmem:[%s212 + $0x42] sm:$0xff]
      %v492 = vld [vmem:[%s212 + $0x4a] sm:$0xff]
      %v493 = vpack.c.bf16 %v484, %v483
      %v494 = vpack.c.bf16 %v486, %v485
      %v495 = vpack.c.bf16 %v488, %v487
      %v496 = vpack.c.bf16 %v490, %v489
      %v497 = vpack.c.bf16 %v492, %v491
      %s498 = scalar_lea.vmem %s217, 40
      %v499 = vld [vmem:[%s498] sm:$0xf]
      %v500 = vld [vmem:[%s498 + $0x4] sm:$0xf]
      %v501 = vld [vmem:[%s498 + $0x8] sm:$0xf]
      %v502 = vld [vmem:[%s498 + $0xc] sm:$0xf]
      %v503 = vld [vmem:[%s498 + $0x10] sm:$0xf]
      %v509 = vunpack.c.l.b16 %v499
      %v510 = vunpack.c.l.b16 %v500
      %v511 = vunpack.c.l.b16 %v501
      %v512 = vunpack.c.l.b16 %v502
      %v513 = vunpack.c.l.b16 %v503
      %v514 = vpack.c.b16 %v510, %v509
      %v515 = vpack.c.b16 %v512, %v511
      %v516 = vpack.c.b16 %v513, %v513
      %v520 = vsel %vm284, %v493, 0
      %v523 = vsel %vm284, %v494, 0
      %v526 = vsel %vm284, %v495, 0
      %v529 = vsel %vm284, %v496, 0
      %v532 = vsel %vm284, %v497, 0
      %v535 = vsel %vm300, %v516, 0
      %537 = vmatprep.subr.bf16.mxu0 0
      %538 = vmatpush1.bf16.msra.mxu0 %v514
      %539 = vmatprep.subr.bf16.mxu0 0
      %540 = vmatpush1.bf16.msra.mxu0 %v515
      %541 = vmatprep.subr.bf16.mxu0 0
      %542 = vmatpush1.bf16.msra.mxu0 %v535
      %543 = vmatprep.subr.bf16.mxu0 0
      %544 = vmatpush1.bf16.msra.mxu0 0
      %545 = vmatprep.subr.bf16.mxu0 0
      %546 = vmatpush1.bf16.msra.mxu0 0
      %547 = vmatprep.subr.bf16.mxu0 0
      %548 = vmatpush1.bf16.msra.mxu0 0
      %549 = vmatprep.subr.bf16.mxu0 0
      %550 = vmatpush1.bf16.msra.mxu0 0
      %551 = vmatprep.subr.bf16.mxu0 0
      %552 = vmatpush1.bf16.msra.mxu0 0
      %553 = vmatprep.subr.bf16.mxu0 0
      %554 = vmatpush1.bf16.msra.mxu0 0
      %555 = vmatprep.subr.bf16.mxu0 0
      %556 = vmatpush1.bf16.msra.mxu0 0
      %557 = vmatprep.subr.bf16.mxu0 0
      %558 = vmatpush1.bf16.msra.mxu0 0
      %559 = vmatprep.subr.bf16.mxu0 0
      %560 = vmatpush1.bf16.msra.mxu0 0
      %561 = vmatprep.subr.bf16.mxu0 0
      %562 = vmatpush1.bf16.msra.mxu0 0
      %563 = vmatprep.subr.bf16.mxu0 0
      %564 = vmatpush1.bf16.msra.mxu0 0
      %565 = vmatprep.subr.bf16.mxu0 0
      %566 = vmatpush1.bf16.msra.mxu0 0
      %567 = vmatprep.subr.bf16.mxu0 0
      %568 = vmatpush1.bf16.msra.mxu0 0
      %569 = vmatprep.mubr.bf16.mxu0 0
      %570 = vmatmul.mubr.bf16.gmra.mrb[0].mxu0 %v520
      %v571 = vpop.f32.mrb[0].mxu0
      %v572 = vadd.f32 0.0, %v571
      %v573 = vpop.f32.mrb[0].mxu0
      %v574 = vpop.f32.mrb[0].mxu0
      %v575 = vadd.f32 0.0, %v574
      %v576 = vpop.f32.mrb[0].mxu0
      %577 = vmatprep.mubr.bf16.mxu0 0
      %578 = vmatmul.mubr.bf16.gmra.mrb[0].mxu0 %v523
      %v579 = vpop.f32.mrb[0].mxu0
      %v580 = vadd.f32 0.0, %v579
      %v581 = vpop.f32.mrb[0].mxu0
      %v582 = vpop.f32.mrb[0].mxu0
      %v583 = vadd.f32 0.0, %v582
      %v584 = vpop.f32.mrb[0].mxu0
      %585 = vmatprep.mubr.bf16.mxu0 0
      %586 = vmatmul.mubr.bf16.gmra.mrb[0].mxu0 %v526
      %v587 = vpop.f32.mrb[0].mxu0
      %v588 = vadd.f32 0.0, %v587
      %v589 = vpop.f32.mrb[0].mxu0
      %v590 = vpop.f32.mrb[0].mxu0
      %v591 = vadd.f32 0.0, %v590
      %v592 = vpop.f32.mrb[0].mxu0
      %593 = vmatprep.mubr.bf16.mxu0 0
      %594 = vmatmul.mubr.bf16.gmra.mrb[0].mxu0 %v529
      %v595 = vpop.f32.mrb[0].mxu0
      %v596 = vadd.f32 0.0, %v595
      %v597 = vpop.f32.mrb[0].mxu0
      %v598 = vpop.f32.mrb[0].mxu0
      %v599 = vadd.f32 0.0, %v598
      %v600 = vpop.f32.mrb[0].mxu0
      %601 = vmatprep.mubr.bf16.mxu0 0
      %602 = vmatmul.mubr.bf16.gmra.mrb[0].mxu0 %v532
      %v603 = vpop.f32.mrb[0].mxu0
      %v604 = vadd.f32 0.0, %v603
      %v605 = vpop.f32.mrb[0].mxu0
      %v606 = vpop.f32.mrb[0].mxu0
      %v607 = vadd.f32 0.0, %v606
      %v608 = vpop.f32.mrb[0].mxu0
      %609 = vdwg.mxu0
      %v610 = vadd.f32 %v445, %v572
      %v611 = vadd.f32 %v448, %v575
      %v612 = vadd.f32 %v453, %v580
      %v613 = vadd.f32 %v456, %v583
      %v614 = vadd.f32 %v461, %v588
      %v615 = vadd.f32 %v464, %v591
      %v616 = vadd.f32 %v469, %v596
      %v617 = vadd.f32 %v472, %v599
      %v618 = vadd.f32 %v477, %v604
      %v619 = vadd.f32 %v480, %v607
      %v620 = vld [vmem:[%s212 + $0xa] sm:$0xff]
      %v621 = vld [vmem:[%s212 + $0x12] sm:$0xff]
      %v622 = vld [vmem:[%s212 + $0x1a] sm:$0xff]
      %v623 = vld [vmem:[%s212 + $0x22] sm:$0xff]
      %v624 = vld [vmem:[%s212 + $0x2a] sm:$0xff]
      %v625 = vld [vmem:[%s212 + $0x32] sm:$0xff]
      %v626 = vld [vmem:[%s212 + $0x3a] sm:$0xff]
      %v627 = vld [vmem:[%s212 + $0x42] sm:$0xff]
      %v628 = vld [vmem:[%s212 + $0x4a] sm:$0xff]
      %v629 = vld [vmem:[%s212 + $0x52] sm:$0xff]
      %v630 = vpack.c.bf16 %v621, %v620
      %v631 = vpack.c.bf16 %v623, %v622
      %v632 = vpack.c.bf16 %v625, %v624
      %v633 = vpack.c.bf16 %v627, %v626
      %v634 = vpack.c.bf16 %v629, %v628
      %s635 = scalar_lea.vmem %s217, 60
      %v636 = vld [vmem:[%s635] sm:$0xf]
      %v637 = vld [vmem:[%s635 + $0x4] sm:$0xf]
      %v638 = vld [vmem:[%s635 + $0x8] sm:$0xf]
      %v639 = vld [vmem:[%s635 + $0xc] sm:$0xf]
      %v640 = vld [vmem:[%s635 + $0x10] sm:$0xf]
      %v646 = vunpack.c.l.b16 %v636
      %v647 = vunpack.c.l.b16 %v637
      %v648 = vunpack.c.l.b16 %v638
      %v649 = vunpack.c.l.b16 %v639
      %v650 = vunpack.c.l.b16 %v640
      %v651 = vpack.c.b16 %v647, %v646
      %v652 = vpack.c.b16 %v649, %v648
      %v653 = vpack.c.b16 %v650, %v650
      %v657 = vsel %vm284, %v630, 0
      %v660 = vsel %vm284, %v631, 0
      %v663 = vsel %vm284, %v632, 0
      %v666 = vsel %vm284, %v633, 0
      %v669 = vsel %vm284, %v634, 0
      %v672 = vsel %vm300, %v653, 0
      %674 = vmatprep.subr.bf16.mxu0 0
      %675 = vmatpush1.bf16.msra.mxu0 %v651
      %676 = vmatprep.subr.bf16.mxu0 0
      %677 = vmatpush1.bf16.msra.mxu0 %v652
      %678 = vmatprep.subr.bf16.mxu0 0
      %679 = vmatpush1.bf16.msra.mxu0 %v672
      %680 = vmatprep.subr.bf16.mxu0 0
      %681 = vmatpush1.bf16.msra.mxu0 0
      %682 = vmatprep.subr.bf16.mxu0 0
      %683 = vmatpush1.bf16.msra.mxu0 0
      %684 = vmatprep.subr.bf16.mxu0 0
      %685 = vmatpush1.bf16.msra.mxu0 0
      %686 = vmatprep.subr.bf16.mxu0 0
      %687 = vmatpush1.bf16.msra.mxu0 0
      %688 = vmatprep.subr.bf16.mxu0 0
      %689 = vmatpush1.bf16.msra.mxu0 0
      %690 = vmatprep.subr.bf16.mxu0 0
      %691 = vmatpush1.bf16.msra.mxu0 0
      %692 = vmatprep.subr.bf16.mxu0 0
      %693 = vmatpush1.bf16.msra.mxu0 0
      %694 = vmatprep.subr.bf16.mxu0 0
      %695 = vmatpush1.bf16.msra.mxu0 0
      %696 = vmatprep.subr.bf16.mxu0 0
      %697 = vmatpush1.bf16.msra.mxu0 0
      %698 = vmatprep.subr.bf16.mxu0 0
      %699 = vmatpush1.bf16.msra.mxu0 0
      %700 = vmatprep.subr.bf16.mxu0 0
      %701 = vmatpush1.bf16.msra.mxu0 0
      %702 = vmatprep.subr.bf16.mxu0 0
      %703 = vmatpush1.bf16.msra.mxu0 0
      %704 = vmatprep.subr.bf16.mxu0 0
      %705 = vmatpush1.bf16.msra.mxu0 0
      %706 = vmatprep.mubr.bf16.mxu0 0
      %707 = vmatmul.mubr.bf16.gmra.mrb[0].mxu0 %v657
      %v708 = vpop.f32.mrb[0].mxu0
      %v709 = vadd.f32 0.0, %v708
      %v710 = vpop.f32.mrb[0].mxu0
      %v711 = vpop.f32.mrb[0].mxu0
      %v712 = vadd.f32 0.0, %v711
      %v713 = vpop.f32.mrb[0].mxu0
      %714 = vmatprep.mubr.bf16.mxu0 0
      %715 = vmatmul.mubr.bf16.gmra.mrb[0].mxu0 %v660
      %v716 = vpop.f32.mrb[0].mxu0
      %v717 = vadd.f32 0.0, %v716
      %v718 = vpop.f32.mrb[0].mxu0
      %v719 = vpop.f32.mrb[0].mxu0
      %v720 = vadd.f32 0.0, %v719
      %v721 = vpop.f32.mrb[0].mxu0
      %722 = vmatprep.mubr.bf16.mxu0 0
      %723 = vmatmul.mubr.bf16.gmra.mrb[0].mxu0 %v663
      %v724 = vpop.f32.mrb[0].mxu0
      %v725 = vadd.f32 0.0, %v724
      %v726 = vpop.f32.mrb[0].mxu0
      %v727 = vpop.f32.mrb[0].mxu0
      %v728 = vadd.f32 0.0, %v727
      %v729 = vpop.f32.mrb[0].mxu0
      %730 = vmatprep.mubr.bf16.mxu0 0
      %731 = vmatmul.mubr.bf16.gmra.mrb[0].mxu0 %v666
      %v732 = vpop.f32.mrb[0].mxu0
      %v733 = vadd.f32 0.0, %v732
      %v734 = vpop.f32.mrb[0].mxu0
      %v735 = vpop.f32.mrb[0].mxu0
      %v736 = vadd.f32 0.0, %v735
      %v737 = vpop.f32.mrb[0].mxu0
      %738 = vmatprep.mubr.bf16.mxu0 0
      %739 = vmatmul.mubr.bf16.gmra.mrb[0].mxu0 %v669
      %v740 = vpop.f32.mrb[0].mxu0
      %v741 = vadd.f32 0.0, %v740
      %v742 = vpop.f32.mrb[0].mxu0
      %v743 = vpop.f32.mrb[0].mxu0
      %v744 = vadd.f32 0.0, %v743
      %v745 = vpop.f32.mrb[0].mxu0
      %746 = vdwg.mxu0
      %v747 = vadd.f32 %v610, %v709
      %v748 = vadd.f32 %v611, %v712
      %v749 = vadd.f32 %v612, %v717
      %v750 = vadd.f32 %v613, %v720
      %v751 = vadd.f32 %v614, %v725
      %v752 = vadd.f32 %v615, %v728
      %v753 = vadd.f32 %v616, %v733
      %v754 = vadd.f32 %v617, %v736
      %v755 = vadd.f32 %v618, %v741
      %v756 = vadd.f32 %v619, %v744
      %v757 = vld [vmem:[%s212 + $0xb] sm:$0xff]
      %v758 = vld [vmem:[%s212 + $0x13] sm:$0xff]
      %v759 = vld [vmem:[%s212 + $0x1b] sm:$0xff]
      %v760 = vld [vmem:[%s212 + $0x23] sm:$0xff]
      %v761 = vld [vmem:[%s212 + $0x2b] sm:$0xff]
      %v762 = vld [vmem:[%s212 + $0x33] sm:$0xff]
      %v763 = vld [vmem:[%s212 + $0x3b] sm:$0xff]
      %v764 = vld [vmem:[%s212 + $0x43] sm:$0xff]
      %v765 = vld [vmem:[%s212 + $0x4b] sm:$0xff]
      %v766 = vld [vmem:[%s212 + $0x53] sm:$0xff]
      %v767 = vpack.c.bf16 %v758, %v757
      %v768 = vpack.c.bf16 %v760, %v759
      %v769 = vpack.c.bf16 %v762, %v761
      %v770 = vpack.c.bf16 %v764, %v763
      %v771 = vpack.c.bf16 %v766, %v765
      %s772 = scalar_lea.vmem %s217, 80
      %v773 = vld [vmem:[%s772] sm:$0xf]
      %v774 = vld [vmem:[%s772 + $0x4] sm:$0xf]
      %v775 = vld [vmem:[%s772 + $0x8] sm:$0xf]
      %v776 = vld [vmem:[%s772 + $0xc] sm:$0xf]
      %v777 = vld [vmem:[%s772 + $0x10] sm:$0xf]
      %v783 = vunpack.c.l.b16 %v773
      %v784 = vunpack.c.l.b16 %v774
      %v785 = vunpack.c.l.b16 %v775
      %v786 = vunpack.c.l.b16 %v776
      %v787 = vunpack.c.l.b16 %v777
      %v788 = vpack.c.b16 %v784, %v783
      %v789 = vpack.c.b16 %v786, %v785
      %v790 = vpack.c.b16 %v787, %v787
      %v794 = vsel %vm284, %v767, 0
      %v797 = vsel %vm284, %v768, 0
      %v800 = vsel %vm284, %v769, 0
      %v803 = vsel %vm284, %v770, 0
      %v806 = vsel %vm284, %v771, 0
      %v809 = vsel %vm300, %v790, 0
      %811 = vmatprep.subr.bf16.mxu0 0
      %812 = vmatpush1.bf16.msra.mxu0 %v788
      %813 = vmatprep.subr.bf16.mxu0 0
      %814 = vmatpush1.bf16.msra.mxu0 %v789
      %815 = vmatprep.subr.bf16.mxu0 0
      %816 = vmatpush1.bf16.msra.mxu0 %v809
      %817 = vmatprep.subr.bf16.mxu0 0
      %818 = vmatpush1.bf16.msra.mxu0 0
      %819 = vmatprep.subr.bf16.mxu0 0
      %820 = vmatpush1.bf16.msra.mxu0 0
      %821 = vmatprep.subr.bf16.mxu0 0
      %822 = vmatpush1.bf16.msra.mxu0 0
      %823 = vmatprep.subr.bf16.mxu0 0
      %824 = vmatpush1.bf16.msra.mxu0 0
      %825 = vmatprep.subr.bf16.mxu0 0
      %826 = vmatpush1.bf16.msra.mxu0 0
      %827 = vmatprep.subr.bf16.mxu0 0
      %828 = vmatpush1.bf16.msra.mxu0 0
      %829 = vmatprep.subr.bf16.mxu0 0
      %830 = vmatpush1.bf16.msra.mxu0 0
      %831 = vmatprep.subr.bf16.mxu0 0
      %832 = vmatpush1.bf16.msra.mxu0 0
      %833 = vmatprep.subr.bf16.mxu0 0
      %834 = vmatpush1.bf16.msra.mxu0 0
      %835 = vmatprep.subr.bf16.mxu0 0
      %836 = vmatpush1.bf16.msra.mxu0 0
      %837 = vmatprep.subr.bf16.mxu0 0
      %838 = vmatpush1.bf16.msra.mxu0 0
      %839 = vmatprep.subr.bf16.mxu0 0
      %840 = vmatpush1.bf16.msra.mxu0 0
      %841 = vmatprep.subr.bf16.mxu0 0
      %842 = vmatpush1.bf16.msra.mxu0 0
      %843 = vmatprep.mubr.bf16.mxu0 0
      %844 = vmatmul.mubr.bf16.gmra.mrb[0].mxu0 %v794
      %v845 = vpop.f32.mrb[0].mxu0
      %v846 = vadd.f32 0.0, %v845
      %v847 = vpop.f32.mrb[0].mxu0
      %v848 = vpop.f32.mrb[0].mxu0
      %v849 = vadd.f32 0.0, %v848
      %v850 = vpop.f32.mrb[0].mxu0
      %851 = vmatprep.mubr.bf16.mxu0 0
      %852 = vmatmul.mubr.bf16.gmra.mrb[0].mxu0 %v797
      %v853 = vpop.f32.mrb[0].mxu0
      %v854 = vadd.f32 0.0, %v853
      %v855 = vpop.f32.mrb[0].mxu0
      %v856 = vpop.f32.mrb[0].mxu0
      %v857 = vadd.f32 0.0, %v856
      %v858 = vpop.f32.mrb[0].mxu0
      %859 = vmatprep.mubr.bf16.mxu0 0
      %860 = vmatmul.mubr.bf16.gmra.mrb[0].mxu0 %v800
      %v861 = vpop.f32.mrb[0].mxu0
      %v862 = vadd.f32 0.0, %v861
      %v863 = vpop.f32.mrb[0].mxu0
      %v864 = vpop.f32.mrb[0].mxu0
      %v865 = vadd.f32 0.0, %v864
      %v866 = vpop.f32.mrb[0].mxu0
      %867 = vmatprep.mubr.bf16.mxu0 0
      %868 = vmatmul.mubr.bf16.gmra.mrb[0].mxu0 %v803
      %v869 = vpop.f32.mrb[0].mxu0
      %v870 = vadd.f32 0.0, %v869
      %v871 = vpop.f32.mrb[0].mxu0
      %v872 = vpop.f32.mrb[0].mxu0
      %v873 = vadd.f32 0.0, %v872
      %v874 = vpop.f32.mrb[0].mxu0
      %875 = vmatprep.mubr.bf16.mxu0 0
      %876 = vmatmul.mubr.bf16.gmra.mrb[0].mxu0 %v806
      %v877 = vpop.f32.mrb[0].mxu0
      %v878 = vadd.f32 0.0, %v877
      %v879 = vpop.f32.mrb[0].mxu0
      %v880 = vpop.f32.mrb[0].mxu0
      %v881 = vadd.f32 0.0, %v880
      %v882 = vpop.f32.mrb[0].mxu0
      %883 = vdwg.mxu0
      %v884 = vadd.f32 %v747, %v846
      %v885 = vadd.f32 %v748, %v849
      %v886 = vadd.f32 %v749, %v854
      %v887 = vadd.f32 %v750, %v857
      %v888 = vadd.f32 %v751, %v862
      %v889 = vadd.f32 %v752, %v865
      %v890 = vadd.f32 %v753, %v870
      %v891 = vadd.f32 %v754, %v873
      %v892 = vadd.f32 %v755, %v878
      %v893 = vadd.f32 %v756, %v881
      %v894 = vld [vmem:[%s212 + $0xc] sm:$0xff]
      %v895 = vld [vmem:[%s212 + $0x14] sm:$0xff]
      %v896 = vld [vmem:[%s212 + $0x1c] sm:$0xff]
      %v897 = vld [vmem:[%s212 + $0x24] sm:$0xff]
      %v898 = vld [vmem:[%s212 + $0x2c] sm:$0xff]
      %v899 = vld [vmem:[%s212 + $0x34] sm:$0xff]
      %v900 = vld [vmem:[%s212 + $0x3c] sm:$0xff]
      %v901 = vld [vmem:[%s212 + $0x44] sm:$0xff]
      %v902 = vld [vmem:[%s212 + $0x4c] sm:$0xff]
      %v903 = vld [vmem:[%s212 + $0x54] sm:$0xff]
      %v904 = vpack.c.bf16 %v895, %v894
      %v905 = vpack.c.bf16 %v897, %v896
      %v906 = vpack.c.bf16 %v899, %v898
      %v907 = vpack.c.bf16 %v901, %v900
      %v908 = vpack.c.bf16 %v903, %v902
      %s909 = scalar_lea.vmem %s217, 100
      %v910 = vld [vmem:[%s909] sm:$0xf]
      %v911 = vld [vmem:[%s909 + $0x4] sm:$0xf]
      %v912 = vld [vmem:[%s909 + $0x8] sm:$0xf]
      %v913 = vld [vmem:[%s909 + $0xc] sm:$0xf]
      %v914 = vld [vmem:[%s909 + $0x10] sm:$0xf]
      %v920 = vunpack.c.l.b16 %v910
      %v921 = vunpack.c.l.b16 %v911
      %v922 = vunpack.c.l.b16 %v912
      %v923 = vunpack.c.l.b16 %v913
      %v924 = vunpack.c.l.b16 %v914
      %v925 = vpack.c.b16 %v921, %v920
      %v926 = vpack.c.b16 %v923, %v922
      %v927 = vpack.c.b16 %v924, %v924
      %v931 = vsel %vm284, %v904, 0
      %v934 = vsel %vm284, %v905, 0
      %v937 = vsel %vm284, %v906, 0
      %v940 = vsel %vm284, %v907, 0
      %v943 = vsel %vm284, %v908, 0
      %v946 = vsel %vm300, %v927, 0
      %948 = vmatprep.subr.bf16.mxu0 0
      %949 = vmatpush1.bf16.msra.mxu0 %v925
      %950 = vmatprep.subr.bf16.mxu0 0
      %951 = vmatpush1.bf16.msra.mxu0 %v926
      %952 = vmatprep.subr.bf16.mxu0 0
      %953 = vmatpush1.bf16.msra.mxu0 %v946
      %954 = vmatprep.subr.bf16.mxu0 0
      %955 = vmatpush1.bf16.msra.mxu0 0
      %956 = vmatprep.subr.bf16.mxu0 0
      %957 = vmatpush1.bf16.msra.mxu0 0
      %958 = vmatprep.subr.bf16.mxu0 0
      %959 = vmatpush1.bf16.msra.mxu0 0
      %960 = vmatprep.subr.bf16.mxu0 0
      %961 = vmatpush1.bf16.msra.mxu0 0
      %962 = vmatprep.subr.bf16.mxu0 0
      %963 = vmatpush1.bf16.msra.mxu0 0
      %964 = vmatprep.subr.bf16.mxu0 0
      %965 = vmatpush1.bf16.msra.mxu0 0
      %966 = vmatprep.subr.bf16.mxu0 0
      %967 = vmatpush1.bf16.msra.mxu0 0
      %968 = vmatprep.subr.bf16.mxu0 0
      %969 = vmatpush1.bf16.msra.mxu0 0
      %970 = vmatprep.subr.bf16.mxu0 0
      %971 = vmatpush1.bf16.msra.mxu0 0
      %972 = vmatprep.subr.bf16.mxu0 0
      %973 = vmatpush1.bf16.msra.mxu0 0
      %974 = vmatprep.subr.bf16.mxu0 0
      %975 = vmatpush1.bf16.msra.mxu0 0
      %976 = vmatprep.subr.bf16.mxu0 0
      %977 = vmatpush1.bf16.msra.mxu0 0
      %978 = vmatprep.subr.bf16.mxu0 0
      %979 = vmatpush1.bf16.msra.mxu0 0
      %980 = vmatprep.mubr.bf16.mxu0 0
      %981 = vmatmul.mubr.bf16.gmra.mrb[0].mxu0 %v931
      %v982 = vpop.f32.mrb[0].mxu0
      %v983 = vadd.f32 0.0, %v982
      %v984 = vpop.f32.mrb[0].mxu0
      %v985 = vpop.f32.mrb[0].mxu0
      %v986 = vadd.f32 0.0, %v985
      %v987 = vpop.f32.mrb[0].mxu0
      %988 = vmatprep.mubr.bf16.mxu0 0
      %989 = vmatmul.mubr.bf16.gmra.mrb[0].mxu0 %v934
      %v990 = vpop.f32.mrb[0].mxu0
      %v991 = vadd.f32 0.0, %v990
      %v992 = vpop.f32.mrb[0].mxu0
      %v993 = vpop.f32.mrb[0].mxu0
      %v994 = vadd.f32 0.0, %v993
      %v995 = vpop.f32.mrb[0].mxu0
      %996 = vmatprep.mubr.bf16.mxu0 0
      %997 = vmatmul.mubr.bf16.gmra.mrb[0].mxu0 %v937
      %v998 = vpop.f32.mrb[0].mxu0
      %v999 = vadd.f32 0.0, %v998
      %v1000 = vpop.f32.mrb[0].mxu0
      %v1001 = vpop.f32.mrb[0].mxu0
      %v1002 = vadd.f32 0.0, %v1001
      %v1003 = vpop.f32.mrb[0].mxu0
      %1004 = vmatprep.mubr.bf16.mxu0 0
      %1005 = vmatmul.mubr.bf16.gmra.mrb[0].mxu0 %v940
      %v1006 = vpop.f32.mrb[0].mxu0
      %v1007 = vadd.f32 0.0, %v1006
      %v1008 = vpop.f32.mrb[0].mxu0
      %v1009 = vpop.f32.mrb[0].mxu0
      %v1010 = vadd.f32 0.0, %v1009
      %v1011 = vpop.f32.mrb[0].mxu0
      %1012 = vmatprep.mubr.bf16.mxu0 0
      %1013 = vmatmul.mubr.bf16.gmra.mrb[0].mxu0 %v943
      %v1014 = vpop.f32.mrb[0].mxu0
      %v1015 = vadd.f32 0.0, %v1014
      %v1016 = vpop.f32.mrb[0].mxu0
      %v1017 = vpop.f32.mrb[0].mxu0
      %v1018 = vadd.f32 0.0, %v1017
      %v1019 = vpop.f32.mrb[0].mxu0
      %1020 = vdwg.mxu0
      %v1021 = vadd.f32 %v884, %v983
      %v1022 = vadd.f32 %v885, %v986
      %v1023 = vadd.f32 %v886, %v991
      %v1024 = vadd.f32 %v887, %v994
      %v1025 = vadd.f32 %v888, %v999
      %v1026 = vadd.f32 %v889, %v1002
      %v1027 = vadd.f32 %v890, %v1007
      %v1028 = vadd.f32 %v891, %v1010
      %v1029 = vadd.f32 %v892, %v1015
      %v1030 = vadd.f32 %v893, %v1018
      %v1031 = vld [vmem:[%s212 + $0x14] sm:$0xff]
      %v1032 = vld [vmem:[%s212 + $0x1c] sm:$0xff]
      %v1033 = vld [vmem:[%s212 + $0x24] sm:$0xff]
      %v1034 = vld [vmem:[%s212 + $0x2c] sm:$0xff]
      %v1035 = vld [vmem:[%s212 + $0x34] sm:$0xff]
      %v1036 = vld [vmem:[%s212 + $0x3c] sm:$0xff]
      %v1037 = vld [vmem:[%s212 + $0x44] sm:$0xff]
      %v1038 = vld [vmem:[%s212 + $0x4c] sm:$0xff]
      %v1039 = vld [vmem:[%s212 + $0x54] sm:$0xff]
      %v1040 = vld [vmem:[%s212 + $0x5c] sm:$0xff]
      %v1041 = vpack.c.bf16 %v1032, %v1031
      %v1042 = vpack.c.bf16 %v1034, %v1033
      %v1043 = vpack.c.bf16 %v1036, %v1035
      %v1044 = vpack.c.bf16 %v1038, %v1037
      %v1045 = vpack.c.bf16 %v1040, %v1039
      %s1046 = scalar_lea.vmem %s217, 120
      %v1047 = vld [vmem:[%s1046] sm:$0xf]
      %v1048 = vld [vmem:[%s1046 + $0x4] sm:$0xf]
      %v1049 = vld [vmem:[%s1046 + $0x8] sm:$0xf]
      %v1050 = vld [vmem:[%s1046 + $0xc] sm:$0xf]
      %v1051 = vld [vmem:[%s1046 + $0x10] sm:$0xf]
      %v1057 = vunpack.c.l.b16 %v1047
      %v1058 = vunpack.c.l.b16 %v1048
      %v1059 = vunpack.c.l.b16 %v1049
      %v1060 = vunpack.c.l.b16 %v1050
      %v1061 = vunpack.c.l.b16 %v1051
      %v1062 = vpack.c.b16 %v1058, %v1057
      %v1063 = vpack.c.b16 %v1060, %v1059
      %v1064 = vpack.c.b16 %v1061, %v1061
      %v1068 = vsel %vm284, %v1041, 0
      %v1071 = vsel %vm284, %v1042, 0
      %v1074 = vsel %vm284, %v1043, 0
      %v1077 = vsel %vm284, %v1044, 0
      %v1080 = vsel %vm284, %v1045, 0
      %v1083 = vsel %vm300, %v1064, 0
      %1085 = vmatprep.subr.bf16.mxu0 0
      %1086 = vmatpush1.bf16.msra.mxu0 %v1062
      %1087 = vmatprep.subr.bf16.mxu0 0
      %1088 = vmatpush1.bf16.msra.mxu0 %v1063
      %1089 = vmatprep.subr.bf16.mxu0 0
      %1090 = vmatpush1.bf16.msra.mxu0 %v1083
      %1091 = vmatprep.subr.bf16.mxu0 0
      %1092 = vmatpush1.bf16.msra.mxu0 0
      %1093 = vmatprep.subr.bf16.mxu0 0
      %1094 = vmatpush1.bf16.msra.mxu0 0
      %1095 = vmatprep.subr.bf16.mxu0 0
      %1096 = vmatpush1.bf16.msra.mxu0 0
      %1097 = vmatprep.subr.bf16.mxu0 0
      %1098 = vmatpush1.bf16.msra.mxu0 0
      %1099 = vmatprep.subr.bf16.mxu0 0
      %1100 = vmatpush1.bf16.msra.mxu0 0
      %1101 = vmatprep.subr.bf16.mxu0 0
      %1102 = vmatpush1.bf16.msra.mxu0 0
      %1103 = vmatprep.subr.bf16.mxu0 0
      %1104 = vmatpush1.bf16.msra.mxu0 0
      %1105 = vmatprep.subr.bf16.mxu0 0
      %1106 = vmatpush1.bf16.msra.mxu0 0
      %1107 = vmatprep.subr.bf16.mxu0 0
      %1108 = vmatpush1.bf16.msra.mxu0 0
      %1109 = vmatprep.subr.bf16.mxu0 0
      %1110 = vmatpush1.bf16.msra.mxu0 0
      %1111 = vmatprep.subr.bf16.mxu0 0
      %1112 = vmatpush1.bf16.msra.mxu0 0
      %1113 = vmatprep.subr.bf16.mxu0 0
      %1114 = vmatpush1.bf16.msra.mxu0 0
      %1115 = vmatprep.subr.bf16.mxu0 0
      %1116 = vmatpush1.bf16.msra.mxu0 0
      %1117 = vmatprep.mubr.bf16.mxu0 0
      %1118 = vmatmul.mubr.bf16.gmra.mrb[0].mxu0 %v1068
      %v1119 = vpop.f32.mrb[0].mxu0
      %v1120 = vadd.f32 0.0, %v1119
      %v1121 = vpop.f32.mrb[0].mxu0
      %v1122 = vpop.f32.mrb[0].mxu0
      %v1123 = vadd.f32 0.0, %v1122
      %v1124 = vpop.f32.mrb[0].mxu0
      %1125 = vmatprep.mubr.bf16.mxu0 0
      %1126 = vmatmul.mubr.bf16.gmra.mrb[0].mxu0 %v1071
      %v1127 = vpop.f32.mrb[0].mxu0
      %v1128 = vadd.f32 0.0, %v1127
      %v1129 = vpop.f32.mrb[0].mxu0
      %v1130 = vpop.f32.mrb[0].mxu0
      %v1131 = vadd.f32 0.0, %v1130
      %v1132 = vpop.f32.mrb[0].mxu0
      %1133 = vmatprep.mubr.bf16.mxu0 0
      %1134 = vmatmul.mubr.bf16.gmra.mrb[0].mxu0 %v1074
      %v1135 = vpop.f32.mrb[0].mxu0
      %v1136 = vadd.f32 0.0, %v1135
      %v1137 = vpop.f32.mrb[0].mxu0
      %v1138 = vpop.f32.mrb[0].mxu0
      %v1139 = vadd.f32 0.0, %v1138
      %v1140 = vpop.f32.mrb[0].mxu0
      %1141 = vmatprep.mubr.bf16.mxu0 0
      %1142 = vmatmul.mubr.bf16.gmra.mrb[0].mxu0 %v1077
      %v1143 = vpop.f32.mrb[0].mxu0
      %v1144 = vadd.f32 0.0, %v1143
      %v1145 = vpop.f32.mrb[0].mxu0
      %v1146 = vpop.f32.mrb[0].mxu0
      %v1147 = vadd.f32 0.0, %v1146
      %v1148 = vpop.f32.mrb[0].mxu0
      %1149 = vmatprep.mubr.bf16.mxu0 0
      %1150 = vmatmul.mubr.bf16.gmra.mrb[0].mxu0 %v1080
      %v1151 = vpop.f32.mrb[0].mxu0
      %v1152 = vadd.f32 0.0, %v1151
      %v1153 = vpop.f32.mrb[0].mxu0
      %v1154 = vpop.f32.mrb[0].mxu0
      %v1155 = vadd.f32 0.0, %v1154
      %v1156 = vpop.f32.mrb[0].mxu0
      %1157 = vdwg.mxu0
      %v1158 = vadd.f32 %v1021, %v1120
      %v1159 = vadd.f32 %v1022, %v1123
      %v1160 = vadd.f32 %v1023, %v1128
      %v1161 = vadd.f32 %v1024, %v1131
      %v1162 = vadd.f32 %v1025, %v1136
      %v1163 = vadd.f32 %v1026, %v1139
      %v1164 = vadd.f32 %v1027, %v1144
      %v1165 = vadd.f32 %v1028, %v1147
      %v1166 = vadd.f32 %v1029, %v1152
      %v1167 = vadd.f32 %v1030, %v1155
      %v1168 = vld [vmem:[%s212 + $0x15] sm:$0xff]
      %v1169 = vld [vmem:[%s212 + $0x1d] sm:$0xff]
      %v1170 = vld [vmem:[%s212 + $0x25] sm:$0xff]
      %v1171 = vld [vmem:[%s212 + $0x2d] sm:$0xff]
      %v1172 = vld [vmem:[%s212 + $0x35] sm:$0xff]
      %v1173 = vld [vmem:[%s212 + $0x3d] sm:$0xff]
      %v1174 = vld [vmem:[%s212 + $0x45] sm:$0xff]
      %v1175 = vld [vmem:[%s212 + $0x4d] sm:$0xff]
      %v1176 = vld [vmem:[%s212 + $0x55] sm:$0xff]
      %v1177 = vld [vmem:[%s212 + $0x5d] sm:$0xff]
      %v1178 = vpack.c.bf16 %v1169, %v1168
      %v1179 = vpack.c.bf16 %v1171, %v1170
      %v1180 = vpack.c.bf16 %v1173, %v1172
      %v1181 = vpack.c.bf16 %v1175, %v1174
      %v1182 = vpack.c.bf16 %v1177, %v1176
      %s1183 = scalar_lea.vmem %s217, 140
      %v1184 = vld [vmem:[%s1183] sm:$0xf]
      %v1185 = vld [vmem:[%s1183 + $0x4] sm:$0xf]
      %v1186 = vld [vmem:[%s1183 + $0x8] sm:$0xf]
      %v1187 = vld [vmem:[%s1183 + $0xc] sm:$0xf]
      %v1188 = vld [vmem:[%s1183 + $0x10] sm:$0xf]
      %v1194 = vunpack.c.l.b16 %v1184
      %v1195 = vunpack.c.l.b16 %v1185
      %v1196 = vunpack.c.l.b16 %v1186
      %v1197 = vunpack.c.l.b16 %v1187
      %v1198 = vunpack.c.l.b16 %v1188
      %v1199 = vpack.c.b16 %v1195, %v1194
      %v1200 = vpack.c.b16 %v1197, %v1196
      %v1201 = vpack.c.b16 %v1198, %v1198
      %v1205 = vsel %vm284, %v1178, 0
      %v1208 = vsel %vm284, %v1179, 0
      %v1211 = vsel %vm284, %v1180, 0
      %v1214 = vsel %vm284, %v1181, 0
      %v1217 = vsel %vm284, %v1182, 0
      %v1220 = vsel %vm300, %v1201, 0
      %1222 = vmatprep.subr.bf16.mxu0 0
      %1223 = vmatpush1.bf16.msra.mxu0 %v1199
      %1224 = vmatprep.subr.bf16.mxu0 0
      %1225 = vmatpush1.bf16.msra.mxu0 %v1200
      %1226 = vmatprep.subr.bf16.mxu0 0
      %1227 = vmatpush1.bf16.msra.mxu0 %v1220
      %1228 = vmatprep.subr.bf16.mxu0 0
      %1229 = vmatpush1.bf16.msra.mxu0 0
      %1230 = vmatprep.subr.bf16.mxu0 0
      %1231 = vmatpush1.bf16.msra.mxu0 0
      %1232 = vmatprep.subr.bf16.mxu0 0
      %1233 = vmatpush1.bf16.msra.mxu0 0
      %1234 = vmatprep.subr.bf16.mxu0 0
      %1235 = vmatpush1.bf16.msra.mxu0 0
      %1236 = vmatprep.subr.bf16.mxu0 0
      %1237 = vmatpush1.bf16.msra.mxu0 0
      %1238 = vmatprep.subr.bf16.mxu0 0
      %1239 = vmatpush1.bf16.msra.mxu0 0
      %1240 = vmatprep.subr.bf16.mxu0 0
      %1241 = vmatpush1.bf16.msra.mxu0 0
      %1242 = vmatprep.subr.bf16.mxu0 0
      %1243 = vmatpush1.bf16.msra.mxu0 0
      %1244 = vmatprep.subr.bf16.mxu0 0
      %1245 = vmatpush1.bf16.msra.mxu0 0
      %1246 = vmatprep.subr.bf16.mxu0 0
      %1247 = vmatpush1.bf16.msra.mxu0 0
      %1248 = vmatprep.subr.bf16.mxu0 0
      %1249 = vmatpush1.bf16.msra.mxu0 0
      %1250 = vmatprep.subr.bf16.mxu0 0
      %1251 = vmatpush1.bf16.msra.mxu0 0
      %1252 = vmatprep.subr.bf16.mxu0 0
      %1253 = vmatpush1.bf16.msra.mxu0 0
      %1254 = vmatprep.mubr.bf16.mxu0 0
      %1255 = vmatmul.mubr.bf16.gmra.mrb[0].mxu0 %v1205
      %v1256 = vpop.f32.mrb[0].mxu0
      %v1257 = vadd.f32 0.0, %v1256
      %v1258 = vpop.f32.mrb[0].mxu0
      %v1259 = vpop.f32.mrb[0].mxu0
      %v1260 = vadd.f32 0.0, %v1259
      %v1261 = vpop.f32.mrb[0].mxu0
      %1262 = vmatprep.mubr.bf16.mxu0 0
      %1263 = vmatmul.mubr.bf16.gmra.mrb[0].mxu0 %v1208
      %v1264 = vpop.f32.mrb[0].mxu0
      %v1265 = vadd.f32 0.0, %v1264
      %v1266 = vpop.f32.mrb[0].mxu0
      %v1267 = vpop.f32.mrb[0].mxu0
      %v1268 = vadd.f32 0.0, %v1267
      %v1269 = vpop.f32.mrb[0].mxu0
      %1270 = vmatprep.mubr.bf16.mxu0 0
      %1271 = vmatmul.mubr.bf16.gmra.mrb[0].mxu0 %v1211
      %v1272 = vpop.f32.mrb[0].mxu0
      %v1273 = vadd.f32 0.0, %v1272
      %v1274 = vpop.f32.mrb[0].mxu0
      %v1275 = vpop.f32.mrb[0].mxu0
      %v1276 = vadd.f32 0.0, %v1275
      %v1277 = vpop.f32.mrb[0].mxu0
      %1278 = vmatprep.mubr.bf16.mxu0 0
      %1279 = vmatmul.mubr.bf16.gmra.mrb[0].mxu0 %v1214
      %v1280 = vpop.f32.mrb[0].mxu0
      %v1281 = vadd.f32 0.0, %v1280
      %v1282 = vpop.f32.mrb[0].mxu0
      %v1283 = vpop.f32.mrb[0].mxu0
      %v1284 = vadd.f32 0.0, %v1283
      %v1285 = vpop.f32.mrb[0].mxu0
      %1286 = vmatprep.mubr.bf16.mxu0 0
      %1287 = vmatmul.mubr.bf16.gmra.mrb[0].mxu0 %v1217
      %v1288 = vpop.f32.mrb[0].mxu0
      %v1289 = vadd.f32 0.0, %v1288
      %v1290 = vpop.f32.mrb[0].mxu0
      %v1291 = vpop.f32.mrb[0].mxu0
      %v1292 = vadd.f32 0.0, %v1291
      %v1293 = vpop.f32.mrb[0].mxu0
      %1294 = vdwg.mxu0
      %v1295 = vadd.f32 %v1158, %v1257
      %v1296 = vadd.f32 %v1159, %v1260
      %v1297 = vadd.f32 %v1160, %v1265
      %v1298 = vadd.f32 %v1161, %v1268
      %v1299 = vadd.f32 %v1162, %v1273
      %v1300 = vadd.f32 %v1163, %v1276
      %v1301 = vadd.f32 %v1164, %v1281
      %v1302 = vadd.f32 %v1165, %v1284
      %v1303 = vadd.f32 %v1166, %v1289
      %v1304 = vadd.f32 %v1167, %v1292
      %v1305 = vld [vmem:[%s212 + $0x16] sm:$0xff]
      %v1306 = vld [vmem:[%s212 + $0x1e] sm:$0xff]
      %v1307 = vld [vmem:[%s212 + $0x26] sm:$0xff]
      %v1308 = vld [vmem:[%s212 + $0x2e] sm:$0xff]
      %v1309 = vld [vmem:[%s212 + $0x36] sm:$0xff]
      %v1310 = vld [vmem:[%s212 + $0x3e] sm:$0xff]
      %v1311 = vld [vmem:[%s212 + $0x46] sm:$0xff]
      %v1312 = vld [vmem:[%s212 + $0x4e] sm:$0xff]
      %v1313 = vld [vmem:[%s212 + $0x56] sm:$0xff]
      %v1314 = vld [vmem:[%s212 + $0x5e] sm:$0xff]
      %v1315 = vpack.c.bf16 %v1306, %v1305
      %v1316 = vpack.c.bf16 %v1308, %v1307
      %v1317 = vpack.c.bf16 %v1310, %v1309
      %v1318 = vpack.c.bf16 %v1312, %v1311
      %v1319 = vpack.c.bf16 %v1314, %v1313
      %s1320 = scalar_lea.vmem %s217, 160
      %v1321 = vld [vmem:[%s1320] sm:$0xf]
      %v1322 = vld [vmem:[%s1320 + $0x4] sm:$0xf]
      %v1323 = vld [vmem:[%s1320 + $0x8] sm:$0xf]
      %v1324 = vld [vmem:[%s1320 + $0xc] sm:$0xf]
      %v1325 = vld [vmem:[%s1320 + $0x10] sm:$0xf]
      %v1331 = vunpack.c.l.b16 %v1321
      %v1332 = vunpack.c.l.b16 %v1322
      %v1333 = vunpack.c.l.b16 %v1323
      %v1334 = vunpack.c.l.b16 %v1324
      %v1335 = vunpack.c.l.b16 %v1325
      %v1336 = vpack.c.b16 %v1332, %v1331
      %v1337 = vpack.c.b16 %v1334, %v1333
      %v1338 = vpack.c.b16 %v1335, %v1335
      %v1342 = vsel %vm284, %v1315, 0
      %v1345 = vsel %vm284, %v1316, 0
      %v1348 = vsel %vm284, %v1317, 0
      %v1351 = vsel %vm284, %v1318, 0
      %v1354 = vsel %vm284, %v1319, 0
      %v1357 = vsel %vm300, %v1338, 0
      %1359 = vmatprep.subr.bf16.mxu0 0
      %1360 = vmatpush1.bf16.msra.mxu0 %v1336
      %1361 = vmatprep.subr.bf16.mxu0 0
      %1362 = vmatpush1.bf16.msra.mxu0 %v1337
      %1363 = vmatprep.subr.bf16.mxu0 0
      %1364 = vmatpush1.bf16.msra.mxu0 %v1357
      %1365 = vmatprep.subr.bf16.mxu0 0
      %1366 = vmatpush1.bf16.msra.mxu0 0
      %1367 = vmatprep.subr.bf16.mxu0 0
      %1368 = vmatpush1.bf16.msra.mxu0 0
      %1369 = vmatprep.subr.bf16.mxu0 0
      %1370 = vmatpush1.bf16.msra.mxu0 0
      %1371 = vmatprep.subr.bf16.mxu0 0
      %1372 = vmatpush1.bf16.msra.mxu0 0
      %1373 = vmatprep.subr.bf16.mxu0 0
      %1374 = vmatpush1.bf16.msra.mxu0 0
      %1375 = vmatprep.subr.bf16.mxu0 0
      %1376 = vmatpush1.bf16.msra.mxu0 0
      %1377 = vmatprep.subr.bf16.mxu0 0
      %1378 = vmatpush1.bf16.msra.mxu0 0
      %1379 = vmatprep.subr.bf16.mxu0 0
      %1380 = vmatpush1.bf16.msra.mxu0 0
      %1381 = vmatprep.subr.bf16.mxu0 0
      %1382 = vmatpush1.bf16.msra.mxu0 0
      %1383 = vmatprep.subr.bf16.mxu0 0
      %1384 = vmatpush1.bf16.msra.mxu0 0
      %1385 = vmatprep.subr.bf16.mxu0 0
      %1386 = vmatpush1.bf16.msra.mxu0 0
      %1387 = vmatprep.subr.bf16.mxu0 0
      %1388 = vmatpush1.bf16.msra.mxu0 0
      %1389 = vmatprep.subr.bf16.mxu0 0
      %1390 = vmatpush1.bf16.msra.mxu0 0
      %1391 = vmatprep.mubr.bf16.mxu0 0
      %1392 = vmatmul.mubr.bf16.gmra.mrb[0].mxu0 %v1342
      %v1393 = vpop.f32.mrb[0].mxu0
      %v1394 = vadd.f32 0.0, %v1393
      %v1395 = vpop.f32.mrb[0].mxu0
      %v1396 = vpop.f32.mrb[0].mxu0
      %v1397 = vadd.f32 0.0, %v1396
      %v1398 = vpop.f32.mrb[0].mxu0
      %1399 = vmatprep.mubr.bf16.mxu0 0
      %1400 = vmatmul.mubr.bf16.gmra.mrb[0].mxu0 %v1345
      %v1401 = vpop.f32.mrb[0].mxu0
      %v1402 = vadd.f32 0.0, %v1401
      %v1403 = vpop.f32.mrb[0].mxu0
      %v1404 = vpop.f32.mrb[0].mxu0
      %v1405 = vadd.f32 0.0, %v1404
      %v1406 = vpop.f32.mrb[0].mxu0
      %1407 = vmatprep.mubr.bf16.mxu0 0
      %1408 = vmatmul.mubr.bf16.gmra.mrb[0].mxu0 %v1348
      %v1409 = vpop.f32.mrb[0].mxu0
      %v1410 = vadd.f32 0.0, %v1409
      %v1411 = vpop.f32.mrb[0].mxu0
      %v1412 = vpop.f32.mrb[0].mxu0
      %v1413 = vadd.f32 0.0, %v1412
      %v1414 = vpop.f32.mrb[0].mxu0
      %1415 = vmatprep.mubr.bf16.mxu0 0
      %1416 = vmatmul.mubr.bf16.gmra.mrb[0].mxu0 %v1351
      %v1417 = vpop.f32.mrb[0].mxu0
      %v1418 = vadd.f32 0.0, %v1417
      %v1419 = vpop.f32.mrb[0].mxu0
      %v1420 = vpop.f32.mrb[0].mxu0
      %v1421 = vadd.f32 0.0, %v1420
      %v1422 = vpop.f32.mrb[0].mxu0
      %1423 = vmatprep.mubr.bf16.mxu0 0
      %1424 = vmatmul.mubr.bf16.gmra.mrb[0].mxu0 %v1354
      %v1425 = vpop.f32.mrb[0].mxu0
      %v1426 = vadd.f32 0.0, %v1425
      %v1427 = vpop.f32.mrb[0].mxu0
      %v1428 = vpop.f32.mrb[0].mxu0
      %v1429 = vadd.f32 0.0, %v1428
      %v1430 = vpop.f32.mrb[0].mxu0
      %1431 = vdwg.mxu0
      %v1432 = vadd.f32 %v1295, %v1394
      %v1433 = vadd.f32 %v1296, %v1397
      %v1434 = vadd.f32 %v1297, %v1402
      %v1435 = vadd.f32 %v1298, %v1405
      %v1436 = vadd.f32 %v1299, %v1410
      %v1437 = vadd.f32 %v1300, %v1413
      %v1438 = vadd.f32 %v1301, %v1418
      %v1439 = vadd.f32 %v1302, %v1421
      %v1440 = vadd.f32 %v1303, %v1426
      %v1441 = vadd.f32 %v1304, %v1429
      %v1442 = vmax.f32 %v1432, 0.0
      %v1443 = vmax.f32 %v1433, 0.0
      %v1444 = vmax.f32 %v1434, 0.0
      %v1445 = vmax.f32 %v1435, 0.0
      %v1446 = vmax.f32 %v1436, 0.0
      %v1447 = vmax.f32 %v1437, 0.0
      %v1448 = vmax.f32 %v1438, 0.0
      %v1449 = vmax.f32 %v1439, 0.0
      %v1450 = vmax.f32 %v1440, 0.0
      %v1451 = vmax.f32 %v1441, 0.0
      %v1452 = vld [vmem:[%s2] sm:$0xff]
      %v1453 = vld [vmem:[%s2 + $0x8] sm:$0xff]
      %v1454 = vld [vmem:[%s2 + $0x10] sm:$0xff]
      %v1455 = vld [vmem:[%s2 + $0x18] sm:$0xff]
      %vm1456 = vcmask 261120
      %v1458 = vsel %vm1456, %v1442, 0
      %v1461 = vsel %vm1456, %v1443, 0
      %v1464 = vsel %vm1456, %v1444, 0
      %v1467 = vsel %vm1456, %v1445, 0
      %v1470 = vsel %vm1456, %v1446, 0
      %v1473 = vsel %vm1456, %v1447, 0
      %v1476 = vsel %vm1456, %v1448, 0
      %v1479 = vsel %vm1456, %v1449, 0
      %v1482 = vsel %vm1456, %v1450, 0
      %v1485 = vsel %vm1456, %v1451, 0
      %1487 = vmatprep.subr.mxu0 0.0
      %1488 = vmatpush1.msra.mxu0 %v1452
      %1489 = vmatprep.subr.mxu0 0.0
      %1490 = vmatpush1.msra.mxu0 %v1453
      %1491 = vmatprep.subr.mxu0 0.0
      %1492 = vmatpush1.msra.mxu0 %v1454
      %1493 = vmatprep.subr.mxu0 0.0
      %1494 = vmatpush1.msra.mxu0 %v1455
      %1495 = vmatprep.subr.mxu0 0.0
      %1496 = vmatpush1.msra.mxu0 0.0
      %1497 = vmatprep.subr.mxu0 0.0
      %1498 = vmatpush1.msra.mxu0 0.0
      %1499 = vmatprep.subr.mxu0 0.0
      %1500 = vmatpush1.msra.mxu0 0.0
      %1501 = vmatprep.subr.mxu0 0.0
      %1502 = vmatpush1.msra.mxu0 0.0
      %1503 = vmatprep.subr.mxu0 0.0
      %1504 = vmatpush1.msra.mxu0 0.0
      %1505 = vmatprep.subr.mxu0 0.0
      %1506 = vmatpush1.msra.mxu0 0.0
      %1507 = vmatprep.subr.mxu0 0.0
      %1508 = vmatpush1.msra.mxu0 0.0
      %1509 = vmatprep.subr.mxu0 0.0
      %1510 = vmatpush1.msra.mxu0 0.0
      %1511 = vmatprep.subr.mxu0 0.0
      %1512 = vmatpush1.msra.mxu0 0.0
      %1513 = vmatprep.subr.mxu0 0.0
      %1514 = vmatpush1.msra.mxu0 0.0
      %1515 = vmatprep.subr.mxu0 0.0
      %1516 = vmatpush1.msra.mxu0 0.0
      %1517 = vmatprep.subr.mxu0 0.0
      %1518 = vmatpush1.msra.mxu0 0.0
      %1519 = vmatprep.subr.mxu0 0.0
      %1520 = vmatpush1.msra.mxu0 0.0
      %1521 = vmatprep.subr.mxu0 0.0
      %1522 = vmatpush1.msra.mxu0 0.0
      %1523 = vmatprep.subr.mxu0 0.0
      %1524 = vmatpush1.msra.mxu0 0.0
      %1525 = vmatprep.subr.mxu0 0.0
      %1526 = vmatpush1.msra.mxu0 0.0
      %1527 = vmatprep.subr.mxu0 0.0
      %1528 = vmatpush1.msra.mxu0 0.0
      %1529 = vmatprep.subr.mxu0 0.0
      %1530 = vmatpush1.msra.mxu0 0.0
      %1531 = vmatprep.subr.mxu0 0.0
      %1532 = vmatpush1.msra.mxu0 0.0
      %1533 = vmatprep.subr.mxu0 0.0
      %1534 = vmatpush1.msra.mxu0 0.0
      %1535 = vmatprep.subr.mxu0 0.0
      %1536 = vmatpush1.msra.mxu0 0.0
      %1537 = vmatprep.subr.mxu0 0.0
      %1538 = vmatpush1.msra.mxu0 0.0
      %1539 = vmatprep.subr.mxu0 0.0
      %1540 = vmatpush1.msra.mxu0 0.0
      %1541 = vmatprep.subr.mxu0 0.0
      %1542 = vmatpush1.msra.mxu0 0.0
      %1543 = vmatprep.subr.mxu0 0.0
      %1544 = vmatpush1.msra.mxu0 0.0
      %1545 = vmatprep.subr.mxu0 0.0
      %1546 = vmatpush1.msra.mxu0 0.0
      %1547 = vmatprep.subr.mxu0 0.0
      %1548 = vmatpush1.msra.mxu0 0.0
      %1549 = vmatprep.subr.mxu0 0.0
      %1550 = vmatpush1.msra.mxu0 0.0
      %1551 = vmatprep.mubr.f32.mxu0 0.0
      %1552 = vmatmul.mubr.f32.gmra.mrb[0].mxu0 %v1458
      %v1553 = vpop.f32.mrb[0].mxu0
      %v1554 = vadd.f32 0.0, %v1553
      %v1555 = vpop.f32.mrb[0].mxu0
      %1556 = vmatprep.mubr.f32.mxu0 0.0
      %1557 = vmatmul.mubr.f32.gmra.mrb[0].mxu0 %v1461
      %v1558 = vpop.f32.mrb[0].mxu0
      %v1559 = vadd.f32 0.0, %v1558
      %v1560 = vpop.f32.mrb[0].mxu0
      %1561 = vmatprep.mubr.f32.mxu0 0.0
      %1562 = vmatmul.mubr.f32.gmra.mrb[0].mxu0 %v1464
      %v1563 = vpop.f32.mrb[0].mxu0
      %v1564 = vadd.f32 0.0, %v1563
      %v1565 = vpop.f32.mrb[0].mxu0
      %1566 = vmatprep.mubr.f32.mxu0 0.0
      %1567 = vmatmul.mubr.f32.gmra.mrb[0].mxu0 %v1467
      %v1568 = vpop.f32.mrb[0].mxu0
      %v1569 = vadd.f32 0.0, %v1568
      %v1570 = vpop.f32.mrb[0].mxu0
      %1571 = vmatprep.mubr.f32.mxu0 0.0
      %1572 = vmatmul.mubr.f32.gmra.mrb[0].mxu0 %v1470
      %v1573 = vpop.f32.mrb[0].mxu0
      %v1574 = vadd.f32 0.0, %v1573
      %v1575 = vpop.f32.mrb[0].mxu0
      %1576 = vmatprep.mubr.f32.mxu0 0.0
      %1577 = vmatmul.mubr.f32.gmra.mrb[0].mxu0 %v1473
      %v1578 = vpop.f32.mrb[0].mxu0
      %v1579 = vadd.f32 0.0, %v1578
      %v1580 = vpop.f32.mrb[0].mxu0
      %1581 = vmatprep.mubr.f32.mxu0 0.0
      %1582 = vmatmul.mubr.f32.gmra.mrb[0].mxu0 %v1476
      %v1583 = vpop.f32.mrb[0].mxu0
      %v1584 = vadd.f32 0.0, %v1583
      %v1585 = vpop.f32.mrb[0].mxu0
      %1586 = vmatprep.mubr.f32.mxu0 0.0
      %1587 = vmatmul.mubr.f32.gmra.mrb[0].mxu0 %v1479
      %v1588 = vpop.f32.mrb[0].mxu0
      %v1589 = vadd.f32 0.0, %v1588
      %v1590 = vpop.f32.mrb[0].mxu0
      %1591 = vmatprep.mubr.f32.mxu0 0.0
      %1592 = vmatmul.mubr.f32.gmra.mrb[0].mxu0 %v1482
      %v1593 = vpop.f32.mrb[0].mxu0
      %v1594 = vadd.f32 0.0, %v1593
      %v1595 = vpop.f32.mrb[0].mxu0
      %1596 = vmatprep.mubr.f32.mxu0 0.0
      %1597 = vmatmul.mubr.f32.gmra.mrb[0].mxu0 %v1485
      %v1598 = vpop.f32.mrb[0].mxu0
      %v1599 = vadd.f32 0.0, %v1598
      %v1600 = vpop.f32.mrb[0].mxu0
      %1601 = vdwg.mxu0
      %vm1602 = vcmask 7168
      %1603 = vst.msk [vmem:[%s226] sm:$0xff] %vm1602, %v1554
      %1604 = vst.msk [vmem:[%s226 + $0x8] sm:$0xff] %vm1602, %v1559
      %1605 = vst.msk [vmem:[%s226 + $0x10] sm:$0xff] %vm1602, %v1564
      %1606 = vst.msk [vmem:[%s226 + $0x18] sm:$0xff] %vm1602, %v1569
      %1607 = vst.msk [vmem:[%s226 + $0x20] sm:$0xff] %vm1602, %v1574
      %1608 = vst.msk [vmem:[%s226 + $0x28] sm:$0xff] %vm1602, %v1579
      %1609 = vst.msk [vmem:[%s226 + $0x30] sm:$0xff] %vm1602, %v1584
      %1610 = vst.msk [vmem:[%s226 + $0x38] sm:$0xff] %vm1602, %v1589
      %1611 = vst.msk [vmem:[%s226 + $0x40] sm:$0xff] %vm1602, %v1594
      %1612 = vst.msk [vmem:[%s226 + $0x48] sm:$0xff] %vm1602, %v1599
      %p1613 = scmp.lt.s32.totalorder %s18, 0
      %s1614 = scalar_select %p1613, %s18, 0
      %p1615 = scmp.lt.s32.totalorder %s19, 5
      %s1616 = scalar_select %p1615, %s19, 5
      %s1617 = smul.addr %s1616, 10
      %s1618 = smul.addr %s1614, 60
      %s1619 = sadd.s32 %s1617, %s1618
      %s1620 = smul.addr %s1619, 8
      %s1621 = scalar_lea.vmem %s3, %s1620
      // Predicated region
      $region33: #{tvsd_forward.12} parent=31 // pred_check
        %p1622 = pneg %p121
      $region34: #{tvsd_forward.12} parent=31 // pred_check_branch
        %1624 = sbr.rel (%p1622) target = $region36
      $region35: #{tvsd_forward.12} parent=31 // pred_region
        _
      $region36: #{tvsd_forward.12} parent=31 // pred_fallthru
        _
    $region32: #{tvsd_forward.12} parent=5 // pred_fallthru
      _
    %p1625 = scmp.le.s32.totalorder 2, %s9
    // Predicated region
    $region37: #{tvsd_forward.12} parent=5 // pred_check
      %p1626 = pneg %p1625
    $region38: #{tvsd_forward.12} parent=5 // pred_check_branch
      %1628 = sbr.rel (%p1626) target = $region40
    $region39: #{tvsd_forward.12} parent=5 // pred_region
      %s1629 = ssub.s32 %s9, 2
      // Predicated region
      $region41: #{tvsd_forward.12} parent=39 // pred_check
        %p1630 = pneg %p127
      $region42: #{tvsd_forward.12} parent=39 // pred_check_branch
        %1632 = sbr.rel (%p1630) target = $region44
      $region43: #{tvsd_forward.12} parent=39 // pred_region
        %p1633 = scmp.lt.s32.totalorder %s20, 0
        %s1634 = scalar_select %p1633, %s20, 0
        %p1635 = scmp.lt.s32.totalorder %s21, 5
        %s1636 = scalar_select %p1635, %s21, 5
        %s1637 = smul.addr %s1636, 10
        %s1638 = smul.addr %s1634, 60
        %s1639 = sadd.s32 %s1637, %s1638
        %s1640 = smul.addr %s1639, 8
        %s1641 = scalar_lea.vmem %s3, %s1640
      $region44: #{tvsd_forward.12} parent=39 // pred_fallthru
        _
    $region40: #{tvsd_forward.12} parent=5 // pred_fallthru
      _
  $region6: #{tvsd_forward.12} parent=0 // loop_footer
    %s13 = sadd.s32 1, %s9
  $region7: #{tvsd_forward.12} parent=0 // loop_footer_branch
    %8 = sbr.rel target = $region3
  $region8: #{tvsd_forward.12} parent=0 // loop_exit
    _

// kernel: tvsd_forward.13
$region0: #{tvsd_forward.13}
  #allocation0 [shape = 'u32[]', space=smem, size = 0x4, offset = 0x4, fixed_abs, tag = 'smem constant byte address 0x4 - core index']
  #allocation1 [shape = 'u32[144,128]{1,0:T(1,128)}', space=vmem, size = 0x12000, scoped, tag = 'internal scratch']
  %s0 = inlined_call_operand.vmem [shape: f32[3,2,16,32], index: 0, kind: input, shape index: {}]
  %s1 = inlined_call_operand.hbm [shape: f32[2,1,2], index: 1, kind: output, shape index: {}]
  %s2 = sld [smem:[#allocation0]]
  $region75: #{tvsd_forward.13} parent=0
    _
  %s4 = ssub.s32 1, %s2
  %s5 = scalar_select 0, %s4, %s2
  $region1: #{tvsd_forward.13} parent=0
    #allocation2 [shape = 'u8[49152]{0}', space=vmem, size = 0xc000, scoped, tag = 'input window, operand 0']
    #allocation3 [shape = 'u8[1024]{0}', space=vmem, size = 0x400, scoped, tag = 'output window, operand 0']
    #allocation4 [shape = 's32[2]{0}', space=sflag, size = 0x8, scoped, tag = 'scoped memory for tvsd_forward.13']
    %6 = vsyncpa [#allocation4], 0
    %s7 = scalar_lea.sflag [#allocation4], 1
    %8 = vsyncpa %s7, 0
    loop: start=0, step=1, limit=4
    $region2: #{tvsd_forward.13} parent=1 // loop_pre_header
      _
    $region3: #{tvsd_forward.13} parent=1 // loop_header
      %s10 = sphi 0, %s14
      %p11 = scmp.ge.s32.totalorder %s10, 4
      %s20 = sphi 0, %s22
      %s23 = sphi 0, %s20
      %s24 = sphi 0, %s23
      %s40 = sphi 0, %s24
      %s46 = sphi 0, %s48
      %s49 = sphi 0, %s46
      %s50 = sphi 0, %s49
      %s66 = sphi 0, %s50
    $region4: #{tvsd_forward.13} parent=1 // loop_header_branch
      %13 = sbr.rel (%p11) target = $region8
    $region5: #{tvsd_forward.13} parent=1 // loop_body
      %s15 = ssub.s32 %s10, 1
      %s16 = ssub.s32 %s10, 2
      %s17 = sadd.s32 %s10, 1
      %s18 = ssub.s32 %s10, %s17
      %p19 = scmp.eq.s32.totalorder %s18, 0
      %s21 = sadd.s32 %s20, 1
      %s22 = scalar_select %p19, %s20, %s21
      %p25 = pneg %p19
      %p26 = scmp.eq.s32.totalorder %s10, 1
      %p27 = por %p25, %p26
      %p28 = scmp.ne.s32.totalorder %s20, %s23
      %p29 = scmp.eq.s32.totalorder %s10, 0
      %p30 = por %p28, %p29
      %p31 = scmp.ne.s32.totalorder %s20, %s23
      %p32 = scmp.eq.s32.totalorder %s15, 1
      %p33 = por %p31, %p32
      %p34 = scmp.ne.s32.totalorder %s23, %s24
      %p35 = scmp.eq.s32.totalorder %s15, 0
      %p36 = por %p34, %p35
      %p37 = scmp.ne.s32.totalorder %s23, %s24
      %p38 = scmp.eq.s32.totalorder %s16, 1
      %p39 = por %p37, %p38
      %p41 = scmp.ne.s32.totalorder %s24, %s40
      %p42 = scmp.eq.s32.totalorder %s16, 0
      %p43 = por %p41, %p42
      %s44 = ssub.s32 %s10, %s17
      %p45 = scmp.eq.s32.totalorder %s44, 0
      %s47 = sadd.s32 %s46, 1
      %s48 = scalar_select %p45, %s46, %s47
      %p51 = pneg %p45
      %p52 = scmp.eq.s32.totalorder %s10, 1
      %p53 = por %p51, %p52
      %p54 = scmp.ne.s32.totalorder %s46, %s49
      %p55 = scmp.eq.s32.totalorder %s10, 0
      %p56 = por %p54, %p55
      %p57 = scmp.ne.s32.totalorder %s46, %s49
      %p58 = scmp.eq.s32.totalorder %s15, 1
      %p59 = por %p57, %p58
      %p60 = scmp.ne.s32.totalorder %s49, %s50
      %p61 = scmp.eq.s32.totalorder %s15, 0
      %p62 = por %p60, %p61
      %p63 = scmp.ne.s32.totalorder %s49, %s50
      %p64 = scmp.eq.s32.totalorder %s16, 1
      %p65 = por %p63, %p64
      %p67 = scmp.ne.s32.totalorder %s50, %s66
      %p68 = scmp.eq.s32.totalorder %s16, 0
      %p69 = por %p67, %p68
      %p70 = scmp.le.s32.totalorder 1, %s10
      %p71 = scmp.lt.s32.totalorder %s10, 3
      %p72 = pnand %p70, %p71
      %p73 = pneg %p72
      // Predicated region
      $region9: #{tvsd_forward.13} parent=5 // pred_check
        _
      $region10: #{tvsd_forward.13} parent=5 // pred_check_branch
        %75 = sbr.rel (%p72) target = $region12
      $region11: #{tvsd_forward.13} parent=5 // pred_region
        %s76 = ssub.s32 %s10, 1
      $region12: #{tvsd_forward.13} parent=5 // pred_fallthru
        _
      %p77 = scmp.lt.s32.totalorder %s10, 2
      // Predicated region
      $region13: #{tvsd_forward.13} parent=5 // pred_check
        %p78 = pneg %p77
      $region14: #{tvsd_forward.13} parent=5 // pred_check_branch
        %80 = sbr.rel (%p78) target = $region16
      $region15: #{tvsd_forward.13} parent=5 // pred_region
        // Predicated region
        $region17: #{tvsd_forward.13} parent=15 // pred_check
          %p81 = pneg %p30
        $region18: #{tvsd_forward.13} parent=15 // pred_check_branch
          %83 = sbr.rel (%p81) target = $region20
        $region19: #{tvsd_forward.13} parent=15 // pred_region
          %s84 = sand.u32 %s20, 1
          %s85 = sand.u32 %s20, 1
          %s86 = smul.addr %s85, 48
          %s87 = scalar_lea.vmem [#allocation2], %s86
          %s88 = smul.addr %s10, 2
          %s89 = smul.addr %s88, 8
          %s90 = scalar_lea.vmem %s0, %s89
          // Predicated region
          $region21: #{tvsd_forward.13} parent=19 // pred_check
            _
          $region22: #{tvsd_forward.13} parent=19 // pred_check_branch
            %92 = sbr.rel (0) target = $region24
          $region23: #{tvsd_forward.13} parent=19 // pred_region
            // Predicated region
            $region25: #{tvsd_forward.13} parent=23 // pred_check
              _
            $region26: #{tvsd_forward.13} parent=23 // pred_check_branch
              %94 = sbr.rel (0) target = $region28
            $region27: #{tvsd_forward.13} parent=23 // pred_region
              // Predicated region
              $region40: #{tvsd_forward.13} parent=27 // pred_check
                _
              $region41: #{tvsd_forward.13} parent=27 // pred_check_branch
                %119 = sbr.rel (0) target = $region43
              $region42: #{tvsd_forward.13} parent=27 // pred_region
                loop: start=0, step=1, limit=1
                $region44: #{tvsd_forward.13} parent=42 // loop_pre_header
                  _
                $region45: #{tvsd_forward.13} parent=42 // loop_header
                  %s121 = sphi 0, %s125
                  %p122 = scmp.ge.s32.totalorder %s121, 1
                  %s126 = sphi %s90, %s90
                  %s127 = sphi %s87, %s87
                $region46: #{tvsd_forward.13} parent=42 // loop_header_branch
                  %124 = sbr.rel (%p122) target = $region50
                $region47: #{tvsd_forward.13} parent=42 // loop_body
                  %v128 = vld [vmem:[%s126] sm:$0xff]
                  %129 = vst [vmem:[%s127] sm:$0xff] %v128
                  %v130 = vld [vmem:[%s126 + $0x8] sm:$0xff]
                  %131 = vst [vmem:[%s127 + $0x8] sm:$0xff] %v130
                  %v132 = vld [vmem:[%s126 + $0x20] sm:$0xff]
                  %133 = vst [vmem:[%s127 + $0x10] sm:$0xff] %v132
                  %v134 = vld [vmem:[%s126 + $0x28] sm:$0xff]
                  %135 = vst [vmem:[%s127 + $0x18] sm:$0xff] %v134
                  %v136 = vld [vmem:[%s126 + $0x40] sm:$0xff]
                  %137 = vst [vmem:[%s127 + $0x20] sm:$0xff] %v136
                  %v138 = vld [vmem:[%s126 + $0x48] sm:$0xff]
                  %139 = vst [vmem:[%s127 + $0x28] sm:$0xff] %v138
                $region48: #{tvsd_forward.13} parent=42 // loop_footer
                  %s125 = sadd.s32 1, %s121
                $region49: #{tvsd_forward.13} parent=42 // loop_footer_branch
                  %120 = sbr.rel target = $region45
                $region50: #{tvsd_forward.13} parent=42 // loop_exit
                  _
              $region43: #{tvsd_forward.13} parent=27 // pred_fallthru
                _
              // Predicated region
              $region51: #{tvsd_forward.13} parent=27 // pred_check
                _
              $region52: #{tvsd_forward.13} parent=27 // pred_check_branch
                %141 = sbr.rel target = $region54
              $region53: #{tvsd_forward.13} parent=27 // pred_region
                _
              $region54: #{tvsd_forward.13} parent=27 // pred_fallthru
                _
            $region28: #{tvsd_forward.13} parent=23 // pred_fallthru
              _
            // Predicated region
            $region29: #{tvsd_forward.13} parent=23 // pred_check
              _
            $region30: #{tvsd_forward.13} parent=23 // pred_check_branch
              %96 = sbr.rel target = $region32
            $region31: #{tvsd_forward.13} parent=23 // pred_region
              loop: start=0, step=1, limit=1
              $region33: #{tvsd_forward.13} parent=31 // loop_pre_header
                _
              $region34: #{tvsd_forward.13} parent=31 // loop_header
                %s99 = sphi 0, %s103
                %p100 = scmp.ge.s32.totalorder %s99, 1
                %s104 = sphi %s90, %s90
                %s105 = sphi %s87, %s87
              $region35: #{tvsd_forward.13} parent=31 // loop_header_branch
                %102 = sbr.rel (%p100) target = $region39
              $region36: #{tvsd_forward.13} parent=31 // loop_body
                %v106 = vld [vmem:[%s104] sm:$0xff]
                %107 = vst [vmem:[%s105] sm:$0xff] %v106
                %v108 = vld [vmem:[%s104 + $0x8] sm:$0xff]
                %109 = vst [vmem:[%s105 + $0x8] sm:$0xff] %v108
                %v110 = vld [vmem:[%s104 + $0x20] sm:$0xff]
                %111 = vst [vmem:[%s105 + $0x10] sm:$0xff] %v110
                %v112 = vld [vmem:[%s104 + $0x28] sm:$0xff]
                %113 = vst [vmem:[%s105 + $0x18] sm:$0xff] %v112
                %v114 = vld [vmem:[%s104 + $0x40] sm:$0xff]
                %115 = vst [vmem:[%s105 + $0x20] sm:$0xff] %v114
                %v116 = vld [vmem:[%s104 + $0x48] sm:$0xff]
                %117 = vst [vmem:[%s105 + $0x28] sm:$0xff] %v116
              $region37: #{tvsd_forward.13} parent=31 // loop_footer
                %s103 = sadd.s32 1, %s99
              $region38: #{tvsd_forward.13} parent=31 // loop_footer_branch
                %98 = sbr.rel target = $region34
              $region39: #{tvsd_forward.13} parent=31 // loop_exit
                _
            $region32: #{tvsd_forward.13} parent=23 // pred_fallthru
              _
          $region24: #{tvsd_forward.13} parent=19 // pred_fallthru
            _
          %142 = vnop
        $region20: #{tvsd_forward.13} parent=15 // pred_fallthru
          _
      $region16: #{tvsd_forward.13} parent=5 // pred_fallthru
        _
      %p143 = scmp.le.s32.totalorder 1, %s10
      %p144 = scmp.lt.s32.totalorder %s10, 3
      %p145 = pnand %p143, %p144
      %p146 = pneg %p145
      // Predicated region
      $region55: #{tvsd_forward.13} parent=5 // pred_check
        _
      $region56: #{tvsd_forward.13} parent=5 // pred_check_branch
        %148 = sbr.rel (%p145) target = $region58
      $region57: #{tvsd_forward.13} parent=5 // pred_region
        %s149 = ssub.s32 %s10, 1
        %s150 = sand.u32 %s23, 1
        %s151 = sand.u32 %s23, 1
        %s152 = smul.addr %s151, 48
        %s153 = scalar_lea.vmem [#allocation2], %s152
        // Predicated region
        $region59: #{tvsd_forward.13} parent=57 // pred_check
          %p154 = pneg %p36
        $region60: #{tvsd_forward.13} parent=57 // pred_check_branch
          %156 = sbr.rel (%p154) target = $region62
        $region61: #{tvsd_forward.13} parent=57 // pred_region
          _
        $region62: #{tvsd_forward.13} parent=57 // pred_fallthru
          _
        %s157 = sand.u32 %s23, 1
        %s158 = sand.u32 %s23, 1
        %s159 = smul.addr %s158, 48
        %s160 = scalar_lea.vmem [#allocation2], %s159
        %p161 = pneg %p36
        %p162 = pneg %p33
        %p163 = pneg %p62
        %p164 = pneg %p59
        %s165 = sand.u32 %s49, 1
        %s166 = scalar_lea.sflag [#allocation4], %s165
        %s167 = sand.u32 %s49, 1
        %s168 = scalar_lea.vmem [#allocation3], %s167
        %v169 = vld [vmem:[%s153] sm:$0xff]
        %v170 = vld [vmem:[%s153 + $0x8] sm:$0xff]
        %vm171 = vcmask 261120
        %v172 = vsel %vm171, %v169, 0.0
        %v173 = vsel %vm171, %v170, 0.0
        %v174 = vadd.f32 %v172, %v173
        %v175 = vrot.slane %v174, 4
        %v176 = vadd.f32 %v174, %v175
        %v177 = vrot.slane %v176, 2
        %v178 = vadd.f32 %v176, %v177
        %v179 = vrot.slane %v178, 1
        %v180 = vadd.f32 %v178, %v179
        %v181 = vrcp.pop 16.0
        %v182 = vmul.f32 %v180, %v181
        %v183 = vmul.f32 %v182, %v182
        %v184 = vsel %vm171, %v183, 0.0
        %185 = vadd.xlane.f32.xlu0 %v184
        %v186 = vpop.xlane.xlu0 %185
        %v187 = vrsqrt.pop %v186
        %v188 = vmul.f32 %v186, %v187
        %vm189 = vcmp.eq.f32.partialorder %v186, inf
        %v190 = vsel %vm189, %v186, %v188
        %vm191 = vcmp.eq.f32.partialorder %v186, 0.0
        %v192 = vand.u32 %v186, 2147483648
        %v193 = vsel %vm191, %v192, %v190
        %v194 = vmax.f32 %v193, 1e-12
        %v195 = vrcp.pop %v194
        %v196 = vmul.f32 %v182, %v195
        %s197 = scalar_lea.vmem %s153, 16 [#allocation2]
        %v198 = vld [vmem:[%s197] sm:$0xff]
        %v199 = vld [vmem:[%s197 + $0x8] sm:$0xff]
        %v200 = vsel %vm171, %v198, 0.0
        %v201 = vsel %vm171, %v199, 0.0
        %v202 = vadd.f32 %v200, %v201
        %v203 = vrot.slane %v202, 4
        %v204 = vadd.f32 %v202, %v203
        %v205 = vrot.slane %v204, 2
        %v206 = vadd.f32 %v204, %v205
        %v207 = vrot.slane %v206, 1
        %v208 = vadd.f32 %v206, %v207
        %v209 = vmul.f32 %v208, %v181
        %v210 = vmul.f32 %v209, %v209
        %v211 = vsel %vm171, %v210, 0.0
        %212 = vadd.xlane.f32.xlu0 %v211
        %v213 = vpop.xlane.xlu0 %212
        %v214 = vrsqrt.pop %v213
        %v215 = vmul.f32 %v213, %v214
        %vm216 = vcmp.eq.f32.partialorder %v213, inf
        %v217 = vsel %vm216, %v213, %v215
        %vm218 = vcmp.eq.f32.partialorder %v213, 0.0
        %v219 = vand.u32 %v213, 2147483648
        %v220 = vsel %vm218, %v219, %v217
        %v221 = vmax.f32 %v220, 1e-12
        %v222 = vrcp.pop %v221
        %v223 = vmul.f32 %v209, %v222
        %s224 = scalar_lea.vmem %s153, 32 [#allocation2]
        %v225 = vld [vmem:[%s224] sm:$0xff]
        %v226 = vld [vmem:[%s224 + $0x8] sm:$0xff]
        %v227 = vsel %vm171, %v225, 0.0
        %v228 = vsel %vm171, %v226, 0.0
        %v229 = vadd.f32 %v227, %v228
        %v230 = vrot.slane %v229, 4
        %v231 = vadd.f32 %v229, %v230
        %v232 = vrot.slane %v231, 2
        %v233 = vadd.f32 %v231, %v232
        %v234 = vrot.slane %v233, 1
        %v235 = vadd.f32 %v233, %v234
        %v236 = vmul.f32 %v235, %v181
        %v237 = vmul.f32 %v236, %v236
        %v238 = vsel %vm171, %v237, 0.0
        %239 = vadd.xlane.f32.xlu0 %v238
        %v240 = vpop.xlane.xlu0 %239
        %v241 = vrsqrt.pop %v240
        %v242 = vmul.f32 %v240, %v241
        %vm243 = vcmp.eq.f32.partialorder %v240, inf
        %v244 = vsel %vm243, %v240, %v242
        %vm245 = vcmp.eq.f32.partialorder %v240, 0.0
        %v246 = vand.u32 %v240, 2147483648
        %v247 = vsel %vm245, %v246, %v244
        %v248 = vmax.f32 %v247, 1e-12
        %v249 = vrcp.pop %v248
        %v250 = vmul.f32 %v236, %v249
        %v251 = vmul.f32 %v196, %v223
        %v252 = vsel %vm171, %v251, 0.0
        %253 = vadd.xlane.f32.xlu0 %v252
        %v254 = vpop.xlane.xlu0 %253
        %v255 = vmul.f32 %v254, 14.285714
        %vm256 = vcmask 0
        %257 = vst.msk [vmem:[%s168] sm:$0x1] %vm256, %v255
        %v258 = vmul.f32 %v196, %v250
        %v259 = vsel %vm171, %v258, 0.0
        %260 = vadd.xlane.f32.xlu0 %v259
        %v261 = vpop.xlane.xlu0 %260
        %v262 = vmul.f32 %v261, 14.285714
        %vm263 = vcmask 8200
        %264 = vst.msk [vmem:[%s168] sm:$0x1] %vm263, %v262
        %s265 = sand.u32 %s49, 1
        %s266 = scalar_lea.sflag [#allocation4], %s265
        %s267 = sand.u32 %s49, 1
        %s268 = scalar_lea.vmem [#allocation3], %s267
        // Predicated region
        $region63: #{tvsd_forward.13} parent=57 // pred_check
          %p269 = pneg %p59
        $region64: #{tvsd_forward.13} parent=57 // pred_check_branch
          %271 = sbr.rel (%p269) target = $region66
        $region65: #{tvsd_forward.13} parent=57 // pred_region
          %s273 = ssub.s32 16, 16
          %274 = vsyncadd %s266, %s273
          %s275 = smul.addr %s15, 16
          %s276 = scalar_lea.hbm %s1, %s275
          %s278 = sshll.u32 %s268, 4
          %s279 = int_to_ptr.vmem [resolvable:$true] %s278
          %281 = dma.vmem_to_hbm [thread:$0]  %s279, 16, %s276, %s266
        $region66: #{tvsd_forward.13} parent=57 // pred_fallthru
          _
      $region58: #{tvsd_forward.13} parent=5 // pred_fallthru
        _
      %p282 = scmp.le.s32.totalorder 2, %s10
      // Predicated region
      $region67: #{tvsd_forward.13} parent=5 // pred_check
        %p283 = pneg %p282
      $region68: #{tvsd_forward.13} parent=5 // pred_check_branch
        %285 = sbr.rel (%p283) target = $region70
      $region69: #{tvsd_forward.13} parent=5 // pred_region
        %s286 = ssub.s32 %s10, 2
        // Predicated region
        $region71: #{tvsd_forward.13} parent=69 // pred_check
          %p287 = pneg %p65
        $region72: #{tvsd_forward.13} parent=69 // pred_check_branch
          %289 = sbr.rel (%p287) target = $region74
        $region73: #{tvsd_forward.13} parent=69 // pred_region
          %s290 = sand.u32 %s50, 1
          %s291 = scalar_lea.sflag [#allocation4], %s290
          %s292 = sand.u32 %s50, 1
          %s293 = scalar_lea.vmem [#allocation3], %s292
          %294 = dma.done %s291, 16
        $region74: #{tvsd_forward.13} parent=69 // pred_fallthru
          _
      $region70: #{tvsd_forward.13} parent=5 // pred_fallthru
        _
    $region6: #{tvsd_forward.13} parent=1 // loop_footer
      %s14 = sadd.s32 1, %s10
    $region7: #{tvsd_forward.13} parent=1 // loop_footer_branch
      %9 = sbr.rel target = $region3
    $region8: #{tvsd_forward.13} parent=1 // loop_exit
      _
    %295 = vsyncpa [#allocation4], 1
    %s296 = scalar_lea.sflag [#allocation4], 1
    %297 = vsyncpa %s296, 1

</llo_original>
